<compile_context>
chip_gen: v7x
topology: tpu7x:2x2x1
jax: 0.10.0
libtpu: 0.0.40
codegen_flags: <defaults>
</compile_context>

<pallas_src>
import functools

import jax
import jax.numpy as jnp
from jax.experimental import pallas as pl
from jax.experimental.pallas import tpu as pltpu

KERNEL_SIZE = 4
PADDING = 1
STRIDE = 2
NEGATIVE_SLOPE = 0.2
BN_EPS = 1e-5

COMPUTE_DTYPE = jnp.bfloat16            # MXU-native operands; accumulation stays f32
VMEM_LIMIT = 32 * 1024 * 1024           # safe on v5e/v6e (128 MiB) and v7x (64 MiB)

# torchvision vgg16 .features truncated at index 27 (features[:-3]), as EncoderTL does.
VGG16_CFG = [64, 64, "M", 128, 128, "M", 256, 256, 256, "M", 512, 512, 512, "M", 512, 512]


def _round_up(v, m):
    return (v + m - 1) // m * m


# ----------------------------- Pallas kernels -----------------------------

def _apply_act(acc, act):
    if act == "relu":
        return jnp.maximum(acc, 0.0)
    if act == "leaky":
        return jnp.maximum(acc, acc * NEGATIVE_SLOPE)     # valid for slope < 1
    if act == "tanh":
        return jnp.tanh(acc)
    return acc


def _gemm_kernel(a_ref, b_ref, o_ref, *, act, bn):
    # (TM, K) bf16 @ (K, Np) bf16 on the MXU with f32 accumulation.
    acc = jnp.dot(a_ref[...], b_ref[...], preferred_element_type=jnp.float32)
    if bn:
        # fused train-mode BatchNorm2d (gamma=1, beta=0); the single M block holds every row.
        mean = jnp.mean(acc, axis=0, keepdims=True)
        var = jnp.mean(jnp.square(acc - mean), axis=0, keepdims=True)
        acc = (acc - mean) * jax.lax.rsqrt(var + BN_EPS)
    o_ref[...] = _apply_act(acc, act).astype(o_ref.dtype)


def _gemm_bias_kernel(a_ref, b_ref, bias_ref, o_ref, *, act):
    acc = jnp.dot(a_ref[...], b_ref[...], preferred_element_type=jnp.float32)
    acc = acc + bias_ref[...]
    o_ref[...] = _apply_act(acc, act).astype(o_ref.dtype)


def _conv3x3_kernel(x_ref, w_ref, bias_ref, o_ref, a_ref, *, oh, ow, act):
    """Implicit-GEMM 3x3 / stride-1 conv.

    x_ref: whole padded activation (n, oh+2, ow+2, cin) resident in VMEM.
    In-VMEM im2col into the a_ref scratch (9 windowed loads), then ONE MXU matmul with a
    fused bias + activation epilogue.  HBM traffic is just x + w + out (no patch tensor).
    """
    n, _, _, cin = x_ref.shape
    m = n * oh * ow
    for di in range(3):
        for dj in range(3):
            t = di * 3 + dj
            win = x_ref[:, pl.ds(di, oh), pl.ds(dj, ow), :]           # (n, oh, ow, cin)
            a_ref[:, t * cin:(t + 1) * cin] = win.reshape(m, cin)
    acc = jnp.dot(a_ref[...], w_ref[...], preferred_element_type=jnp.float32)
    acc = acc + bias_ref[...]
    o_ref[...] = _apply_act(acc, act).astype(o_ref.dtype)


def _bn_kernel(x_ref, o_ref):
    # (N*H*W, C_tile) block: training-mode BatchNorm2d (gamma=1, beta=0), stats in f32.
    x = x_ref[...].astype(jnp.float32)
    mean = jnp.mean(x, axis=0, keepdims=True)
    var = jnp.mean(jnp.square(x - mean), axis=0, keepdims=True)
    o_ref[...] = ((x - mean) * jax.lax.rsqrt(var + BN_EPS)).astype(o_ref.dtype)


def _pair_max_kernel(x_ref, o_ref):
    # (T, 2K) -> (T, K): elementwise max of the two lane halves (one half of a 2x2 max-pool).
    x = x_ref[...]
    k = o_ref.shape[-1]
    o_ref[...] = jnp.maximum(x[:, :k], x[:, k:])


# ----------------------------- GEMM wrappers -----------------------------

def matmul_act(a, b, bias=None, *, act="none", bn=False):
    """Grouped GEMM with fused (optional) bias, (optional) BatchNorm and activation.

    a:    (G, M, K)  bf16 activations / patches (K is always a full-dim block)
    b:    (G, K, Np) bf16 weights, Np pre-padded to a multiple of 128 at init time
    bias: (1, Np)    f32 or None
    """
    G, M, K = a.shape
    Gb, Kb, Np = b.shape
    assert Gb == G and Kb == K and Np % 128 == 0

    if M <= 1024:
        tm = M                      # single M block (every layer in this model)
    else:
        tm = M
        for t in (1024, 512, 256, 128):
            if M % t == 0:
                tm = t
                break
    if bn:
        assert G == 1 and tm == M and bias is None, "fused BN needs every row in one block"

    if bias is not None:
        kernel = functools.partial(_gemm_bias_kernel, act=act)
    else:
        kernel = functools.partial(_gemm_kernel, act=act, bn=bn)

    in_specs = [
        pl.BlockSpec((None, tm, K), lambda g, i: (g, i, 0)),
        pl.BlockSpec((None, K, Np), lambda g, i: (g, 0, 0)),
    ]
    args = [a, b]
    if bias is not None:
        in_specs.append(pl.BlockSpec((1, Np), lambda g, i: (0, 0)))
        args.append(bias)

    return pl.pallas_call(
        kernel,
        out_shape=jax.ShapeDtypeStruct((G, M, Np), COMPUTE_DTYPE),
        grid=(G, M // tm),
        in_specs=in_specs,
        out_specs=pl.BlockSpec((None, tm, Np), lambda g, i: (g, i, 0)),
        compiler_params=pltpu.CompilerParams(
            dimension_semantics=("parallel", "parallel"),
            vmem_limit_bytes=VMEM_LIMIT,
        ),
    )(*args)


def _conv3x3_implicit(xp, layer, *, act):
    """Implicit-GEMM 3x3/stride-1 conv with bias; xp is the already-padded NHWC activation."""
    n, hp, wp, cin = xp.shape
    oh, ow = hp - 2, wp - 2
    m = n * oh * ow
    K, Np = layer["w"].shape
    assert K == 9 * cin
    return pl.pallas_call(
        functools.partial(_conv3x3_kernel, oh=oh, ow=ow, act=act),
        out_shape=jax.ShapeDtypeStruct((m, Np), COMPUTE_DTYPE),
        grid=(1,),
        in_specs=[
            pl.BlockSpec((n, hp, wp, cin), lambda i: (0, 0, 0, 0)),
            pl.BlockSpec((K, Np), lambda i: (0, 0)),
            pl.BlockSpec((1, Np), lambda i: (0, 0)),
        ],
        out_specs=pl.BlockSpec((m, Np), lambda i: (0, 0)),
        scratch_shapes=[pltpu.VMEM((m, K), COMPUTE_DTYPE)],
        compiler_params=pltpu.CompilerParams(
            dimension_semantics=("arbitrary",),
            vmem_limit_bytes=VMEM_LIMIT,
        ),
    )(xp, layer["w"], layer["b"])


# ----------------------------- conv / pool / bn wrappers -----------------------------

def _im2col(x, kh, kw, stride):
    # glue: patch extraction in bf16 for the small layers only (4x4 stride-2 / 2x2 / tiny maps).
    n, h, w, c = x.shape
    oh = (h - kh) // stride + 1
    ow = (w - kw) // stride + 1
    cols = []
    for i in range(kh):
        for j in range(kw):
            cols.append(x[:, i:i + (oh - 1) * stride + 1:stride,
                          j:j + (ow - 1) * stride + 1:stride, :])
    patches = jnp.concatenate(cols, axis=-1).reshape(n * oh * ow, kh * kw * c)
    return patches, oh, ow


def conv2d(x, layer, *, cout, kh, kw, stride=1, padding=0, act="none",
           has_bias=False, bn=False):
    n, _, _, cin = x.shape
    if padding:
        x = jnp.pad(x, ((0, 0), (padding, padding), (padding, padding), (0, 0)))
    oh = (x.shape[1] - kh) // stride + 1
    ow = (x.shape[2] - kw) // stride + 1

    use_implicit = (kh == 3 and kw == 3 and stride == 1 and cin >= 8
                    and oh % 8 == 0 and has_bias and not bn)
    if use_implicit:
        y = _conv3x3_implicit(x, layer, act=act)
    else:
        patches, oh2, ow2 = _im2col(x, kh, kw, stride)
        assert (oh2, ow2) == (oh, ow)
        bias = layer["b"] if has_bias else None
        y = matmul_act(patches[None], layer["w"][None], bias, act=act, bn=bn)[0]

    if y.shape[-1] != cout:
        y = y[:, :cout]
    return y.reshape(n, oh, ow, cout)


def conv_transpose2d_s2(x, layer, *, cout, act="none"):
    """ConvTranspose2d(k=4, s=2, p=1, bias=False), parity-decomposed.

    Each output-pixel parity class (a, b) is an independent 2x2 / stride-1 conv over the
    1-padded input; the four parity GEMMs run as one grouped pallas_call and the results are
    interleaved back with a reshape + transpose.
    """
    n, h, w, cin = x.shape
    xp = jnp.pad(x, ((0, 0), (1, 1), (1, 1), (0, 0)))
    groups = []
    for a in (0, 1):
        for b in (0, 1):
            cols = [xp[:, a + da:a + da + h, b + db:b + db + w, :]
                    for da in (0, 1) for db in (0, 1)]
            groups.append(jnp.concatenate(cols, axis=-1).reshape(n * h * w, 4 * cin))
    a_grp = jnp.stack(groups, axis=0)                                  # (4, n*h*w, 4*cin)
    y = matmul_act(a_grp, layer["w"], act=act)
    y = y[:, :, :cout].reshape(2, 2, n, h, w, cout)                    # [a, b, n, r, c, co]
    y = jnp.transpose(y, (2, 3, 0, 4, 1, 5)).reshape(n, 2 * h, 2 * w, cout)
    return y


def conv_transpose2d_initial(z, layer, *, cout, act="none"):
    """ConvTranspose2d(k=4, s=1, p=0) on a 1x1 spatial map: one dense GEMM (cin -> 16*cout)."""
    n = z.shape[0]
    cin = z.shape[-1]
    a = z.reshape(n, cin)
    y = matmul_act(a[None], layer["w"][None], act=act)[0]
    return y[:, :16 * cout].reshape(n, 4, 4, cout)


def _pair_max(x2d):
    r, two_k = x2d.shape
    k = two_k // 2
    tr = 256 if (r % 256 == 0 and r > 256) else r
    return pl.pallas_call(
        _pair_max_kernel,
        out_shape=jax.ShapeDtypeStruct((r, k), x2d.dtype),
        grid=(r // tr,),
        in_specs=[pl.BlockSpec((tr, two_k), lambda i: (i, 0))],
        out_specs=pl.BlockSpec((tr, k), lambda i: (i, 0)),
        compiler_params=pltpu.CompilerParams(
            dimension_semantics=("parallel",), vmem_limit_bytes=VMEM_LIMIT),
    )(x2d)


def maxpool2x2(x):
    # 2x2/2 max-pool as two lane-halving passes over free (contiguous) reshapes.
    n, h, w, c = x.shape
    ho, wo = h // 2, w // 2
    v = _pair_max(x.reshape(n * ho, 2 * w * c))
    out = _pair_max(v.reshape(n * ho * wo, 2 * c))
    return out.reshape(n, ho, wo, c)


def batchnorm(x):
    # standalone BN used only on the decoder path (stats span the 4 ConvT parity groups).
    n, h, w, c = x.shape
    m = n * h * w
    x2 = x.reshape(m, c)
    tc = 128 if (c % 128 == 0 and c > 128) else c
    y = pl.pallas_call(
        _bn_kernel,
        out_shape=jax.ShapeDtypeStruct((m, c), x.dtype),
        grid=(c // tc,),
        in_specs=[pl.BlockSpec((m, tc), lambda i: (0, i))],
        out_specs=pl.BlockSpec((m, tc), lambda i: (0, i)),
        compiler_params=pltpu.CompilerParams(
            dimension_semantics=("parallel",), vmem_limit_bytes=VMEM_LIMIT),
    )(x2)
    return y.reshape(n, h, w, c)


# ----------------------------- parameters (arrays only; packed at init) -----------------------------

class Opt:
    img_size = 32
    z_size = 64
    in_channels = 3
    out_channels = 64
    n_extra_layers = 0
    tl = "vgg16"


def _kaiming(key, shape, fan_in):
    return jax.random.normal(key, shape, jnp.float32) * jnp.sqrt(2.0 / fan_in)


def _pack_conv(w, with_bias):
    """Conv2d weight (cout, cin, kh, kw) -> (kh*kw*cin, Np) bf16 GEMM operand (tap-major rows)."""
    cout, cin, kh, kw = w.shape
    k = kh * kw * cin
    np_ = _round_up(cout, 128)
    mat = jnp.zeros((k, np_), jnp.float32).at[:, :cout].set(
        jnp.transpose(w, (2, 3, 1, 0)).reshape(k, cout))
    layer = {"w": mat.astype(COMPUTE_DTYPE)}
    if with_bias:
        layer["b"] = jnp.zeros((1, np_), jnp.float32)   # fresh biases start at zero
    return layer


def _prep_conv(key, cout, cin, kh, kw, with_bias=True):
    return _pack_conv(_kaiming(key, (cout, cin, kh, kw), cin * kh * kw), with_bias)


def _pack_convT_pyramid(wt):
    """ConvTranspose2d(k4,s2,p1) weight (cin,cout,4,4) -> 4 parity 2x2 sub-kernels (4, 4*cin, Np)."""
    cin, cout = wt.shape[0], wt.shape[1]
    wf = jnp.transpose(wt[:, :, ::-1, ::-1], (2, 3, 0, 1))            # (kh, kw, cin, cout), flipped
    mats = [wf[a::2, b::2].reshape(4 * cin, cout) for a in (0, 1) for b in (0, 1)]
    wmat = jnp.stack(mats, axis=0)
    np_ = _round_up(cout, 128)
    if np_ != cout:
        wmat = jnp.concatenate([wmat, jnp.zeros((4, 4 * cin, np_ - cout), wmat.dtype)], axis=-1)
    return {"w": wmat.astype(COMPUTE_DTYPE)}


def _prep_convT_pyramid(key, cin, cout):
    return _pack_convT_pyramid(_kaiming(key, (cin, cout, 4, 4), cin * 16))


def _prep_convT_initial(key, cin, cout):
    """ConvTranspose2d(k4,s1,p0) on a 1x1 map == dense GEMM (cin) -> (4*4*cout)."""
    wt = _kaiming(key, (cin, cout, 4, 4), cin * 16)
    b = jnp.transpose(wt, (0, 2, 3, 1)).reshape(cin, 16 * cout)       # columns (kh, kw, cout)
    np_ = _round_up(16 * cout, 128)
    mat = jnp.zeros((cin, np_), jnp.float32).at[:, :16 * cout].set(b)
    return {"w": mat.astype(COMPUTE_DTYPE)}


def init_params(key, opt):
    keys = iter(jax.random.split(key, 64))
    params = {}

    # encoder1: vgg16 features[:28] (12 convs with bias + ReLU, 4 maxpools) + Conv2d(512, z, 2)
    enc1 = []
    cin = opt.in_channels
    for v in VGG16_CFG:
        if v == "M":
            continue
        enc1.append(_prep_conv(next(keys), v, cin, 3, 3, with_bias=True))
        cin = v
    enc1_final = _prep_conv(next(keys), opt.z_size, 512, 2, 2, with_bias=True)
    params["enc1"] = (enc1, enc1_final)

    # decoder
    out_ch = opt.out_channels // 2
    s = 4
    while s != opt.img_size:
        s *= 2
        out_ch *= 2
    dec_init = _prep_convT_initial(next(keys), opt.z_size, out_ch)
    pyr = []
    s = 4
    while s < opt.img_size // 2:
        pyr.append(_prep_convT_pyramid(next(keys), out_ch, out_ch // 2))
        out_ch //= 2
        s *= 2
    dec_final = _prep_convT_pyramid(next(keys), out_ch, opt.in_channels)
    params["dec"] = (dec_init, pyr, dec_final)

    # encoder2
    cout = opt.out_channels
    e2_first = _prep_conv(next(keys), cout, opt.in_channels, 4, 4, with_bias=False)
    e2_pyr = []
    s = opt.img_size // 2
    while s > 4:
        e2_pyr.append(_prep_conv(next(keys), cout * 2, cout, 4, 4, with_bias=False))
        cout *= 2
        s //= 2
    e2_final = _prep_conv(next(keys), opt.z_size, cout, 4, 4, with_bias=False)
    params["enc2"] = (e2_first, e2_pyr, e2_final)
    return params


# ----------------------------- forward -----------------------------

def encoder_tl_forward(params, x, opt):
    layers, final = params
    h = x
    i = 0
    for v in VGG16_CFG:
        if v == "M":
            h = maxpool2x2(h)
        else:
            h = conv2d(h, layers[i], cout=v, kh=3, kw=3, stride=1, padding=1,
                       act="relu", has_bias=True)
            i += 1
    return conv2d(h, final, cout=opt.z_size, kh=2, kw=2, stride=1, padding=0,
                  act="none", has_bias=True)


def decoder_forward(params, z, opt):
    dec_init, pyr, dec_final = params
    out_ch = opt.out_channels // 2
    s = 4
    while s != opt.img_size:
        s *= 2
        out_ch *= 2
    # nn.LeakyReLU(True): negative_slope == 1.0 == identity -> BN only after each ConvT.
    h = conv_transpose2d_initial(z, dec_init, cout=out_ch)
    h = batchnorm(h)
    for layer in pyr:
        out_ch //= 2
        h = conv_transpose2d_s2(h, layer, cout=out_ch)
        h = batchnorm(h)
    return conv_transpose2d_s2(h, dec_final, cout=opt.in_channels, act="tanh")


def encoder_forward(params, x, opt):
    first, pyr, final = params
    h = conv2d(x, first, cout=opt.out_channels, kh=4, kw=4, stride=STRIDE, padding=PADDING,
               act="leaky", has_bias=False)
    cout = opt.out_channels
    for layer in pyr:
        cout *= 2
        # Conv(bias=False) + BatchNorm + LeakyReLU fused into one GEMM epilogue.
        h = conv2d(h, layer, cout=cout, kh=4, kw=4, stride=STRIDE, padding=PADDING,
                   act="leaky", has_bias=False, bn=True)
    return conv2d(h, final, cout=opt.z_size, kh=4, kw=4, stride=1, padding=0,
                  act="none", has_bias=False)


def generator_tl_forward(params, x_nchw, *, opt):
    x = jnp.transpose(x_nchw, (0, 2, 3, 1)).astype(COMPUTE_DTYPE)     # NCHW f32 -> NHWC bf16
    z = encoder_tl_forward(params["enc1"], x, opt)
    x_prime = decoder_forward(params["dec"], z, opt)
    z_prime = encoder_forward(params["enc2"], x_prime, opt)
    to_nchw = lambda t: jnp.transpose(t, (0, 3, 1, 2)).astype(jnp.float32)
    return to_nchw(x_prime), to_nchw(z), to_nchw(z_prime)


# ----------------------------- main -----------------------------

if __name__ == "__main__":
    opt = Opt()
    key = jax.random.PRNGKey(0)
    pkey, xkey, ck0, ck1, ck2 = jax.random.split(key, 5)

    # --- numerical sanity check 1: implicit 3x3 conv vs lax reference ---
    xt = jax.random.normal(ck0, (2, 16, 16, 64), jnp.float32).astype(COMPUTE_DTYPE)
    wt = _kaiming(ck1, (64, 64, 3, 3), 64 * 9)
    lyr = _pack_conv(wt, with_bias=True)
    got = conv2d(xt, lyr, cout=64, kh=3, kw=3, stride=1, padding=1, act="none", has_bias=True)
    w_hwio = jnp.transpose(wt, (2, 3, 1, 0)).astype(COMPUTE_DTYPE).astype(jnp.float32)
    ref = jax.lax.conv_general_dilated(
        xt.astype(jnp.float32), w_hwio, window_strides=(1, 1), padding=((1, 1), (1, 1)),
        dimension_numbers=("NHWC", "HWIO", "NHWC"))
    assert jnp.allclose(got.astype(jnp.float32), ref, atol=0.05, rtol=0.05), "conv3x3 mismatch"

    # --- numerical sanity check 2: parity-decomposed ConvT(k4,s2,p1) vs lax reference ---
    xt2 = jax.random.normal(ck2, (2, 8, 8, 32), jnp.float32).astype(COMPUTE_DTYPE)
    wt2 = _kaiming(ck0, (32, 16, 4, 4), 32 * 16)                      # torch layout (cin,cout,kh,kw)
    lyrT = _pack_convT_pyramid(wt2)
    gotT = conv_transpose2d_s2(xt2, lyrT, cout=16, act="none")
    wfT = jnp.transpose(wt2[:, :, ::-1, ::-1], (2, 3, 0, 1)).astype(COMPUTE_DTYPE).astype(jnp.float32)
    refT = jax.lax.conv_general_dilated(
        xt2.astype(jnp.float32), wfT, window_strides=(1, 1), padding=((2, 2), (2, 2)),
        lhs_dilation=(2, 2), dimension_numbers=("NHWC", "HWIO", "NHWC"))
    assert refT.shape == (2, 16, 16, 16)
    assert jnp.allclose(gotT.astype(jnp.float32), refT, atol=0.05, rtol=0.05), "convT mismatch"

    # --- full GeneratorTL forward ---
    params = init_params(pkey, opt)
    x = jax.random.normal(xkey, (2, opt.in_channels, opt.img_size, opt.img_size), jnp.float32)

    fwd = jax.jit(functools.partial(generator_tl_forward, opt=opt))
    x_prime, z, z_prime = fwd(params, x)
    jax.block_until_ready((x_prime, z, z_prime))

    assert x_prime.shape == (2, opt.in_channels, opt.img_size, opt.img_size)
    assert z.shape == (2, opt.z_size, 1, 1)
    assert z_prime.shape == (2, opt.z_size, 1, 1)
    print("KERNEL_OK")
</pallas_src>

<mosaic_0001>
module attributes {stable_mosaic.version = 11 : i64} {
  func.func @_conv3x3_kernel(%arg0: i32, %arg1: memref<2x18x18x64xbf16, #tpu.memory_space<vmem>>, %arg2: memref<576x128xbf16, #tpu.memory_space<vmem>>, %arg3: memref<1x128xf32, #tpu.memory_space<vmem>>, %arg4: memref<512x128xbf16, #tpu.memory_space<vmem>>, %arg5: memref<512x576xbf16, #tpu.memory_space<vmem>>) attributes {dimension_semantics = [#tpu.dimension_semantics<arbitrary>], iteration_bounds = array<i64: 1>, scalar_prefetch = 0 : i64, scratch_operands = 1 : i64, tpu.core_type = #tpu.core_type<tc>, window_params = [{pipeline_mode = #tpu.pipeline_mode<synchronous>, transform_indices = @transform_0, window_bounds = array<i64: 2, 18, 18, 64>}, {pipeline_mode = #tpu.pipeline_mode<synchronous>, transform_indices = @transform_1, window_bounds = array<i64: 576, 128>}, {pipeline_mode = #tpu.pipeline_mode<synchronous>, transform_indices = @transform_2, window_bounds = array<i64: 1, 128>}, {pipeline_mode = #tpu.pipeline_mode<synchronous>, transform_indices = @transform_3, window_bounds = array<i64: 512, 128>}]} {
    %c0 = arith.constant 0 : index
    %c0_0 = arith.constant 0 : index
    %c0_1 = arith.constant 0 : index
    %c0_2 = arith.constant 0 : index
    %0 = vector.load %arg1[%c0, %c0_0, %c0_1, %c0_2] : memref<2x18x18x64xbf16, #tpu.memory_space<vmem>>, vector<2x16x16x64xbf16>
    %1 = vector.shape_cast %0 : vector<2x16x16x64xbf16> to vector<512x64xbf16>
    %c0_3 = arith.constant 0 : index
    %c0_4 = arith.constant 0 : index
    %2 = vector.load %arg5[%c0_3, %c0_4] : memref<512x576xbf16, #tpu.memory_space<vmem>>, vector<512x64xbf16>
    tpu.vector_store %arg5[%c0_3, %c0_4], %1 {strides = array<i32>} : memref<512x576xbf16, #tpu.memory_space<vmem>>, vector<512x64xbf16>,
    %c0_5 = arith.constant 0 : index
    %c0_6 = arith.constant 0 : index
    %c1 = arith.constant 1 : index
    %c0_7 = arith.constant 0 : index
    %3 = vector.load %arg1[%c0_5, %c0_6, %c1, %c0_7] : memref<2x18x18x64xbf16, #tpu.memory_space<vmem>>, vector<2x16x16x64xbf16>
    %4 = vector.shape_cast %3 : vector<2x16x16x64xbf16> to vector<512x64xbf16>
    %c0_8 = arith.constant 0 : index
    %c64 = arith.constant 64 : index
    %5 = vector.load %arg5[%c0_8, %c64] : memref<512x576xbf16, #tpu.memory_space<vmem>>, vector<512x64xbf16>
    tpu.vector_store %arg5[%c0_8, %c64], %4 {strides = array<i32>} : memref<512x576xbf16, #tpu.memory_space<vmem>>, vector<512x64xbf16>,
    %c0_9 = arith.constant 0 : index
    %c0_10 = arith.constant 0 : index
    %c2 = arith.constant 2 : index
    %c0_11 = arith.constant 0 : index
    %6 = vector.load %arg1[%c0_9, %c0_10, %c2, %c0_11] : memref<2x18x18x64xbf16, #tpu.memory_space<vmem>>, vector<2x16x16x64xbf16>
    %7 = vector.shape_cast %6 : vector<2x16x16x64xbf16> to vector<512x64xbf16>
    %c0_12 = arith.constant 0 : index
    %c128 = arith.constant 128 : index
    %8 = vector.load %arg5[%c0_12, %c128] : memref<512x576xbf16, #tpu.memory_space<vmem>>, vector<512x64xbf16>
    tpu.vector_store %arg5[%c0_12, %c128], %7 {strides = array<i32>} : memref<512x576xbf16, #tpu.memory_space<vmem>>, vector<512x64xbf16>,
    %c0_13 = arith.constant 0 : index
    %c1_14 = arith.constant 1 : index
    %c0_15 = arith.constant 0 : index
    %c0_16 = arith.constant 0 : index
    %9 = vector.load %arg1[%c0_13, %c1_14, %c0_15, %c0_16] : memref<2x18x18x64xbf16, #tpu.memory_space<vmem>>, vector<2x16x16x64xbf16>
    %10 = vector.shape_cast %9 : vector<2x16x16x64xbf16> to vector<512x64xbf16>
    %c0_17 = arith.constant 0 : index
    %c192 = arith.constant 192 : index
    %11 = vector.load %arg5[%c0_17, %c192] : memref<512x576xbf16, #tpu.memory_space<vmem>>, vector<512x64xbf16>
    tpu.vector_store %arg5[%c0_17, %c192], %10 {strides = array<i32>} : memref<512x576xbf16, #tpu.memory_space<vmem>>, vector<512x64xbf16>,
    %c0_18 = arith.constant 0 : index
    %c1_19 = arith.constant 1 : index
    %c1_20 = arith.constant 1 : index
    %c0_21 = arith.constant 0 : index
    %12 = vector.load %arg1[%c0_18, %c1_19, %c1_20, %c0_21] : memref<2x18x18x64xbf16, #tpu.memory_space<vmem>>, vector<2x16x16x64xbf16>
    %13 = vector.shape_cast %12 : vector<2x16x16x64xbf16> to vector<512x64xbf16>
    %c0_22 = arith.constant 0 : index
    %c256 = arith.constant 256 : index
    %14 = vector.load %arg5[%c0_22, %c256] : memref<512x576xbf16, #tpu.memory_space<vmem>>, vector<512x64xbf16>
    tpu.vector_store %arg5[%c0_22, %c256], %13 {strides = array<i32>} : memref<512x576xbf16, #tpu.memory_space<vmem>>, vector<512x64xbf16>,
    %c0_23 = arith.constant 0 : index
    %c1_24 = arith.constant 1 : index
    %c2_25 = arith.constant 2 : index
    %c0_26 = arith.constant 0 : index
    %15 = vector.load %arg1[%c0_23, %c1_24, %c2_25, %c0_26] : memref<2x18x18x64xbf16, #tpu.memory_space<vmem>>, vector<2x16x16x64xbf16>
    %16 = vector.shape_cast %15 : vector<2x16x16x64xbf16> to vector<512x64xbf16>
    %c0_27 = arith.constant 0 : index
    %c320 = arith.constant 320 : index
    %17 = vector.load %arg5[%c0_27, %c320] : memref<512x576xbf16, #tpu.memory_space<vmem>>, vector<512x64xbf16>
    tpu.vector_store %arg5[%c0_27, %c320], %16 {strides = array<i32>} : memref<512x576xbf16, #tpu.memory_space<vmem>>, vector<512x64xbf16>,
    %c0_28 = arith.constant 0 : index
    %c2_29 = arith.constant 2 : index
    %c0_30 = arith.constant 0 : index
    %c0_31 = arith.constant 0 : index
    %18 = vector.load %arg1[%c0_28, %c2_29, %c0_30, %c0_31] : memref<2x18x18x64xbf16, #tpu.memory_space<vmem>>, vector<2x16x16x64xbf16>
    %19 = vector.shape_cast %18 : vector<2x16x16x64xbf16> to vector<512x64xbf16>
    %c0_32 = arith.constant 0 : index
    %c384 = arith.constant 384 : index
    %20 = vector.load %arg5[%c0_32, %c384] : memref<512x576xbf16, #tpu.memory_space<vmem>>, vector<512x64xbf16>
    tpu.vector_store %arg5[%c0_32, %c384], %19 {strides = array<i32>} : memref<512x576xbf16, #tpu.memory_space<vmem>>, vector<512x64xbf16>,
    %c0_33 = arith.constant 0 : index
    %c2_34 = arith.constant 2 : index
    %c1_35 = arith.constant 1 : index
    %c0_36 = arith.constant 0 : index
    %21 = vector.load %arg1[%c0_33, %c2_34, %c1_35, %c0_36] : memref<2x18x18x64xbf16, #tpu.memory_space<vmem>>, vector<2x16x16x64xbf16>
    %22 = vector.shape_cast %21 : vector<2x16x16x64xbf16> to vector<512x64xbf16>
    %c0_37 = arith.constant 0 : index
    %c448 = arith.constant 448 : index
    %23 = vector.load %arg5[%c0_37, %c448] : memref<512x576xbf16, #tpu.memory_space<vmem>>, vector<512x64xbf16>
    tpu.vector_store %arg5[%c0_37, %c448], %22 {strides = array<i32>} : memref<512x576xbf16, #tpu.memory_space<vmem>>, vector<512x64xbf16>,
    %c0_38 = arith.constant 0 : index
    %c2_39 = arith.constant 2 : index
    %c2_40 = arith.constant 2 : index
    %c0_41 = arith.constant 0 : index
    %24 = vector.load %arg1[%c0_38, %c2_39, %c2_40, %c0_41] : memref<2x18x18x64xbf16, #tpu.memory_space<vmem>>, vector<2x16x16x64xbf16>
    %25 = vector.shape_cast %24 : vector<2x16x16x64xbf16> to vector<512x64xbf16>
    %c0_42 = arith.constant 0 : index
    %c512 = arith.constant 512 : index
    %26 = vector.load %arg5[%c0_42, %c512] : memref<512x576xbf16, #tpu.memory_space<vmem>>, vector<512x64xbf16>
    tpu.vector_store %arg5[%c0_42, %c512], %25 {strides = array<i32>} : memref<512x576xbf16, #tpu.memory_space<vmem>>, vector<512x64xbf16>,
    %c0_43 = arith.constant 0 : index
    %c0_44 = arith.constant 0 : index
    %27 = vector.load %arg5[%c0_43, %c0_44] : memref<512x576xbf16, #tpu.memory_space<vmem>>, vector<512x576xbf16>
    %c0_45 = arith.constant 0 : index
    %c0_46 = arith.constant 0 : index
    %28 = vector.load %arg2[%c0_45, %c0_46] : memref<576x128xbf16, #tpu.memory_space<vmem>>, vector<576x128xbf16>
    %cst = arith.constant dense<0.000000e+00> : vector<512x128xf32>
    %29 = tpu.matmul %27, %28, %cst {dimension_numbers = #tpu.dot_dimension_numbers<[1], [0], [0], [1], [0, 0, 1, 1], [], []>} : vector<512x576xbf16>, vector<576x128xbf16>, vector<512x128xf32> -> vector<512x128xf32>
    %c0_47 = arith.constant 0 : index
    %c0_48 = arith.constant 0 : index
    %30 = vector.load %arg3[%c0_47, %c0_48] : memref<1x128xf32, #tpu.memory_space<vmem>>, vector<1x128xf32>
    %31 = vector.broadcast %30 : vector<1x128xf32> to vector<512x128xf32>
    %32 = arith.addf %29, %31 : vector<512x128xf32>
    %33 = arith.truncf %32 : vector<512x128xf32> to vector<512x128xbf16>
    %c0_49 = arith.constant 0 : index
    %c0_50 = arith.constant 0 : index
    %34 = vector.load %arg4[%c0_49, %c0_50] : memref<512x128xbf16, #tpu.memory_space<vmem>>, vector<512x128xbf16>
    tpu.vector_store %arg4[%c0_49, %c0_50], %33 {strides = array<i32>} : memref<512x128xbf16, #tpu.memory_space<vmem>>, vector<512x128xbf16>,
    return
  }
  func.func @transform_0(%arg0: i32) -> (i32, i32, i32, i32) {
    %c0_i32 = arith.constant 0 : i32
    %c0_i32_0 = arith.constant 0 : i32
    %c0_i32_1 = arith.constant 0 : i32
    %c0_i32_2 = arith.constant 0 : i32
    %c0_i32_3 = arith.constant 0 : i32
    return %c0_i32, %c0_i32_0, %c0_i32_1, %c0_i32_2 : i32, i32, i32, i32
  }
  func.func @transform_1(%arg0: i32) -> (i32, i32) {
    %c0_i32 = arith.constant 0 : i32
    %c0_i32_0 = arith.constant 0 : i32
    %c0_i32_1 = arith.constant 0 : i32
    return %c0_i32, %c0_i32_0 : i32, i32
  }
  func.func @transform_2(%arg0: i32) -> (i32, i32) {
    %c0_i32 = arith.constant 0 : i32
    %c0_i32_0 = arith.constant 0 : i32
    %c0_i32_1 = arith.constant 0 : i32
    return %c0_i32, %c0_i32_0 : i32, i32
  }
  func.func @transform_3(%arg0: i32) -> (i32, i32) {
    %c0_i32 = arith.constant 0 : i32
    %c0_i32_0 = arith.constant 0 : i32
    %c0_i32_1 = arith.constant 0 : i32
    return %c0_i32, %c0_i32_0 : i32, i32
  }
}

</mosaic_0001>

<llo_original>
// kernel: tpu_custom_call.1
$region0: #{tpu_custom_call.1}
  #allocation0 [shape = 'u32[]', space=smem, size = 0x4, offset = 0x4, fixed_abs, tag = 'smem constant byte address 0x4 - core index']
  #allocation1 [shape = 'u32[144,128]{1,0:T(1,128)}', space=vmem, size = 0x12000, scoped, tag = 'internal scratch']
  #allocation2 [shape = 'bf16[512,576]{1,0:T(16,128)(2,1)}', space=vmem, size = 0xa0000, scoped, tag = 'scratch operand']
  %s0 = inlined_call_operand.vmem [shape: bf16[2,18,18,64], index: 0, kind: input, shape index: {}]
  %s1 = inlined_call_operand.vmem [shape: bf16[576,128], index: 1, kind: input, shape index: {}]
  %s2 = inlined_call_operand.vmem [shape: f32[1,128], index: 2, kind: input, shape index: {}]
  %s3 = inlined_call_operand.hbm [shape: bf16[512,128], index: 3, kind: output, shape index: {}]
  %s4 = sld [smem:[#allocation0]]
  $region22: #{tpu_custom_call.1} parent=0
    _
  %s6 = ssub.s32 1, %s4
  %s7 = scalar_select 0, %s6, %s4
  $region1: #{tpu_custom_call.1} parent=0
    #allocation3 [shape = 'u8[131072]{0}', space=vmem, size = 0x20000, scoped, tag = 'output window, operand 0, single buffered']
    #allocation4 [shape = 's32[1]{0}', space=sflag, size = 0x4, scoped, tag = 'scoped memory for tpu_custom_call.1']
    %8 = vsyncpa [#allocation4], 0
    // Predicated region
    $region2: #{tpu_custom_call.1} parent=1 // pred_check
      _
    $region3: #{tpu_custom_call.1} parent=1 // pred_check_branch
      %10 = sbr.rel (0) target = $region5
    $region4: #{tpu_custom_call.1} parent=1 // pred_region
      _
    $region5: #{tpu_custom_call.1} parent=1 // pred_fallthru
      _
    // Predicated region
    $region6: #{tpu_custom_call.1} parent=1 // pred_check
      _
    $region7: #{tpu_custom_call.1} parent=1 // pred_check_branch
      %12 = sbr.rel (0) target = $region9
    $region8: #{tpu_custom_call.1} parent=1 // pred_region
      _
    $region9: #{tpu_custom_call.1} parent=1 // pred_fallthru
      _
    // Predicated region
    $region10: #{tpu_custom_call.1} parent=1 // pred_check
      _
    $region11: #{tpu_custom_call.1} parent=1 // pred_check_branch
      %14 = sbr.rel (0) target = $region13
    $region12: #{tpu_custom_call.1} parent=1 // pred_region
      _
    $region13: #{tpu_custom_call.1} parent=1 // pred_fallthru
      _
    %v16 = vld [vmem:[%s0] sm:$0xf]
    %v17 = vld [vmem:[%s0 + $0x4] sm:$0xf]
    %v18 = vld [vmem:[%s0 + $0xc] sm:$0xf]
    %v19 = vld [vmem:[%s0 + $0x10] sm:$0xf]
    %v20 = vld [vmem:[%s0 + $0x18] sm:$0xf]
    %v21 = vld [vmem:[%s0 + $0x1c] sm:$0xf]
    %v22 = vld [vmem:[%s0 + $0x24] sm:$0xf]
    %v23 = vld [vmem:[%s0 + $0x28] sm:$0xf]
    %v24 = vld [vmem:[%s0 + $0x30] sm:$0xf]
    %v25 = vld [vmem:[%s0 + $0x34] sm:$0xf]
    %v26 = vld [vmem:[%s0 + $0x3c] sm:$0xf]
    %v27 = vld [vmem:[%s0 + $0x40] sm:$0xf]
    %v28 = vld [vmem:[%s0 + $0x48] sm:$0xf]
    %v29 = vld [vmem:[%s0 + $0x4c] sm:$0xf]
    %v30 = vld [vmem:[%s0 + $0x54] sm:$0xf]
    %v31 = vld [vmem:[%s0 + $0x58] sm:$0xf]
    %v32 = vld [vmem:[%s0 + $0x60] sm:$0xf]
    %v33 = vld [vmem:[%s0 + $0x64] sm:$0xf]
    %v34 = vld [vmem:[%s0 + $0x6c] sm:$0xf]
    %v35 = vld [vmem:[%s0 + $0x70] sm:$0xf]
    %v36 = vld [vmem:[%s0 + $0x78] sm:$0xf]
    %v37 = vld [vmem:[%s0 + $0x7c] sm:$0xf]
    %v38 = vld [vmem:[%s0 + $0x84] sm:$0xf]
    %v39 = vld [vmem:[%s0 + $0x88] sm:$0xf]
    %v40 = vld [vmem:[%s0 + $0x90] sm:$0xf]
    %v41 = vld [vmem:[%s0 + $0x94] sm:$0xf]
    %v42 = vld [vmem:[%s0 + $0x9c] sm:$0xf]
    %v43 = vld [vmem:[%s0 + $0xa0] sm:$0xf]
    %v44 = vld [vmem:[%s0 + $0xa8] sm:$0xf]
    %v45 = vld [vmem:[%s0 + $0xac] sm:$0xf]
    %v46 = vld [vmem:[%s0 + $0xb4] sm:$0xf]
    %v47 = vld [vmem:[%s0 + $0xb8] sm:$0xf]
    %v48 = vld [vmem:[%s0 + $0xd8] sm:$0xf]
    %v49 = vld [vmem:[%s0 + $0xdc] sm:$0xf]
    %v50 = vld [vmem:[%s0 + $0xe4] sm:$0xf]
    %v51 = vld [vmem:[%s0 + $0xe8] sm:$0xf]
    %v52 = vld [vmem:[%s0 + $0xf0] sm:$0xf]
    %v53 = vld [vmem:[%s0 + $0xf4] sm:$0xf]
    %v54 = vld [vmem:[%s0 + $0xfc] sm:$0xf]
    %v55 = vld [vmem:[%s0 + $0x100] sm:$0xf]
    %v56 = vld [vmem:[%s0 + $0x108] sm:$0xf]
    %v57 = vld [vmem:[%s0 + $0x10c] sm:$0xf]
    %v58 = vld [vmem:[%s0 + $0x114] sm:$0xf]
    %v59 = vld [vmem:[%s0 + $0x118] sm:$0xf]
    %v60 = vld [vmem:[%s0 + $0x120] sm:$0xf]
    %v61 = vld [vmem:[%s0 + $0x124] sm:$0xf]
    %v62 = vld [vmem:[%s0 + $0x12c] sm:$0xf]
    %v63 = vld [vmem:[%s0 + $0x130] sm:$0xf]
    %v64 = vld [vmem:[%s0 + $0x138] sm:$0xf]
    %v65 = vld [vmem:[%s0 + $0x13c] sm:$0xf]
    %v66 = vld [vmem:[%s0 + $0x144] sm:$0xf]
    %v67 = vld [vmem:[%s0 + $0x148] sm:$0xf]
    %v68 = vld [vmem:[%s0 + $0x150] sm:$0xf]
    %v69 = vld [vmem:[%s0 + $0x154] sm:$0xf]
    %v70 = vld [vmem:[%s0 + $0x15c] sm:$0xf]
    %v71 = vld [vmem:[%s0 + $0x160] sm:$0xf]
    %v72 = vld [vmem:[%s0 + $0x168] sm:$0xf]
    %v73 = vld [vmem:[%s0 + $0x16c] sm:$0xf]
    %v74 = vld [vmem:[%s0 + $0x174] sm:$0xf]
    %v75 = vld [vmem:[%s0 + $0x178] sm:$0xf]
    %v76 = vld [vmem:[%s0 + $0x180] sm:$0xf]
    %v77 = vld [vmem:[%s0 + $0x184] sm:$0xf]
    %v78 = vld [vmem:[%s0 + $0x18c] sm:$0xf]
    %v79 = vld [vmem:[%s0 + $0x190] sm:$0xf]
    %v144 = vunpack.c.l.b16 %v16
    %v145 = vunpack.c.l.b16 %v17
    %v146 = vunpack.c.l.b16 %v18
    %v147 = vunpack.c.l.b16 %v19
    %v148 = vunpack.c.l.b16 %v20
    %v149 = vunpack.c.l.b16 %v21
    %v150 = vunpack.c.l.b16 %v22
    %v151 = vunpack.c.l.b16 %v23
    %v152 = vunpack.c.l.b16 %v24
    %v153 = vunpack.c.l.b16 %v25
    %v154 = vunpack.c.l.b16 %v26
    %v155 = vunpack.c.l.b16 %v27
    %v156 = vunpack.c.l.b16 %v28
    %v157 = vunpack.c.l.b16 %v29
    %v158 = vunpack.c.l.b16 %v30
    %v159 = vunpack.c.l.b16 %v31
    %v160 = vunpack.c.l.b16 %v32
    %v161 = vunpack.c.l.b16 %v33
    %v162 = vunpack.c.l.b16 %v34
    %v163 = vunpack.c.l.b16 %v35
    %v164 = vunpack.c.l.b16 %v36
    %v165 = vunpack.c.l.b16 %v37
    %v166 = vunpack.c.l.b16 %v38
    %v167 = vunpack.c.l.b16 %v39
    %v168 = vunpack.c.l.b16 %v40
    %v169 = vunpack.c.l.b16 %v41
    %v170 = vunpack.c.l.b16 %v42
    %v171 = vunpack.c.l.b16 %v43
    %v172 = vunpack.c.l.b16 %v44
    %v173 = vunpack.c.l.b16 %v45
    %v174 = vunpack.c.l.b16 %v46
    %v175 = vunpack.c.l.b16 %v47
    %v176 = vunpack.c.l.b16 %v48
    %v177 = vunpack.c.l.b16 %v49
    %v178 = vunpack.c.l.b16 %v50
    %v179 = vunpack.c.l.b16 %v51
    %v180 = vunpack.c.l.b16 %v52
    %v181 = vunpack.c.l.b16 %v53
    %v182 = vunpack.c.l.b16 %v54
    %v183 = vunpack.c.l.b16 %v55
    %v184 = vunpack.c.l.b16 %v56
    %v185 = vunpack.c.l.b16 %v57
    %v186 = vunpack.c.l.b16 %v58
    %v187 = vunpack.c.l.b16 %v59
    %v188 = vunpack.c.l.b16 %v60
    %v189 = vunpack.c.l.b16 %v61
    %v190 = vunpack.c.l.b16 %v62
    %v191 = vunpack.c.l.b16 %v63
    %v192 = vunpack.c.l.b16 %v64
    %v193 = vunpack.c.l.b16 %v65
    %v194 = vunpack.c.l.b16 %v66
    %v195 = vunpack.c.l.b16 %v67
    %v196 = vunpack.c.l.b16 %v68
    %v197 = vunpack.c.l.b16 %v69
    %v198 = vunpack.c.l.b16 %v70
    %v199 = vunpack.c.l.b16 %v71
    %v200 = vunpack.c.l.b16 %v72
    %v201 = vunpack.c.l.b16 %v73
    %v202 = vunpack.c.l.b16 %v74
    %v203 = vunpack.c.l.b16 %v75
    %v204 = vunpack.c.l.b16 %v76
    %v205 = vunpack.c.l.b16 %v77
    %v206 = vunpack.c.l.b16 %v78
    %v207 = vunpack.c.l.b16 %v79
    %v208 = vpack.c.b16 %v145, %v144
    %v209 = vpack.c.b16 %v147, %v146
    %v210 = vpack.c.b16 %v149, %v148
    %v211 = vpack.c.b16 %v151, %v150
    %v212 = vpack.c.b16 %v153, %v152
    %v213 = vpack.c.b16 %v155, %v154
    %v214 = vpack.c.b16 %v157, %v156
    %v215 = vpack.c.b16 %v159, %v158
    %v216 = vpack.c.b16 %v161, %v160
    %v217 = vpack.c.b16 %v163, %v162
    %v218 = vpack.c.b16 %v165, %v164
    %v219 = vpack.c.b16 %v167, %v166
    %v220 = vpack.c.b16 %v169, %v168
    %v221 = vpack.c.b16 %v171, %v170
    %v222 = vpack.c.b16 %v173, %v172
    %v223 = vpack.c.b16 %v175, %v174
    %v224 = vpack.c.b16 %v177, %v176
    %v225 = vpack.c.b16 %v179, %v178
    %v226 = vpack.c.b16 %v181, %v180
    %v227 = vpack.c.b16 %v183, %v182
    %v228 = vpack.c.b16 %v185, %v184
    %v229 = vpack.c.b16 %v187, %v186
    %v230 = vpack.c.b16 %v189, %v188
    %v231 = vpack.c.b16 %v191, %v190
    %v232 = vpack.c.b16 %v193, %v192
    %v233 = vpack.c.b16 %v195, %v194
    %v234 = vpack.c.b16 %v197, %v196
    %v235 = vpack.c.b16 %v199, %v198
    %v236 = vpack.c.b16 %v201, %v200
    %v237 = vpack.c.b16 %v203, %v202
    %v238 = vpack.c.b16 %v205, %v204
    %v239 = vpack.c.b16 %v207, %v206
    %vm272 = vcmask 523264
    %273 = vst.msk [vmem:[#allocation2] sm:$0xff] %vm272, %v208
    %274 = vst.msk [vmem:[#allocation2 + $0x28] sm:$0xff] %vm272, %v209
    %275 = vst.msk [vmem:[#allocation2 + $0x50] sm:$0xff] %vm272, %v210
    %276 = vst.msk [vmem:[#allocation2 + $0x78] sm:$0xff] %vm272, %v211
    %277 = vst.msk [vmem:[#allocation2 + $0xa0] sm:$0xff] %vm272, %v212
    %278 = vst.msk [vmem:[#allocation2 + $0xc8] sm:$0xff] %vm272, %v213
    %279 = vst.msk [vmem:[#allocation2 + $0xf0] sm:$0xff] %vm272, %v214
    %280 = vst.msk [vmem:[#allocation2 + $0x118] sm:$0xff] %vm272, %v215
    %281 = vst.msk [vmem:[#allocation2 + $0x140] sm:$0xff] %vm272, %v216
    %282 = vst.msk [vmem:[#allocation2 + $0x168] sm:$0xff] %vm272, %v217
    %283 = vst.msk [vmem:[#allocation2 + $0x190] sm:$0xff] %vm272, %v218
    %284 = vst.msk [vmem:[#allocation2 + $0x1b8] sm:$0xff] %vm272, %v219
    %285 = vst.msk [vmem:[#allocation2 + $0x1e0] sm:$0xff] %vm272, %v220
    %286 = vst.msk [vmem:[#allocation2 + $0x208] sm:$0xff] %vm272, %v221
    %287 = vst.msk [vmem:[#allocation2 + $0x230] sm:$0xff] %vm272, %v222
    %288 = vst.msk [vmem:[#allocation2 + $0x258] sm:$0xff] %vm272, %v223
    %289 = vst.msk [vmem:[#allocation2 + $0x280] sm:$0xff] %vm272, %v224
    %290 = vst.msk [vmem:[#allocation2 + $0x2a8] sm:$0xff] %vm272, %v225
    %291 = vst.msk [vmem:[#allocation2 + $0x2d0] sm:$0xff] %vm272, %v226
    %292 = vst.msk [vmem:[#allocation2 + $0x2f8] sm:$0xff] %vm272, %v227
    %293 = vst.msk [vmem:[#allocation2 + $0x320] sm:$0xff] %vm272, %v228
    %294 = vst.msk [vmem:[#allocation2 + $0x348] sm:$0xff] %vm272, %v229
    %295 = vst.msk [vmem:[#allocation2 + $0x370] sm:$0xff] %vm272, %v230
    %296 = vst.msk [vmem:[#allocation2 + $0x398] sm:$0xff] %vm272, %v231
    %297 = vst.msk [vmem:[#allocation2 + $0x3c0] sm:$0xff] %vm272, %v232
    %298 = vst.msk [vmem:[#allocation2 + $0x3e8] sm:$0xff] %vm272, %v233
    %299 = vst.msk [vmem:[#allocation2 + $0x410] sm:$0xff] %vm272, %v234
    %300 = vst.msk [vmem:[#allocation2 + $0x438] sm:$0xff] %vm272, %v235
    %301 = vst.msk [vmem:[#allocation2 + $0x460] sm:$0xff] %vm272, %v236
    %302 = vst.msk [vmem:[#allocation2 + $0x488] sm:$0xff] %vm272, %v237
    %303 = vst.msk [vmem:[#allocation2 + $0x4b0] sm:$0xff] %vm272, %v238
    %304 = vst.msk [vmem:[#allocation2 + $0x4d8] sm:$0xff] %vm272, %v239
    %v305 = vld [vmem:[%s0] sm:$0xf]
    %v306 = vld [vmem:[%s0 + $0x4] sm:$0xf]
    %v307 = vld [vmem:[%s0 + $0x8] sm:$0x1]
    %v308 = vld [vmem:[%s0 + $0xc] sm:$0xf]
    %v309 = vld [vmem:[%s0 + $0x10] sm:$0xf]
    %v310 = vld [vmem:[%s0 + $0x14] sm:$0x1]
    %v311 = vld [vmem:[%s0 + $0x18] sm:$0xf]
    %v312 = vld [vmem:[%s0 + $0x1c] sm:$0xf]
    %v313 = vld [vmem:[%s0 + $0x20] sm:$0x1]
    %v314 = vld [vmem:[%s0 + $0x24] sm:$0xf]
    %v315 = vld [vmem:[%s0 + $0x28] sm:$0xf]
    %v316 = vld [vmem:[%s0 + $0x2c] sm:$0x1]
    %v317 = vld [vmem:[%s0 + $0x30] sm:$0xf]
    %v318 = vld [vmem:[%s0 + $0x34] sm:$0xf]
    %v319 = vld [vmem:[%s0 + $0x38] sm:$0x1]
    %v320 = vld [vmem:[%s0 + $0x3c] sm:$0xf]
    %v321 = vld [vmem:[%s0 + $0x40] sm:$0xf]
    %v322 = vld [vmem:[%s0 + $0x44] sm:$0x1]
    %v323 = vld [vmem:[%s0 + $0x48] sm:$0xf]
    %v324 = vld [vmem:[%s0 + $0x4c] sm:$0xf]
    %v325 = vld [vmem:[%s0 + $0x50] sm:$0x1]
    %v326 = vld [vmem:[%s0 + $0x54] sm:$0xf]
    %v327 = vld [vmem:[%s0 + $0x58] sm:$0xf]
    %v328 = vld [vmem:[%s0 + $0x5c] sm:$0x1]
    %v329 = vld [vmem:[%s0 + $0x60] sm:$0xf]
    %v330 = vld [vmem:[%s0 + $0x64] sm:$0xf]
    %v331 = vld [vmem:[%s0 + $0x68] sm:$0x1]
    %v332 = vld [vmem:[%s0 + $0x6c] sm:$0xf]
    %v333 = vld [vmem:[%s0 + $0x70] sm:$0xf]
    %v334 = vld [vmem:[%s0 + $0x74] sm:$0x1]
    %v335 = vld [vmem:[%s0 + $0x78] sm:$0xf]
    %v336 = vld [vmem:[%s0 + $0x7c] sm:$0xf]
    %v337 = vld [vmem:[%s0 + $0x80] sm:$0x1]
    %v338 = vld [vmem:[%s0 + $0x84] sm:$0xf]
    %v339 = vld [vmem:[%s0 + $0x88] sm:$0xf]
    %v340 = vld [vmem:[%s0 + $0x8c] sm:$0x1]
    %v341 = vld [vmem:[%s0 + $0x90] sm:$0xf]
    %v342 = vld [vmem:[%s0 + $0x94] sm:$0xf]
    %v343 = vld [vmem:[%s0 + $0x98] sm:$0x1]
    %v344 = vld [vmem:[%s0 + $0x9c] sm:$0xf]
    %v345 = vld [vmem:[%s0 + $0xa0] sm:$0xf]
    %v346 = vld [vmem:[%s0 + $0xa4] sm:$0x1]
    %v347 = vld [vmem:[%s0 + $0xa8] sm:$0xf]
    %v348 = vld [vmem:[%s0 + $0xac] sm:$0xf]
    %v349 = vld [vmem:[%s0 + $0xb0] sm:$0x1]
    %v350 = vld [vmem:[%s0 + $0xb4] sm:$0xf]
    %v351 = vld [vmem:[%s0 + $0xb8] sm:$0xf]
    %v352 = vld [vmem:[%s0 + $0xbc] sm:$0x1]
    %v353 = vld [vmem:[%s0 + $0xd8] sm:$0xf]
    %v354 = vld [vmem:[%s0 + $0xdc] sm:$0xf]
    %v355 = vld [vmem:[%s0 + $0xe0] sm:$0x1]
    %v356 = vld [vmem:[%s0 + $0xe4] sm:$0xf]
    %v357 = vld [vmem:[%s0 + $0xe8] sm:$0xf]
    %v358 = vld [vmem:[%s0 + $0xec] sm:$0x1]
    %v359 = vld [vmem:[%s0 + $0xf0] sm:$0xf]
    %v360 = vld [vmem:[%s0 + $0xf4] sm:$0xf]
    %v361 = vld [vmem:[%s0 + $0xf8] sm:$0x1]
    %v362 = vld [vmem:[%s0 + $0xfc] sm:$0xf]
    %v363 = vld [vmem:[%s0 + $0x100] sm:$0xf]
    %v364 = vld [vmem:[%s0 + $0x104] sm:$0x1]
    %v365 = vld [vmem:[%s0 + $0x108] sm:$0xf]
    %v366 = vld [vmem:[%s0 + $0x10c] sm:$0xf]
    %v367 = vld [vmem:[%s0 + $0x110] sm:$0x1]
    %v368 = vld [vmem:[%s0 + $0x114] sm:$0xf]
    %v369 = vld [vmem:[%s0 + $0x118] sm:$0xf]
    %v370 = vld [vmem:[%s0 + $0x11c] sm:$0x1]
    %v371 = vld [vmem:[%s0 + $0x120] sm:$0xf]
    %v372 = vld [vmem:[%s0 + $0x124] sm:$0xf]
    %v373 = vld [vmem:[%s0 + $0x128] sm:$0x1]
    %v374 = vld [vmem:[%s0 + $0x12c] sm:$0xf]
    %v375 = vld [vmem:[%s0 + $0x130] sm:$0xf]
    %v376 = vld [vmem:[%s0 + $0x134] sm:$0x1]
    %v377 = vld [vmem:[%s0 + $0x138] sm:$0xf]
    %v378 = vld [vmem:[%s0 + $0x13c] sm:$0xf]
    %v379 = vld [vmem:[%s0 + $0x140] sm:$0x1]
    %v380 = vld [vmem:[%s0 + $0x144] sm:$0xf]
    %v381 = vld [vmem:[%s0 + $0x148] sm:$0xf]
    %v382 = vld [vmem:[%s0 + $0x14c] sm:$0x1]
    %v383 = vld [vmem:[%s0 + $0x150] sm:$0xf]
    %v384 = vld [vmem:[%s0 + $0x154] sm:$0xf]
    %v385 = vld [vmem:[%s0 + $0x158] sm:$0x1]
    %v386 = vld [vmem:[%s0 + $0x15c] sm:$0xf]
    %v387 = vld [vmem:[%s0 + $0x160] sm:$0xf]
    %v388 = vld [vmem:[%s0 + $0x164] sm:$0x1]
    %v389 = vld [vmem:[%s0 + $0x168] sm:$0xf]
    %v390 = vld [vmem:[%s0 + $0x16c] sm:$0xf]
    %v391 = vld [vmem:[%s0 + $0x170] sm:$0x1]
    %v392 = vld [vmem:[%s0 + $0x174] sm:$0xf]
    %v393 = vld [vmem:[%s0 + $0x178] sm:$0xf]
    %v394 = vld [vmem:[%s0 + $0x17c] sm:$0x1]
    %v395 = vld [vmem:[%s0 + $0x180] sm:$0xf]
    %v396 = vld [vmem:[%s0 + $0x184] sm:$0xf]
    %v397 = vld [vmem:[%s0 + $0x188] sm:$0x1]
    %v398 = vld [vmem:[%s0 + $0x18c] sm:$0xf]
    %v399 = vld [vmem:[%s0 + $0x190] sm:$0xf]
    %v400 = vld [vmem:[%s0 + $0x194] sm:$0x1]
    %vm401 = vsmask.f32 3328
    %vm402 = vsmask.f32 7440
    %vm403 = vmor %vm401, %vm402
    %v405 = vshrl.u32 %v305, 16
    %v407 = vrot.slane %v405, 4
    %v408 = vshll.u32 %v305, 16
    %v410 = vrot.slane %v408, 5
    %v411 = vor.u32 %v407, %v410
    %v412 = vrot.slane %v411, 4
    %v414 = vshll.u32 %v306, 16
    %v416 = vrot.slane %v414, 5
    %v417 = vsel %vm403, %v412, %v416
    %v418 = vshrl.u32 %v306, 16
    %v420 = vrot.slane %v418, 4
    %v421 = vor.u32 %v420, %v416
    %v422 = vrot.slane %v421, 4
    %v424 = vshll.u32 %v307, 16
    %v426 = vrot.slane %v424, 5
    %v427 = vsel %vm403, %v422, %v426
    %v429 = vshrl.u32 %v308, 16
    %v431 = vrot.slane %v429, 4
    %v432 = vshll.u32 %v308, 16
    %v434 = vrot.slane %v432, 5
    %v435 = vor.u32 %v431, %v434
    %v436 = vrot.slane %v435, 4
    %v438 = vshll.u32 %v309, 16
    %v440 = vrot.slane %v438, 5
    %v441 = vsel %vm403, %v436, %v440
    %v442 = vshrl.u32 %v309, 16
    %v444 = vrot.slane %v442, 4
    %v445 = vor.u32 %v444, %v440
    %v446 = vrot.slane %v445, 4
    %v448 = vshll.u32 %v310, 16
    %v450 = vrot.slane %v448, 5
    %v451 = vsel %vm403, %v446, %v450
    %v453 = vshrl.u32 %v311, 16
    %v455 = vrot.slane %v453, 4
    %v456 = vshll.u32 %v311, 16
    %v458 = vrot.slane %v456, 5
    %v459 = vor.u32 %v455, %v458
    %v460 = vrot.slane %v459, 4
    %v462 = vshll.u32 %v312, 16
    %v464 = vrot.slane %v462, 5
    %v465 = vsel %vm403, %v460, %v464
    %v466 = vshrl.u32 %v312, 16
    %v468 = vrot.slane %v466, 4
    %v469 = vor.u32 %v468, %v464
    %v470 = vrot.slane %v469, 4
    %v472 = vshll.u32 %v313, 16
    %v474 = vrot.slane %v472, 5
    %v475 = vsel %vm403, %v470, %v474
    %v477 = vshrl.u32 %v314, 16
    %v479 = vrot.slane %v477, 4
    %v480 = vshll.u32 %v314, 16
    %v482 = vrot.slane %v480, 5
    %v483 = vor.u32 %v479, %v482
    %v484 = vrot.slane %v483, 4
    %v486 = vshll.u32 %v315, 16
    %v488 = vrot.slane %v486, 5
    %v489 = vsel %vm403, %v484, %v488
    %v490 = vshrl.u32 %v315, 16
    %v492 = vrot.slane %v490, 4
    %v493 = vor.u32 %v492, %v488
    %v494 = vrot.slane %v493, 4
    %v496 = vshll.u32 %v316, 16
    %v498 = vrot.slane %v496, 5
    %v499 = vsel %vm403, %v494, %v498
    %v501 = vshrl.u32 %v317, 16
    %v503 = vrot.slane %v501, 4
    %v504 = vshll.u32 %v317, 16
    %v506 = vrot.slane %v504, 5
    %v507 = vor.u32 %v503, %v506
    %v508 = vrot.slane %v507, 4
    %v510 = vshll.u32 %v318, 16
    %v512 = vrot.slane %v510, 5
    %v513 = vsel %vm403, %v508, %v512
    %v514 = vshrl.u32 %v318, 16
    %v516 = vrot.slane %v514, 4
    %v517 = vor.u32 %v516, %v512
    %v518 = vrot.slane %v517, 4
    %v520 = vshll.u32 %v319, 16
    %v522 = vrot.slane %v520, 5
    %v523 = vsel %vm403, %v518, %v522
    %v525 = vshrl.u32 %v320, 16
    %v527 = vrot.slane %v525, 4
    %v528 = vshll.u32 %v320, 16
    %v530 = vrot.slane %v528, 5
    %v531 = vor.u32 %v527, %v530
    %v532 = vrot.slane %v531, 4
    %v534 = vshll.u32 %v321, 16
    %v536 = vrot.slane %v534, 5
    %v537 = vsel %vm403, %v532, %v536
    %v538 = vshrl.u32 %v321, 16
    %v540 = vrot.slane %v538, 4
    %v541 = vor.u32 %v540, %v536
    %v542 = vrot.slane %v541, 4
    %v544 = vshll.u32 %v322, 16
    %v546 = vrot.slane %v544, 5
    %v547 = vsel %vm403, %v542, %v546
    %v549 = vshrl.u32 %v323, 16
    %v551 = vrot.slane %v549, 4
    %v552 = vshll.u32 %v323, 16
    %v554 = vrot.slane %v552, 5
    %v555 = vor.u32 %v551, %v554
    %v556 = vrot.slane %v555, 4
    %v558 = vshll.u32 %v324, 16
    %v560 = vrot.slane %v558, 5
    %v561 = vsel %vm403, %v556, %v560
    %v562 = vshrl.u32 %v324, 16
    %v564 = vrot.slane %v562, 4
    %v565 = vor.u32 %v564, %v560
    %v566 = vrot.slane %v565, 4
    %v568 = vshll.u32 %v325, 16
    %v570 = vrot.slane %v568, 5
    %v571 = vsel %vm403, %v566, %v570
    %v573 = vshrl.u32 %v326, 16
    %v575 = vrot.slane %v573, 4
    %v576 = vshll.u32 %v326, 16
    %v578 = vrot.slane %v576, 5
    %v579 = vor.u32 %v575, %v578
    %v580 = vrot.slane %v579, 4
    %v582 = vshll.u32 %v327, 16
    %v584 = vrot.slane %v582, 5
    %v585 = vsel %vm403, %v580, %v584
    %v586 = vshrl.u32 %v327, 16
    %v588 = vrot.slane %v586, 4
    %v589 = vor.u32 %v588, %v584
    %v590 = vrot.slane %v589, 4
    %v592 = vshll.u32 %v328, 16
    %v594 = vrot.slane %v592, 5
    %v595 = vsel %vm403, %v590, %v594
    %v597 = vshrl.u32 %v329, 16
    %v599 = vrot.slane %v597, 4
    %v600 = vshll.u32 %v329, 16
    %v602 = vrot.slane %v600, 5
    %v603 = vor.u32 %v599, %v602
    %v604 = vrot.slane %v603, 4
    %v606 = vshll.u32 %v330, 16
    %v608 = vrot.slane %v606, 5
    %v609 = vsel %vm403, %v604, %v608
    %v610 = vshrl.u32 %v330, 16
    %v612 = vrot.slane %v610, 4
    %v613 = vor.u32 %v612, %v608
    %v614 = vrot.slane %v613, 4
    %v616 = vshll.u32 %v331, 16
    %v618 = vrot.slane %v616, 5
    %v619 = vsel %vm403, %v614, %v618
    %v621 = vshrl.u32 %v332, 16
    %v623 = vrot.slane %v621, 4
    %v624 = vshll.u32 %v332, 16
    %v626 = vrot.slane %v624, 5
    %v627 = vor.u32 %v623, %v626
    %v628 = vrot.slane %v627, 4
    %v630 = vshll.u32 %v333, 16
    %v632 = vrot.slane %v630, 5
    %v633 = vsel %vm403, %v628, %v632
    %v634 = vshrl.u32 %v333, 16
    %v636 = vrot.slane %v634, 4
    %v637 = vor.u32 %v636, %v632
    %v638 = vrot.slane %v637, 4
    %v640 = vshll.u32 %v334, 16
    %v642 = vrot.slane %v640, 5
    %v643 = vsel %vm403, %v638, %v642
    %v645 = vshrl.u32 %v335, 16
    %v647 = vrot.slane %v645, 4
    %v648 = vshll.u32 %v335, 16
    %v650 = vrot.slane %v648, 5
    %v651 = vor.u32 %v647, %v650
    %v652 = vrot.slane %v651, 4
    %v654 = vshll.u32 %v336, 16
    %v656 = vrot.slane %v654, 5
    %v657 = vsel %vm403, %v652, %v656
    %v658 = vshrl.u32 %v336, 16
    %v660 = vrot.slane %v658, 4
    %v661 = vor.u32 %v660, %v656
    %v662 = vrot.slane %v661, 4
    %v664 = vshll.u32 %v337, 16
    %v666 = vrot.slane %v664, 5
    %v667 = vsel %vm403, %v662, %v666
    %v669 = vshrl.u32 %v338, 16
    %v671 = vrot.slane %v669, 4
    %v672 = vshll.u32 %v338, 16
    %v674 = vrot.slane %v672, 5
    %v675 = vor.u32 %v671, %v674
    %v676 = vrot.slane %v675, 4
    %v678 = vshll.u32 %v339, 16
    %v680 = vrot.slane %v678, 5
    %v681 = vsel %vm403, %v676, %v680
    %v682 = vshrl.u32 %v339, 16
    %v684 = vrot.slane %v682, 4
    %v685 = vor.u32 %v684, %v680
    %v686 = vrot.slane %v685, 4
    %v688 = vshll.u32 %v340, 16
    %v690 = vrot.slane %v688, 5
    %v691 = vsel %vm403, %v686, %v690
    %v693 = vshrl.u32 %v341, 16
    %v695 = vrot.slane %v693, 4
    %v696 = vshll.u32 %v341, 16
    %v698 = vrot.slane %v696, 5
    %v699 = vor.u32 %v695, %v698
    %v700 = vrot.slane %v699, 4
    %v702 = vshll.u32 %v342, 16
    %v704 = vrot.slane %v702, 5
    %v705 = vsel %vm403, %v700, %v704
    %v706 = vshrl.u32 %v342, 16
    %v708 = vrot.slane %v706, 4
    %v709 = vor.u32 %v708, %v704
    %v710 = vrot.slane %v709, 4
    %v712 = vshll.u32 %v343, 16
    %v714 = vrot.slane %v712, 5
    %v715 = vsel %vm403, %v710, %v714
    %v717 = vshrl.u32 %v344, 16
    %v719 = vrot.slane %v717, 4
    %v720 = vshll.u32 %v344, 16
    %v722 = vrot.slane %v720, 5
    %v723 = vor.u32 %v719, %v722
    %v724 = vrot.slane %v723, 4
    %v726 = vshll.u32 %v345, 16
    %v728 = vrot.slane %v726, 5
    %v729 = vsel %vm403, %v724, %v728
    %v730 = vshrl.u32 %v345, 16
    %v732 = vrot.slane %v730, 4
    %v733 = vor.u32 %v732, %v728
    %v734 = vrot.slane %v733, 4
    %v736 = vshll.u32 %v346, 16
    %v738 = vrot.slane %v736, 5
    %v739 = vsel %vm403, %v734, %v738
    %v741 = vshrl.u32 %v347, 16
    %v743 = vrot.slane %v741, 4
    %v744 = vshll.u32 %v347, 16
    %v746 = vrot.slane %v744, 5
    %v747 = vor.u32 %v743, %v746
    %v748 = vrot.slane %v747, 4
    %v750 = vshll.u32 %v348, 16
    %v752 = vrot.slane %v750, 5
    %v753 = vsel %vm403, %v748, %v752
    %v754 = vshrl.u32 %v348, 16
    %v756 = vrot.slane %v754, 4
    %v757 = vor.u32 %v756, %v752
    %v758 = vrot.slane %v757, 4
    %v760 = vshll.u32 %v349, 16
    %v762 = vrot.slane %v760, 5
    %v763 = vsel %vm403, %v758, %v762
    %v765 = vshrl.u32 %v350, 16
    %v767 = vrot.slane %v765, 4
    %v768 = vshll.u32 %v350, 16
    %v770 = vrot.slane %v768, 5
    %v771 = vor.u32 %v767, %v770
    %v772 = vrot.slane %v771, 4
    %v774 = vshll.u32 %v351, 16
    %v776 = vrot.slane %v774, 5
    %v777 = vsel %vm403, %v772, %v776
    %v778 = vshrl.u32 %v351, 16
    %v780 = vrot.slane %v778, 4
    %v781 = vor.u32 %v780, %v776
    %v782 = vrot.slane %v781, 4
    %v784 = vshll.u32 %v352, 16
    %v786 = vrot.slane %v784, 5
    %v787 = vsel %vm403, %v782, %v786
    %v789 = vshrl.u32 %v353, 16
    %v791 = vrot.slane %v789, 4
    %v792 = vshll.u32 %v353, 16
    %v794 = vrot.slane %v792, 5
    %v795 = vor.u32 %v791, %v794
    %v796 = vrot.slane %v795, 4
    %v798 = vshll.u32 %v354, 16
    %v800 = vrot.slane %v798, 5
    %v801 = vsel %vm403, %v796, %v800
    %v802 = vshrl.u32 %v354, 16
    %v804 = vrot.slane %v802, 4
    %v805 = vor.u32 %v804, %v800
    %v806 = vrot.slane %v805, 4
    %v808 = vshll.u32 %v355, 16
    %v810 = vrot.slane %v808, 5
    %v811 = vsel %vm403, %v806, %v810
    %v813 = vshrl.u32 %v356, 16
    %v815 = vrot.slane %v813, 4
    %v816 = vshll.u32 %v356, 16
    %v818 = vrot.slane %v816, 5
    %v819 = vor.u32 %v815, %v818
    %v820 = vrot.slane %v819, 4
    %v822 = vshll.u32 %v357, 16
    %v824 = vrot.slane %v822, 5
    %v825 = vsel %vm403, %v820, %v824
    %v826 = vshrl.u32 %v357, 16
    %v828 = vrot.slane %v826, 4
    %v829 = vor.u32 %v828, %v824
    %v830 = vrot.slane %v829, 4
    %v832 = vshll.u32 %v358, 16
    %v834 = vrot.slane %v832, 5
    %v835 = vsel %vm403, %v830, %v834
    %v837 = vshrl.u32 %v359, 16
    %v839 = vrot.slane %v837, 4
    %v840 = vshll.u32 %v359, 16
    %v842 = vrot.slane %v840, 5
    %v843 = vor.u32 %v839, %v842
    %v844 = vrot.slane %v843, 4
    %v846 = vshll.u32 %v360, 16
    %v848 = vrot.slane %v846, 5
    %v849 = vsel %vm403, %v844, %v848
    %v850 = vshrl.u32 %v360, 16
    %v852 = vrot.slane %v850, 4
    %v853 = vor.u32 %v852, %v848
    %v854 = vrot.slane %v853, 4
    %v856 = vshll.u32 %v361, 16
    %v858 = vrot.slane %v856, 5
    %v859 = vsel %vm403, %v854, %v858
    %v861 = vshrl.u32 %v362, 16
    %v863 = vrot.slane %v861, 4
    %v864 = vshll.u32 %v362, 16
    %v866 = vrot.slane %v864, 5
    %v867 = vor.u32 %v863, %v866
    %v868 = vrot.slane %v867, 4
    %v870 = vshll.u32 %v363, 16
    %v872 = vrot.slane %v870, 5
    %v873 = vsel %vm403, %v868, %v872
    %v874 = vshrl.u32 %v363, 16
    %v876 = vrot.slane %v874, 4
    %v877 = vor.u32 %v876, %v872
    %v878 = vrot.slane %v877, 4
    %v880 = vshll.u32 %v364, 16
    %v882 = vrot.slane %v880, 5
    %v883 = vsel %vm403, %v878, %v882
    %v885 = vshrl.u32 %v365, 16
    %v887 = vrot.slane %v885, 4
    %v888 = vshll.u32 %v365, 16
    %v890 = vrot.slane %v888, 5
    %v891 = vor.u32 %v887, %v890
    %v892 = vrot.slane %v891, 4
    %v894 = vshll.u32 %v366, 16
    %v896 = vrot.slane %v894, 5
    %v897 = vsel %vm403, %v892, %v896
    %v898 = vshrl.u32 %v366, 16
    %v900 = vrot.slane %v898, 4
    %v901 = vor.u32 %v900, %v896
    %v902 = vrot.slane %v901, 4
    %v904 = vshll.u32 %v367, 16
    %v906 = vrot.slane %v904, 5
    %v907 = vsel %vm403, %v902, %v906
    %v909 = vshrl.u32 %v368, 16
    %v911 = vrot.slane %v909, 4
    %v912 = vshll.u32 %v368, 16
    %v914 = vrot.slane %v912, 5
    %v915 = vor.u32 %v911, %v914
    %v916 = vrot.slane %v915, 4
    %v918 = vshll.u32 %v369, 16
    %v920 = vrot.slane %v918, 5
    %v921 = vsel %vm403, %v916, %v920
    %v922 = vshrl.u32 %v369, 16
    %v924 = vrot.slane %v922, 4
    %v925 = vor.u32 %v924, %v920
    %v926 = vrot.slane %v925, 4
    %v928 = vshll.u32 %v370, 16
    %v930 = vrot.slane %v928, 5
    %v931 = vsel %vm403, %v926, %v930
    %v933 = vshrl.u32 %v371, 16
    %v935 = vrot.slane %v933, 4
    %v936 = vshll.u32 %v371, 16
    %v938 = vrot.slane %v936, 5
    %v939 = vor.u32 %v935, %v938
    %v940 = vrot.slane %v939, 4
    %v942 = vshll.u32 %v372, 16
    %v944 = vrot.slane %v942, 5
    %v945 = vsel %vm403, %v940, %v944
    %v946 = vshrl.u32 %v372, 16
    %v948 = vrot.slane %v946, 4
    %v949 = vor.u32 %v948, %v944
    %v950 = vrot.slane %v949, 4
    %v952 = vshll.u32 %v373, 16
    %v954 = vrot.slane %v952, 5
    %v955 = vsel %vm403, %v950, %v954
    %v957 = vshrl.u32 %v374, 16
    %v959 = vrot.slane %v957, 4
    %v960 = vshll.u32 %v374, 16
    %v962 = vrot.slane %v960, 5
    %v963 = vor.u32 %v959, %v962
    %v964 = vrot.slane %v963, 4
    %v966 = vshll.u32 %v375, 16
    %v968 = vrot.slane %v966, 5
    %v969 = vsel %vm403, %v964, %v968
    %v970 = vshrl.u32 %v375, 16
    %v972 = vrot.slane %v970, 4
    %v973 = vor.u32 %v972, %v968
    %v974 = vrot.slane %v973, 4
    %v976 = vshll.u32 %v376, 16
    %v978 = vrot.slane %v976, 5
    %v979 = vsel %vm403, %v974, %v978
    %v981 = vshrl.u32 %v377, 16
    %v983 = vrot.slane %v981, 4
    %v984 = vshll.u32 %v377, 16
    %v986 = vrot.slane %v984, 5
    %v987 = vor.u32 %v983, %v986
    %v988 = vrot.slane %v987, 4
    %v990 = vshll.u32 %v378, 16
    %v992 = vrot.slane %v990, 5
    %v993 = vsel %vm403, %v988, %v992
    %v994 = vshrl.u32 %v378, 16
    %v996 = vrot.slane %v994, 4
    %v997 = vor.u32 %v996, %v992
    %v998 = vrot.slane %v997, 4
    %v1000 = vshll.u32 %v379, 16
    %v1002 = vrot.slane %v1000, 5
    %v1003 = vsel %vm403, %v998, %v1002
    %v1005 = vshrl.u32 %v380, 16
    %v1007 = vrot.slane %v1005, 4
    %v1008 = vshll.u32 %v380, 16
    %v1010 = vrot.slane %v1008, 5
    %v1011 = vor.u32 %v1007, %v1010
    %v1012 = vrot.slane %v1011, 4
    %v1014 = vshll.u32 %v381, 16
    %v1016 = vrot.slane %v1014, 5
    %v1017 = vsel %vm403, %v1012, %v1016
    %v1018 = vshrl.u32 %v381, 16
    %v1020 = vrot.slane %v1018, 4
    %v1021 = vor.u32 %v1020, %v1016
    %v1022 = vrot.slane %v1021, 4
    %v1024 = vshll.u32 %v382, 16
    %v1026 = vrot.slane %v1024, 5
    %v1027 = vsel %vm403, %v1022, %v1026
    %v1029 = vshrl.u32 %v383, 16
    %v1031 = vrot.slane %v1029, 4
    %v1032 = vshll.u32 %v383, 16
    %v1034 = vrot.slane %v1032, 5
    %v1035 = vor.u32 %v1031, %v1034
    %v1036 = vrot.slane %v1035, 4
    %v1038 = vshll.u32 %v384, 16
    %v1040 = vrot.slane %v1038, 5
    %v1041 = vsel %vm403, %v1036, %v1040
    %v1042 = vshrl.u32 %v384, 16
    %v1044 = vrot.slane %v1042, 4
    %v1045 = vor.u32 %v1044, %v1040
    %v1046 = vrot.slane %v1045, 4
    %v1048 = vshll.u32 %v385, 16
    %v1050 = vrot.slane %v1048, 5
    %v1051 = vsel %vm403, %v1046, %v1050
    %v1053 = vshrl.u32 %v386, 16
    %v1055 = vrot.slane %v1053, 4
    %v1056 = vshll.u32 %v386, 16
    %v1058 = vrot.slane %v1056, 5
    %v1059 = vor.u32 %v1055, %v1058
    %v1060 = vrot.slane %v1059, 4
    %v1062 = vshll.u32 %v387, 16
    %v1064 = vrot.slane %v1062, 5
    %v1065 = vsel %vm403, %v1060, %v1064
    %v1066 = vshrl.u32 %v387, 16
    %v1068 = vrot.slane %v1066, 4
    %v1069 = vor.u32 %v1068, %v1064
    %v1070 = vrot.slane %v1069, 4
    %v1072 = vshll.u32 %v388, 16
    %v1074 = vrot.slane %v1072, 5
    %v1075 = vsel %vm403, %v1070, %v1074
    %v1077 = vshrl.u32 %v389, 16
    %v1079 = vrot.slane %v1077, 4
    %v1080 = vshll.u32 %v389, 16
    %v1082 = vrot.slane %v1080, 5
    %v1083 = vor.u32 %v1079, %v1082
    %v1084 = vrot.slane %v1083, 4
    %v1086 = vshll.u32 %v390, 16
    %v1088 = vrot.slane %v1086, 5
    %v1089 = vsel %vm403, %v1084, %v1088
    %v1090 = vshrl.u32 %v390, 16
    %v1092 = vrot.slane %v1090, 4
    %v1093 = vor.u32 %v1092, %v1088
    %v1094 = vrot.slane %v1093, 4
    %v1096 = vshll.u32 %v391, 16
    %v1098 = vrot.slane %v1096, 5
    %v1099 = vsel %vm403, %v1094, %v1098
    %v1101 = vshrl.u32 %v392, 16
    %v1103 = vrot.slane %v1101, 4
    %v1104 = vshll.u32 %v392, 16
    %v1106 = vrot.slane %v1104, 5
    %v1107 = vor.u32 %v1103, %v1106
    %v1108 = vrot.slane %v1107, 4
    %v1110 = vshll.u32 %v393, 16
    %v1112 = vrot.slane %v1110, 5
    %v1113 = vsel %vm403, %v1108, %v1112
    %v1114 = vshrl.u32 %v393, 16
    %v1116 = vrot.slane %v1114, 4
    %v1117 = vor.u32 %v1116, %v1112
    %v1118 = vrot.slane %v1117, 4
    %v1120 = vshll.u32 %v394, 16
    %v1122 = vrot.slane %v1120, 5
    %v1123 = vsel %vm403, %v1118, %v1122
    %v1125 = vshrl.u32 %v395, 16
    %v1127 = vrot.slane %v1125, 4
    %v1128 = vshll.u32 %v395, 16
    %v1130 = vrot.slane %v1128, 5
    %v1131 = vor.u32 %v1127, %v1130
    %v1132 = vrot.slane %v1131, 4
    %v1134 = vshll.u32 %v396, 16
    %v1136 = vrot.slane %v1134, 5
    %v1137 = vsel %vm403, %v1132, %v1136
    %v1138 = vshrl.u32 %v396, 16
    %v1140 = vrot.slane %v1138, 4
    %v1141 = vor.u32 %v1140, %v1136
    %v1142 = vrot.slane %v1141, 4
    %v1144 = vshll.u32 %v397, 16
    %v1146 = vrot.slane %v1144, 5
    %v1147 = vsel %vm403, %v1142, %v1146
    %v1149 = vshrl.u32 %v398, 16
    %v1151 = vrot.slane %v1149, 4
    %v1152 = vshll.u32 %v398, 16
    %v1154 = vrot.slane %v1152, 5
    %v1155 = vor.u32 %v1151, %v1154
    %v1156 = vrot.slane %v1155, 4
    %v1158 = vshll.u32 %v399, 16
    %v1160 = vrot.slane %v1158, 5
    %v1161 = vsel %vm403, %v1156, %v1160
    %v1162 = vshrl.u32 %v399, 16
    %v1164 = vrot.slane %v1162, 4
    %v1165 = vor.u32 %v1164, %v1160
    %v1166 = vrot.slane %v1165, 4
    %v1168 = vshll.u32 %v400, 16
    %v1170 = vrot.slane %v1168, 5
    %v1171 = vsel %vm403, %v1166, %v1170
    %v1172 = vunpack.c.l.b16 %v417
    %v1173 = vunpack.c.l.b16 %v427
    %v1174 = vunpack.c.l.b16 %v441
    %v1175 = vunpack.c.l.b16 %v451
    %v1176 = vunpack.c.l.b16 %v465
    %v1177 = vunpack.c.l.b16 %v475
    %v1178 = vunpack.c.l.b16 %v489
    %v1179 = vunpack.c.l.b16 %v499
    %v1180 = vunpack.c.l.b16 %v513
    %v1181 = vunpack.c.l.b16 %v523
    %v1182 = vunpack.c.l.b16 %v537
    %v1183 = vunpack.c.l.b16 %v547
    %v1184 = vunpack.c.l.b16 %v561
    %v1185 = vunpack.c.l.b16 %v571
    %v1186 = vunpack.c.l.b16 %v585
    %v1187 = vunpack.c.l.b16 %v595
    %v1188 = vunpack.c.l.b16 %v609
    %v1189 = vunpack.c.l.b16 %v619
    %v1190 = vunpack.c.l.b16 %v633
    %v1191 = vunpack.c.l.b16 %v643
    %v1192 = vunpack.c.l.b16 %v657
    %v1193 = vunpack.c.l.b16 %v667
    %v1194 = vunpack.c.l.b16 %v681
    %v1195 = vunpack.c.l.b16 %v691
    %v1196 = vunpack.c.l.b16 %v705
    %v1197 = vunpack.c.l.b16 %v715
    %v1198 = vunpack.c.l.b16 %v729
    %v1199 = vunpack.c.l.b16 %v739
    %v1200 = vunpack.c.l.b16 %v753
    %v1201 = vunpack.c.l.b16 %v763
    %v1202 = vunpack.c.l.b16 %v777
    %v1203 = vunpack.c.l.b16 %v787
    %v1204 = vunpack.c.l.b16 %v801
    %v1205 = vunpack.c.l.b16 %v811
    %v1206 = vunpack.c.l.b16 %v825
    %v1207 = vunpack.c.l.b16 %v835
    %v1208 = vunpack.c.l.b16 %v849
    %v1209 = vunpack.c.l.b16 %v859
    %v1210 = vunpack.c.l.b16 %v873
    %v1211 = vunpack.c.l.b16 %v883
    %v1212 = vunpack.c.l.b16 %v897
    %v1213 = vunpack.c.l.b16 %v907
    %v1214 = vunpack.c.l.b16 %v921
    %v1215 = vunpack.c.l.b16 %v931
    %v1216 = vunpack.c.l.b16 %v945
    %v1217 = vunpack.c.l.b16 %v955
    %v1218 = vunpack.c.l.b16 %v969
    %v1219 = vunpack.c.l.b16 %v979
    %v1220 = vunpack.c.l.b16 %v993
    %v1221 = vunpack.c.l.b16 %v1003
    %v1222 = vunpack.c.l.b16 %v1017
    %v1223 = vunpack.c.l.b16 %v1027
    %v1224 = vunpack.c.l.b16 %v1041
    %v1225 = vunpack.c.l.b16 %v1051
    %v1226 = vunpack.c.l.b16 %v1065
    %v1227 = vunpack.c.l.b16 %v1075
    %v1228 = vunpack.c.l.b16 %v1089
    %v1229 = vunpack.c.l.b16 %v1099
    %v1230 = vunpack.c.l.b16 %v1113
    %v1231 = vunpack.c.l.b16 %v1123
    %v1232 = vunpack.c.l.b16 %v1137
    %v1233 = vunpack.c.l.b16 %v1147
    %v1234 = vunpack.c.l.b16 %v1161
    %v1235 = vunpack.c.l.b16 %v1171
    %v1236 = vpack.c.b16 %v1173, %v1172
    %v1237 = vpack.c.b16 %v1175, %v1174
    %v1238 = vpack.c.b16 %v1177, %v1176
    %v1239 = vpack.c.b16 %v1179, %v1178
    %v1240 = vpack.c.b16 %v1181, %v1180
    %v1241 = vpack.c.b16 %v1183, %v1182
    %v1242 = vpack.c.b16 %v1185, %v1184
    %v1243 = vpack.c.b16 %v1187, %v1186
    %v1244 = vpack.c.b16 %v1189, %v1188
    %v1245 = vpack.c.b16 %v1191, %v1190
    %v1246 = vpack.c.b16 %v1193, %v1192
    %v1247 = vpack.c.b16 %v1195, %v1194
    %v1248 = vpack.c.b16 %v1197, %v1196
    %v1249 = vpack.c.b16 %v1199, %v1198
    %v1250 = vpack.c.b16 %v1201, %v1200
    %v1251 = vpack.c.b16 %v1203, %v1202
    %v1252 = vpack.c.b16 %v1205, %v1204
    %v1253 = vpack.c.b16 %v1207, %v1206
    %v1254 = vpack.c.b16 %v1209, %v1208
    %v1255 = vpack.c.b16 %v1211, %v1210
    %v1256 = vpack.c.b16 %v1213, %v1212
    %v1257 = vpack.c.b16 %v1215, %v1214
    %v1258 = vpack.c.b16 %v1217, %v1216
    %v1259 = vpack.c.b16 %v1219, %v1218
    %v1260 = vpack.c.b16 %v1221, %v1220
    %v1261 = vpack.c.b16 %v1223, %v1222
    %v1262 = vpack.c.b16 %v1225, %v1224
    %v1263 = vpack.c.b16 %v1227, %v1226
    %v1264 = vpack.c.b16 %v1229, %v1228
    %v1265 = vpack.c.b16 %v1231, %v1230
    %v1266 = vpack.c.b16 %v1233, %v1232
    %v1267 = vpack.c.b16 %v1235, %v1234
    %1268 = vrot.lane.b32.xlu0 %v1236, 64
    %v1269 = vpop.permute.xlu0 %1268
    %1270 = vrot.lane.b32.xlu0 %v1237, 64
    %v1271 = vpop.permute.xlu0 %1270
    %1272 = vrot.lane.b32.xlu0 %v1238, 64
    %v1273 = vpop.permute.xlu0 %1272
    %1274 = vrot.lane.b32.xlu0 %v1239, 64
    %v1275 = vpop.permute.xlu0 %1274
    %1276 = vrot.lane.b32.xlu0 %v1240, 64
    %v1277 = vpop.permute.xlu0 %1276
    %1278 = vrot.lane.b32.xlu0 %v1241, 64
    %v1279 = vpop.permute.xlu0 %1278
    %1280 = vrot.lane.b32.xlu0 %v1242, 64
    %v1281 = vpop.permute.xlu0 %1280
    %1282 = vrot.lane.b32.xlu0 %v1243, 64
    %v1283 = vpop.permute.xlu0 %1282
    %1284 = vrot.lane.b32.xlu0 %v1244, 64
    %v1285 = vpop.permute.xlu0 %1284
    %1286 = vrot.lane.b32.xlu0 %v1245, 64
    %v1287 = vpop.permute.xlu0 %1286
    %1288 = vrot.lane.b32.xlu0 %v1246, 64
    %v1289 = vpop.permute.xlu0 %1288
    %1290 = vrot.lane.b32.xlu0 %v1247, 64
    %v1291 = vpop.permute.xlu0 %1290
    %1292 = vrot.lane.b32.xlu0 %v1248, 64
    %v1293 = vpop.permute.xlu0 %1292
    %1294 = vrot.lane.b32.xlu0 %v1249, 64
    %v1295 = vpop.permute.xlu0 %1294
    %1296 = vrot.lane.b32.xlu0 %v1250, 64
    %v1297 = vpop.permute.xlu0 %1296
    %1298 = vrot.lane.b32.xlu0 %v1251, 64
    %v1299 = vpop.permute.xlu0 %1298
    %1300 = vrot.lane.b32.xlu0 %v1252, 64
    %v1301 = vpop.permute.xlu0 %1300
    %1302 = vrot.lane.b32.xlu0 %v1253, 64
    %v1303 = vpop.permute.xlu0 %1302
    %1304 = vrot.lane.b32.xlu0 %v1254, 64
    %v1305 = vpop.permute.xlu0 %1304
    %1306 = vrot.lane.b32.xlu0 %v1255, 64
    %v1307 = vpop.permute.xlu0 %1306
    %1308 = vrot.lane.b32.xlu0 %v1256, 64
    %v1309 = vpop.permute.xlu0 %1308
    %1310 = vrot.lane.b32.xlu0 %v1257, 64
    %v1311 = vpop.permute.xlu0 %1310
    %1312 = vrot.lane.b32.xlu0 %v1258, 64
    %v1313 = vpop.permute.xlu0 %1312
    %1314 = vrot.lane.b32.xlu0 %v1259, 64
    %v1315 = vpop.permute.xlu0 %1314
    %1316 = vrot.lane.b32.xlu0 %v1260, 64
    %v1317 = vpop.permute.xlu0 %1316
    %1318 = vrot.lane.b32.xlu0 %v1261, 64
    %v1319 = vpop.permute.xlu0 %1318
    %1320 = vrot.lane.b32.xlu0 %v1262, 64
    %v1321 = vpop.permute.xlu0 %1320
    %1322 = vrot.lane.b32.xlu0 %v1263, 64
    %v1323 = vpop.permute.xlu0 %1322
    %1324 = vrot.lane.b32.xlu0 %v1264, 64
    %v1325 = vpop.permute.xlu0 %1324
    %1326 = vrot.lane.b32.xlu0 %v1265, 64
    %v1327 = vpop.permute.xlu0 %1326
    %1328 = vrot.lane.b32.xlu0 %v1266, 64
    %v1329 = vpop.permute.xlu0 %1328
    %1330 = vrot.lane.b32.xlu0 %v1267, 64
    %v1331 = vpop.permute.xlu0 %1330
    %vm1364 = vcmask 1048064
    %1365 = vst.msk [vmem:[#allocation2] sm:$0xff] %vm1364, %v1269
    %1366 = vst.msk [vmem:[#allocation2 + $0x28] sm:$0xff] %vm1364, %v1271
    %1367 = vst.msk [vmem:[#allocation2 + $0x50] sm:$0xff] %vm1364, %v1273
    %1368 = vst.msk [vmem:[#allocation2 + $0x78] sm:$0xff] %vm1364, %v1275
    %1369 = vst.msk [vmem:[#allocation2 + $0xa0] sm:$0xff] %vm1364, %v1277
    %1370 = vst.msk [vmem:[#allocation2 + $0xc8] sm:$0xff] %vm1364, %v1279
    %1371 = vst.msk [vmem:[#allocation2 + $0xf0] sm:$0xff] %vm1364, %v1281
    %1372 = vst.msk [vmem:[#allocation2 + $0x118] sm:$0xff] %vm1364, %v1283
    %1373 = vst.msk [vmem:[#allocation2 + $0x140] sm:$0xff] %vm1364, %v1285
    %1374 = vst.msk [vmem:[#allocation2 + $0x168] sm:$0xff] %vm1364, %v1287
    %1375 = vst.msk [vmem:[#allocation2 + $0x190] sm:$0xff] %vm1364, %v1289
    %1376 = vst.msk [vmem:[#allocation2 + $0x1b8] sm:$0xff] %vm1364, %v1291
    %1377 = vst.msk [vmem:[#allocation2 + $0x1e0] sm:$0xff] %vm1364, %v1293
    %1378 = vst.msk [vmem:[#allocation2 + $0x208] sm:$0xff] %vm1364, %v1295
    %1379 = vst.msk [vmem:[#allocation2 + $0x230] sm:$0xff] %vm1364, %v1297
    %1380 = vst.msk [vmem:[#allocation2 + $0x258] sm:$0xff] %vm1364, %v1299
    %1381 = vst.msk [vmem:[#allocation2 + $0x280] sm:$0xff] %vm1364, %v1301
    %1382 = vst.msk [vmem:[#allocation2 + $0x2a8] sm:$0xff] %vm1364, %v1303
    %1383 = vst.msk [vmem:[#allocation2 + $0x2d0] sm:$0xff] %vm1364, %v1305
    %1384 = vst.msk [vmem:[#allocation2 + $0x2f8] sm:$0xff] %vm1364, %v1307
    %1385 = vst.msk [vmem:[#allocation2 + $0x320] sm:$0xff] %vm1364, %v1309
    %1386 = vst.msk [vmem:[#allocation2 + $0x348] sm:$0xff] %vm1364, %v1311
    %1387 = vst.msk [vmem:[#allocation2 + $0x370] sm:$0xff] %vm1364, %v1313
    %1388 = vst.msk [vmem:[#allocation2 + $0x398] sm:$0xff] %vm1364, %v1315
    %1389 = vst.msk [vmem:[#allocation2 + $0x3c0] sm:$0xff] %vm1364, %v1317
    %1390 = vst.msk [vmem:[#allocation2 + $0x3e8] sm:$0xff] %vm1364, %v1319
    %1391 = vst.msk [vmem:[#allocation2 + $0x410] sm:$0xff] %vm1364, %v1321
    %1392 = vst.msk [vmem:[#allocation2 + $0x438] sm:$0xff] %vm1364, %v1323
    %1393 = vst.msk [vmem:[#allocation2 + $0x460] sm:$0xff] %vm1364, %v1325
    %1394 = vst.msk [vmem:[#allocation2 + $0x488] sm:$0xff] %vm1364, %v1327
    %1395 = vst.msk [vmem:[#allocation2 + $0x4b0] sm:$0xff] %vm1364, %v1329
    %1396 = vst.msk [vmem:[#allocation2 + $0x4d8] sm:$0xff] %vm1364, %v1331
    %v1397 = vld [vmem:[%s0] sm:$0xe]
    %v1398 = vld [vmem:[%s0 + $0x4] sm:$0xf]
    %v1399 = vld [vmem:[%s0 + $0x8] sm:$0x1]
    %v1400 = vld [vmem:[%s0 + $0xc] sm:$0xe]
    %v1401 = vld [vmem:[%s0 + $0x10] sm:$0xf]
    %v1402 = vld [vmem:[%s0 + $0x14] sm:$0x1]
    %v1403 = vld [vmem:[%s0 + $0x18] sm:$0xe]
    %v1404 = vld [vmem:[%s0 + $0x1c] sm:$0xf]
    %v1405 = vld [vmem:[%s0 + $0x20] sm:$0x1]
    %v1406 = vld [vmem:[%s0 + $0x24] sm:$0xe]
    %v1407 = vld [vmem:[%s0 + $0x28] sm:$0xf]
    %v1408 = vld [vmem:[%s0 + $0x2c] sm:$0x1]
    %v1409 = vld [vmem:[%s0 + $0x30] sm:$0xe]
    %v1410 = vld [vmem:[%s0 + $0x34] sm:$0xf]
    %v1411 = vld [vmem:[%s0 + $0x38] sm:$0x1]
    %v1412 = vld [vmem:[%s0 + $0x3c] sm:$0xe]
    %v1413 = vld [vmem:[%s0 + $0x40] sm:$0xf]
    %v1414 = vld [vmem:[%s0 + $0x44] sm:$0x1]
    %v1415 = vld [vmem:[%s0 + $0x48] sm:$0xe]
    %v1416 = vld [vmem:[%s0 + $0x4c] sm:$0xf]
    %v1417 = vld [vmem:[%s0 + $0x50] sm:$0x1]
    %v1418 = vld [vmem:[%s0 + $0x54] sm:$0xe]
    %v1419 = vld [vmem:[%s0 + $0x58] sm:$0xf]
    %v1420 = vld [vmem:[%s0 + $0x5c] sm:$0x1]
    %v1421 = vld [vmem:[%s0 + $0x60] sm:$0xe]
    %v1422 = vld [vmem:[%s0 + $0x64] sm:$0xf]
    %v1423 = vld [vmem:[%s0 + $0x68] sm:$0x1]
    %v1424 = vld [vmem:[%s0 + $0x6c] sm:$0xe]
    %v1425 = vld [vmem:[%s0 + $0x70] sm:$0xf]
    %v1426 = vld [vmem:[%s0 + $0x74] sm:$0x1]
    %v1427 = vld [vmem:[%s0 + $0x78] sm:$0xe]
    %v1428 = vld [vmem:[%s0 + $0x7c] sm:$0xf]
    %v1429 = vld [vmem:[%s0 + $0x80] sm:$0x1]
    %v1430 = vld [vmem:[%s0 + $0x84] sm:$0xe]
    %v1431 = vld [vmem:[%s0 + $0x88] sm:$0xf]
    %v1432 = vld [vmem:[%s0 + $0x8c] sm:$0x1]
    %v1433 = vld [vmem:[%s0 + $0x90] sm:$0xe]
    %v1434 = vld [vmem:[%s0 + $0x94] sm:$0xf]
    %v1435 = vld [vmem:[%s0 + $0x98] sm:$0x1]
    %v1436 = vld [vmem:[%s0 + $0x9c] sm:$0xe]
    %v1437 = vld [vmem:[%s0 + $0xa0] sm:$0xf]
    %v1438 = vld [vmem:[%s0 + $0xa4] sm:$0x1]
    %v1439 = vld [vmem:[%s0 + $0xa8] sm:$0xe]
    %v1440 = vld [vmem:[%s0 + $0xac] sm:$0xf]
    %v1441 = vld [vmem:[%s0 + $0xb0] sm:$0x1]
    %v1442 = vld [vmem:[%s0 + $0xb4] sm:$0xe]
    %v1443 = vld [vmem:[%s0 + $0xb8] sm:$0xf]
    %v1444 = vld [vmem:[%s0 + $0xbc] sm:$0x1]
    %v1445 = vld [vmem:[%s0 + $0xd8] sm:$0xe]
    %v1446 = vld [vmem:[%s0 + $0xdc] sm:$0xf]
    %v1447 = vld [vmem:[%s0 + $0xe0] sm:$0x1]
    %v1448 = vld [vmem:[%s0 + $0xe4] sm:$0xe]
    %v1449 = vld [vmem:[%s0 + $0xe8] sm:$0xf]
    %v1450 = vld [vmem:[%s0 + $0xec] sm:$0x1]
    %v1451 = vld [vmem:[%s0 + $0xf0] sm:$0xe]
    %v1452 = vld [vmem:[%s0 + $0xf4] sm:$0xf]
    %v1453 = vld [vmem:[%s0 + $0xf8] sm:$0x1]
    %v1454 = vld [vmem:[%s0 + $0xfc] sm:$0xe]
    %v1455 = vld [vmem:[%s0 + $0x100] sm:$0xf]
    %v1456 = vld [vmem:[%s0 + $0x104] sm:$0x1]
    %v1457 = vld [vmem:[%s0 + $0x108] sm:$0xe]
    %v1458 = vld [vmem:[%s0 + $0x10c] sm:$0xf]
    %v1459 = vld [vmem:[%s0 + $0x110] sm:$0x1]
    %v1460 = vld [vmem:[%s0 + $0x114] sm:$0xe]
    %v1461 = vld [vmem:[%s0 + $0x118] sm:$0xf]
    %v1462 = vld [vmem:[%s0 + $0x11c] sm:$0x1]
    %v1463 = vld [vmem:[%s0 + $0x120] sm:$0xe]
    %v1464 = vld [vmem:[%s0 + $0x124] sm:$0xf]
    %v1465 = vld [vmem:[%s0 + $0x128] sm:$0x1]
    %v1466 = vld [vmem:[%s0 + $0x12c] sm:$0xe]
    %v1467 = vld [vmem:[%s0 + $0x130] sm:$0xf]
    %v1468 = vld [vmem:[%s0 + $0x134] sm:$0x1]
    %v1469 = vld [vmem:[%s0 + $0x138] sm:$0xe]
    %v1470 = vld [vmem:[%s0 + $0x13c] sm:$0xf]
    %v1471 = vld [vmem:[%s0 + $0x140] sm:$0x1]
    %v1472 = vld [vmem:[%s0 + $0x144] sm:$0xe]
    %v1473 = vld [vmem:[%s0 + $0x148] sm:$0xf]
    %v1474 = vld [vmem:[%s0 + $0x14c] sm:$0x1]
    %v1475 = vld [vmem:[%s0 + $0x150] sm:$0xe]
    %v1476 = vld [vmem:[%s0 + $0x154] sm:$0xf]
    %v1477 = vld [vmem:[%s0 + $0x158] sm:$0x1]
    %v1478 = vld [vmem:[%s0 + $0x15c] sm:$0xe]
    %v1479 = vld [vmem:[%s0 + $0x160] sm:$0xf]
    %v1480 = vld [vmem:[%s0 + $0x164] sm:$0x1]
    %v1481 = vld [vmem:[%s0 + $0x168] sm:$0xe]
    %v1482 = vld [vmem:[%s0 + $0x16c] sm:$0xf]
    %v1483 = vld [vmem:[%s0 + $0x170] sm:$0x1]
    %v1484 = vld [vmem:[%s0 + $0x174] sm:$0xe]
    %v1485 = vld [vmem:[%s0 + $0x178] sm:$0xf]
    %v1486 = vld [vmem:[%s0 + $0x17c] sm:$0x1]
    %v1487 = vld [vmem:[%s0 + $0x180] sm:$0xe]
    %v1488 = vld [vmem:[%s0 + $0x184] sm:$0xf]
    %v1489 = vld [vmem:[%s0 + $0x188] sm:$0x1]
    %v1490 = vld [vmem:[%s0 + $0x18c] sm:$0xe]
    %v1491 = vld [vmem:[%s0 + $0x190] sm:$0xf]
    %v1492 = vld [vmem:[%s0 + $0x194] sm:$0x1]
    %vm1589 = vcmask 1042432
    %vm1590 = vcmask 1046532
    %vm1591 = vmor %vm1589, %vm1590
    %v1592 = vrot.slane %v1397, 5
    %v1593 = vrot.slane %v1592, 4
    %v1594 = vrot.slane %v1398, 5
    %v1595 = vsel %vm1591, %v1593, %v1594
    %v1596 = vrot.slane %v1594, 4
    %v1597 = vrot.slane %v1399, 5
    %v1598 = vsel %vm1591, %v1596, %v1597
    %v1599 = vrot.slane %v1400, 5
    %v1600 = vrot.slane %v1599, 4
    %v1601 = vrot.slane %v1401, 5
    %v1602 = vsel %vm1591, %v1600, %v1601
    %v1603 = vrot.slane %v1601, 4
    %v1604 = vrot.slane %v1402, 5
    %v1605 = vsel %vm1591, %v1603, %v1604
    %v1606 = vrot.slane %v1403, 5
    %v1607 = vrot.slane %v1606, 4
    %v1608 = vrot.slane %v1404, 5
    %v1609 = vsel %vm1591, %v1607, %v1608
    %v1610 = vrot.slane %v1608, 4
    %v1611 = vrot.slane %v1405, 5
    %v1612 = vsel %vm1591, %v1610, %v1611
    %v1613 = vrot.slane %v1406, 5
    %v1614 = vrot.slane %v1613, 4
    %v1615 = vrot.slane %v1407, 5
    %v1616 = vsel %vm1591, %v1614, %v1615
    %v1617 = vrot.slane %v1615, 4
    %v1618 = vrot.slane %v1408, 5
    %v1619 = vsel %vm1591, %v1617, %v1618
    %v1620 = vrot.slane %v1409, 5
    %v1621 = vrot.slane %v1620, 4
    %v1622 = vrot.slane %v1410, 5
    %v1623 = vsel %vm1591, %v1621, %v1622
    %v1624 = vrot.slane %v1622, 4
    %v1625 = vrot.slane %v1411, 5
    %v1626 = vsel %vm1591, %v1624, %v1625
    %v1627 = vrot.slane %v1412, 5
    %v1628 = vrot.slane %v1627, 4
    %v1629 = vrot.slane %v1413, 5
    %v1630 = vsel %vm1591, %v1628, %v1629
    %v1631 = vrot.slane %v1629, 4
    %v1632 = vrot.slane %v1414, 5
    %v1633 = vsel %vm1591, %v1631, %v1632
    %v1634 = vrot.slane %v1415, 5
    %v1635 = vrot.slane %v1634, 4
    %v1636 = vrot.slane %v1416, 5
    %v1637 = vsel %vm1591, %v1635, %v1636
    %v1638 = vrot.slane %v1636, 4
    %v1639 = vrot.slane %v1417, 5
    %v1640 = vsel %vm1591, %v1638, %v1639
    %v1641 = vrot.slane %v1418, 5
    %v1642 = vrot.slane %v1641, 4
    %v1643 = vrot.slane %v1419, 5
    %v1644 = vsel %vm1591, %v1642, %v1643
    %v1645 = vrot.slane %v1643, 4
    %v1646 = vrot.slane %v1420, 5
    %v1647 = vsel %vm1591, %v1645, %v1646
    %v1648 = vrot.slane %v1421, 5
    %v1649 = vrot.slane %v1648, 4
    %v1650 = vrot.slane %v1422, 5
    %v1651 = vsel %vm1591, %v1649, %v1650
    %v1652 = vrot.slane %v1650, 4
    %v1653 = vrot.slane %v1423, 5
    %v1654 = vsel %vm1591, %v1652, %v1653
    %v1655 = vrot.slane %v1424, 5
    %v1656 = vrot.slane %v1655, 4
    %v1657 = vrot.slane %v1425, 5
    %v1658 = vsel %vm1591, %v1656, %v1657
    %v1659 = vrot.slane %v1657, 4
    %v1660 = vrot.slane %v1426, 5
    %v1661 = vsel %vm1591, %v1659, %v1660
    %v1662 = vrot.slane %v1427, 5
    %v1663 = vrot.slane %v1662, 4
    %v1664 = vrot.slane %v1428, 5
    %v1665 = vsel %vm1591, %v1663, %v1664
    %v1666 = vrot.slane %v1664, 4
    %v1667 = vrot.slane %v1429, 5
    %v1668 = vsel %vm1591, %v1666, %v1667
    %v1669 = vrot.slane %v1430, 5
    %v1670 = vrot.slane %v1669, 4
    %v1671 = vrot.slane %v1431, 5
    %v1672 = vsel %vm1591, %v1670, %v1671
    %v1673 = vrot.slane %v1671, 4
    %v1674 = vrot.slane %v1432, 5
    %v1675 = vsel %vm1591, %v1673, %v1674
    %v1676 = vrot.slane %v1433, 5
    %v1677 = vrot.slane %v1676, 4
    %v1678 = vrot.slane %v1434, 5
    %v1679 = vsel %vm1591, %v1677, %v1678
    %v1680 = vrot.slane %v1678, 4
    %v1681 = vrot.slane %v1435, 5
    %v1682 = vsel %vm1591, %v1680, %v1681
    %v1683 = vrot.slane %v1436, 5
    %v1684 = vrot.slane %v1683, 4
    %v1685 = vrot.slane %v1437, 5
    %v1686 = vsel %vm1591, %v1684, %v1685
    %v1687 = vrot.slane %v1685, 4
    %v1688 = vrot.slane %v1438, 5
    %v1689 = vsel %vm1591, %v1687, %v1688
    %v1690 = vrot.slane %v1439, 5
    %v1691 = vrot.slane %v1690, 4
    %v1692 = vrot.slane %v1440, 5
    %v1693 = vsel %vm1591, %v1691, %v1692
    %v1694 = vrot.slane %v1692, 4
    %v1695 = vrot.slane %v1441, 5
    %v1696 = vsel %vm1591, %v1694, %v1695
    %v1697 = vrot.slane %v1442, 5
    %v1698 = vrot.slane %v1697, 4
    %v1699 = vrot.slane %v1443, 5
    %v1700 = vsel %vm1591, %v1698, %v1699
    %v1701 = vrot.slane %v1699, 4
    %v1702 = vrot.slane %v1444, 5
    %v1703 = vsel %vm1591, %v1701, %v1702
    %v1704 = vrot.slane %v1445, 5
    %v1705 = vrot.slane %v1704, 4
    %v1706 = vrot.slane %v1446, 5
    %v1707 = vsel %vm1591, %v1705, %v1706
    %v1708 = vrot.slane %v1706, 4
    %v1709 = vrot.slane %v1447, 5
    %v1710 = vsel %vm1591, %v1708, %v1709
    %v1711 = vrot.slane %v1448, 5
    %v1712 = vrot.slane %v1711, 4
    %v1713 = vrot.slane %v1449, 5
    %v1714 = vsel %vm1591, %v1712, %v1713
    %v1715 = vrot.slane %v1713, 4
    %v1716 = vrot.slane %v1450, 5
    %v1717 = vsel %vm1591, %v1715, %v1716
    %v1718 = vrot.slane %v1451, 5
    %v1719 = vrot.slane %v1718, 4
    %v1720 = vrot.slane %v1452, 5
    %v1721 = vsel %vm1591, %v1719, %v1720
    %v1722 = vrot.slane %v1720, 4
    %v1723 = vrot.slane %v1453, 5
    %v1724 = vsel %vm1591, %v1722, %v1723
    %v1725 = vrot.slane %v1454, 5
    %v1726 = vrot.slane %v1725, 4
    %v1727 = vrot.slane %v1455, 5
    %v1728 = vsel %vm1591, %v1726, %v1727
    %v1729 = vrot.slane %v1727, 4
    %v1730 = vrot.slane %v1456, 5
    %v1731 = vsel %vm1591, %v1729, %v1730
    %v1732 = vrot.slane %v1457, 5
    %v1733 = vrot.slane %v1732, 4
    %v1734 = vrot.slane %v1458, 5
    %v1735 = vsel %vm1591, %v1733, %v1734
    %v1736 = vrot.slane %v1734, 4
    %v1737 = vrot.slane %v1459, 5
    %v1738 = vsel %vm1591, %v1736, %v1737
    %v1739 = vrot.slane %v1460, 5
    %v1740 = vrot.slane %v1739, 4
    %v1741 = vrot.slane %v1461, 5
    %v1742 = vsel %vm1591, %v1740, %v1741
    %v1743 = vrot.slane %v1741, 4
    %v1744 = vrot.slane %v1462, 5
    %v1745 = vsel %vm1591, %v1743, %v1744
    %v1746 = vrot.slane %v1463, 5
    %v1747 = vrot.slane %v1746, 4
    %v1748 = vrot.slane %v1464, 5
    %v1749 = vsel %vm1591, %v1747, %v1748
    %v1750 = vrot.slane %v1748, 4
    %v1751 = vrot.slane %v1465, 5
    %v1752 = vsel %vm1591, %v1750, %v1751
    %v1753 = vrot.slane %v1466, 5
    %v1754 = vrot.slane %v1753, 4
    %v1755 = vrot.slane %v1467, 5
    %v1756 = vsel %vm1591, %v1754, %v1755
    %v1757 = vrot.slane %v1755, 4
    %v1758 = vrot.slane %v1468, 5
    %v1759 = vsel %vm1591, %v1757, %v1758
    %v1760 = vrot.slane %v1469, 5
    %v1761 = vrot.slane %v1760, 4
    %v1762 = vrot.slane %v1470, 5
    %v1763 = vsel %vm1591, %v1761, %v1762
    %v1764 = vrot.slane %v1762, 4
    %v1765 = vrot.slane %v1471, 5
    %v1766 = vsel %vm1591, %v1764, %v1765
    %v1767 = vrot.slane %v1472, 5
    %v1768 = vrot.slane %v1767, 4
    %v1769 = vrot.slane %v1473, 5
    %v1770 = vsel %vm1591, %v1768, %v1769
    %v1771 = vrot.slane %v1769, 4
    %v1772 = vrot.slane %v1474, 5
    %v1773 = vsel %vm1591, %v1771, %v1772
    %v1774 = vrot.slane %v1475, 5
    %v1775 = vrot.slane %v1774, 4
    %v1776 = vrot.slane %v1476, 5
    %v1777 = vsel %vm1591, %v1775, %v1776
    %v1778 = vrot.slane %v1776, 4
    %v1779 = vrot.slane %v1477, 5
    %v1780 = vsel %vm1591, %v1778, %v1779
    %v1781 = vrot.slane %v1478, 5
    %v1782 = vrot.slane %v1781, 4
    %v1783 = vrot.slane %v1479, 5
    %v1784 = vsel %vm1591, %v1782, %v1783
    %v1785 = vrot.slane %v1783, 4
    %v1786 = vrot.slane %v1480, 5
    %v1787 = vsel %vm1591, %v1785, %v1786
    %v1788 = vrot.slane %v1481, 5
    %v1789 = vrot.slane %v1788, 4
    %v1790 = vrot.slane %v1482, 5
    %v1791 = vsel %vm1591, %v1789, %v1790
    %v1792 = vrot.slane %v1790, 4
    %v1793 = vrot.slane %v1483, 5
    %v1794 = vsel %vm1591, %v1792, %v1793
    %v1795 = vrot.slane %v1484, 5
    %v1796 = vrot.slane %v1795, 4
    %v1797 = vrot.slane %v1485, 5
    %v1798 = vsel %vm1591, %v1796, %v1797
    %v1799 = vrot.slane %v1797, 4
    %v1800 = vrot.slane %v1486, 5
    %v1801 = vsel %vm1591, %v1799, %v1800
    %v1802 = vrot.slane %v1487, 5
    %v1803 = vrot.slane %v1802, 4
    %v1804 = vrot.slane %v1488, 5
    %v1805 = vsel %vm1591, %v1803, %v1804
    %v1806 = vrot.slane %v1804, 4
    %v1807 = vrot.slane %v1489, 5
    %v1808 = vsel %vm1591, %v1806, %v1807
    %v1809 = vrot.slane %v1490, 5
    %v1810 = vrot.slane %v1809, 4
    %v1811 = vrot.slane %v1491, 5
    %v1812 = vsel %vm1591, %v1810, %v1811
    %v1813 = vrot.slane %v1811, 4
    %v1814 = vrot.slane %v1492, 5
    %v1815 = vsel %vm1591, %v1813, %v1814
    %v1816 = vunpack.c.l.b16 %v1595
    %v1817 = vunpack.c.l.b16 %v1598
    %v1818 = vunpack.c.l.b16 %v1602
    %v1819 = vunpack.c.l.b16 %v1605
    %v1820 = vunpack.c.l.b16 %v1609
    %v1821 = vunpack.c.l.b16 %v1612
    %v1822 = vunpack.c.l.b16 %v1616
    %v1823 = vunpack.c.l.b16 %v1619
    %v1824 = vunpack.c.l.b16 %v1623
    %v1825 = vunpack.c.l.b16 %v1626
    %v1826 = vunpack.c.l.b16 %v1630
    %v1827 = vunpack.c.l.b16 %v1633
    %v1828 = vunpack.c.l.b16 %v1637
    %v1829 = vunpack.c.l.b16 %v1640
    %v1830 = vunpack.c.l.b16 %v1644
    %v1831 = vunpack.c.l.b16 %v1647
    %v1832 = vunpack.c.l.b16 %v1651
    %v1833 = vunpack.c.l.b16 %v1654
    %v1834 = vunpack.c.l.b16 %v1658
    %v1835 = vunpack.c.l.b16 %v1661
    %v1836 = vunpack.c.l.b16 %v1665
    %v1837 = vunpack.c.l.b16 %v1668
    %v1838 = vunpack.c.l.b16 %v1672
    %v1839 = vunpack.c.l.b16 %v1675
    %v1840 = vunpack.c.l.b16 %v1679
    %v1841 = vunpack.c.l.b16 %v1682
    %v1842 = vunpack.c.l.b16 %v1686
    %v1843 = vunpack.c.l.b16 %v1689
    %v1844 = vunpack.c.l.b16 %v1693
    %v1845 = vunpack.c.l.b16 %v1696
    %v1846 = vunpack.c.l.b16 %v1700
    %v1847 = vunpack.c.l.b16 %v1703
    %v1848 = vunpack.c.l.b16 %v1707
    %v1849 = vunpack.c.l.b16 %v1710
    %v1850 = vunpack.c.l.b16 %v1714
    %v1851 = vunpack.c.l.b16 %v1717
    %v1852 = vunpack.c.l.b16 %v1721
    %v1853 = vunpack.c.l.b16 %v1724
    %v1854 = vunpack.c.l.b16 %v1728
    %v1855 = vunpack.c.l.b16 %v1731
    %v1856 = vunpack.c.l.b16 %v1735
    %v1857 = vunpack.c.l.b16 %v1738
    %v1858 = vunpack.c.l.b16 %v1742
    %v1859 = vunpack.c.l.b16 %v1745
    %v1860 = vunpack.c.l.b16 %v1749
    %v1861 = vunpack.c.l.b16 %v1752
    %v1862 = vunpack.c.l.b16 %v1756
    %v1863 = vunpack.c.l.b16 %v1759
    %v1864 = vunpack.c.l.b16 %v1763
    %v1865 = vunpack.c.l.b16 %v1766
    %v1866 = vunpack.c.l.b16 %v1770
    %v1867 = vunpack.c.l.b16 %v1773
    %v1868 = vunpack.c.l.b16 %v1777
    %v1869 = vunpack.c.l.b16 %v1780
    %v1870 = vunpack.c.l.b16 %v1784
    %v1871 = vunpack.c.l.b16 %v1787
    %v1872 = vunpack.c.l.b16 %v1791
    %v1873 = vunpack.c.l.b16 %v1794
    %v1874 = vunpack.c.l.b16 %v1798
    %v1875 = vunpack.c.l.b16 %v1801
    %v1876 = vunpack.c.l.b16 %v1805
    %v1877 = vunpack.c.l.b16 %v1808
    %v1878 = vunpack.c.l.b16 %v1812
    %v1879 = vunpack.c.l.b16 %v1815
    %v1880 = vpack.c.b16 %v1817, %v1816
    %v1881 = vpack.c.b16 %v1819, %v1818
    %v1882 = vpack.c.b16 %v1821, %v1820
    %v1883 = vpack.c.b16 %v1823, %v1822
    %v1884 = vpack.c.b16 %v1825, %v1824
    %v1885 = vpack.c.b16 %v1827, %v1826
    %v1886 = vpack.c.b16 %v1829, %v1828
    %v1887 = vpack.c.b16 %v1831, %v1830
    %v1888 = vpack.c.b16 %v1833, %v1832
    %v1889 = vpack.c.b16 %v1835, %v1834
    %v1890 = vpack.c.b16 %v1837, %v1836
    %v1891 = vpack.c.b16 %v1839, %v1838
    %v1892 = vpack.c.b16 %v1841, %v1840
    %v1893 = vpack.c.b16 %v1843, %v1842
    %v1894 = vpack.c.b16 %v1845, %v1844
    %v1895 = vpack.c.b16 %v1847, %v1846
    %v1896 = vpack.c.b16 %v1849, %v1848
    %v1897 = vpack.c.b16 %v1851, %v1850
    %v1898 = vpack.c.b16 %v1853, %v1852
    %v1899 = vpack.c.b16 %v1855, %v1854
    %v1900 = vpack.c.b16 %v1857, %v1856
    %v1901 = vpack.c.b16 %v1859, %v1858
    %v1902 = vpack.c.b16 %v1861, %v1860
    %v1903 = vpack.c.b16 %v1863, %v1862
    %v1904 = vpack.c.b16 %v1865, %v1864
    %v1905 = vpack.c.b16 %v1867, %v1866
    %v1906 = vpack.c.b16 %v1869, %v1868
    %v1907 = vpack.c.b16 %v1871, %v1870
    %v1908 = vpack.c.b16 %v1873, %v1872
    %v1909 = vpack.c.b16 %v1875, %v1874
    %v1910 = vpack.c.b16 %v1877, %v1876
    %v1911 = vpack.c.b16 %v1879, %v1878
    %1944 = vst.msk [vmem:[#allocation2 + $0x8] sm:$0xff] %vm272, %v1880
    %1945 = vst.msk [vmem:[#allocation2 + $0x30] sm:$0xff] %vm272, %v1881
    %1946 = vst.msk [vmem:[#allocation2 + $0x58] sm:$0xff] %vm272, %v1882
    %1947 = vst.msk [vmem:[#allocation2 + $0x80] sm:$0xff] %vm272, %v1883
    %1948 = vst.msk [vmem:[#allocation2 + $0xa8] sm:$0xff] %vm272, %v1884
    %1949 = vst.msk [vmem:[#allocation2 + $0xd0] sm:$0xff] %vm272, %v1885
    %1950 = vst.msk [vmem:[#allocation2 + $0xf8] sm:$0xff] %vm272, %v1886
    %1951 = vst.msk [vmem:[#allocation2 + $0x120] sm:$0xff] %vm272, %v1887
    %1952 = vst.msk [vmem:[#allocation2 + $0x148] sm:$0xff] %vm272, %v1888
    %1953 = vst.msk [vmem:[#allocation2 + $0x170] sm:$0xff] %vm272, %v1889
    %1954 = vst.msk [vmem:[#allocation2 + $0x198] sm:$0xff] %vm272, %v1890
    %1955 = vst.msk [vmem:[#allocation2 + $0x1c0] sm:$0xff] %vm272, %v1891
    %1956 = vst.msk [vmem:[#allocation2 + $0x1e8] sm:$0xff] %vm272, %v1892
    %1957 = vst.msk [vmem:[#allocation2 + $0x210] sm:$0xff] %vm272, %v1893
    %1958 = vst.msk [vmem:[#allocation2 + $0x238] sm:$0xff] %vm272, %v1894
    %1959 = vst.msk [vmem:[#allocation2 + $0x260] sm:$0xff] %vm272, %v1895
    %1960 = vst.msk [vmem:[#allocation2 + $0x288] sm:$0xff] %vm272, %v1896
    %1961 = vst.msk [vmem:[#allocation2 + $0x2b0] sm:$0xff] %vm272, %v1897
    %1962 = vst.msk [vmem:[#allocation2 + $0x2d8] sm:$0xff] %vm272, %v1898
    %1963 = vst.msk [vmem:[#allocation2 + $0x300] sm:$0xff] %vm272, %v1899
    %1964 = vst.msk [vmem:[#allocation2 + $0x328] sm:$0xff] %vm272, %v1900
    %1965 = vst.msk [vmem:[#allocation2 + $0x350] sm:$0xff] %vm272, %v1901
    %1966 = vst.msk [vmem:[#allocation2 + $0x378] sm:$0xff] %vm272, %v1902
    %1967 = vst.msk [vmem:[#allocation2 + $0x3a0] sm:$0xff] %vm272, %v1903
    %1968 = vst.msk [vmem:[#allocation2 + $0x3c8] sm:$0xff] %vm272, %v1904
    %1969 = vst.msk [vmem:[#allocation2 + $0x3f0] sm:$0xff] %vm272, %v1905
    %1970 = vst.msk [vmem:[#allocation2 + $0x418] sm:$0xff] %vm272, %v1906
    %1971 = vst.msk [vmem:[#allocation2 + $0x440] sm:$0xff] %vm272, %v1907
    %1972 = vst.msk [vmem:[#allocation2 + $0x468] sm:$0xff] %vm272, %v1908
    %1973 = vst.msk [vmem:[#allocation2 + $0x490] sm:$0xff] %vm272, %v1909
    %1974 = vst.msk [vmem:[#allocation2 + $0x4b8] sm:$0xff] %vm272, %v1910
    %1975 = vst.msk [vmem:[#allocation2 + $0x4e0] sm:$0xff] %vm272, %v1911
    %s1976 = scalar_lea.vmem %s0, 12
    %v1977 = vld [vmem:[%s1976] sm:$0xf]
    %v1978 = vld [vmem:[%s1976 + $0x4] sm:$0xf]
    %v1979 = vld [vmem:[%s1976 + $0xc] sm:$0xf]
    %v1980 = vld [vmem:[%s1976 + $0x10] sm:$0xf]
    %v1981 = vld [vmem:[%s1976 + $0x18] sm:$0xf]
    %v1982 = vld [vmem:[%s1976 + $0x1c] sm:$0xf]
    %v1983 = vld [vmem:[%s1976 + $0x24] sm:$0xf]
    %v1984 = vld [vmem:[%s1976 + $0x28] sm:$0xf]
    %v1985 = vld [vmem:[%s1976 + $0x30] sm:$0xf]
    %v1986 = vld [vmem:[%s1976 + $0x34] sm:$0xf]
    %v1987 = vld [vmem:[%s1976 + $0x3c] sm:$0xf]
    %v1988 = vld [vmem:[%s1976 + $0x40] sm:$0xf]
    %v1989 = vld [vmem:[%s1976 + $0x48] sm:$0xf]
    %v1990 = vld [vmem:[%s1976 + $0x4c] sm:$0xf]
    %v1991 = vld [vmem:[%s1976 + $0x54] sm:$0xf]
    %v1992 = vld [vmem:[%s1976 + $0x58] sm:$0xf]
    %v1993 = vld [vmem:[%s1976 + $0x60] sm:$0xf]
    %v1994 = vld [vmem:[%s1976 + $0x64] sm:$0xf]
    %v1995 = vld [vmem:[%s1976 + $0x6c] sm:$0xf]
    %v1996 = vld [vmem:[%s1976 + $0x70] sm:$0xf]
    %v1997 = vld [vmem:[%s1976 + $0x78] sm:$0xf]
    %v1998 = vld [vmem:[%s1976 + $0x7c] sm:$0xf]
    %v1999 = vld [vmem:[%s1976 + $0x84] sm:$0xf]
    %v2000 = vld [vmem:[%s1976 + $0x88] sm:$0xf]
    %v2001 = vld [vmem:[%s1976 + $0x90] sm:$0xf]
    %v2002 = vld [vmem:[%s1976 + $0x94] sm:$0xf]
    %v2003 = vld [vmem:[%s1976 + $0x9c] sm:$0xf]
    %v2004 = vld [vmem:[%s1976 + $0xa0] sm:$0xf]
    %v2005 = vld [vmem:[%s1976 + $0xa8] sm:$0xf]
    %v2006 = vld [vmem:[%s1976 + $0xac] sm:$0xf]
    %v2007 = vld [vmem:[%s1976 + $0xb4] sm:$0xf]
    %v2008 = vld [vmem:[%s1976 + $0xb8] sm:$0xf]
    %v2009 = vld [vmem:[%s1976 + $0xd8] sm:$0xf]
    %v2010 = vld [vmem:[%s1976 + $0xdc] sm:$0xf]
    %v2011 = vld [vmem:[%s1976 + $0xe4] sm:$0xf]
    %v2012 = vld [vmem:[%s1976 + $0xe8] sm:$0xf]
    %v2013 = vld [vmem:[%s1976 + $0xf0] sm:$0xf]
    %v2014 = vld [vmem:[%s1976 + $0xf4] sm:$0xf]
    %v2015 = vld [vmem:[%s1976 + $0xfc] sm:$0xf]
    %v2016 = vld [vmem:[%s1976 + $0x100] sm:$0xf]
    %v2017 = vld [vmem:[%s1976 + $0x108] sm:$0xf]
    %v2018 = vld [vmem:[%s1976 + $0x10c] sm:$0xf]
    %v2019 = vld [vmem:[%s1976 + $0x114] sm:$0xf]
    %v2020 = vld [vmem:[%s1976 + $0x118] sm:$0xf]
    %v2021 = vld [vmem:[%s1976 + $0x120] sm:$0xf]
    %v2022 = vld [vmem:[%s1976 + $0x124] sm:$0xf]
    %v2023 = vld [vmem:[%s1976 + $0x12c] sm:$0xf]
    %v2024 = vld [vmem:[%s1976 + $0x130] sm:$0xf]
    %v2025 = vld [vmem:[%s1976 + $0x138] sm:$0xf]
    %v2026 = vld [vmem:[%s1976 + $0x13c] sm:$0xf]
    %v2027 = vld [vmem:[%s1976 + $0x144] sm:$0xf]
    %v2028 = vld [vmem:[%s1976 + $0x148] sm:$0xf]
    %v2029 = vld [vmem:[%s1976 + $0x150] sm:$0xf]
    %v2030 = vld [vmem:[%s1976 + $0x154] sm:$0xf]
    %v2031 = vld [vmem:[%s1976 + $0x15c] sm:$0xf]
    %v2032 = vld [vmem:[%s1976 + $0x160] sm:$0xf]
    %v2033 = vld [vmem:[%s1976 + $0x168] sm:$0xf]
    %v2034 = vld [vmem:[%s1976 + $0x16c] sm:$0xf]
    %v2035 = vld [vmem:[%s1976 + $0x174] sm:$0xf]
    %v2036 = vld [vmem:[%s1976 + $0x178] sm:$0xf]
    %v2037 = vld [vmem:[%s1976 + $0x180] sm:$0xf]
    %v2038 = vld [vmem:[%s1976 + $0x184] sm:$0xf]
    %v2039 = vld [vmem:[%s1976 + $0x18c] sm:$0xf]
    %v2040 = vld [vmem:[%s1976 + $0x190] sm:$0xf]
    %v2105 = vunpack.c.l.b16 %v1977
    %v2106 = vunpack.c.l.b16 %v1978
    %v2107 = vunpack.c.l.b16 %v1979
    %v2108 = vunpack.c.l.b16 %v1980
    %v2109 = vunpack.c.l.b16 %v1981
    %v2110 = vunpack.c.l.b16 %v1982
    %v2111 = vunpack.c.l.b16 %v1983
    %v2112 = vunpack.c.l.b16 %v1984
    %v2113 = vunpack.c.l.b16 %v1985
    %v2114 = vunpack.c.l.b16 %v1986
    %v2115 = vunpack.c.l.b16 %v1987
    %v2116 = vunpack.c.l.b16 %v1988
    %v2117 = vunpack.c.l.b16 %v1989
    %v2118 = vunpack.c.l.b16 %v1990
    %v2119 = vunpack.c.l.b16 %v1991
    %v2120 = vunpack.c.l.b16 %v1992
    %v2121 = vunpack.c.l.b16 %v1993
    %v2122 = vunpack.c.l.b16 %v1994
    %v2123 = vunpack.c.l.b16 %v1995
    %v2124 = vunpack.c.l.b16 %v1996
    %v2125 = vunpack.c.l.b16 %v1997
    %v2126 = vunpack.c.l.b16 %v1998
    %v2127 = vunpack.c.l.b16 %v1999
    %v2128 = vunpack.c.l.b16 %v2000
    %v2129 = vunpack.c.l.b16 %v2001
    %v2130 = vunpack.c.l.b16 %v2002
    %v2131 = vunpack.c.l.b16 %v2003
    %v2132 = vunpack.c.l.b16 %v2004
    %v2133 = vunpack.c.l.b16 %v2005
    %v2134 = vunpack.c.l.b16 %v2006
    %v2135 = vunpack.c.l.b16 %v2007
    %v2136 = vunpack.c.l.b16 %v2008
    %v2137 = vunpack.c.l.b16 %v2009
    %v2138 = vunpack.c.l.b16 %v2010
    %v2139 = vunpack.c.l.b16 %v2011
    %v2140 = vunpack.c.l.b16 %v2012
    %v2141 = vunpack.c.l.b16 %v2013
    %v2142 = vunpack.c.l.b16 %v2014
    %v2143 = vunpack.c.l.b16 %v2015
    %v2144 = vunpack.c.l.b16 %v2016
    %v2145 = vunpack.c.l.b16 %v2017
    %v2146 = vunpack.c.l.b16 %v2018
    %v2147 = vunpack.c.l.b16 %v2019
    %v2148 = vunpack.c.l.b16 %v2020
    %v2149 = vunpack.c.l.b16 %v2021
    %v2150 = vunpack.c.l.b16 %v2022
    %v2151 = vunpack.c.l.b16 %v2023
    %v2152 = vunpack.c.l.b16 %v2024
    %v2153 = vunpack.c.l.b16 %v2025
    %v2154 = vunpack.c.l.b16 %v2026
    %v2155 = vunpack.c.l.b16 %v2027
    %v2156 = vunpack.c.l.b16 %v2028
    %v2157 = vunpack.c.l.b16 %v2029
    %v2158 = vunpack.c.l.b16 %v2030
    %v2159 = vunpack.c.l.b16 %v2031
    %v2160 = vunpack.c.l.b16 %v2032
    %v2161 = vunpack.c.l.b16 %v2033
    %v2162 = vunpack.c.l.b16 %v2034
    %v2163 = vunpack.c.l.b16 %v2035
    %v2164 = vunpack.c.l.b16 %v2036
    %v2165 = vunpack.c.l.b16 %v2037
    %v2166 = vunpack.c.l.b16 %v2038
    %v2167 = vunpack.c.l.b16 %v2039
    %v2168 = vunpack.c.l.b16 %v2040
    %v2169 = vpack.c.b16 %v2106, %v2105
    %v2170 = vpack.c.b16 %v2108, %v2107
    %v2171 = vpack.c.b16 %v2110, %v2109
    %v2172 = vpack.c.b16 %v2112, %v2111
    %v2173 = vpack.c.b16 %v2114, %v2113
    %v2174 = vpack.c.b16 %v2116, %v2115
    %v2175 = vpack.c.b16 %v2118, %v2117
    %v2176 = vpack.c.b16 %v2120, %v2119
    %v2177 = vpack.c.b16 %v2122, %v2121
    %v2178 = vpack.c.b16 %v2124, %v2123
    %v2179 = vpack.c.b16 %v2126, %v2125
    %v2180 = vpack.c.b16 %v2128, %v2127
    %v2181 = vpack.c.b16 %v2130, %v2129
    %v2182 = vpack.c.b16 %v2132, %v2131
    %v2183 = vpack.c.b16 %v2134, %v2133
    %v2184 = vpack.c.b16 %v2136, %v2135
    %v2185 = vpack.c.b16 %v2138, %v2137
    %v2186 = vpack.c.b16 %v2140, %v2139
    %v2187 = vpack.c.b16 %v2142, %v2141
    %v2188 = vpack.c.b16 %v2144, %v2143
    %v2189 = vpack.c.b16 %v2146, %v2145
    %v2190 = vpack.c.b16 %v2148, %v2147
    %v2191 = vpack.c.b16 %v2150, %v2149
    %v2192 = vpack.c.b16 %v2152, %v2151
    %v2193 = vpack.c.b16 %v2154, %v2153
    %v2194 = vpack.c.b16 %v2156, %v2155
    %v2195 = vpack.c.b16 %v2158, %v2157
    %v2196 = vpack.c.b16 %v2160, %v2159
    %v2197 = vpack.c.b16 %v2162, %v2161
    %v2198 = vpack.c.b16 %v2164, %v2163
    %v2199 = vpack.c.b16 %v2166, %v2165
    %v2200 = vpack.c.b16 %v2168, %v2167
    %2201 = vrot.lane.b32.xlu0 %v2169, 64
    %v2202 = vpop.permute.xlu0 %2201
    %2203 = vrot.lane.b32.xlu0 %v2170, 64
    %v2204 = vpop.permute.xlu0 %2203
    %2205 = vrot.lane.b32.xlu0 %v2171, 64
    %v2206 = vpop.permute.xlu0 %2205
    %2207 = vrot.lane.b32.xlu0 %v2172, 64
    %v2208 = vpop.permute.xlu0 %2207
    %2209 = vrot.lane.b32.xlu0 %v2173, 64
    %v2210 = vpop.permute.xlu0 %2209
    %2211 = vrot.lane.b32.xlu0 %v2174, 64
    %v2212 = vpop.permute.xlu0 %2211
    %2213 = vrot.lane.b32.xlu0 %v2175, 64
    %v2214 = vpop.permute.xlu0 %2213
    %2215 = vrot.lane.b32.xlu0 %v2176, 64
    %v2216 = vpop.permute.xlu0 %2215
    %2217 = vrot.lane.b32.xlu0 %v2177, 64
    %v2218 = vpop.permute.xlu0 %2217
    %2219 = vrot.lane.b32.xlu0 %v2178, 64
    %v2220 = vpop.permute.xlu0 %2219
    %2221 = vrot.lane.b32.xlu0 %v2179, 64
    %v2222 = vpop.permute.xlu0 %2221
    %2223 = vrot.lane.b32.xlu0 %v2180, 64
    %v2224 = vpop.permute.xlu0 %2223
    %2225 = vrot.lane.b32.xlu0 %v2181, 64
    %v2226 = vpop.permute.xlu0 %2225
    %2227 = vrot.lane.b32.xlu0 %v2182, 64
    %v2228 = vpop.permute.xlu0 %2227
    %2229 = vrot.lane.b32.xlu0 %v2183, 64
    %v2230 = vpop.permute.xlu0 %2229
    %2231 = vrot.lane.b32.xlu0 %v2184, 64
    %v2232 = vpop.permute.xlu0 %2231
    %2233 = vrot.lane.b32.xlu0 %v2185, 64
    %v2234 = vpop.permute.xlu0 %2233
    %2235 = vrot.lane.b32.xlu0 %v2186, 64
    %v2236 = vpop.permute.xlu0 %2235
    %2237 = vrot.lane.b32.xlu0 %v2187, 64
    %v2238 = vpop.permute.xlu0 %2237
    %2239 = vrot.lane.b32.xlu0 %v2188, 64
    %v2240 = vpop.permute.xlu0 %2239
    %2241 = vrot.lane.b32.xlu0 %v2189, 64
    %v2242 = vpop.permute.xlu0 %2241
    %2243 = vrot.lane.b32.xlu0 %v2190, 64
    %v2244 = vpop.permute.xlu0 %2243
    %2245 = vrot.lane.b32.xlu0 %v2191, 64
    %v2246 = vpop.permute.xlu0 %2245
    %2247 = vrot.lane.b32.xlu0 %v2192, 64
    %v2248 = vpop.permute.xlu0 %2247
    %2249 = vrot.lane.b32.xlu0 %v2193, 64
    %v2250 = vpop.permute.xlu0 %2249
    %2251 = vrot.lane.b32.xlu0 %v2194, 64
    %v2252 = vpop.permute.xlu0 %2251
    %2253 = vrot.lane.b32.xlu0 %v2195, 64
    %v2254 = vpop.permute.xlu0 %2253
    %2255 = vrot.lane.b32.xlu0 %v2196, 64
    %v2256 = vpop.permute.xlu0 %2255
    %2257 = vrot.lane.b32.xlu0 %v2197, 64
    %v2258 = vpop.permute.xlu0 %2257
    %2259 = vrot.lane.b32.xlu0 %v2198, 64
    %v2260 = vpop.permute.xlu0 %2259
    %2261 = vrot.lane.b32.xlu0 %v2199, 64
    %v2262 = vpop.permute.xlu0 %2261
    %2263 = vrot.lane.b32.xlu0 %v2200, 64
    %v2264 = vpop.permute.xlu0 %2263
    %2297 = vst.msk [vmem:[#allocation2 + $0x8] sm:$0xff] %vm1364, %v2202
    %2298 = vst.msk [vmem:[#allocation2 + $0x30] sm:$0xff] %vm1364, %v2204
    %2299 = vst.msk [vmem:[#allocation2 + $0x58] sm:$0xff] %vm1364, %v2206
    %2300 = vst.msk [vmem:[#allocation2 + $0x80] sm:$0xff] %vm1364, %v2208
    %2301 = vst.msk [vmem:[#allocation2 + $0xa8] sm:$0xff] %vm1364, %v2210
    %2302 = vst.msk [vmem:[#allocation2 + $0xd0] sm:$0xff] %vm1364, %v2212
    %2303 = vst.msk [vmem:[#allocation2 + $0xf8] sm:$0xff] %vm1364, %v2214
    %2304 = vst.msk [vmem:[#allocation2 + $0x120] sm:$0xff] %vm1364, %v2216
    %2305 = vst.msk [vmem:[#allocation2 + $0x148] sm:$0xff] %vm1364, %v2218
    %2306 = vst.msk [vmem:[#allocation2 + $0x170] sm:$0xff] %vm1364, %v2220
    %2307 = vst.msk [vmem:[#allocation2 + $0x198] sm:$0xff] %vm1364, %v2222
    %2308 = vst.msk [vmem:[#allocation2 + $0x1c0] sm:$0xff] %vm1364, %v2224
    %2309 = vst.msk [vmem:[#allocation2 + $0x1e8] sm:$0xff] %vm1364, %v2226
    %2310 = vst.msk [vmem:[#allocation2 + $0x210] sm:$0xff] %vm1364, %v2228
    %2311 = vst.msk [vmem:[#allocation2 + $0x238] sm:$0xff] %vm1364, %v2230
    %2312 = vst.msk [vmem:[#allocation2 + $0x260] sm:$0xff] %vm1364, %v2232
    %2313 = vst.msk [vmem:[#allocation2 + $0x288] sm:$0xff] %vm1364, %v2234
    %2314 = vst.msk [vmem:[#allocation2 + $0x2b0] sm:$0xff] %vm1364, %v2236
    %2315 = vst.msk [vmem:[#allocation2 + $0x2d8] sm:$0xff] %vm1364, %v2238
    %2316 = vst.msk [vmem:[#allocation2 + $0x300] sm:$0xff] %vm1364, %v2240
    %2317 = vst.msk [vmem:[#allocation2 + $0x328] sm:$0xff] %vm1364, %v2242
    %2318 = vst.msk [vmem:[#allocation2 + $0x350] sm:$0xff] %vm1364, %v2244
    %2319 = vst.msk [vmem:[#allocation2 + $0x378] sm:$0xff] %vm1364, %v2246
    %2320 = vst.msk [vmem:[#allocation2 + $0x3a0] sm:$0xff] %vm1364, %v2248
    %2321 = vst.msk [vmem:[#allocation2 + $0x3c8] sm:$0xff] %vm1364, %v2250
    %2322 = vst.msk [vmem:[#allocation2 + $0x3f0] sm:$0xff] %vm1364, %v2252
    %2323 = vst.msk [vmem:[#allocation2 + $0x418] sm:$0xff] %vm1364, %v2254
    %2324 = vst.msk [vmem:[#allocation2 + $0x440] sm:$0xff] %vm1364, %v2256
    %2325 = vst.msk [vmem:[#allocation2 + $0x468] sm:$0xff] %vm1364, %v2258
    %2326 = vst.msk [vmem:[#allocation2 + $0x490] sm:$0xff] %vm1364, %v2260
    %2327 = vst.msk [vmem:[#allocation2 + $0x4b8] sm:$0xff] %vm1364, %v2262
    %2328 = vst.msk [vmem:[#allocation2 + $0x4e0] sm:$0xff] %vm1364, %v2264
    %v2329 = vld [vmem:[%s1976] sm:$0xf]
    %v2330 = vld [vmem:[%s1976 + $0x4] sm:$0xf]
    %v2331 = vld [vmem:[%s1976 + $0x8] sm:$0x1]
    %v2332 = vld [vmem:[%s1976 + $0xc] sm:$0xf]
    %v2333 = vld [vmem:[%s1976 + $0x10] sm:$0xf]
    %v2334 = vld [vmem:[%s1976 + $0x14] sm:$0x1]
    %v2335 = vld [vmem:[%s1976 + $0x18] sm:$0xf]
    %v2336 = vld [vmem:[%s1976 + $0x1c] sm:$0xf]
    %v2337 = vld [vmem:[%s1976 + $0x20] sm:$0x1]
    %v2338 = vld [vmem:[%s1976 + $0x24] sm:$0xf]
    %v2339 = vld [vmem:[%s1976 + $0x28] sm:$0xf]
    %v2340 = vld [vmem:[%s1976 + $0x2c] sm:$0x1]
    %v2341 = vld [vmem:[%s1976 + $0x30] sm:$0xf]
    %v2342 = vld [vmem:[%s1976 + $0x34] sm:$0xf]
    %v2343 = vld [vmem:[%s1976 + $0x38] sm:$0x1]
    %v2344 = vld [vmem:[%s1976 + $0x3c] sm:$0xf]
    %v2345 = vld [vmem:[%s1976 + $0x40] sm:$0xf]
    %v2346 = vld [vmem:[%s1976 + $0x44] sm:$0x1]
    %v2347 = vld [vmem:[%s1976 + $0x48] sm:$0xf]
    %v2348 = vld [vmem:[%s1976 + $0x4c] sm:$0xf]
    %v2349 = vld [vmem:[%s1976 + $0x50] sm:$0x1]
    %v2350 = vld [vmem:[%s1976 + $0x54] sm:$0xf]
    %v2351 = vld [vmem:[%s1976 + $0x58] sm:$0xf]
    %v2352 = vld [vmem:[%s1976 + $0x5c] sm:$0x1]
    %v2353 = vld [vmem:[%s1976 + $0x60] sm:$0xf]
    %v2354 = vld [vmem:[%s1976 + $0x64] sm:$0xf]
    %v2355 = vld [vmem:[%s1976 + $0x68] sm:$0x1]
    %v2356 = vld [vmem:[%s1976 + $0x6c] sm:$0xf]
    %v2357 = vld [vmem:[%s1976 + $0x70] sm:$0xf]
    %v2358 = vld [vmem:[%s1976 + $0x74] sm:$0x1]
    %v2359 = vld [vmem:[%s1976 + $0x78] sm:$0xf]
    %v2360 = vld [vmem:[%s1976 + $0x7c] sm:$0xf]
    %v2361 = vld [vmem:[%s1976 + $0x80] sm:$0x1]
    %v2362 = vld [vmem:[%s1976 + $0x84] sm:$0xf]
    %v2363 = vld [vmem:[%s1976 + $0x88] sm:$0xf]
    %v2364 = vld [vmem:[%s1976 + $0x8c] sm:$0x1]
    %v2365 = vld [vmem:[%s1976 + $0x90] sm:$0xf]
    %v2366 = vld [vmem:[%s1976 + $0x94] sm:$0xf]
    %v2367 = vld [vmem:[%s1976 + $0x98] sm:$0x1]
    %v2368 = vld [vmem:[%s1976 + $0x9c] sm:$0xf]
    %v2369 = vld [vmem:[%s1976 + $0xa0] sm:$0xf]
    %v2370 = vld [vmem:[%s1976 + $0xa4] sm:$0x1]
    %v2371 = vld [vmem:[%s1976 + $0xa8] sm:$0xf]
    %v2372 = vld [vmem:[%s1976 + $0xac] sm:$0xf]
    %v2373 = vld [vmem:[%s1976 + $0xb0] sm:$0x1]
    %v2374 = vld [vmem:[%s1976 + $0xb4] sm:$0xf]
    %v2375 = vld [vmem:[%s1976 + $0xb8] sm:$0xf]
    %v2376 = vld [vmem:[%s1976 + $0xbc] sm:$0x1]
    %v2377 = vld [vmem:[%s1976 + $0xd8] sm:$0xf]
    %v2378 = vld [vmem:[%s1976 + $0xdc] sm:$0xf]
    %v2379 = vld [vmem:[%s1976 + $0xe0] sm:$0x1]
    %v2380 = vld [vmem:[%s1976 + $0xe4] sm:$0xf]
    %v2381 = vld [vmem:[%s1976 + $0xe8] sm:$0xf]
    %v2382 = vld [vmem:[%s1976 + $0xec] sm:$0x1]
    %v2383 = vld [vmem:[%s1976 + $0xf0] sm:$0xf]
    %v2384 = vld [vmem:[%s1976 + $0xf4] sm:$0xf]
    %v2385 = vld [vmem:[%s1976 + $0xf8] sm:$0x1]
    %v2386 = vld [vmem:[%s1976 + $0xfc] sm:$0xf]
    %v2387 = vld [vmem:[%s1976 + $0x100] sm:$0xf]
    %v2388 = vld [vmem:[%s1976 + $0x104] sm:$0x1]
    %v2389 = vld [vmem:[%s1976 + $0x108] sm:$0xf]
    %v2390 = vld [vmem:[%s1976 + $0x10c] sm:$0xf]
    %v2391 = vld [vmem:[%s1976 + $0x110] sm:$0x1]
    %v2392 = vld [vmem:[%s1976 + $0x114] sm:$0xf]
    %v2393 = vld [vmem:[%s1976 + $0x118] sm:$0xf]
    %v2394 = vld [vmem:[%s1976 + $0x11c] sm:$0x1]
    %v2395 = vld [vmem:[%s1976 + $0x120] sm:$0xf]
    %v2396 = vld [vmem:[%s1976 + $0x124] sm:$0xf]
    %v2397 = vld [vmem:[%s1976 + $0x128] sm:$0x1]
    %v2398 = vld [vmem:[%s1976 + $0x12c] sm:$0xf]
    %v2399 = vld [vmem:[%s1976 + $0x130] sm:$0xf]
    %v2400 = vld [vmem:[%s1976 + $0x134] sm:$0x1]
    %v2401 = vld [vmem:[%s1976 + $0x138] sm:$0xf]
    %v2402 = vld [vmem:[%s1976 + $0x13c] sm:$0xf]
    %v2403 = vld [vmem:[%s1976 + $0x140] sm:$0x1]
    %v2404 = vld [vmem:[%s1976 + $0x144] sm:$0xf]
    %v2405 = vld [vmem:[%s1976 + $0x148] sm:$0xf]
    %v2406 = vld [vmem:[%s1976 + $0x14c] sm:$0x1]
    %v2407 = vld [vmem:[%s1976 + $0x150] sm:$0xf]
    %v2408 = vld [vmem:[%s1976 + $0x154] sm:$0xf]
    %v2409 = vld [vmem:[%s1976 + $0x158] sm:$0x1]
    %v2410 = vld [vmem:[%s1976 + $0x15c] sm:$0xf]
    %v2411 = vld [vmem:[%s1976 + $0x160] sm:$0xf]
    %v2412 = vld [vmem:[%s1976 + $0x164] sm:$0x1]
    %v2413 = vld [vmem:[%s1976 + $0x168] sm:$0xf]
    %v2414 = vld [vmem:[%s1976 + $0x16c] sm:$0xf]
    %v2415 = vld [vmem:[%s1976 + $0x170] sm:$0x1]
    %v2416 = vld [vmem:[%s1976 + $0x174] sm:$0xf]
    %v2417 = vld [vmem:[%s1976 + $0x178] sm:$0xf]
    %v2418 = vld [vmem:[%s1976 + $0x17c] sm:$0x1]
    %v2419 = vld [vmem:[%s1976 + $0x180] sm:$0xf]
    %v2420 = vld [vmem:[%s1976 + $0x184] sm:$0xf]
    %v2421 = vld [vmem:[%s1976 + $0x188] sm:$0x1]
    %v2422 = vld [vmem:[%s1976 + $0x18c] sm:$0xf]
    %v2423 = vld [vmem:[%s1976 + $0x190] sm:$0xf]
    %v2424 = vld [vmem:[%s1976 + $0x194] sm:$0x1]
    %v2426 = vshrl.u32 %v2329, 16
    %v2428 = vrot.slane %v2426, 4
    %v2429 = vshll.u32 %v2329, 16
    %v2431 = vrot.slane %v2429, 5
    %v2432 = vor.u32 %v2428, %v2431
    %v2433 = vrot.slane %v2432, 4
    %v2435 = vshll.u32 %v2330, 16
    %v2437 = vrot.slane %v2435, 5
    %v2438 = vsel %vm403, %v2433, %v2437
    %v2439 = vshrl.u32 %v2330, 16
    %v2441 = vrot.slane %v2439, 4
    %v2442 = vor.u32 %v2441, %v2437
    %v2443 = vrot.slane %v2442, 4
    %v2445 = vshll.u32 %v2331, 16
    %v2447 = vrot.slane %v2445, 5
    %v2448 = vsel %vm403, %v2443, %v2447
    %v2450 = vshrl.u32 %v2332, 16
    %v2452 = vrot.slane %v2450, 4
    %v2453 = vshll.u32 %v2332, 16
    %v2455 = vrot.slane %v2453, 5
    %v2456 = vor.u32 %v2452, %v2455
    %v2457 = vrot.slane %v2456, 4
    %v2459 = vshll.u32 %v2333, 16
    %v2461 = vrot.slane %v2459, 5
    %v2462 = vsel %vm403, %v2457, %v2461
    %v2463 = vshrl.u32 %v2333, 16
    %v2465 = vrot.slane %v2463, 4
    %v2466 = vor.u32 %v2465, %v2461
    %v2467 = vrot.slane %v2466, 4
    %v2469 = vshll.u32 %v2334, 16
    %v2471 = vrot.slane %v2469, 5
    %v2472 = vsel %vm403, %v2467, %v2471
    %v2474 = vshrl.u32 %v2335, 16
    %v2476 = vrot.slane %v2474, 4
    %v2477 = vshll.u32 %v2335, 16
    %v2479 = vrot.slane %v2477, 5
    %v2480 = vor.u32 %v2476, %v2479
    %v2481 = vrot.slane %v2480, 4
    %v2483 = vshll.u32 %v2336, 16
    %v2485 = vrot.slane %v2483, 5
    %v2486 = vsel %vm403, %v2481, %v2485
    %v2487 = vshrl.u32 %v2336, 16
    %v2489 = vrot.slane %v2487, 4
    %v2490 = vor.u32 %v2489, %v2485
    %v2491 = vrot.slane %v2490, 4
    %v2493 = vshll.u32 %v2337, 16
    %v2495 = vrot.slane %v2493, 5
    %v2496 = vsel %vm403, %v2491, %v2495
    %v2498 = vshrl.u32 %v2338, 16
    %v2500 = vrot.slane %v2498, 4
    %v2501 = vshll.u32 %v2338, 16
    %v2503 = vrot.slane %v2501, 5
    %v2504 = vor.u32 %v2500, %v2503
    %v2505 = vrot.slane %v2504, 4
    %v2507 = vshll.u32 %v2339, 16
    %v2509 = vrot.slane %v2507, 5
    %v2510 = vsel %vm403, %v2505, %v2509
    %v2511 = vshrl.u32 %v2339, 16
    %v2513 = vrot.slane %v2511, 4
    %v2514 = vor.u32 %v2513, %v2509
    %v2515 = vrot.slane %v2514, 4
    %v2517 = vshll.u32 %v2340, 16
    %v2519 = vrot.slane %v2517, 5
    %v2520 = vsel %vm403, %v2515, %v2519
    %v2522 = vshrl.u32 %v2341, 16
    %v2524 = vrot.slane %v2522, 4
    %v2525 = vshll.u32 %v2341, 16
    %v2527 = vrot.slane %v2525, 5
    %v2528 = vor.u32 %v2524, %v2527
    %v2529 = vrot.slane %v2528, 4
    %v2531 = vshll.u32 %v2342, 16
    %v2533 = vrot.slane %v2531, 5
    %v2534 = vsel %vm403, %v2529, %v2533
    %v2535 = vshrl.u32 %v2342, 16
    %v2537 = vrot.slane %v2535, 4
    %v2538 = vor.u32 %v2537, %v2533
    %v2539 = vrot.slane %v2538, 4
    %v2541 = vshll.u32 %v2343, 16
    %v2543 = vrot.slane %v2541, 5
    %v2544 = vsel %vm403, %v2539, %v2543
    %v2546 = vshrl.u32 %v2344, 16
    %v2548 = vrot.slane %v2546, 4
    %v2549 = vshll.u32 %v2344, 16
    %v2551 = vrot.slane %v2549, 5
    %v2552 = vor.u32 %v2548, %v2551
    %v2553 = vrot.slane %v2552, 4
    %v2555 = vshll.u32 %v2345, 16
    %v2557 = vrot.slane %v2555, 5
    %v2558 = vsel %vm403, %v2553, %v2557
    %v2559 = vshrl.u32 %v2345, 16
    %v2561 = vrot.slane %v2559, 4
    %v2562 = vor.u32 %v2561, %v2557
    %v2563 = vrot.slane %v2562, 4
    %v2565 = vshll.u32 %v2346, 16
    %v2567 = vrot.slane %v2565, 5
    %v2568 = vsel %vm403, %v2563, %v2567
    %v2570 = vshrl.u32 %v2347, 16
    %v2572 = vrot.slane %v2570, 4
    %v2573 = vshll.u32 %v2347, 16
    %v2575 = vrot.slane %v2573, 5
    %v2576 = vor.u32 %v2572, %v2575
    %v2577 = vrot.slane %v2576, 4
    %v2579 = vshll.u32 %v2348, 16
    %v2581 = vrot.slane %v2579, 5
    %v2582 = vsel %vm403, %v2577, %v2581
    %v2583 = vshrl.u32 %v2348, 16
    %v2585 = vrot.slane %v2583, 4
    %v2586 = vor.u32 %v2585, %v2581
    %v2587 = vrot.slane %v2586, 4
    %v2589 = vshll.u32 %v2349, 16
    %v2591 = vrot.slane %v2589, 5
    %v2592 = vsel %vm403, %v2587, %v2591
    %v2594 = vshrl.u32 %v2350, 16
    %v2596 = vrot.slane %v2594, 4
    %v2597 = vshll.u32 %v2350, 16
    %v2599 = vrot.slane %v2597, 5
    %v2600 = vor.u32 %v2596, %v2599
    %v2601 = vrot.slane %v2600, 4
    %v2603 = vshll.u32 %v2351, 16
    %v2605 = vrot.slane %v2603, 5
    %v2606 = vsel %vm403, %v2601, %v2605
    %v2607 = vshrl.u32 %v2351, 16
    %v2609 = vrot.slane %v2607, 4
    %v2610 = vor.u32 %v2609, %v2605
    %v2611 = vrot.slane %v2610, 4
    %v2613 = vshll.u32 %v2352, 16
    %v2615 = vrot.slane %v2613, 5
    %v2616 = vsel %vm403, %v2611, %v2615
    %v2618 = vshrl.u32 %v2353, 16
    %v2620 = vrot.slane %v2618, 4
    %v2621 = vshll.u32 %v2353, 16
    %v2623 = vrot.slane %v2621, 5
    %v2624 = vor.u32 %v2620, %v2623
    %v2625 = vrot.slane %v2624, 4
    %v2627 = vshll.u32 %v2354, 16
    %v2629 = vrot.slane %v2627, 5
    %v2630 = vsel %vm403, %v2625, %v2629
    %v2631 = vshrl.u32 %v2354, 16
    %v2633 = vrot.slane %v2631, 4
    %v2634 = vor.u32 %v2633, %v2629
    %v2635 = vrot.slane %v2634, 4
    %v2637 = vshll.u32 %v2355, 16
    %v2639 = vrot.slane %v2637, 5
    %v2640 = vsel %vm403, %v2635, %v2639
    %v2642 = vshrl.u32 %v2356, 16
    %v2644 = vrot.slane %v2642, 4
    %v2645 = vshll.u32 %v2356, 16
    %v2647 = vrot.slane %v2645, 5
    %v2648 = vor.u32 %v2644, %v2647
    %v2649 = vrot.slane %v2648, 4
    %v2651 = vshll.u32 %v2357, 16
    %v2653 = vrot.slane %v2651, 5
    %v2654 = vsel %vm403, %v2649, %v2653
    %v2655 = vshrl.u32 %v2357, 16
    %v2657 = vrot.slane %v2655, 4
    %v2658 = vor.u32 %v2657, %v2653
    %v2659 = vrot.slane %v2658, 4
    %v2661 = vshll.u32 %v2358, 16
    %v2663 = vrot.slane %v2661, 5
    %v2664 = vsel %vm403, %v2659, %v2663
    %v2666 = vshrl.u32 %v2359, 16
    %v2668 = vrot.slane %v2666, 4
    %v2669 = vshll.u32 %v2359, 16
    %v2671 = vrot.slane %v2669, 5
    %v2672 = vor.u32 %v2668, %v2671
    %v2673 = vrot.slane %v2672, 4
    %v2675 = vshll.u32 %v2360, 16
    %v2677 = vrot.slane %v2675, 5
    %v2678 = vsel %vm403, %v2673, %v2677
    %v2679 = vshrl.u32 %v2360, 16
    %v2681 = vrot.slane %v2679, 4
    %v2682 = vor.u32 %v2681, %v2677
    %v2683 = vrot.slane %v2682, 4
    %v2685 = vshll.u32 %v2361, 16
    %v2687 = vrot.slane %v2685, 5
    %v2688 = vsel %vm403, %v2683, %v2687
    %v2690 = vshrl.u32 %v2362, 16
    %v2692 = vrot.slane %v2690, 4
    %v2693 = vshll.u32 %v2362, 16
    %v2695 = vrot.slane %v2693, 5
    %v2696 = vor.u32 %v2692, %v2695
    %v2697 = vrot.slane %v2696, 4
    %v2699 = vshll.u32 %v2363, 16
    %v2701 = vrot.slane %v2699, 5
    %v2702 = vsel %vm403, %v2697, %v2701
    %v2703 = vshrl.u32 %v2363, 16
    %v2705 = vrot.slane %v2703, 4
    %v2706 = vor.u32 %v2705, %v2701
    %v2707 = vrot.slane %v2706, 4
    %v2709 = vshll.u32 %v2364, 16
    %v2711 = vrot.slane %v2709, 5
    %v2712 = vsel %vm403, %v2707, %v2711
    %v2714 = vshrl.u32 %v2365, 16
    %v2716 = vrot.slane %v2714, 4
    %v2717 = vshll.u32 %v2365, 16
    %v2719 = vrot.slane %v2717, 5
    %v2720 = vor.u32 %v2716, %v2719
    %v2721 = vrot.slane %v2720, 4
    %v2723 = vshll.u32 %v2366, 16
    %v2725 = vrot.slane %v2723, 5
    %v2726 = vsel %vm403, %v2721, %v2725
    %v2727 = vshrl.u32 %v2366, 16
    %v2729 = vrot.slane %v2727, 4
    %v2730 = vor.u32 %v2729, %v2725
    %v2731 = vrot.slane %v2730, 4
    %v2733 = vshll.u32 %v2367, 16
    %v2735 = vrot.slane %v2733, 5
    %v2736 = vsel %vm403, %v2731, %v2735
    %v2738 = vshrl.u32 %v2368, 16
    %v2740 = vrot.slane %v2738, 4
    %v2741 = vshll.u32 %v2368, 16
    %v2743 = vrot.slane %v2741, 5
    %v2744 = vor.u32 %v2740, %v2743
    %v2745 = vrot.slane %v2744, 4
    %v2747 = vshll.u32 %v2369, 16
    %v2749 = vrot.slane %v2747, 5
    %v2750 = vsel %vm403, %v2745, %v2749
    %v2751 = vshrl.u32 %v2369, 16
    %v2753 = vrot.slane %v2751, 4
    %v2754 = vor.u32 %v2753, %v2749
    %v2755 = vrot.slane %v2754, 4
    %v2757 = vshll.u32 %v2370, 16
    %v2759 = vrot.slane %v2757, 5
    %v2760 = vsel %vm403, %v2755, %v2759
    %v2762 = vshrl.u32 %v2371, 16
    %v2764 = vrot.slane %v2762, 4
    %v2765 = vshll.u32 %v2371, 16
    %v2767 = vrot.slane %v2765, 5
    %v2768 = vor.u32 %v2764, %v2767
    %v2769 = vrot.slane %v2768, 4
    %v2771 = vshll.u32 %v2372, 16
    %v2773 = vrot.slane %v2771, 5
    %v2774 = vsel %vm403, %v2769, %v2773
    %v2775 = vshrl.u32 %v2372, 16
    %v2777 = vrot.slane %v2775, 4
    %v2778 = vor.u32 %v2777, %v2773
    %v2779 = vrot.slane %v2778, 4
    %v2781 = vshll.u32 %v2373, 16
    %v2783 = vrot.slane %v2781, 5
    %v2784 = vsel %vm403, %v2779, %v2783
    %v2786 = vshrl.u32 %v2374, 16
    %v2788 = vrot.slane %v2786, 4
    %v2789 = vshll.u32 %v2374, 16
    %v2791 = vrot.slane %v2789, 5
    %v2792 = vor.u32 %v2788, %v2791
    %v2793 = vrot.slane %v2792, 4
    %v2795 = vshll.u32 %v2375, 16
    %v2797 = vrot.slane %v2795, 5
    %v2798 = vsel %vm403, %v2793, %v2797
    %v2799 = vshrl.u32 %v2375, 16
    %v2801 = vrot.slane %v2799, 4
    %v2802 = vor.u32 %v2801, %v2797
    %v2803 = vrot.slane %v2802, 4
    %v2805 = vshll.u32 %v2376, 16
    %v2807 = vrot.slane %v2805, 5
    %v2808 = vsel %vm403, %v2803, %v2807
    %v2810 = vshrl.u32 %v2377, 16
    %v2812 = vrot.slane %v2810, 4
    %v2813 = vshll.u32 %v2377, 16
    %v2815 = vrot.slane %v2813, 5
    %v2816 = vor.u32 %v2812, %v2815
    %v2817 = vrot.slane %v2816, 4
    %v2819 = vshll.u32 %v2378, 16
    %v2821 = vrot.slane %v2819, 5
    %v2822 = vsel %vm403, %v2817, %v2821
    %v2823 = vshrl.u32 %v2378, 16
    %v2825 = vrot.slane %v2823, 4
    %v2826 = vor.u32 %v2825, %v2821
    %v2827 = vrot.slane %v2826, 4
    %v2829 = vshll.u32 %v2379, 16
    %v2831 = vrot.slane %v2829, 5
    %v2832 = vsel %vm403, %v2827, %v2831
    %v2834 = vshrl.u32 %v2380, 16
    %v2836 = vrot.slane %v2834, 4
    %v2837 = vshll.u32 %v2380, 16
    %v2839 = vrot.slane %v2837, 5
    %v2840 = vor.u32 %v2836, %v2839
    %v2841 = vrot.slane %v2840, 4
    %v2843 = vshll.u32 %v2381, 16
    %v2845 = vrot.slane %v2843, 5
    %v2846 = vsel %vm403, %v2841, %v2845
    %v2847 = vshrl.u32 %v2381, 16
    %v2849 = vrot.slane %v2847, 4
    %v2850 = vor.u32 %v2849, %v2845
    %v2851 = vrot.slane %v2850, 4
    %v2853 = vshll.u32 %v2382, 16
    %v2855 = vrot.slane %v2853, 5
    %v2856 = vsel %vm403, %v2851, %v2855
    %v2858 = vshrl.u32 %v2383, 16
    %v2860 = vrot.slane %v2858, 4
    %v2861 = vshll.u32 %v2383, 16
    %v2863 = vrot.slane %v2861, 5
    %v2864 = vor.u32 %v2860, %v2863
    %v2865 = vrot.slane %v2864, 4
    %v2867 = vshll.u32 %v2384, 16
    %v2869 = vrot.slane %v2867, 5
    %v2870 = vsel %vm403, %v2865, %v2869
    %v2871 = vshrl.u32 %v2384, 16
    %v2873 = vrot.slane %v2871, 4
    %v2874 = vor.u32 %v2873, %v2869
    %v2875 = vrot.slane %v2874, 4
    %v2877 = vshll.u32 %v2385, 16
    %v2879 = vrot.slane %v2877, 5
    %v2880 = vsel %vm403, %v2875, %v2879
    %v2882 = vshrl.u32 %v2386, 16
    %v2884 = vrot.slane %v2882, 4
    %v2885 = vshll.u32 %v2386, 16
    %v2887 = vrot.slane %v2885, 5
    %v2888 = vor.u32 %v2884, %v2887
    %v2889 = vrot.slane %v2888, 4
    %v2891 = vshll.u32 %v2387, 16
    %v2893 = vrot.slane %v2891, 5
    %v2894 = vsel %vm403, %v2889, %v2893
    %v2895 = vshrl.u32 %v2387, 16
    %v2897 = vrot.slane %v2895, 4
    %v2898 = vor.u32 %v2897, %v2893
    %v2899 = vrot.slane %v2898, 4
    %v2901 = vshll.u32 %v2388, 16
    %v2903 = vrot.slane %v2901, 5
    %v2904 = vsel %vm403, %v2899, %v2903
    %v2906 = vshrl.u32 %v2389, 16
    %v2908 = vrot.slane %v2906, 4
    %v2909 = vshll.u32 %v2389, 16
    %v2911 = vrot.slane %v2909, 5
    %v2912 = vor.u32 %v2908, %v2911
    %v2913 = vrot.slane %v2912, 4
    %v2915 = vshll.u32 %v2390, 16
    %v2917 = vrot.slane %v2915, 5
    %v2918 = vsel %vm403, %v2913, %v2917
    %v2919 = vshrl.u32 %v2390, 16
    %v2921 = vrot.slane %v2919, 4
    %v2922 = vor.u32 %v2921, %v2917
    %v2923 = vrot.slane %v2922, 4
    %v2925 = vshll.u32 %v2391, 16
    %v2927 = vrot.slane %v2925, 5
    %v2928 = vsel %vm403, %v2923, %v2927
    %v2930 = vshrl.u32 %v2392, 16
    %v2932 = vrot.slane %v2930, 4
    %v2933 = vshll.u32 %v2392, 16
    %v2935 = vrot.slane %v2933, 5
    %v2936 = vor.u32 %v2932, %v2935
    %v2937 = vrot.slane %v2936, 4
    %v2939 = vshll.u32 %v2393, 16
    %v2941 = vrot.slane %v2939, 5
    %v2942 = vsel %vm403, %v2937, %v2941
    %v2943 = vshrl.u32 %v2393, 16
    %v2945 = vrot.slane %v2943, 4
    %v2946 = vor.u32 %v2945, %v2941
    %v2947 = vrot.slane %v2946, 4
    %v2949 = vshll.u32 %v2394, 16
    %v2951 = vrot.slane %v2949, 5
    %v2952 = vsel %vm403, %v2947, %v2951
    %v2954 = vshrl.u32 %v2395, 16
    %v2956 = vrot.slane %v2954, 4
    %v2957 = vshll.u32 %v2395, 16
    %v2959 = vrot.slane %v2957, 5
    %v2960 = vor.u32 %v2956, %v2959
    %v2961 = vrot.slane %v2960, 4
    %v2963 = vshll.u32 %v2396, 16
    %v2965 = vrot.slane %v2963, 5
    %v2966 = vsel %vm403, %v2961, %v2965
    %v2967 = vshrl.u32 %v2396, 16
    %v2969 = vrot.slane %v2967, 4
    %v2970 = vor.u32 %v2969, %v2965
    %v2971 = vrot.slane %v2970, 4
    %v2973 = vshll.u32 %v2397, 16
    %v2975 = vrot.slane %v2973, 5
    %v2976 = vsel %vm403, %v2971, %v2975
    %v2978 = vshrl.u32 %v2398, 16
    %v2980 = vrot.slane %v2978, 4
    %v2981 = vshll.u32 %v2398, 16
    %v2983 = vrot.slane %v2981, 5
    %v2984 = vor.u32 %v2980, %v2983
    %v2985 = vrot.slane %v2984, 4
    %v2987 = vshll.u32 %v2399, 16
    %v2989 = vrot.slane %v2987, 5
    %v2990 = vsel %vm403, %v2985, %v2989
    %v2991 = vshrl.u32 %v2399, 16
    %v2993 = vrot.slane %v2991, 4
    %v2994 = vor.u32 %v2993, %v2989
    %v2995 = vrot.slane %v2994, 4
    %v2997 = vshll.u32 %v2400, 16
    %v2999 = vrot.slane %v2997, 5
    %v3000 = vsel %vm403, %v2995, %v2999
    %v3002 = vshrl.u32 %v2401, 16
    %v3004 = vrot.slane %v3002, 4
    %v3005 = vshll.u32 %v2401, 16
    %v3007 = vrot.slane %v3005, 5
    %v3008 = vor.u32 %v3004, %v3007
    %v3009 = vrot.slane %v3008, 4
    %v3011 = vshll.u32 %v2402, 16
    %v3013 = vrot.slane %v3011, 5
    %v3014 = vsel %vm403, %v3009, %v3013
    %v3015 = vshrl.u32 %v2402, 16
    %v3017 = vrot.slane %v3015, 4
    %v3018 = vor.u32 %v3017, %v3013
    %v3019 = vrot.slane %v3018, 4
    %v3021 = vshll.u32 %v2403, 16
    %v3023 = vrot.slane %v3021, 5
    %v3024 = vsel %vm403, %v3019, %v3023
    %v3026 = vshrl.u32 %v2404, 16
    %v3028 = vrot.slane %v3026, 4
    %v3029 = vshll.u32 %v2404, 16
    %v3031 = vrot.slane %v3029, 5
    %v3032 = vor.u32 %v3028, %v3031
    %v3033 = vrot.slane %v3032, 4
    %v3035 = vshll.u32 %v2405, 16
    %v3037 = vrot.slane %v3035, 5
    %v3038 = vsel %vm403, %v3033, %v3037
    %v3039 = vshrl.u32 %v2405, 16
    %v3041 = vrot.slane %v3039, 4
    %v3042 = vor.u32 %v3041, %v3037
    %v3043 = vrot.slane %v3042, 4
    %v3045 = vshll.u32 %v2406, 16
    %v3047 = vrot.slane %v3045, 5
    %v3048 = vsel %vm403, %v3043, %v3047
    %v3050 = vshrl.u32 %v2407, 16
    %v3052 = vrot.slane %v3050, 4
    %v3053 = vshll.u32 %v2407, 16
    %v3055 = vrot.slane %v3053, 5
    %v3056 = vor.u32 %v3052, %v3055
    %v3057 = vrot.slane %v3056, 4
    %v3059 = vshll.u32 %v2408, 16
    %v3061 = vrot.slane %v3059, 5
    %v3062 = vsel %vm403, %v3057, %v3061
    %v3063 = vshrl.u32 %v2408, 16
    %v3065 = vrot.slane %v3063, 4
    %v3066 = vor.u32 %v3065, %v3061
    %v3067 = vrot.slane %v3066, 4
    %v3069 = vshll.u32 %v2409, 16
    %v3071 = vrot.slane %v3069, 5
    %v3072 = vsel %vm403, %v3067, %v3071
    %v3074 = vshrl.u32 %v2410, 16
    %v3076 = vrot.slane %v3074, 4
    %v3077 = vshll.u32 %v2410, 16
    %v3079 = vrot.slane %v3077, 5
    %v3080 = vor.u32 %v3076, %v3079
    %v3081 = vrot.slane %v3080, 4
    %v3083 = vshll.u32 %v2411, 16
    %v3085 = vrot.slane %v3083, 5
    %v3086 = vsel %vm403, %v3081, %v3085
    %v3087 = vshrl.u32 %v2411, 16
    %v3089 = vrot.slane %v3087, 4
    %v3090 = vor.u32 %v3089, %v3085
    %v3091 = vrot.slane %v3090, 4
    %v3093 = vshll.u32 %v2412, 16
    %v3095 = vrot.slane %v3093, 5
    %v3096 = vsel %vm403, %v3091, %v3095
    %v3098 = vshrl.u32 %v2413, 16
    %v3100 = vrot.slane %v3098, 4
    %v3101 = vshll.u32 %v2413, 16
    %v3103 = vrot.slane %v3101, 5
    %v3104 = vor.u32 %v3100, %v3103
    %v3105 = vrot.slane %v3104, 4
    %v3107 = vshll.u32 %v2414, 16
    %v3109 = vrot.slane %v3107, 5
    %v3110 = vsel %vm403, %v3105, %v3109
    %v3111 = vshrl.u32 %v2414, 16
    %v3113 = vrot.slane %v3111, 4
    %v3114 = vor.u32 %v3113, %v3109
    %v3115 = vrot.slane %v3114, 4
    %v3117 = vshll.u32 %v2415, 16
    %v3119 = vrot.slane %v3117, 5
    %v3120 = vsel %vm403, %v3115, %v3119
    %v3122 = vshrl.u32 %v2416, 16
    %v3124 = vrot.slane %v3122, 4
    %v3125 = vshll.u32 %v2416, 16
    %v3127 = vrot.slane %v3125, 5
    %v3128 = vor.u32 %v3124, %v3127
    %v3129 = vrot.slane %v3128, 4
    %v3131 = vshll.u32 %v2417, 16
    %v3133 = vrot.slane %v3131, 5
    %v3134 = vsel %vm403, %v3129, %v3133
    %v3135 = vshrl.u32 %v2417, 16
    %v3137 = vrot.slane %v3135, 4
    %v3138 = vor.u32 %v3137, %v3133
    %v3139 = vrot.slane %v3138, 4
    %v3141 = vshll.u32 %v2418, 16
    %v3143 = vrot.slane %v3141, 5
    %v3144 = vsel %vm403, %v3139, %v3143
    %v3146 = vshrl.u32 %v2419, 16
    %v3148 = vrot.slane %v3146, 4
    %v3149 = vshll.u32 %v2419, 16
    %v3151 = vrot.slane %v3149, 5
    %v3152 = vor.u32 %v3148, %v3151
    %v3153 = vrot.slane %v3152, 4
    %v3155 = vshll.u32 %v2420, 16
    %v3157 = vrot.slane %v3155, 5
    %v3158 = vsel %vm403, %v3153, %v3157
    %v3159 = vshrl.u32 %v2420, 16
    %v3161 = vrot.slane %v3159, 4
    %v3162 = vor.u32 %v3161, %v3157
    %v3163 = vrot.slane %v3162, 4
    %v3165 = vshll.u32 %v2421, 16
    %v3167 = vrot.slane %v3165, 5
    %v3168 = vsel %vm403, %v3163, %v3167
    %v3170 = vshrl.u32 %v2422, 16
    %v3172 = vrot.slane %v3170, 4
    %v3173 = vshll.u32 %v2422, 16
    %v3175 = vrot.slane %v3173, 5
    %v3176 = vor.u32 %v3172, %v3175
    %v3177 = vrot.slane %v3176, 4
    %v3179 = vshll.u32 %v2423, 16
    %v3181 = vrot.slane %v3179, 5
    %v3182 = vsel %vm403, %v3177, %v3181
    %v3183 = vshrl.u32 %v2423, 16
    %v3185 = vrot.slane %v3183, 4
    %v3186 = vor.u32 %v3185, %v3181
    %v3187 = vrot.slane %v3186, 4
    %v3189 = vshll.u32 %v2424, 16
    %v3191 = vrot.slane %v3189, 5
    %v3192 = vsel %vm403, %v3187, %v3191
    %v3193 = vunpack.c.l.b16 %v2438
    %v3194 = vunpack.c.l.b16 %v2448
    %v3195 = vunpack.c.l.b16 %v2462
    %v3196 = vunpack.c.l.b16 %v2472
    %v3197 = vunpack.c.l.b16 %v2486
    %v3198 = vunpack.c.l.b16 %v2496
    %v3199 = vunpack.c.l.b16 %v2510
    %v3200 = vunpack.c.l.b16 %v2520
    %v3201 = vunpack.c.l.b16 %v2534
    %v3202 = vunpack.c.l.b16 %v2544
    %v3203 = vunpack.c.l.b16 %v2558
    %v3204 = vunpack.c.l.b16 %v2568
    %v3205 = vunpack.c.l.b16 %v2582
    %v3206 = vunpack.c.l.b16 %v2592
    %v3207 = vunpack.c.l.b16 %v2606
    %v3208 = vunpack.c.l.b16 %v2616
    %v3209 = vunpack.c.l.b16 %v2630
    %v3210 = vunpack.c.l.b16 %v2640
    %v3211 = vunpack.c.l.b16 %v2654
    %v3212 = vunpack.c.l.b16 %v2664
    %v3213 = vunpack.c.l.b16 %v2678
    %v3214 = vunpack.c.l.b16 %v2688
    %v3215 = vunpack.c.l.b16 %v2702
    %v3216 = vunpack.c.l.b16 %v2712
    %v3217 = vunpack.c.l.b16 %v2726
    %v3218 = vunpack.c.l.b16 %v2736
    %v3219 = vunpack.c.l.b16 %v2750
    %v3220 = vunpack.c.l.b16 %v2760
    %v3221 = vunpack.c.l.b16 %v2774
    %v3222 = vunpack.c.l.b16 %v2784
    %v3223 = vunpack.c.l.b16 %v2798
    %v3224 = vunpack.c.l.b16 %v2808
    %v3225 = vunpack.c.l.b16 %v2822
    %v3226 = vunpack.c.l.b16 %v2832
    %v3227 = vunpack.c.l.b16 %v2846
    %v3228 = vunpack.c.l.b16 %v2856
    %v3229 = vunpack.c.l.b16 %v2870
    %v3230 = vunpack.c.l.b16 %v2880
    %v3231 = vunpack.c.l.b16 %v2894
    %v3232 = vunpack.c.l.b16 %v2904
    %v3233 = vunpack.c.l.b16 %v2918
    %v3234 = vunpack.c.l.b16 %v2928
    %v3235 = vunpack.c.l.b16 %v2942
    %v3236 = vunpack.c.l.b16 %v2952
    %v3237 = vunpack.c.l.b16 %v2966
    %v3238 = vunpack.c.l.b16 %v2976
    %v3239 = vunpack.c.l.b16 %v2990
    %v3240 = vunpack.c.l.b16 %v3000
    %v3241 = vunpack.c.l.b16 %v3014
    %v3242 = vunpack.c.l.b16 %v3024
    %v3243 = vunpack.c.l.b16 %v3038
    %v3244 = vunpack.c.l.b16 %v3048
    %v3245 = vunpack.c.l.b16 %v3062
    %v3246 = vunpack.c.l.b16 %v3072
    %v3247 = vunpack.c.l.b16 %v3086
    %v3248 = vunpack.c.l.b16 %v3096
    %v3249 = vunpack.c.l.b16 %v3110
    %v3250 = vunpack.c.l.b16 %v3120
    %v3251 = vunpack.c.l.b16 %v3134
    %v3252 = vunpack.c.l.b16 %v3144
    %v3253 = vunpack.c.l.b16 %v3158
    %v3254 = vunpack.c.l.b16 %v3168
    %v3255 = vunpack.c.l.b16 %v3182
    %v3256 = vunpack.c.l.b16 %v3192
    %v3257 = vpack.c.b16 %v3194, %v3193
    %v3258 = vpack.c.b16 %v3196, %v3195
    %v3259 = vpack.c.b16 %v3198, %v3197
    %v3260 = vpack.c.b16 %v3200, %v3199
    %v3261 = vpack.c.b16 %v3202, %v3201
    %v3262 = vpack.c.b16 %v3204, %v3203
    %v3263 = vpack.c.b16 %v3206, %v3205
    %v3264 = vpack.c.b16 %v3208, %v3207
    %v3265 = vpack.c.b16 %v3210, %v3209
    %v3266 = vpack.c.b16 %v3212, %v3211
    %v3267 = vpack.c.b16 %v3214, %v3213
    %v3268 = vpack.c.b16 %v3216, %v3215
    %v3269 = vpack.c.b16 %v3218, %v3217
    %v3270 = vpack.c.b16 %v3220, %v3219
    %v3271 = vpack.c.b16 %v3222, %v3221
    %v3272 = vpack.c.b16 %v3224, %v3223
    %v3273 = vpack.c.b16 %v3226, %v3225
    %v3274 = vpack.c.b16 %v3228, %v3227
    %v3275 = vpack.c.b16 %v3230, %v3229
    %v3276 = vpack.c.b16 %v3232, %v3231
    %v3277 = vpack.c.b16 %v3234, %v3233
    %v3278 = vpack.c.b16 %v3236, %v3235
    %v3279 = vpack.c.b16 %v3238, %v3237
    %v3280 = vpack.c.b16 %v3240, %v3239
    %v3281 = vpack.c.b16 %v3242, %v3241
    %v3282 = vpack.c.b16 %v3244, %v3243
    %v3283 = vpack.c.b16 %v3246, %v3245
    %v3284 = vpack.c.b16 %v3248, %v3247
    %v3285 = vpack.c.b16 %v3250, %v3249
    %v3286 = vpack.c.b16 %v3252, %v3251
    %v3287 = vpack.c.b16 %v3254, %v3253
    %v3288 = vpack.c.b16 %v3256, %v3255
    %3321 = vst.msk [vmem:[#allocation2 + $0x10] sm:$0xff] %vm272, %v3257
    %3322 = vst.msk [vmem:[#allocation2 + $0x38] sm:$0xff] %vm272, %v3258
    %3323 = vst.msk [vmem:[#allocation2 + $0x60] sm:$0xff] %vm272, %v3259
    %3324 = vst.msk [vmem:[#allocation2 + $0x88] sm:$0xff] %vm272, %v3260
    %3325 = vst.msk [vmem:[#allocation2 + $0xb0] sm:$0xff] %vm272, %v3261
    %3326 = vst.msk [vmem:[#allocation2 + $0xd8] sm:$0xff] %vm272, %v3262
    %3327 = vst.msk [vmem:[#allocation2 + $0x100] sm:$0xff] %vm272, %v3263
    %3328 = vst.msk [vmem:[#allocation2 + $0x128] sm:$0xff] %vm272, %v3264
    %3329 = vst.msk [vmem:[#allocation2 + $0x150] sm:$0xff] %vm272, %v3265
    %3330 = vst.msk [vmem:[#allocation2 + $0x178] sm:$0xff] %vm272, %v3266
    %3331 = vst.msk [vmem:[#allocation2 + $0x1a0] sm:$0xff] %vm272, %v3267
    %3332 = vst.msk [vmem:[#allocation2 + $0x1c8] sm:$0xff] %vm272, %v3268
    %3333 = vst.msk [vmem:[#allocation2 + $0x1f0] sm:$0xff] %vm272, %v3269
    %3334 = vst.msk [vmem:[#allocation2 + $0x218] sm:$0xff] %vm272, %v3270
    %3335 = vst.msk [vmem:[#allocation2 + $0x240] sm:$0xff] %vm272, %v3271
    %3336 = vst.msk [vmem:[#allocation2 + $0x268] sm:$0xff] %vm272, %v3272
    %3337 = vst.msk [vmem:[#allocation2 + $0x290] sm:$0xff] %vm272, %v3273
    %3338 = vst.msk [vmem:[#allocation2 + $0x2b8] sm:$0xff] %vm272, %v3274
    %3339 = vst.msk [vmem:[#allocation2 + $0x2e0] sm:$0xff] %vm272, %v3275
    %3340 = vst.msk [vmem:[#allocation2 + $0x308] sm:$0xff] %vm272, %v3276
    %3341 = vst.msk [vmem:[#allocation2 + $0x330] sm:$0xff] %vm272, %v3277
    %3342 = vst.msk [vmem:[#allocation2 + $0x358] sm:$0xff] %vm272, %v3278
    %3343 = vst.msk [vmem:[#allocation2 + $0x380] sm:$0xff] %vm272, %v3279
    %3344 = vst.msk [vmem:[#allocation2 + $0x3a8] sm:$0xff] %vm272, %v3280
    %3345 = vst.msk [vmem:[#allocation2 + $0x3d0] sm:$0xff] %vm272, %v3281
    %3346 = vst.msk [vmem:[#allocation2 + $0x3f8] sm:$0xff] %vm272, %v3282
    %3347 = vst.msk [vmem:[#allocation2 + $0x420] sm:$0xff] %vm272, %v3283
    %3348 = vst.msk [vmem:[#allocation2 + $0x448] sm:$0xff] %vm272, %v3284
    %3349 = vst.msk [vmem:[#allocation2 + $0x470] sm:$0xff] %vm272, %v3285
    %3350 = vst.msk [vmem:[#allocation2 + $0x498] sm:$0xff] %vm272, %v3286
    %3351 = vst.msk [vmem:[#allocation2 + $0x4c0] sm:$0xff] %vm272, %v3287
    %3352 = vst.msk [vmem:[#allocation2 + $0x4e8] sm:$0xff] %vm272, %v3288
    %v3353 = vld [vmem:[%s1976] sm:$0xe]
    %v3354 = vld [vmem:[%s1976 + $0x4] sm:$0xf]
    %v3355 = vld [vmem:[%s1976 + $0x8] sm:$0x1]
    %v3356 = vld [vmem:[%s1976 + $0xc] sm:$0xe]
    %v3357 = vld [vmem:[%s1976 + $0x10] sm:$0xf]
    %v3358 = vld [vmem:[%s1976 + $0x14] sm:$0x1]
    %v3359 = vld [vmem:[%s1976 + $0x18] sm:$0xe]
    %v3360 = vld [vmem:[%s1976 + $0x1c] sm:$0xf]
    %v3361 = vld [vmem:[%s1976 + $0x20] sm:$0x1]
    %v3362 = vld [vmem:[%s1976 + $0x24] sm:$0xe]
    %v3363 = vld [vmem:[%s1976 + $0x28] sm:$0xf]
    %v3364 = vld [vmem:[%s1976 + $0x2c] sm:$0x1]
    %v3365 = vld [vmem:[%s1976 + $0x30] sm:$0xe]
    %v3366 = vld [vmem:[%s1976 + $0x34] sm:$0xf]
    %v3367 = vld [vmem:[%s1976 + $0x38] sm:$0x1]
    %v3368 = vld [vmem:[%s1976 + $0x3c] sm:$0xe]
    %v3369 = vld [vmem:[%s1976 + $0x40] sm:$0xf]
    %v3370 = vld [vmem:[%s1976 + $0x44] sm:$0x1]
    %v3371 = vld [vmem:[%s1976 + $0x48] sm:$0xe]
    %v3372 = vld [vmem:[%s1976 + $0x4c] sm:$0xf]
    %v3373 = vld [vmem:[%s1976 + $0x50] sm:$0x1]
    %v3374 = vld [vmem:[%s1976 + $0x54] sm:$0xe]
    %v3375 = vld [vmem:[%s1976 + $0x58] sm:$0xf]
    %v3376 = vld [vmem:[%s1976 + $0x5c] sm:$0x1]
    %v3377 = vld [vmem:[%s1976 + $0x60] sm:$0xe]
    %v3378 = vld [vmem:[%s1976 + $0x64] sm:$0xf]
    %v3379 = vld [vmem:[%s1976 + $0x68] sm:$0x1]
    %v3380 = vld [vmem:[%s1976 + $0x6c] sm:$0xe]
    %v3381 = vld [vmem:[%s1976 + $0x70] sm:$0xf]
    %v3382 = vld [vmem:[%s1976 + $0x74] sm:$0x1]
    %v3383 = vld [vmem:[%s1976 + $0x78] sm:$0xe]
    %v3384 = vld [vmem:[%s1976 + $0x7c] sm:$0xf]
    %v3385 = vld [vmem:[%s1976 + $0x80] sm:$0x1]
    %v3386 = vld [vmem:[%s1976 + $0x84] sm:$0xe]
    %v3387 = vld [vmem:[%s1976 + $0x88] sm:$0xf]
    %v3388 = vld [vmem:[%s1976 + $0x8c] sm:$0x1]
    %v3389 = vld [vmem:[%s1976 + $0x90] sm:$0xe]
    %v3390 = vld [vmem:[%s1976 + $0x94] sm:$0xf]
    %v3391 = vld [vmem:[%s1976 + $0x98] sm:$0x1]
    %v3392 = vld [vmem:[%s1976 + $0x9c] sm:$0xe]
    %v3393 = vld [vmem:[%s1976 + $0xa0] sm:$0xf]
    %v3394 = vld [vmem:[%s1976 + $0xa4] sm:$0x1]
    %v3395 = vld [vmem:[%s1976 + $0xa8] sm:$0xe]
    %v3396 = vld [vmem:[%s1976 + $0xac] sm:$0xf]
    %v3397 = vld [vmem:[%s1976 + $0xb0] sm:$0x1]
    %v3398 = vld [vmem:[%s1976 + $0xb4] sm:$0xe]
    %v3399 = vld [vmem:[%s1976 + $0xb8] sm:$0xf]
    %v3400 = vld [vmem:[%s1976 + $0xbc] sm:$0x1]
    %v3401 = vld [vmem:[%s1976 + $0xd8] sm:$0xe]
    %v3402 = vld [vmem:[%s1976 + $0xdc] sm:$0xf]
    %v3403 = vld [vmem:[%s1976 + $0xe0] sm:$0x1]
    %v3404 = vld [vmem:[%s1976 + $0xe4] sm:$0xe]
    %v3405 = vld [vmem:[%s1976 + $0xe8] sm:$0xf]
    %v3406 = vld [vmem:[%s1976 + $0xec] sm:$0x1]
    %v3407 = vld [vmem:[%s1976 + $0xf0] sm:$0xe]
    %v3408 = vld [vmem:[%s1976 + $0xf4] sm:$0xf]
    %v3409 = vld [vmem:[%s1976 + $0xf8] sm:$0x1]
    %v3410 = vld [vmem:[%s1976 + $0xfc] sm:$0xe]
    %v3411 = vld [vmem:[%s1976 + $0x100] sm:$0xf]
    %v3412 = vld [vmem:[%s1976 + $0x104] sm:$0x1]
    %v3413 = vld [vmem:[%s1976 + $0x108] sm:$0xe]
    %v3414 = vld [vmem:[%s1976 + $0x10c] sm:$0xf]
    %v3415 = vld [vmem:[%s1976 + $0x110] sm:$0x1]
    %v3416 = vld [vmem:[%s1976 + $0x114] sm:$0xe]
    %v3417 = vld [vmem:[%s1976 + $0x118] sm:$0xf]
    %v3418 = vld [vmem:[%s1976 + $0x11c] sm:$0x1]
    %v3419 = vld [vmem:[%s1976 + $0x120] sm:$0xe]
    %v3420 = vld [vmem:[%s1976 + $0x124] sm:$0xf]
    %v3421 = vld [vmem:[%s1976 + $0x128] sm:$0x1]
    %v3422 = vld [vmem:[%s1976 + $0x12c] sm:$0xe]
    %v3423 = vld [vmem:[%s1976 + $0x130] sm:$0xf]
    %v3424 = vld [vmem:[%s1976 + $0x134] sm:$0x1]
    %v3425 = vld [vmem:[%s1976 + $0x138] sm:$0xe]
    %v3426 = vld [vmem:[%s1976 + $0x13c] sm:$0xf]
    %v3427 = vld [vmem:[%s1976 + $0x140] sm:$0x1]
    %v3428 = vld [vmem:[%s1976 + $0x144] sm:$0xe]
    %v3429 = vld [vmem:[%s1976 + $0x148] sm:$0xf]
    %v3430 = vld [vmem:[%s1976 + $0x14c] sm:$0x1]
    %v3431 = vld [vmem:[%s1976 + $0x150] sm:$0xe]
    %v3432 = vld [vmem:[%s1976 + $0x154] sm:$0xf]
    %v3433 = vld [vmem:[%s1976 + $0x158] sm:$0x1]
    %v3434 = vld [vmem:[%s1976 + $0x15c] sm:$0xe]
    %v3435 = vld [vmem:[%s1976 + $0x160] sm:$0xf]
    %v3436 = vld [vmem:[%s1976 + $0x164] sm:$0x1]
    %v3437 = vld [vmem:[%s1976 + $0x168] sm:$0xe]
    %v3438 = vld [vmem:[%s1976 + $0x16c] sm:$0xf]
    %v3439 = vld [vmem:[%s1976 + $0x170] sm:$0x1]
    %v3440 = vld [vmem:[%s1976 + $0x174] sm:$0xe]
    %v3441 = vld [vmem:[%s1976 + $0x178] sm:$0xf]
    %v3442 = vld [vmem:[%s1976 + $0x17c] sm:$0x1]
    %v3443 = vld [vmem:[%s1976 + $0x180] sm:$0xe]
    %v3444 = vld [vmem:[%s1976 + $0x184] sm:$0xf]
    %v3445 = vld [vmem:[%s1976 + $0x188] sm:$0x1]
    %v3446 = vld [vmem:[%s1976 + $0x18c] sm:$0xe]
    %v3447 = vld [vmem:[%s1976 + $0x190] sm:$0xf]
    %v3448 = vld [vmem:[%s1976 + $0x194] sm:$0x1]
    %v3545 = vrot.slane %v3353, 5
    %v3546 = vrot.slane %v3545, 4
    %v3547 = vrot.slane %v3354, 5
    %v3548 = vsel %vm1591, %v3546, %v3547
    %v3549 = vrot.slane %v3547, 4
    %v3550 = vrot.slane %v3355, 5
    %v3551 = vsel %vm1591, %v3549, %v3550
    %v3552 = vrot.slane %v3356, 5
    %v3553 = vrot.slane %v3552, 4
    %v3554 = vrot.slane %v3357, 5
    %v3555 = vsel %vm1591, %v3553, %v3554
    %v3556 = vrot.slane %v3554, 4
    %v3557 = vrot.slane %v3358, 5
    %v3558 = vsel %vm1591, %v3556, %v3557
    %v3559 = vrot.slane %v3359, 5
    %v3560 = vrot.slane %v3559, 4
    %v3561 = vrot.slane %v3360, 5
    %v3562 = vsel %vm1591, %v3560, %v3561
    %v3563 = vrot.slane %v3561, 4
    %v3564 = vrot.slane %v3361, 5
    %v3565 = vsel %vm1591, %v3563, %v3564
    %v3566 = vrot.slane %v3362, 5
    %v3567 = vrot.slane %v3566, 4
    %v3568 = vrot.slane %v3363, 5
    %v3569 = vsel %vm1591, %v3567, %v3568
    %v3570 = vrot.slane %v3568, 4
    %v3571 = vrot.slane %v3364, 5
    %v3572 = vsel %vm1591, %v3570, %v3571
    %v3573 = vrot.slane %v3365, 5
    %v3574 = vrot.slane %v3573, 4
    %v3575 = vrot.slane %v3366, 5
    %v3576 = vsel %vm1591, %v3574, %v3575
    %v3577 = vrot.slane %v3575, 4
    %v3578 = vrot.slane %v3367, 5
    %v3579 = vsel %vm1591, %v3577, %v3578
    %v3580 = vrot.slane %v3368, 5
    %v3581 = vrot.slane %v3580, 4
    %v3582 = vrot.slane %v3369, 5
    %v3583 = vsel %vm1591, %v3581, %v3582
    %v3584 = vrot.slane %v3582, 4
    %v3585 = vrot.slane %v3370, 5
    %v3586 = vsel %vm1591, %v3584, %v3585
    %v3587 = vrot.slane %v3371, 5
    %v3588 = vrot.slane %v3587, 4
    %v3589 = vrot.slane %v3372, 5
    %v3590 = vsel %vm1591, %v3588, %v3589
    %v3591 = vrot.slane %v3589, 4
    %v3592 = vrot.slane %v3373, 5
    %v3593 = vsel %vm1591, %v3591, %v3592
    %v3594 = vrot.slane %v3374, 5
    %v3595 = vrot.slane %v3594, 4
    %v3596 = vrot.slane %v3375, 5
    %v3597 = vsel %vm1591, %v3595, %v3596
    %v3598 = vrot.slane %v3596, 4
    %v3599 = vrot.slane %v3376, 5
    %v3600 = vsel %vm1591, %v3598, %v3599
    %v3601 = vrot.slane %v3377, 5
    %v3602 = vrot.slane %v3601, 4
    %v3603 = vrot.slane %v3378, 5
    %v3604 = vsel %vm1591, %v3602, %v3603
    %v3605 = vrot.slane %v3603, 4
    %v3606 = vrot.slane %v3379, 5
    %v3607 = vsel %vm1591, %v3605, %v3606
    %v3608 = vrot.slane %v3380, 5
    %v3609 = vrot.slane %v3608, 4
    %v3610 = vrot.slane %v3381, 5
    %v3611 = vsel %vm1591, %v3609, %v3610
    %v3612 = vrot.slane %v3610, 4
    %v3613 = vrot.slane %v3382, 5
    %v3614 = vsel %vm1591, %v3612, %v3613
    %v3615 = vrot.slane %v3383, 5
    %v3616 = vrot.slane %v3615, 4
    %v3617 = vrot.slane %v3384, 5
    %v3618 = vsel %vm1591, %v3616, %v3617
    %v3619 = vrot.slane %v3617, 4
    %v3620 = vrot.slane %v3385, 5
    %v3621 = vsel %vm1591, %v3619, %v3620
    %v3622 = vrot.slane %v3386, 5
    %v3623 = vrot.slane %v3622, 4
    %v3624 = vrot.slane %v3387, 5
    %v3625 = vsel %vm1591, %v3623, %v3624
    %v3626 = vrot.slane %v3624, 4
    %v3627 = vrot.slane %v3388, 5
    %v3628 = vsel %vm1591, %v3626, %v3627
    %v3629 = vrot.slane %v3389, 5
    %v3630 = vrot.slane %v3629, 4
    %v3631 = vrot.slane %v3390, 5
    %v3632 = vsel %vm1591, %v3630, %v3631
    %v3633 = vrot.slane %v3631, 4
    %v3634 = vrot.slane %v3391, 5
    %v3635 = vsel %vm1591, %v3633, %v3634
    %v3636 = vrot.slane %v3392, 5
    %v3637 = vrot.slane %v3636, 4
    %v3638 = vrot.slane %v3393, 5
    %v3639 = vsel %vm1591, %v3637, %v3638
    %v3640 = vrot.slane %v3638, 4
    %v3641 = vrot.slane %v3394, 5
    %v3642 = vsel %vm1591, %v3640, %v3641
    %v3643 = vrot.slane %v3395, 5
    %v3644 = vrot.slane %v3643, 4
    %v3645 = vrot.slane %v3396, 5
    %v3646 = vsel %vm1591, %v3644, %v3645
    %v3647 = vrot.slane %v3645, 4
    %v3648 = vrot.slane %v3397, 5
    %v3649 = vsel %vm1591, %v3647, %v3648
    %v3650 = vrot.slane %v3398, 5
    %v3651 = vrot.slane %v3650, 4
    %v3652 = vrot.slane %v3399, 5
    %v3653 = vsel %vm1591, %v3651, %v3652
    %v3654 = vrot.slane %v3652, 4
    %v3655 = vrot.slane %v3400, 5
    %v3656 = vsel %vm1591, %v3654, %v3655
    %v3657 = vrot.slane %v3401, 5
    %v3658 = vrot.slane %v3657, 4
    %v3659 = vrot.slane %v3402, 5
    %v3660 = vsel %vm1591, %v3658, %v3659
    %v3661 = vrot.slane %v3659, 4
    %v3662 = vrot.slane %v3403, 5
    %v3663 = vsel %vm1591, %v3661, %v3662
    %v3664 = vrot.slane %v3404, 5
    %v3665 = vrot.slane %v3664, 4
    %v3666 = vrot.slane %v3405, 5
    %v3667 = vsel %vm1591, %v3665, %v3666
    %v3668 = vrot.slane %v3666, 4
    %v3669 = vrot.slane %v3406, 5
    %v3670 = vsel %vm1591, %v3668, %v3669
    %v3671 = vrot.slane %v3407, 5
    %v3672 = vrot.slane %v3671, 4
    %v3673 = vrot.slane %v3408, 5
    %v3674 = vsel %vm1591, %v3672, %v3673
    %v3675 = vrot.slane %v3673, 4
    %v3676 = vrot.slane %v3409, 5
    %v3677 = vsel %vm1591, %v3675, %v3676
    %v3678 = vrot.slane %v3410, 5
    %v3679 = vrot.slane %v3678, 4
    %v3680 = vrot.slane %v3411, 5
    %v3681 = vsel %vm1591, %v3679, %v3680
    %v3682 = vrot.slane %v3680, 4
    %v3683 = vrot.slane %v3412, 5
    %v3684 = vsel %vm1591, %v3682, %v3683
    %v3685 = vrot.slane %v3413, 5
    %v3686 = vrot.slane %v3685, 4
    %v3687 = vrot.slane %v3414, 5
    %v3688 = vsel %vm1591, %v3686, %v3687
    %v3689 = vrot.slane %v3687, 4
    %v3690 = vrot.slane %v3415, 5
    %v3691 = vsel %vm1591, %v3689, %v3690
    %v3692 = vrot.slane %v3416, 5
    %v3693 = vrot.slane %v3692, 4
    %v3694 = vrot.slane %v3417, 5
    %v3695 = vsel %vm1591, %v3693, %v3694
    %v3696 = vrot.slane %v3694, 4
    %v3697 = vrot.slane %v3418, 5
    %v3698 = vsel %vm1591, %v3696, %v3697
    %v3699 = vrot.slane %v3419, 5
    %v3700 = vrot.slane %v3699, 4
    %v3701 = vrot.slane %v3420, 5
    %v3702 = vsel %vm1591, %v3700, %v3701
    %v3703 = vrot.slane %v3701, 4
    %v3704 = vrot.slane %v3421, 5
    %v3705 = vsel %vm1591, %v3703, %v3704
    %v3706 = vrot.slane %v3422, 5
    %v3707 = vrot.slane %v3706, 4
    %v3708 = vrot.slane %v3423, 5
    %v3709 = vsel %vm1591, %v3707, %v3708
    %v3710 = vrot.slane %v3708, 4
    %v3711 = vrot.slane %v3424, 5
    %v3712 = vsel %vm1591, %v3710, %v3711
    %v3713 = vrot.slane %v3425, 5
    %v3714 = vrot.slane %v3713, 4
    %v3715 = vrot.slane %v3426, 5
    %v3716 = vsel %vm1591, %v3714, %v3715
    %v3717 = vrot.slane %v3715, 4
    %v3718 = vrot.slane %v3427, 5
    %v3719 = vsel %vm1591, %v3717, %v3718
    %v3720 = vrot.slane %v3428, 5
    %v3721 = vrot.slane %v3720, 4
    %v3722 = vrot.slane %v3429, 5
    %v3723 = vsel %vm1591, %v3721, %v3722
    %v3724 = vrot.slane %v3722, 4
    %v3725 = vrot.slane %v3430, 5
    %v3726 = vsel %vm1591, %v3724, %v3725
    %v3727 = vrot.slane %v3431, 5
    %v3728 = vrot.slane %v3727, 4
    %v3729 = vrot.slane %v3432, 5
    %v3730 = vsel %vm1591, %v3728, %v3729
    %v3731 = vrot.slane %v3729, 4
    %v3732 = vrot.slane %v3433, 5
    %v3733 = vsel %vm1591, %v3731, %v3732
    %v3734 = vrot.slane %v3434, 5
    %v3735 = vrot.slane %v3734, 4
    %v3736 = vrot.slane %v3435, 5
    %v3737 = vsel %vm1591, %v3735, %v3736
    %v3738 = vrot.slane %v3736, 4
    %v3739 = vrot.slane %v3436, 5
    %v3740 = vsel %vm1591, %v3738, %v3739
    %v3741 = vrot.slane %v3437, 5
    %v3742 = vrot.slane %v3741, 4
    %v3743 = vrot.slane %v3438, 5
    %v3744 = vsel %vm1591, %v3742, %v3743
    %v3745 = vrot.slane %v3743, 4
    %v3746 = vrot.slane %v3439, 5
    %v3747 = vsel %vm1591, %v3745, %v3746
    %v3748 = vrot.slane %v3440, 5
    %v3749 = vrot.slane %v3748, 4
    %v3750 = vrot.slane %v3441, 5
    %v3751 = vsel %vm1591, %v3749, %v3750
    %v3752 = vrot.slane %v3750, 4
    %v3753 = vrot.slane %v3442, 5
    %v3754 = vsel %vm1591, %v3752, %v3753
    %v3755 = vrot.slane %v3443, 5
    %v3756 = vrot.slane %v3755, 4
    %v3757 = vrot.slane %v3444, 5
    %v3758 = vsel %vm1591, %v3756, %v3757
    %v3759 = vrot.slane %v3757, 4
    %v3760 = vrot.slane %v3445, 5
    %v3761 = vsel %vm1591, %v3759, %v3760
    %v3762 = vrot.slane %v3446, 5
    %v3763 = vrot.slane %v3762, 4
    %v3764 = vrot.slane %v3447, 5
    %v3765 = vsel %vm1591, %v3763, %v3764
    %v3766 = vrot.slane %v3764, 4
    %v3767 = vrot.slane %v3448, 5
    %v3768 = vsel %vm1591, %v3766, %v3767
    %v3769 = vunpack.c.l.b16 %v3548
    %v3770 = vunpack.c.l.b16 %v3551
    %v3771 = vunpack.c.l.b16 %v3555
    %v3772 = vunpack.c.l.b16 %v3558
    %v3773 = vunpack.c.l.b16 %v3562
    %v3774 = vunpack.c.l.b16 %v3565
    %v3775 = vunpack.c.l.b16 %v3569
    %v3776 = vunpack.c.l.b16 %v3572
    %v3777 = vunpack.c.l.b16 %v3576
    %v3778 = vunpack.c.l.b16 %v3579
    %v3779 = vunpack.c.l.b16 %v3583
    %v3780 = vunpack.c.l.b16 %v3586
    %v3781 = vunpack.c.l.b16 %v3590
    %v3782 = vunpack.c.l.b16 %v3593
    %v3783 = vunpack.c.l.b16 %v3597
    %v3784 = vunpack.c.l.b16 %v3600
    %v3785 = vunpack.c.l.b16 %v3604
    %v3786 = vunpack.c.l.b16 %v3607
    %v3787 = vunpack.c.l.b16 %v3611
    %v3788 = vunpack.c.l.b16 %v3614
    %v3789 = vunpack.c.l.b16 %v3618
    %v3790 = vunpack.c.l.b16 %v3621
    %v3791 = vunpack.c.l.b16 %v3625
    %v3792 = vunpack.c.l.b16 %v3628
    %v3793 = vunpack.c.l.b16 %v3632
    %v3794 = vunpack.c.l.b16 %v3635
    %v3795 = vunpack.c.l.b16 %v3639
    %v3796 = vunpack.c.l.b16 %v3642
    %v3797 = vunpack.c.l.b16 %v3646
    %v3798 = vunpack.c.l.b16 %v3649
    %v3799 = vunpack.c.l.b16 %v3653
    %v3800 = vunpack.c.l.b16 %v3656
    %v3801 = vunpack.c.l.b16 %v3660
    %v3802 = vunpack.c.l.b16 %v3663
    %v3803 = vunpack.c.l.b16 %v3667
    %v3804 = vunpack.c.l.b16 %v3670
    %v3805 = vunpack.c.l.b16 %v3674
    %v3806 = vunpack.c.l.b16 %v3677
    %v3807 = vunpack.c.l.b16 %v3681
    %v3808 = vunpack.c.l.b16 %v3684
    %v3809 = vunpack.c.l.b16 %v3688
    %v3810 = vunpack.c.l.b16 %v3691
    %v3811 = vunpack.c.l.b16 %v3695
    %v3812 = vunpack.c.l.b16 %v3698
    %v3813 = vunpack.c.l.b16 %v3702
    %v3814 = vunpack.c.l.b16 %v3705
    %v3815 = vunpack.c.l.b16 %v3709
    %v3816 = vunpack.c.l.b16 %v3712
    %v3817 = vunpack.c.l.b16 %v3716
    %v3818 = vunpack.c.l.b16 %v3719
    %v3819 = vunpack.c.l.b16 %v3723
    %v3820 = vunpack.c.l.b16 %v3726
    %v3821 = vunpack.c.l.b16 %v3730
    %v3822 = vunpack.c.l.b16 %v3733
    %v3823 = vunpack.c.l.b16 %v3737
    %v3824 = vunpack.c.l.b16 %v3740
    %v3825 = vunpack.c.l.b16 %v3744
    %v3826 = vunpack.c.l.b16 %v3747
    %v3827 = vunpack.c.l.b16 %v3751
    %v3828 = vunpack.c.l.b16 %v3754
    %v3829 = vunpack.c.l.b16 %v3758
    %v3830 = vunpack.c.l.b16 %v3761
    %v3831 = vunpack.c.l.b16 %v3765
    %v3832 = vunpack.c.l.b16 %v3768
    %v3833 = vpack.c.b16 %v3770, %v3769
    %v3834 = vpack.c.b16 %v3772, %v3771
    %v3835 = vpack.c.b16 %v3774, %v3773
    %v3836 = vpack.c.b16 %v3776, %v3775
    %v3837 = vpack.c.b16 %v3778, %v3777
    %v3838 = vpack.c.b16 %v3780, %v3779
    %v3839 = vpack.c.b16 %v3782, %v3781
    %v3840 = vpack.c.b16 %v3784, %v3783
    %v3841 = vpack.c.b16 %v3786, %v3785
    %v3842 = vpack.c.b16 %v3788, %v3787
    %v3843 = vpack.c.b16 %v3790, %v3789
    %v3844 = vpack.c.b16 %v3792, %v3791
    %v3845 = vpack.c.b16 %v3794, %v3793
    %v3846 = vpack.c.b16 %v3796, %v3795
    %v3847 = vpack.c.b16 %v3798, %v3797
    %v3848 = vpack.c.b16 %v3800, %v3799
    %v3849 = vpack.c.b16 %v3802, %v3801
    %v3850 = vpack.c.b16 %v3804, %v3803
    %v3851 = vpack.c.b16 %v3806, %v3805
    %v3852 = vpack.c.b16 %v3808, %v3807
    %v3853 = vpack.c.b16 %v3810, %v3809
    %v3854 = vpack.c.b16 %v3812, %v3811
    %v3855 = vpack.c.b16 %v3814, %v3813
    %v3856 = vpack.c.b16 %v3816, %v3815
    %v3857 = vpack.c.b16 %v3818, %v3817
    %v3858 = vpack.c.b16 %v3820, %v3819
    %v3859 = vpack.c.b16 %v3822, %v3821
    %v3860 = vpack.c.b16 %v3824, %v3823
    %v3861 = vpack.c.b16 %v3826, %v3825
    %v3862 = vpack.c.b16 %v3828, %v3827
    %v3863 = vpack.c.b16 %v3830, %v3829
    %v3864 = vpack.c.b16 %v3832, %v3831
    %3865 = vrot.lane.b32.xlu0 %v3833, 64
    %v3866 = vpop.permute.xlu0 %3865
    %3867 = vrot.lane.b32.xlu0 %v3834, 64
    %v3868 = vpop.permute.xlu0 %3867
    %3869 = vrot.lane.b32.xlu0 %v3835, 64
    %v3870 = vpop.permute.xlu0 %3869
    %3871 = vrot.lane.b32.xlu0 %v3836, 64
    %v3872 = vpop.permute.xlu0 %3871
    %3873 = vrot.lane.b32.xlu0 %v3837, 64
    %v3874 = vpop.permute.xlu0 %3873
    %3875 = vrot.lane.b32.xlu0 %v3838, 64
    %v3876 = vpop.permute.xlu0 %3875
    %3877 = vrot.lane.b32.xlu0 %v3839, 64
    %v3878 = vpop.permute.xlu0 %3877
    %3879 = vrot.lane.b32.xlu0 %v3840, 64
    %v3880 = vpop.permute.xlu0 %3879
    %3881 = vrot.lane.b32.xlu0 %v3841, 64
    %v3882 = vpop.permute.xlu0 %3881
    %3883 = vrot.lane.b32.xlu0 %v3842, 64
    %v3884 = vpop.permute.xlu0 %3883
    %3885 = vrot.lane.b32.xlu0 %v3843, 64
    %v3886 = vpop.permute.xlu0 %3885
    %3887 = vrot.lane.b32.xlu0 %v3844, 64
    %v3888 = vpop.permute.xlu0 %3887
    %3889 = vrot.lane.b32.xlu0 %v3845, 64
    %v3890 = vpop.permute.xlu0 %3889
    %3891 = vrot.lane.b32.xlu0 %v3846, 64
    %v3892 = vpop.permute.xlu0 %3891
    %3893 = vrot.lane.b32.xlu0 %v3847, 64
    %v3894 = vpop.permute.xlu0 %3893
    %3895 = vrot.lane.b32.xlu0 %v3848, 64
    %v3896 = vpop.permute.xlu0 %3895
    %3897 = vrot.lane.b32.xlu0 %v3849, 64
    %v3898 = vpop.permute.xlu0 %3897
    %3899 = vrot.lane.b32.xlu0 %v3850, 64
    %v3900 = vpop.permute.xlu0 %3899
    %3901 = vrot.lane.b32.xlu0 %v3851, 64
    %v3902 = vpop.permute.xlu0 %3901
    %3903 = vrot.lane.b32.xlu0 %v3852, 64
    %v3904 = vpop.permute.xlu0 %3903
    %3905 = vrot.lane.b32.xlu0 %v3853, 64
    %v3906 = vpop.permute.xlu0 %3905
    %3907 = vrot.lane.b32.xlu0 %v3854, 64
    %v3908 = vpop.permute.xlu0 %3907
    %3909 = vrot.lane.b32.xlu0 %v3855, 64
    %v3910 = vpop.permute.xlu0 %3909
    %3911 = vrot.lane.b32.xlu0 %v3856, 64
    %v3912 = vpop.permute.xlu0 %3911
    %3913 = vrot.lane.b32.xlu0 %v3857, 64
    %v3914 = vpop.permute.xlu0 %3913
    %3915 = vrot.lane.b32.xlu0 %v3858, 64
    %v3916 = vpop.permute.xlu0 %3915
    %3917 = vrot.lane.b32.xlu0 %v3859, 64
    %v3918 = vpop.permute.xlu0 %3917
    %3919 = vrot.lane.b32.xlu0 %v3860, 64
    %v3920 = vpop.permute.xlu0 %3919
    %3921 = vrot.lane.b32.xlu0 %v3861, 64
    %v3922 = vpop.permute.xlu0 %3921
    %3923 = vrot.lane.b32.xlu0 %v3862, 64
    %v3924 = vpop.permute.xlu0 %3923
    %3925 = vrot.lane.b32.xlu0 %v3863, 64
    %v3926 = vpop.permute.xlu0 %3925
    %3927 = vrot.lane.b32.xlu0 %v3864, 64
    %v3928 = vpop.permute.xlu0 %3927
    %3961 = vst.msk [vmem:[#allocation2 + $0x10] sm:$0xff] %vm1364, %v3866
    %3962 = vst.msk [vmem:[#allocation2 + $0x38] sm:$0xff] %vm1364, %v3868
    %3963 = vst.msk [vmem:[#allocation2 + $0x60] sm:$0xff] %vm1364, %v3870
    %3964 = vst.msk [vmem:[#allocation2 + $0x88] sm:$0xff] %vm1364, %v3872
    %3965 = vst.msk [vmem:[#allocation2 + $0xb0] sm:$0xff] %vm1364, %v3874
    %3966 = vst.msk [vmem:[#allocation2 + $0xd8] sm:$0xff] %vm1364, %v3876
    %3967 = vst.msk [vmem:[#allocation2 + $0x100] sm:$0xff] %vm1364, %v3878
    %3968 = vst.msk [vmem:[#allocation2 + $0x128] sm:$0xff] %vm1364, %v3880
    %3969 = vst.msk [vmem:[#allocation2 + $0x150] sm:$0xff] %vm1364, %v3882
    %3970 = vst.msk [vmem:[#allocation2 + $0x178] sm:$0xff] %vm1364, %v3884
    %3971 = vst.msk [vmem:[#allocation2 + $0x1a0] sm:$0xff] %vm1364, %v3886
    %3972 = vst.msk [vmem:[#allocation2 + $0x1c8] sm:$0xff] %vm1364, %v3888
    %3973 = vst.msk [vmem:[#allocation2 + $0x1f0] sm:$0xff] %vm1364, %v3890
    %3974 = vst.msk [vmem:[#allocation2 + $0x218] sm:$0xff] %vm1364, %v3892
    %3975 = vst.msk [vmem:[#allocation2 + $0x240] sm:$0xff] %vm1364, %v3894
    %3976 = vst.msk [vmem:[#allocation2 + $0x268] sm:$0xff] %vm1364, %v3896
    %3977 = vst.msk [vmem:[#allocation2 + $0x290] sm:$0xff] %vm1364, %v3898
    %3978 = vst.msk [vmem:[#allocation2 + $0x2b8] sm:$0xff] %vm1364, %v3900
    %3979 = vst.msk [vmem:[#allocation2 + $0x2e0] sm:$0xff] %vm1364, %v3902
    %3980 = vst.msk [vmem:[#allocation2 + $0x308] sm:$0xff] %vm1364, %v3904
    %3981 = vst.msk [vmem:[#allocation2 + $0x330] sm:$0xff] %vm1364, %v3906
    %3982 = vst.msk [vmem:[#allocation2 + $0x358] sm:$0xff] %vm1364, %v3908
    %3983 = vst.msk [vmem:[#allocation2 + $0x380] sm:$0xff] %vm1364, %v3910
    %3984 = vst.msk [vmem:[#allocation2 + $0x3a8] sm:$0xff] %vm1364, %v3912
    %3985 = vst.msk [vmem:[#allocation2 + $0x3d0] sm:$0xff] %vm1364, %v3914
    %3986 = vst.msk [vmem:[#allocation2 + $0x3f8] sm:$0xff] %vm1364, %v3916
    %3987 = vst.msk [vmem:[#allocation2 + $0x420] sm:$0xff] %vm1364, %v3918
    %3988 = vst.msk [vmem:[#allocation2 + $0x448] sm:$0xff] %vm1364, %v3920
    %3989 = vst.msk [vmem:[#allocation2 + $0x470] sm:$0xff] %vm1364, %v3922
    %3990 = vst.msk [vmem:[#allocation2 + $0x498] sm:$0xff] %vm1364, %v3924
    %3991 = vst.msk [vmem:[#allocation2 + $0x4c0] sm:$0xff] %vm1364, %v3926
    %3992 = vst.msk [vmem:[#allocation2 + $0x4e8] sm:$0xff] %vm1364, %v3928
    %s3993 = scalar_lea.vmem %s0, 24
    %v3994 = vld [vmem:[%s3993] sm:$0xf]
    %v3995 = vld [vmem:[%s3993 + $0x4] sm:$0xf]
    %v3996 = vld [vmem:[%s3993 + $0xc] sm:$0xf]
    %v3997 = vld [vmem:[%s3993 + $0x10] sm:$0xf]
    %v3998 = vld [vmem:[%s3993 + $0x18] sm:$0xf]
    %v3999 = vld [vmem:[%s3993 + $0x1c] sm:$0xf]
    %v4000 = vld [vmem:[%s3993 + $0x24] sm:$0xf]
    %v4001 = vld [vmem:[%s3993 + $0x28] sm:$0xf]
    %v4002 = vld [vmem:[%s3993 + $0x30] sm:$0xf]
    %v4003 = vld [vmem:[%s3993 + $0x34] sm:$0xf]
    %v4004 = vld [vmem:[%s3993 + $0x3c] sm:$0xf]
    %v4005 = vld [vmem:[%s3993 + $0x40] sm:$0xf]
    %v4006 = vld [vmem:[%s3993 + $0x48] sm:$0xf]
    %v4007 = vld [vmem:[%s3993 + $0x4c] sm:$0xf]
    %v4008 = vld [vmem:[%s3993 + $0x54] sm:$0xf]
    %v4009 = vld [vmem:[%s3993 + $0x58] sm:$0xf]
    %v4010 = vld [vmem:[%s3993 + $0x60] sm:$0xf]
    %v4011 = vld [vmem:[%s3993 + $0x64] sm:$0xf]
    %v4012 = vld [vmem:[%s3993 + $0x6c] sm:$0xf]
    %v4013 = vld [vmem:[%s3993 + $0x70] sm:$0xf]
    %v4014 = vld [vmem:[%s3993 + $0x78] sm:$0xf]
    %v4015 = vld [vmem:[%s3993 + $0x7c] sm:$0xf]
    %v4016 = vld [vmem:[%s3993 + $0x84] sm:$0xf]
    %v4017 = vld [vmem:[%s3993 + $0x88] sm:$0xf]
    %v4018 = vld [vmem:[%s3993 + $0x90] sm:$0xf]
    %v4019 = vld [vmem:[%s3993 + $0x94] sm:$0xf]
    %v4020 = vld [vmem:[%s3993 + $0x9c] sm:$0xf]
    %v4021 = vld [vmem:[%s3993 + $0xa0] sm:$0xf]
    %v4022 = vld [vmem:[%s3993 + $0xa8] sm:$0xf]
    %v4023 = vld [vmem:[%s3993 + $0xac] sm:$0xf]
    %v4024 = vld [vmem:[%s3993 + $0xb4] sm:$0xf]
    %v4025 = vld [vmem:[%s3993 + $0xb8] sm:$0xf]
    %v4026 = vld [vmem:[%s3993 + $0xd8] sm:$0xf]
    %v4027 = vld [vmem:[%s3993 + $0xdc] sm:$0xf]
    %v4028 = vld [vmem:[%s3993 + $0xe4] sm:$0xf]
    %v4029 = vld [vmem:[%s3993 + $0xe8] sm:$0xf]
    %v4030 = vld [vmem:[%s3993 + $0xf0] sm:$0xf]
    %v4031 = vld [vmem:[%s3993 + $0xf4] sm:$0xf]
    %v4032 = vld [vmem:[%s3993 + $0xfc] sm:$0xf]
    %v4033 = vld [vmem:[%s3993 + $0x100] sm:$0xf]
    %v4034 = vld [vmem:[%s3993 + $0x108] sm:$0xf]
    %v4035 = vld [vmem:[%s3993 + $0x10c] sm:$0xf]
    %v4036 = vld [vmem:[%s3993 + $0x114] sm:$0xf]
    %v4037 = vld [vmem:[%s3993 + $0x118] sm:$0xf]
    %v4038 = vld [vmem:[%s3993 + $0x120] sm:$0xf]
    %v4039 = vld [vmem:[%s3993 + $0x124] sm:$0xf]
    %v4040 = vld [vmem:[%s3993 + $0x12c] sm:$0xf]
    %v4041 = vld [vmem:[%s3993 + $0x130] sm:$0xf]
    %v4042 = vld [vmem:[%s3993 + $0x138] sm:$0xf]
    %v4043 = vld [vmem:[%s3993 + $0x13c] sm:$0xf]
    %v4044 = vld [vmem:[%s3993 + $0x144] sm:$0xf]
    %v4045 = vld [vmem:[%s3993 + $0x148] sm:$0xf]
    %v4046 = vld [vmem:[%s3993 + $0x150] sm:$0xf]
    %v4047 = vld [vmem:[%s3993 + $0x154] sm:$0xf]
    %v4048 = vld [vmem:[%s3993 + $0x15c] sm:$0xf]
    %v4049 = vld [vmem:[%s3993 + $0x160] sm:$0xf]
    %v4050 = vld [vmem:[%s3993 + $0x168] sm:$0xf]
    %v4051 = vld [vmem:[%s3993 + $0x16c] sm:$0xf]
    %v4052 = vld [vmem:[%s3993 + $0x174] sm:$0xf]
    %v4053 = vld [vmem:[%s3993 + $0x178] sm:$0xf]
    %v4054 = vld [vmem:[%s3993 + $0x180] sm:$0xf]
    %v4055 = vld [vmem:[%s3993 + $0x184] sm:$0xf]
    %v4056 = vld [vmem:[%s3993 + $0x18c] sm:$0xf]
    %v4057 = vld [vmem:[%s3993 + $0x190] sm:$0xf]
    %v4122 = vunpack.c.l.b16 %v3994
    %v4123 = vunpack.c.l.b16 %v3995
    %v4124 = vunpack.c.l.b16 %v3996
    %v4125 = vunpack.c.l.b16 %v3997
    %v4126 = vunpack.c.l.b16 %v3998
    %v4127 = vunpack.c.l.b16 %v3999
    %v4128 = vunpack.c.l.b16 %v4000
    %v4129 = vunpack.c.l.b16 %v4001
    %v4130 = vunpack.c.l.b16 %v4002
    %v4131 = vunpack.c.l.b16 %v4003
    %v4132 = vunpack.c.l.b16 %v4004
    %v4133 = vunpack.c.l.b16 %v4005
    %v4134 = vunpack.c.l.b16 %v4006
    %v4135 = vunpack.c.l.b16 %v4007
    %v4136 = vunpack.c.l.b16 %v4008
    %v4137 = vunpack.c.l.b16 %v4009
    %v4138 = vunpack.c.l.b16 %v4010
    %v4139 = vunpack.c.l.b16 %v4011
    %v4140 = vunpack.c.l.b16 %v4012
    %v4141 = vunpack.c.l.b16 %v4013
    %v4142 = vunpack.c.l.b16 %v4014
    %v4143 = vunpack.c.l.b16 %v4015
    %v4144 = vunpack.c.l.b16 %v4016
    %v4145 = vunpack.c.l.b16 %v4017
    %v4146 = vunpack.c.l.b16 %v4018
    %v4147 = vunpack.c.l.b16 %v4019
    %v4148 = vunpack.c.l.b16 %v4020
    %v4149 = vunpack.c.l.b16 %v4021
    %v4150 = vunpack.c.l.b16 %v4022
    %v4151 = vunpack.c.l.b16 %v4023
    %v4152 = vunpack.c.l.b16 %v4024
    %v4153 = vunpack.c.l.b16 %v4025
    %v4154 = vunpack.c.l.b16 %v4026
    %v4155 = vunpack.c.l.b16 %v4027
    %v4156 = vunpack.c.l.b16 %v4028
    %v4157 = vunpack.c.l.b16 %v4029
    %v4158 = vunpack.c.l.b16 %v4030
    %v4159 = vunpack.c.l.b16 %v4031
    %v4160 = vunpack.c.l.b16 %v4032
    %v4161 = vunpack.c.l.b16 %v4033
    %v4162 = vunpack.c.l.b16 %v4034
    %v4163 = vunpack.c.l.b16 %v4035
    %v4164 = vunpack.c.l.b16 %v4036
    %v4165 = vunpack.c.l.b16 %v4037
    %v4166 = vunpack.c.l.b16 %v4038
    %v4167 = vunpack.c.l.b16 %v4039
    %v4168 = vunpack.c.l.b16 %v4040
    %v4169 = vunpack.c.l.b16 %v4041
    %v4170 = vunpack.c.l.b16 %v4042
    %v4171 = vunpack.c.l.b16 %v4043
    %v4172 = vunpack.c.l.b16 %v4044
    %v4173 = vunpack.c.l.b16 %v4045
    %v4174 = vunpack.c.l.b16 %v4046
    %v4175 = vunpack.c.l.b16 %v4047
    %v4176 = vunpack.c.l.b16 %v4048
    %v4177 = vunpack.c.l.b16 %v4049
    %v4178 = vunpack.c.l.b16 %v4050
    %v4179 = vunpack.c.l.b16 %v4051
    %v4180 = vunpack.c.l.b16 %v4052
    %v4181 = vunpack.c.l.b16 %v4053
    %v4182 = vunpack.c.l.b16 %v4054
    %v4183 = vunpack.c.l.b16 %v4055
    %v4184 = vunpack.c.l.b16 %v4056
    %v4185 = vunpack.c.l.b16 %v4057
    %v4186 = vpack.c.b16 %v4123, %v4122
    %v4187 = vpack.c.b16 %v4125, %v4124
    %v4188 = vpack.c.b16 %v4127, %v4126
    %v4189 = vpack.c.b16 %v4129, %v4128
    %v4190 = vpack.c.b16 %v4131, %v4130
    %v4191 = vpack.c.b16 %v4133, %v4132
    %v4192 = vpack.c.b16 %v4135, %v4134
    %v4193 = vpack.c.b16 %v4137, %v4136
    %v4194 = vpack.c.b16 %v4139, %v4138
    %v4195 = vpack.c.b16 %v4141, %v4140
    %v4196 = vpack.c.b16 %v4143, %v4142
    %v4197 = vpack.c.b16 %v4145, %v4144
    %v4198 = vpack.c.b16 %v4147, %v4146
    %v4199 = vpack.c.b16 %v4149, %v4148
    %v4200 = vpack.c.b16 %v4151, %v4150
    %v4201 = vpack.c.b16 %v4153, %v4152
    %v4202 = vpack.c.b16 %v4155, %v4154
    %v4203 = vpack.c.b16 %v4157, %v4156
    %v4204 = vpack.c.b16 %v4159, %v4158
    %v4205 = vpack.c.b16 %v4161, %v4160
    %v4206 = vpack.c.b16 %v4163, %v4162
    %v4207 = vpack.c.b16 %v4165, %v4164
    %v4208 = vpack.c.b16 %v4167, %v4166
    %v4209 = vpack.c.b16 %v4169, %v4168
    %v4210 = vpack.c.b16 %v4171, %v4170
    %v4211 = vpack.c.b16 %v4173, %v4172
    %v4212 = vpack.c.b16 %v4175, %v4174
    %v4213 = vpack.c.b16 %v4177, %v4176
    %v4214 = vpack.c.b16 %v4179, %v4178
    %v4215 = vpack.c.b16 %v4181, %v4180
    %v4216 = vpack.c.b16 %v4183, %v4182
    %v4217 = vpack.c.b16 %v4185, %v4184
    %4250 = vst.msk [vmem:[#allocation2 + $0x18] sm:$0xff] %vm272, %v4186
    %4251 = vst.msk [vmem:[#allocation2 + $0x40] sm:$0xff] %vm272, %v4187
    %4252 = vst.msk [vmem:[#allocation2 + $0x68] sm:$0xff] %vm272, %v4188
    %4253 = vst.msk [vmem:[#allocation2 + $0x90] sm:$0xff] %vm272, %v4189
    %4254 = vst.msk [vmem:[#allocation2 + $0xb8] sm:$0xff] %vm272, %v4190
    %4255 = vst.msk [vmem:[#allocation2 + $0xe0] sm:$0xff] %vm272, %v4191
    %4256 = vst.msk [vmem:[#allocation2 + $0x108] sm:$0xff] %vm272, %v4192
    %4257 = vst.msk [vmem:[#allocation2 + $0x130] sm:$0xff] %vm272, %v4193
    %4258 = vst.msk [vmem:[#allocation2 + $0x158] sm:$0xff] %vm272, %v4194
    %4259 = vst.msk [vmem:[#allocation2 + $0x180] sm:$0xff] %vm272, %v4195
    %4260 = vst.msk [vmem:[#allocation2 + $0x1a8] sm:$0xff] %vm272, %v4196
    %4261 = vst.msk [vmem:[#allocation2 + $0x1d0] sm:$0xff] %vm272, %v4197
    %4262 = vst.msk [vmem:[#allocation2 + $0x1f8] sm:$0xff] %vm272, %v4198
    %4263 = vst.msk [vmem:[#allocation2 + $0x220] sm:$0xff] %vm272, %v4199
    %4264 = vst.msk [vmem:[#allocation2 + $0x248] sm:$0xff] %vm272, %v4200
    %4265 = vst.msk [vmem:[#allocation2 + $0x270] sm:$0xff] %vm272, %v4201
    %4266 = vst.msk [vmem:[#allocation2 + $0x298] sm:$0xff] %vm272, %v4202
    %4267 = vst.msk [vmem:[#allocation2 + $0x2c0] sm:$0xff] %vm272, %v4203
    %4268 = vst.msk [vmem:[#allocation2 + $0x2e8] sm:$0xff] %vm272, %v4204
    %4269 = vst.msk [vmem:[#allocation2 + $0x310] sm:$0xff] %vm272, %v4205
    %4270 = vst.msk [vmem:[#allocation2 + $0x338] sm:$0xff] %vm272, %v4206
    %4271 = vst.msk [vmem:[#allocation2 + $0x360] sm:$0xff] %vm272, %v4207
    %4272 = vst.msk [vmem:[#allocation2 + $0x388] sm:$0xff] %vm272, %v4208
    %4273 = vst.msk [vmem:[#allocation2 + $0x3b0] sm:$0xff] %vm272, %v4209
    %4274 = vst.msk [vmem:[#allocation2 + $0x3d8] sm:$0xff] %vm272, %v4210
    %4275 = vst.msk [vmem:[#allocation2 + $0x400] sm:$0xff] %vm272, %v4211
    %4276 = vst.msk [vmem:[#allocation2 + $0x428] sm:$0xff] %vm272, %v4212
    %4277 = vst.msk [vmem:[#allocation2 + $0x450] sm:$0xff] %vm272, %v4213
    %4278 = vst.msk [vmem:[#allocation2 + $0x478] sm:$0xff] %vm272, %v4214
    %4279 = vst.msk [vmem:[#allocation2 + $0x4a0] sm:$0xff] %vm272, %v4215
    %4280 = vst.msk [vmem:[#allocation2 + $0x4c8] sm:$0xff] %vm272, %v4216
    %4281 = vst.msk [vmem:[#allocation2 + $0x4f0] sm:$0xff] %vm272, %v4217
    %v4282 = vld [vmem:[%s3993] sm:$0xf]
    %v4283 = vld [vmem:[%s3993 + $0x4] sm:$0xf]
    %v4284 = vld [vmem:[%s3993 + $0x8] sm:$0x1]
    %v4285 = vld [vmem:[%s3993 + $0xc] sm:$0xf]
    %v4286 = vld [vmem:[%s3993 + $0x10] sm:$0xf]
    %v4287 = vld [vmem:[%s3993 + $0x14] sm:$0x1]
    %v4288 = vld [vmem:[%s3993 + $0x18] sm:$0xf]
    %v4289 = vld [vmem:[%s3993 + $0x1c] sm:$0xf]
    %v4290 = vld [vmem:[%s3993 + $0x20] sm:$0x1]
    %v4291 = vld [vmem:[%s3993 + $0x24] sm:$0xf]
    %v4292 = vld [vmem:[%s3993 + $0x28] sm:$0xf]
    %v4293 = vld [vmem:[%s3993 + $0x2c] sm:$0x1]
    %v4294 = vld [vmem:[%s3993 + $0x30] sm:$0xf]
    %v4295 = vld [vmem:[%s3993 + $0x34] sm:$0xf]
    %v4296 = vld [vmem:[%s3993 + $0x38] sm:$0x1]
    %v4297 = vld [vmem:[%s3993 + $0x3c] sm:$0xf]
    %v4298 = vld [vmem:[%s3993 + $0x40] sm:$0xf]
    %v4299 = vld [vmem:[%s3993 + $0x44] sm:$0x1]
    %v4300 = vld [vmem:[%s3993 + $0x48] sm:$0xf]
    %v4301 = vld [vmem:[%s3993 + $0x4c] sm:$0xf]
    %v4302 = vld [vmem:[%s3993 + $0x50] sm:$0x1]
    %v4303 = vld [vmem:[%s3993 + $0x54] sm:$0xf]
    %v4304 = vld [vmem:[%s3993 + $0x58] sm:$0xf]
    %v4305 = vld [vmem:[%s3993 + $0x5c] sm:$0x1]
    %v4306 = vld [vmem:[%s3993 + $0x60] sm:$0xf]
    %v4307 = vld [vmem:[%s3993 + $0x64] sm:$0xf]
    %v4308 = vld [vmem:[%s3993 + $0x68] sm:$0x1]
    %v4309 = vld [vmem:[%s3993 + $0x6c] sm:$0xf]
    %v4310 = vld [vmem:[%s3993 + $0x70] sm:$0xf]
    %v4311 = vld [vmem:[%s3993 + $0x74] sm:$0x1]
    %v4312 = vld [vmem:[%s3993 + $0x78] sm:$0xf]
    %v4313 = vld [vmem:[%s3993 + $0x7c] sm:$0xf]
    %v4314 = vld [vmem:[%s3993 + $0x80] sm:$0x1]
    %v4315 = vld [vmem:[%s3993 + $0x84] sm:$0xf]
    %v4316 = vld [vmem:[%s3993 + $0x88] sm:$0xf]
    %v4317 = vld [vmem:[%s3993 + $0x8c] sm:$0x1]
    %v4318 = vld [vmem:[%s3993 + $0x90] sm:$0xf]
    %v4319 = vld [vmem:[%s3993 + $0x94] sm:$0xf]
    %v4320 = vld [vmem:[%s3993 + $0x98] sm:$0x1]
    %v4321 = vld [vmem:[%s3993 + $0x9c] sm:$0xf]
    %v4322 = vld [vmem:[%s3993 + $0xa0] sm:$0xf]
    %v4323 = vld [vmem:[%s3993 + $0xa4] sm:$0x1]
    %v4324 = vld [vmem:[%s3993 + $0xa8] sm:$0xf]
    %v4325 = vld [vmem:[%s3993 + $0xac] sm:$0xf]
    %v4326 = vld [vmem:[%s3993 + $0xb0] sm:$0x1]
    %v4327 = vld [vmem:[%s3993 + $0xb4] sm:$0xf]
    %v4328 = vld [vmem:[%s3993 + $0xb8] sm:$0xf]
    %v4329 = vld [vmem:[%s3993 + $0xbc] sm:$0x1]
    %v4330 = vld [vmem:[%s3993 + $0xd8] sm:$0xf]
    %v4331 = vld [vmem:[%s3993 + $0xdc] sm:$0xf]
    %v4332 = vld [vmem:[%s3993 + $0xe0] sm:$0x1]
    %v4333 = vld [vmem:[%s3993 + $0xe4] sm:$0xf]
    %v4334 = vld [vmem:[%s3993 + $0xe8] sm:$0xf]
    %v4335 = vld [vmem:[%s3993 + $0xec] sm:$0x1]
    %v4336 = vld [vmem:[%s3993 + $0xf0] sm:$0xf]
    %v4337 = vld [vmem:[%s3993 + $0xf4] sm:$0xf]
    %v4338 = vld [vmem:[%s3993 + $0xf8] sm:$0x1]
    %v4339 = vld [vmem:[%s3993 + $0xfc] sm:$0xf]
    %v4340 = vld [vmem:[%s3993 + $0x100] sm:$0xf]
    %v4341 = vld [vmem:[%s3993 + $0x104] sm:$0x1]
    %v4342 = vld [vmem:[%s3993 + $0x108] sm:$0xf]
    %v4343 = vld [vmem:[%s3993 + $0x10c] sm:$0xf]
    %v4344 = vld [vmem:[%s3993 + $0x110] sm:$0x1]
    %v4345 = vld [vmem:[%s3993 + $0x114] sm:$0xf]
    %v4346 = vld [vmem:[%s3993 + $0x118] sm:$0xf]
    %v4347 = vld [vmem:[%s3993 + $0x11c] sm:$0x1]
    %v4348 = vld [vmem:[%s3993 + $0x120] sm:$0xf]
    %v4349 = vld [vmem:[%s3993 + $0x124] sm:$0xf]
    %v4350 = vld [vmem:[%s3993 + $0x128] sm:$0x1]
    %v4351 = vld [vmem:[%s3993 + $0x12c] sm:$0xf]
    %v4352 = vld [vmem:[%s3993 + $0x130] sm:$0xf]
    %v4353 = vld [vmem:[%s3993 + $0x134] sm:$0x1]
    %v4354 = vld [vmem:[%s3993 + $0x138] sm:$0xf]
    %v4355 = vld [vmem:[%s3993 + $0x13c] sm:$0xf]
    %v4356 = vld [vmem:[%s3993 + $0x140] sm:$0x1]
    %v4357 = vld [vmem:[%s3993 + $0x144] sm:$0xf]
    %v4358 = vld [vmem:[%s3993 + $0x148] sm:$0xf]
    %v4359 = vld [vmem:[%s3993 + $0x14c] sm:$0x1]
    %v4360 = vld [vmem:[%s3993 + $0x150] sm:$0xf]
    %v4361 = vld [vmem:[%s3993 + $0x154] sm:$0xf]
    %v4362 = vld [vmem:[%s3993 + $0x158] sm:$0x1]
    %v4363 = vld [vmem:[%s3993 + $0x15c] sm:$0xf]
    %v4364 = vld [vmem:[%s3993 + $0x160] sm:$0xf]
    %v4365 = vld [vmem:[%s3993 + $0x164] sm:$0x1]
    %v4366 = vld [vmem:[%s3993 + $0x168] sm:$0xf]
    %v4367 = vld [vmem:[%s3993 + $0x16c] sm:$0xf]
    %v4368 = vld [vmem:[%s3993 + $0x170] sm:$0x1]
    %v4369 = vld [vmem:[%s3993 + $0x174] sm:$0xf]
    %v4370 = vld [vmem:[%s3993 + $0x178] sm:$0xf]
    %v4371 = vld [vmem:[%s3993 + $0x17c] sm:$0x1]
    %v4372 = vld [vmem:[%s3993 + $0x180] sm:$0xf]
    %v4373 = vld [vmem:[%s3993 + $0x184] sm:$0xf]
    %v4374 = vld [vmem:[%s3993 + $0x188] sm:$0x1]
    %v4375 = vld [vmem:[%s3993 + $0x18c] sm:$0xf]
    %v4376 = vld [vmem:[%s3993 + $0x190] sm:$0xf]
    %v4377 = vld [vmem:[%s3993 + $0x194] sm:$0x1]
    %v4379 = vshrl.u32 %v4282, 16
    %v4381 = vrot.slane %v4379, 4
    %v4382 = vshll.u32 %v4282, 16
    %v4384 = vrot.slane %v4382, 5
    %v4385 = vor.u32 %v4381, %v4384
    %v4386 = vrot.slane %v4385, 4
    %v4388 = vshll.u32 %v4283, 16
    %v4390 = vrot.slane %v4388, 5
    %v4391 = vsel %vm403, %v4386, %v4390
    %v4392 = vshrl.u32 %v4283, 16
    %v4394 = vrot.slane %v4392, 4
    %v4395 = vor.u32 %v4394, %v4390
    %v4396 = vrot.slane %v4395, 4
    %v4398 = vshll.u32 %v4284, 16
    %v4400 = vrot.slane %v4398, 5
    %v4401 = vsel %vm403, %v4396, %v4400
    %v4403 = vshrl.u32 %v4285, 16
    %v4405 = vrot.slane %v4403, 4
    %v4406 = vshll.u32 %v4285, 16
    %v4408 = vrot.slane %v4406, 5
    %v4409 = vor.u32 %v4405, %v4408
    %v4410 = vrot.slane %v4409, 4
    %v4412 = vshll.u32 %v4286, 16
    %v4414 = vrot.slane %v4412, 5
    %v4415 = vsel %vm403, %v4410, %v4414
    %v4416 = vshrl.u32 %v4286, 16
    %v4418 = vrot.slane %v4416, 4
    %v4419 = vor.u32 %v4418, %v4414
    %v4420 = vrot.slane %v4419, 4
    %v4422 = vshll.u32 %v4287, 16
    %v4424 = vrot.slane %v4422, 5
    %v4425 = vsel %vm403, %v4420, %v4424
    %v4427 = vshrl.u32 %v4288, 16
    %v4429 = vrot.slane %v4427, 4
    %v4430 = vshll.u32 %v4288, 16
    %v4432 = vrot.slane %v4430, 5
    %v4433 = vor.u32 %v4429, %v4432
    %v4434 = vrot.slane %v4433, 4
    %v4436 = vshll.u32 %v4289, 16
    %v4438 = vrot.slane %v4436, 5
    %v4439 = vsel %vm403, %v4434, %v4438
    %v4440 = vshrl.u32 %v4289, 16
    %v4442 = vrot.slane %v4440, 4
    %v4443 = vor.u32 %v4442, %v4438
    %v4444 = vrot.slane %v4443, 4
    %v4446 = vshll.u32 %v4290, 16
    %v4448 = vrot.slane %v4446, 5
    %v4449 = vsel %vm403, %v4444, %v4448
    %v4451 = vshrl.u32 %v4291, 16
    %v4453 = vrot.slane %v4451, 4
    %v4454 = vshll.u32 %v4291, 16
    %v4456 = vrot.slane %v4454, 5
    %v4457 = vor.u32 %v4453, %v4456
    %v4458 = vrot.slane %v4457, 4
    %v4460 = vshll.u32 %v4292, 16
    %v4462 = vrot.slane %v4460, 5
    %v4463 = vsel %vm403, %v4458, %v4462
    %v4464 = vshrl.u32 %v4292, 16
    %v4466 = vrot.slane %v4464, 4
    %v4467 = vor.u32 %v4466, %v4462
    %v4468 = vrot.slane %v4467, 4
    %v4470 = vshll.u32 %v4293, 16
    %v4472 = vrot.slane %v4470, 5
    %v4473 = vsel %vm403, %v4468, %v4472
    %v4475 = vshrl.u32 %v4294, 16
    %v4477 = vrot.slane %v4475, 4
    %v4478 = vshll.u32 %v4294, 16
    %v4480 = vrot.slane %v4478, 5
    %v4481 = vor.u32 %v4477, %v4480
    %v4482 = vrot.slane %v4481, 4
    %v4484 = vshll.u32 %v4295, 16
    %v4486 = vrot.slane %v4484, 5
    %v4487 = vsel %vm403, %v4482, %v4486
    %v4488 = vshrl.u32 %v4295, 16
    %v4490 = vrot.slane %v4488, 4
    %v4491 = vor.u32 %v4490, %v4486
    %v4492 = vrot.slane %v4491, 4
    %v4494 = vshll.u32 %v4296, 16
    %v4496 = vrot.slane %v4494, 5
    %v4497 = vsel %vm403, %v4492, %v4496
    %v4499 = vshrl.u32 %v4297, 16
    %v4501 = vrot.slane %v4499, 4
    %v4502 = vshll.u32 %v4297, 16
    %v4504 = vrot.slane %v4502, 5
    %v4505 = vor.u32 %v4501, %v4504
    %v4506 = vrot.slane %v4505, 4
    %v4508 = vshll.u32 %v4298, 16
    %v4510 = vrot.slane %v4508, 5
    %v4511 = vsel %vm403, %v4506, %v4510
    %v4512 = vshrl.u32 %v4298, 16
    %v4514 = vrot.slane %v4512, 4
    %v4515 = vor.u32 %v4514, %v4510
    %v4516 = vrot.slane %v4515, 4
    %v4518 = vshll.u32 %v4299, 16
    %v4520 = vrot.slane %v4518, 5
    %v4521 = vsel %vm403, %v4516, %v4520
    %v4523 = vshrl.u32 %v4300, 16
    %v4525 = vrot.slane %v4523, 4
    %v4526 = vshll.u32 %v4300, 16
    %v4528 = vrot.slane %v4526, 5
    %v4529 = vor.u32 %v4525, %v4528
    %v4530 = vrot.slane %v4529, 4
    %v4532 = vshll.u32 %v4301, 16
    %v4534 = vrot.slane %v4532, 5
    %v4535 = vsel %vm403, %v4530, %v4534
    %v4536 = vshrl.u32 %v4301, 16
    %v4538 = vrot.slane %v4536, 4
    %v4539 = vor.u32 %v4538, %v4534
    %v4540 = vrot.slane %v4539, 4
    %v4542 = vshll.u32 %v4302, 16
    %v4544 = vrot.slane %v4542, 5
    %v4545 = vsel %vm403, %v4540, %v4544
    %v4547 = vshrl.u32 %v4303, 16
    %v4549 = vrot.slane %v4547, 4
    %v4550 = vshll.u32 %v4303, 16
    %v4552 = vrot.slane %v4550, 5
    %v4553 = vor.u32 %v4549, %v4552
    %v4554 = vrot.slane %v4553, 4
    %v4556 = vshll.u32 %v4304, 16
    %v4558 = vrot.slane %v4556, 5
    %v4559 = vsel %vm403, %v4554, %v4558
    %v4560 = vshrl.u32 %v4304, 16
    %v4562 = vrot.slane %v4560, 4
    %v4563 = vor.u32 %v4562, %v4558
    %v4564 = vrot.slane %v4563, 4
    %v4566 = vshll.u32 %v4305, 16
    %v4568 = vrot.slane %v4566, 5
    %v4569 = vsel %vm403, %v4564, %v4568
    %v4571 = vshrl.u32 %v4306, 16
    %v4573 = vrot.slane %v4571, 4
    %v4574 = vshll.u32 %v4306, 16
    %v4576 = vrot.slane %v4574, 5
    %v4577 = vor.u32 %v4573, %v4576
    %v4578 = vrot.slane %v4577, 4
    %v4580 = vshll.u32 %v4307, 16
    %v4582 = vrot.slane %v4580, 5
    %v4583 = vsel %vm403, %v4578, %v4582
    %v4584 = vshrl.u32 %v4307, 16
    %v4586 = vrot.slane %v4584, 4
    %v4587 = vor.u32 %v4586, %v4582
    %v4588 = vrot.slane %v4587, 4
    %v4590 = vshll.u32 %v4308, 16
    %v4592 = vrot.slane %v4590, 5
    %v4593 = vsel %vm403, %v4588, %v4592
    %v4595 = vshrl.u32 %v4309, 16
    %v4597 = vrot.slane %v4595, 4
    %v4598 = vshll.u32 %v4309, 16
    %v4600 = vrot.slane %v4598, 5
    %v4601 = vor.u32 %v4597, %v4600
    %v4602 = vrot.slane %v4601, 4
    %v4604 = vshll.u32 %v4310, 16
    %v4606 = vrot.slane %v4604, 5
    %v4607 = vsel %vm403, %v4602, %v4606
    %v4608 = vshrl.u32 %v4310, 16
    %v4610 = vrot.slane %v4608, 4
    %v4611 = vor.u32 %v4610, %v4606
    %v4612 = vrot.slane %v4611, 4
    %v4614 = vshll.u32 %v4311, 16
    %v4616 = vrot.slane %v4614, 5
    %v4617 = vsel %vm403, %v4612, %v4616
    %v4619 = vshrl.u32 %v4312, 16
    %v4621 = vrot.slane %v4619, 4
    %v4622 = vshll.u32 %v4312, 16
    %v4624 = vrot.slane %v4622, 5
    %v4625 = vor.u32 %v4621, %v4624
    %v4626 = vrot.slane %v4625, 4
    %v4628 = vshll.u32 %v4313, 16
    %v4630 = vrot.slane %v4628, 5
    %v4631 = vsel %vm403, %v4626, %v4630
    %v4632 = vshrl.u32 %v4313, 16
    %v4634 = vrot.slane %v4632, 4
    %v4635 = vor.u32 %v4634, %v4630
    %v4636 = vrot.slane %v4635, 4
    %v4638 = vshll.u32 %v4314, 16
    %v4640 = vrot.slane %v4638, 5
    %v4641 = vsel %vm403, %v4636, %v4640
    %v4643 = vshrl.u32 %v4315, 16
    %v4645 = vrot.slane %v4643, 4
    %v4646 = vshll.u32 %v4315, 16
    %v4648 = vrot.slane %v4646, 5
    %v4649 = vor.u32 %v4645, %v4648
    %v4650 = vrot.slane %v4649, 4
    %v4652 = vshll.u32 %v4316, 16
    %v4654 = vrot.slane %v4652, 5
    %v4655 = vsel %vm403, %v4650, %v4654
    %v4656 = vshrl.u32 %v4316, 16
    %v4658 = vrot.slane %v4656, 4
    %v4659 = vor.u32 %v4658, %v4654
    %v4660 = vrot.slane %v4659, 4
    %v4662 = vshll.u32 %v4317, 16
    %v4664 = vrot.slane %v4662, 5
    %v4665 = vsel %vm403, %v4660, %v4664
    %v4667 = vshrl.u32 %v4318, 16
    %v4669 = vrot.slane %v4667, 4
    %v4670 = vshll.u32 %v4318, 16
    %v4672 = vrot.slane %v4670, 5
    %v4673 = vor.u32 %v4669, %v4672
    %v4674 = vrot.slane %v4673, 4
    %v4676 = vshll.u32 %v4319, 16
    %v4678 = vrot.slane %v4676, 5
    %v4679 = vsel %vm403, %v4674, %v4678
    %v4680 = vshrl.u32 %v4319, 16
    %v4682 = vrot.slane %v4680, 4
    %v4683 = vor.u32 %v4682, %v4678
    %v4684 = vrot.slane %v4683, 4
    %v4686 = vshll.u32 %v4320, 16
    %v4688 = vrot.slane %v4686, 5
    %v4689 = vsel %vm403, %v4684, %v4688
    %v4691 = vshrl.u32 %v4321, 16
    %v4693 = vrot.slane %v4691, 4
    %v4694 = vshll.u32 %v4321, 16
    %v4696 = vrot.slane %v4694, 5
    %v4697 = vor.u32 %v4693, %v4696
    %v4698 = vrot.slane %v4697, 4
    %v4700 = vshll.u32 %v4322, 16
    %v4702 = vrot.slane %v4700, 5
    %v4703 = vsel %vm403, %v4698, %v4702
    %v4704 = vshrl.u32 %v4322, 16
    %v4706 = vrot.slane %v4704, 4
    %v4707 = vor.u32 %v4706, %v4702
    %v4708 = vrot.slane %v4707, 4
    %v4710 = vshll.u32 %v4323, 16
    %v4712 = vrot.slane %v4710, 5
    %v4713 = vsel %vm403, %v4708, %v4712
    %v4715 = vshrl.u32 %v4324, 16
    %v4717 = vrot.slane %v4715, 4
    %v4718 = vshll.u32 %v4324, 16
    %v4720 = vrot.slane %v4718, 5
    %v4721 = vor.u32 %v4717, %v4720
    %v4722 = vrot.slane %v4721, 4
    %v4724 = vshll.u32 %v4325, 16
    %v4726 = vrot.slane %v4724, 5
    %v4727 = vsel %vm403, %v4722, %v4726
    %v4728 = vshrl.u32 %v4325, 16
    %v4730 = vrot.slane %v4728, 4
    %v4731 = vor.u32 %v4730, %v4726
    %v4732 = vrot.slane %v4731, 4
    %v4734 = vshll.u32 %v4326, 16
    %v4736 = vrot.slane %v4734, 5
    %v4737 = vsel %vm403, %v4732, %v4736
    %v4739 = vshrl.u32 %v4327, 16
    %v4741 = vrot.slane %v4739, 4
    %v4742 = vshll.u32 %v4327, 16
    %v4744 = vrot.slane %v4742, 5
    %v4745 = vor.u32 %v4741, %v4744
    %v4746 = vrot.slane %v4745, 4
    %v4748 = vshll.u32 %v4328, 16
    %v4750 = vrot.slane %v4748, 5
    %v4751 = vsel %vm403, %v4746, %v4750
    %v4752 = vshrl.u32 %v4328, 16
    %v4754 = vrot.slane %v4752, 4
    %v4755 = vor.u32 %v4754, %v4750
    %v4756 = vrot.slane %v4755, 4
    %v4758 = vshll.u32 %v4329, 16
    %v4760 = vrot.slane %v4758, 5
    %v4761 = vsel %vm403, %v4756, %v4760
    %v4763 = vshrl.u32 %v4330, 16
    %v4765 = vrot.slane %v4763, 4
    %v4766 = vshll.u32 %v4330, 16
    %v4768 = vrot.slane %v4766, 5
    %v4769 = vor.u32 %v4765, %v4768
    %v4770 = vrot.slane %v4769, 4
    %v4772 = vshll.u32 %v4331, 16
    %v4774 = vrot.slane %v4772, 5
    %v4775 = vsel %vm403, %v4770, %v4774
    %v4776 = vshrl.u32 %v4331, 16
    %v4778 = vrot.slane %v4776, 4
    %v4779 = vor.u32 %v4778, %v4774
    %v4780 = vrot.slane %v4779, 4
    %v4782 = vshll.u32 %v4332, 16
    %v4784 = vrot.slane %v4782, 5
    %v4785 = vsel %vm403, %v4780, %v4784
    %v4787 = vshrl.u32 %v4333, 16
    %v4789 = vrot.slane %v4787, 4
    %v4790 = vshll.u32 %v4333, 16
    %v4792 = vrot.slane %v4790, 5
    %v4793 = vor.u32 %v4789, %v4792
    %v4794 = vrot.slane %v4793, 4
    %v4796 = vshll.u32 %v4334, 16
    %v4798 = vrot.slane %v4796, 5
    %v4799 = vsel %vm403, %v4794, %v4798
    %v4800 = vshrl.u32 %v4334, 16
    %v4802 = vrot.slane %v4800, 4
    %v4803 = vor.u32 %v4802, %v4798
    %v4804 = vrot.slane %v4803, 4
    %v4806 = vshll.u32 %v4335, 16
    %v4808 = vrot.slane %v4806, 5
    %v4809 = vsel %vm403, %v4804, %v4808
    %v4811 = vshrl.u32 %v4336, 16
    %v4813 = vrot.slane %v4811, 4
    %v4814 = vshll.u32 %v4336, 16
    %v4816 = vrot.slane %v4814, 5
    %v4817 = vor.u32 %v4813, %v4816
    %v4818 = vrot.slane %v4817, 4
    %v4820 = vshll.u32 %v4337, 16
    %v4822 = vrot.slane %v4820, 5
    %v4823 = vsel %vm403, %v4818, %v4822
    %v4824 = vshrl.u32 %v4337, 16
    %v4826 = vrot.slane %v4824, 4
    %v4827 = vor.u32 %v4826, %v4822
    %v4828 = vrot.slane %v4827, 4
    %v4830 = vshll.u32 %v4338, 16
    %v4832 = vrot.slane %v4830, 5
    %v4833 = vsel %vm403, %v4828, %v4832
    %v4835 = vshrl.u32 %v4339, 16
    %v4837 = vrot.slane %v4835, 4
    %v4838 = vshll.u32 %v4339, 16
    %v4840 = vrot.slane %v4838, 5
    %v4841 = vor.u32 %v4837, %v4840
    %v4842 = vrot.slane %v4841, 4
    %v4844 = vshll.u32 %v4340, 16
    %v4846 = vrot.slane %v4844, 5
    %v4847 = vsel %vm403, %v4842, %v4846
    %v4848 = vshrl.u32 %v4340, 16
    %v4850 = vrot.slane %v4848, 4
    %v4851 = vor.u32 %v4850, %v4846
    %v4852 = vrot.slane %v4851, 4
    %v4854 = vshll.u32 %v4341, 16
    %v4856 = vrot.slane %v4854, 5
    %v4857 = vsel %vm403, %v4852, %v4856
    %v4859 = vshrl.u32 %v4342, 16
    %v4861 = vrot.slane %v4859, 4
    %v4862 = vshll.u32 %v4342, 16
    %v4864 = vrot.slane %v4862, 5
    %v4865 = vor.u32 %v4861, %v4864
    %v4866 = vrot.slane %v4865, 4
    %v4868 = vshll.u32 %v4343, 16
    %v4870 = vrot.slane %v4868, 5
    %v4871 = vsel %vm403, %v4866, %v4870
    %v4872 = vshrl.u32 %v4343, 16
    %v4874 = vrot.slane %v4872, 4
    %v4875 = vor.u32 %v4874, %v4870
    %v4876 = vrot.slane %v4875, 4
    %v4878 = vshll.u32 %v4344, 16
    %v4880 = vrot.slane %v4878, 5
    %v4881 = vsel %vm403, %v4876, %v4880
    %v4883 = vshrl.u32 %v4345, 16
    %v4885 = vrot.slane %v4883, 4
    %v4886 = vshll.u32 %v4345, 16
    %v4888 = vrot.slane %v4886, 5
    %v4889 = vor.u32 %v4885, %v4888
    %v4890 = vrot.slane %v4889, 4
    %v4892 = vshll.u32 %v4346, 16
    %v4894 = vrot.slane %v4892, 5
    %v4895 = vsel %vm403, %v4890, %v4894
    %v4896 = vshrl.u32 %v4346, 16
    %v4898 = vrot.slane %v4896, 4
    %v4899 = vor.u32 %v4898, %v4894
    %v4900 = vrot.slane %v4899, 4
    %v4902 = vshll.u32 %v4347, 16
    %v4904 = vrot.slane %v4902, 5
    %v4905 = vsel %vm403, %v4900, %v4904
    %v4907 = vshrl.u32 %v4348, 16
    %v4909 = vrot.slane %v4907, 4
    %v4910 = vshll.u32 %v4348, 16
    %v4912 = vrot.slane %v4910, 5
    %v4913 = vor.u32 %v4909, %v4912
    %v4914 = vrot.slane %v4913, 4
    %v4916 = vshll.u32 %v4349, 16
    %v4918 = vrot.slane %v4916, 5
    %v4919 = vsel %vm403, %v4914, %v4918
    %v4920 = vshrl.u32 %v4349, 16
    %v4922 = vrot.slane %v4920, 4
    %v4923 = vor.u32 %v4922, %v4918
    %v4924 = vrot.slane %v4923, 4
    %v4926 = vshll.u32 %v4350, 16
    %v4928 = vrot.slane %v4926, 5
    %v4929 = vsel %vm403, %v4924, %v4928
    %v4931 = vshrl.u32 %v4351, 16
    %v4933 = vrot.slane %v4931, 4
    %v4934 = vshll.u32 %v4351, 16
    %v4936 = vrot.slane %v4934, 5
    %v4937 = vor.u32 %v4933, %v4936
    %v4938 = vrot.slane %v4937, 4
    %v4940 = vshll.u32 %v4352, 16
    %v4942 = vrot.slane %v4940, 5
    %v4943 = vsel %vm403, %v4938, %v4942
    %v4944 = vshrl.u32 %v4352, 16
    %v4946 = vrot.slane %v4944, 4
    %v4947 = vor.u32 %v4946, %v4942
    %v4948 = vrot.slane %v4947, 4
    %v4950 = vshll.u32 %v4353, 16
    %v4952 = vrot.slane %v4950, 5
    %v4953 = vsel %vm403, %v4948, %v4952
    %v4955 = vshrl.u32 %v4354, 16
    %v4957 = vrot.slane %v4955, 4
    %v4958 = vshll.u32 %v4354, 16
    %v4960 = vrot.slane %v4958, 5
    %v4961 = vor.u32 %v4957, %v4960
    %v4962 = vrot.slane %v4961, 4
    %v4964 = vshll.u32 %v4355, 16
    %v4966 = vrot.slane %v4964, 5
    %v4967 = vsel %vm403, %v4962, %v4966
    %v4968 = vshrl.u32 %v4355, 16
    %v4970 = vrot.slane %v4968, 4
    %v4971 = vor.u32 %v4970, %v4966
    %v4972 = vrot.slane %v4971, 4
    %v4974 = vshll.u32 %v4356, 16
    %v4976 = vrot.slane %v4974, 5
    %v4977 = vsel %vm403, %v4972, %v4976
    %v4979 = vshrl.u32 %v4357, 16
    %v4981 = vrot.slane %v4979, 4
    %v4982 = vshll.u32 %v4357, 16
    %v4984 = vrot.slane %v4982, 5
    %v4985 = vor.u32 %v4981, %v4984
    %v4986 = vrot.slane %v4985, 4
    %v4988 = vshll.u32 %v4358, 16
    %v4990 = vrot.slane %v4988, 5
    %v4991 = vsel %vm403, %v4986, %v4990
    %v4992 = vshrl.u32 %v4358, 16
    %v4994 = vrot.slane %v4992, 4
    %v4995 = vor.u32 %v4994, %v4990
    %v4996 = vrot.slane %v4995, 4
    %v4998 = vshll.u32 %v4359, 16
    %v5000 = vrot.slane %v4998, 5
    %v5001 = vsel %vm403, %v4996, %v5000
    %v5003 = vshrl.u32 %v4360, 16
    %v5005 = vrot.slane %v5003, 4
    %v5006 = vshll.u32 %v4360, 16
    %v5008 = vrot.slane %v5006, 5
    %v5009 = vor.u32 %v5005, %v5008
    %v5010 = vrot.slane %v5009, 4
    %v5012 = vshll.u32 %v4361, 16
    %v5014 = vrot.slane %v5012, 5
    %v5015 = vsel %vm403, %v5010, %v5014
    %v5016 = vshrl.u32 %v4361, 16
    %v5018 = vrot.slane %v5016, 4
    %v5019 = vor.u32 %v5018, %v5014
    %v5020 = vrot.slane %v5019, 4
    %v5022 = vshll.u32 %v4362, 16
    %v5024 = vrot.slane %v5022, 5
    %v5025 = vsel %vm403, %v5020, %v5024
    %v5027 = vshrl.u32 %v4363, 16
    %v5029 = vrot.slane %v5027, 4
    %v5030 = vshll.u32 %v4363, 16
    %v5032 = vrot.slane %v5030, 5
    %v5033 = vor.u32 %v5029, %v5032
    %v5034 = vrot.slane %v5033, 4
    %v5036 = vshll.u32 %v4364, 16
    %v5038 = vrot.slane %v5036, 5
    %v5039 = vsel %vm403, %v5034, %v5038
    %v5040 = vshrl.u32 %v4364, 16
    %v5042 = vrot.slane %v5040, 4
    %v5043 = vor.u32 %v5042, %v5038
    %v5044 = vrot.slane %v5043, 4
    %v5046 = vshll.u32 %v4365, 16
    %v5048 = vrot.slane %v5046, 5
    %v5049 = vsel %vm403, %v5044, %v5048
    %v5051 = vshrl.u32 %v4366, 16
    %v5053 = vrot.slane %v5051, 4
    %v5054 = vshll.u32 %v4366, 16
    %v5056 = vrot.slane %v5054, 5
    %v5057 = vor.u32 %v5053, %v5056
    %v5058 = vrot.slane %v5057, 4
    %v5060 = vshll.u32 %v4367, 16
    %v5062 = vrot.slane %v5060, 5
    %v5063 = vsel %vm403, %v5058, %v5062
    %v5064 = vshrl.u32 %v4367, 16
    %v5066 = vrot.slane %v5064, 4
    %v5067 = vor.u32 %v5066, %v5062
    %v5068 = vrot.slane %v5067, 4
    %v5070 = vshll.u32 %v4368, 16
    %v5072 = vrot.slane %v5070, 5
    %v5073 = vsel %vm403, %v5068, %v5072
    %v5075 = vshrl.u32 %v4369, 16
    %v5077 = vrot.slane %v5075, 4
    %v5078 = vshll.u32 %v4369, 16
    %v5080 = vrot.slane %v5078, 5
    %v5081 = vor.u32 %v5077, %v5080
    %v5082 = vrot.slane %v5081, 4
    %v5084 = vshll.u32 %v4370, 16
    %v5086 = vrot.slane %v5084, 5
    %v5087 = vsel %vm403, %v5082, %v5086
    %v5088 = vshrl.u32 %v4370, 16
    %v5090 = vrot.slane %v5088, 4
    %v5091 = vor.u32 %v5090, %v5086
    %v5092 = vrot.slane %v5091, 4
    %v5094 = vshll.u32 %v4371, 16
    %v5096 = vrot.slane %v5094, 5
    %v5097 = vsel %vm403, %v5092, %v5096
    %v5099 = vshrl.u32 %v4372, 16
    %v5101 = vrot.slane %v5099, 4
    %v5102 = vshll.u32 %v4372, 16
    %v5104 = vrot.slane %v5102, 5
    %v5105 = vor.u32 %v5101, %v5104
    %v5106 = vrot.slane %v5105, 4
    %v5108 = vshll.u32 %v4373, 16
    %v5110 = vrot.slane %v5108, 5
    %v5111 = vsel %vm403, %v5106, %v5110
    %v5112 = vshrl.u32 %v4373, 16
    %v5114 = vrot.slane %v5112, 4
    %v5115 = vor.u32 %v5114, %v5110
    %v5116 = vrot.slane %v5115, 4
    %v5118 = vshll.u32 %v4374, 16
    %v5120 = vrot.slane %v5118, 5
    %v5121 = vsel %vm403, %v5116, %v5120
    %v5123 = vshrl.u32 %v4375, 16
    %v5125 = vrot.slane %v5123, 4
    %v5126 = vshll.u32 %v4375, 16
    %v5128 = vrot.slane %v5126, 5
    %v5129 = vor.u32 %v5125, %v5128
    %v5130 = vrot.slane %v5129, 4
    %v5132 = vshll.u32 %v4376, 16
    %v5134 = vrot.slane %v5132, 5
    %v5135 = vsel %vm403, %v5130, %v5134
    %v5136 = vshrl.u32 %v4376, 16
    %v5138 = vrot.slane %v5136, 4
    %v5139 = vor.u32 %v5138, %v5134
    %v5140 = vrot.slane %v5139, 4
    %v5142 = vshll.u32 %v4377, 16
    %v5144 = vrot.slane %v5142, 5
    %v5145 = vsel %vm403, %v5140, %v5144
    %v5146 = vunpack.c.l.b16 %v4391
    %v5147 = vunpack.c.l.b16 %v4401
    %v5148 = vunpack.c.l.b16 %v4415
    %v5149 = vunpack.c.l.b16 %v4425
    %v5150 = vunpack.c.l.b16 %v4439
    %v5151 = vunpack.c.l.b16 %v4449
    %v5152 = vunpack.c.l.b16 %v4463
    %v5153 = vunpack.c.l.b16 %v4473
    %v5154 = vunpack.c.l.b16 %v4487
    %v5155 = vunpack.c.l.b16 %v4497
    %v5156 = vunpack.c.l.b16 %v4511
    %v5157 = vunpack.c.l.b16 %v4521
    %v5158 = vunpack.c.l.b16 %v4535
    %v5159 = vunpack.c.l.b16 %v4545
    %v5160 = vunpack.c.l.b16 %v4559
    %v5161 = vunpack.c.l.b16 %v4569
    %v5162 = vunpack.c.l.b16 %v4583
    %v5163 = vunpack.c.l.b16 %v4593
    %v5164 = vunpack.c.l.b16 %v4607
    %v5165 = vunpack.c.l.b16 %v4617
    %v5166 = vunpack.c.l.b16 %v4631
    %v5167 = vunpack.c.l.b16 %v4641
    %v5168 = vunpack.c.l.b16 %v4655
    %v5169 = vunpack.c.l.b16 %v4665
    %v5170 = vunpack.c.l.b16 %v4679
    %v5171 = vunpack.c.l.b16 %v4689
    %v5172 = vunpack.c.l.b16 %v4703
    %v5173 = vunpack.c.l.b16 %v4713
    %v5174 = vunpack.c.l.b16 %v4727
    %v5175 = vunpack.c.l.b16 %v4737
    %v5176 = vunpack.c.l.b16 %v4751
    %v5177 = vunpack.c.l.b16 %v4761
    %v5178 = vunpack.c.l.b16 %v4775
    %v5179 = vunpack.c.l.b16 %v4785
    %v5180 = vunpack.c.l.b16 %v4799
    %v5181 = vunpack.c.l.b16 %v4809
    %v5182 = vunpack.c.l.b16 %v4823
    %v5183 = vunpack.c.l.b16 %v4833
    %v5184 = vunpack.c.l.b16 %v4847
    %v5185 = vunpack.c.l.b16 %v4857
    %v5186 = vunpack.c.l.b16 %v4871
    %v5187 = vunpack.c.l.b16 %v4881
    %v5188 = vunpack.c.l.b16 %v4895
    %v5189 = vunpack.c.l.b16 %v4905
    %v5190 = vunpack.c.l.b16 %v4919
    %v5191 = vunpack.c.l.b16 %v4929
    %v5192 = vunpack.c.l.b16 %v4943
    %v5193 = vunpack.c.l.b16 %v4953
    %v5194 = vunpack.c.l.b16 %v4967
    %v5195 = vunpack.c.l.b16 %v4977
    %v5196 = vunpack.c.l.b16 %v4991
    %v5197 = vunpack.c.l.b16 %v5001
    %v5198 = vunpack.c.l.b16 %v5015
    %v5199 = vunpack.c.l.b16 %v5025
    %v5200 = vunpack.c.l.b16 %v5039
    %v5201 = vunpack.c.l.b16 %v5049
    %v5202 = vunpack.c.l.b16 %v5063
    %v5203 = vunpack.c.l.b16 %v5073
    %v5204 = vunpack.c.l.b16 %v5087
    %v5205 = vunpack.c.l.b16 %v5097
    %v5206 = vunpack.c.l.b16 %v5111
    %v5207 = vunpack.c.l.b16 %v5121
    %v5208 = vunpack.c.l.b16 %v5135
    %v5209 = vunpack.c.l.b16 %v5145
    %v5210 = vpack.c.b16 %v5147, %v5146
    %v5211 = vpack.c.b16 %v5149, %v5148
    %v5212 = vpack.c.b16 %v5151, %v5150
    %v5213 = vpack.c.b16 %v5153, %v5152
    %v5214 = vpack.c.b16 %v5155, %v5154
    %v5215 = vpack.c.b16 %v5157, %v5156
    %v5216 = vpack.c.b16 %v5159, %v5158
    %v5217 = vpack.c.b16 %v5161, %v5160
    %v5218 = vpack.c.b16 %v5163, %v5162
    %v5219 = vpack.c.b16 %v5165, %v5164
    %v5220 = vpack.c.b16 %v5167, %v5166
    %v5221 = vpack.c.b16 %v5169, %v5168
    %v5222 = vpack.c.b16 %v5171, %v5170
    %v5223 = vpack.c.b16 %v5173, %v5172
    %v5224 = vpack.c.b16 %v5175, %v5174
    %v5225 = vpack.c.b16 %v5177, %v5176
    %v5226 = vpack.c.b16 %v5179, %v5178
    %v5227 = vpack.c.b16 %v5181, %v5180
    %v5228 = vpack.c.b16 %v5183, %v5182
    %v5229 = vpack.c.b16 %v5185, %v5184
    %v5230 = vpack.c.b16 %v5187, %v5186
    %v5231 = vpack.c.b16 %v5189, %v5188
    %v5232 = vpack.c.b16 %v5191, %v5190
    %v5233 = vpack.c.b16 %v5193, %v5192
    %v5234 = vpack.c.b16 %v5195, %v5194
    %v5235 = vpack.c.b16 %v5197, %v5196
    %v5236 = vpack.c.b16 %v5199, %v5198
    %v5237 = vpack.c.b16 %v5201, %v5200
    %v5238 = vpack.c.b16 %v5203, %v5202
    %v5239 = vpack.c.b16 %v5205, %v5204
    %v5240 = vpack.c.b16 %v5207, %v5206
    %v5241 = vpack.c.b16 %v5209, %v5208
    %5242 = vrot.lane.b32.xlu0 %v5210, 64
    %v5243 = vpop.permute.xlu0 %5242
    %5244 = vrot.lane.b32.xlu0 %v5211, 64
    %v5245 = vpop.permute.xlu0 %5244
    %5246 = vrot.lane.b32.xlu0 %v5212, 64
    %v5247 = vpop.permute.xlu0 %5246
    %5248 = vrot.lane.b32.xlu0 %v5213, 64
    %v5249 = vpop.permute.xlu0 %5248
    %5250 = vrot.lane.b32.xlu0 %v5214, 64
    %v5251 = vpop.permute.xlu0 %5250
    %5252 = vrot.lane.b32.xlu0 %v5215, 64
    %v5253 = vpop.permute.xlu0 %5252
    %5254 = vrot.lane.b32.xlu0 %v5216, 64
    %v5255 = vpop.permute.xlu0 %5254
    %5256 = vrot.lane.b32.xlu0 %v5217, 64
    %v5257 = vpop.permute.xlu0 %5256
    %5258 = vrot.lane.b32.xlu0 %v5218, 64
    %v5259 = vpop.permute.xlu0 %5258
    %5260 = vrot.lane.b32.xlu0 %v5219, 64
    %v5261 = vpop.permute.xlu0 %5260
    %5262 = vrot.lane.b32.xlu0 %v5220, 64
    %v5263 = vpop.permute.xlu0 %5262
    %5264 = vrot.lane.b32.xlu0 %v5221, 64
    %v5265 = vpop.permute.xlu0 %5264
    %5266 = vrot.lane.b32.xlu0 %v5222, 64
    %v5267 = vpop.permute.xlu0 %5266
    %5268 = vrot.lane.b32.xlu0 %v5223, 64
    %v5269 = vpop.permute.xlu0 %5268
    %5270 = vrot.lane.b32.xlu0 %v5224, 64
    %v5271 = vpop.permute.xlu0 %5270
    %5272 = vrot.lane.b32.xlu0 %v5225, 64
    %v5273 = vpop.permute.xlu0 %5272
    %5274 = vrot.lane.b32.xlu0 %v5226, 64
    %v5275 = vpop.permute.xlu0 %5274
    %5276 = vrot.lane.b32.xlu0 %v5227, 64
    %v5277 = vpop.permute.xlu0 %5276
    %5278 = vrot.lane.b32.xlu0 %v5228, 64
    %v5279 = vpop.permute.xlu0 %5278
    %5280 = vrot.lane.b32.xlu0 %v5229, 64
    %v5281 = vpop.permute.xlu0 %5280
    %5282 = vrot.lane.b32.xlu0 %v5230, 64
    %v5283 = vpop.permute.xlu0 %5282
    %5284 = vrot.lane.b32.xlu0 %v5231, 64
    %v5285 = vpop.permute.xlu0 %5284
    %5286 = vrot.lane.b32.xlu0 %v5232, 64
    %v5287 = vpop.permute.xlu0 %5286
    %5288 = vrot.lane.b32.xlu0 %v5233, 64
    %v5289 = vpop.permute.xlu0 %5288
    %5290 = vrot.lane.b32.xlu0 %v5234, 64
    %v5291 = vpop.permute.xlu0 %5290
    %5292 = vrot.lane.b32.xlu0 %v5235, 64
    %v5293 = vpop.permute.xlu0 %5292
    %5294 = vrot.lane.b32.xlu0 %v5236, 64
    %v5295 = vpop.permute.xlu0 %5294
    %5296 = vrot.lane.b32.xlu0 %v5237, 64
    %v5297 = vpop.permute.xlu0 %5296
    %5298 = vrot.lane.b32.xlu0 %v5238, 64
    %v5299 = vpop.permute.xlu0 %5298
    %5300 = vrot.lane.b32.xlu0 %v5239, 64
    %v5301 = vpop.permute.xlu0 %5300
    %5302 = vrot.lane.b32.xlu0 %v5240, 64
    %v5303 = vpop.permute.xlu0 %5302
    %5304 = vrot.lane.b32.xlu0 %v5241, 64
    %v5305 = vpop.permute.xlu0 %5304
    %5338 = vst.msk [vmem:[#allocation2 + $0x18] sm:$0xff] %vm1364, %v5243
    %5339 = vst.msk [vmem:[#allocation2 + $0x40] sm:$0xff] %vm1364, %v5245
    %5340 = vst.msk [vmem:[#allocation2 + $0x68] sm:$0xff] %vm1364, %v5247
    %5341 = vst.msk [vmem:[#allocation2 + $0x90] sm:$0xff] %vm1364, %v5249
    %5342 = vst.msk [vmem:[#allocation2 + $0xb8] sm:$0xff] %vm1364, %v5251
    %5343 = vst.msk [vmem:[#allocation2 + $0xe0] sm:$0xff] %vm1364, %v5253
    %5344 = vst.msk [vmem:[#allocation2 + $0x108] sm:$0xff] %vm1364, %v5255
    %5345 = vst.msk [vmem:[#allocation2 + $0x130] sm:$0xff] %vm1364, %v5257
    %5346 = vst.msk [vmem:[#allocation2 + $0x158] sm:$0xff] %vm1364, %v5259
    %5347 = vst.msk [vmem:[#allocation2 + $0x180] sm:$0xff] %vm1364, %v5261
    %5348 = vst.msk [vmem:[#allocation2 + $0x1a8] sm:$0xff] %vm1364, %v5263
    %5349 = vst.msk [vmem:[#allocation2 + $0x1d0] sm:$0xff] %vm1364, %v5265
    %5350 = vst.msk [vmem:[#allocation2 + $0x1f8] sm:$0xff] %vm1364, %v5267
    %5351 = vst.msk [vmem:[#allocation2 + $0x220] sm:$0xff] %vm1364, %v5269
    %5352 = vst.msk [vmem:[#allocation2 + $0x248] sm:$0xff] %vm1364, %v5271
    %5353 = vst.msk [vmem:[#allocation2 + $0x270] sm:$0xff] %vm1364, %v5273
    %5354 = vst.msk [vmem:[#allocation2 + $0x298] sm:$0xff] %vm1364, %v5275
    %5355 = vst.msk [vmem:[#allocation2 + $0x2c0] sm:$0xff] %vm1364, %v5277
    %5356 = vst.msk [vmem:[#allocation2 + $0x2e8] sm:$0xff] %vm1364, %v5279
    %5357 = vst.msk [vmem:[#allocation2 + $0x310] sm:$0xff] %vm1364, %v5281
    %5358 = vst.msk [vmem:[#allocation2 + $0x338] sm:$0xff] %vm1364, %v5283
    %5359 = vst.msk [vmem:[#allocation2 + $0x360] sm:$0xff] %vm1364, %v5285
    %5360 = vst.msk [vmem:[#allocation2 + $0x388] sm:$0xff] %vm1364, %v5287
    %5361 = vst.msk [vmem:[#allocation2 + $0x3b0] sm:$0xff] %vm1364, %v5289
    %5362 = vst.msk [vmem:[#allocation2 + $0x3d8] sm:$0xff] %vm1364, %v5291
    %5363 = vst.msk [vmem:[#allocation2 + $0x400] sm:$0xff] %vm1364, %v5293
    %5364 = vst.msk [vmem:[#allocation2 + $0x428] sm:$0xff] %vm1364, %v5295
    %5365 = vst.msk [vmem:[#allocation2 + $0x450] sm:$0xff] %vm1364, %v5297
    %5366 = vst.msk [vmem:[#allocation2 + $0x478] sm:$0xff] %vm1364, %v5299
    %5367 = vst.msk [vmem:[#allocation2 + $0x4a0] sm:$0xff] %vm1364, %v5301
    %5368 = vst.msk [vmem:[#allocation2 + $0x4c8] sm:$0xff] %vm1364, %v5303
    %5369 = vst.msk [vmem:[#allocation2 + $0x4f0] sm:$0xff] %vm1364, %v5305
    %v5370 = vld [vmem:[%s3993] sm:$0xe]
    %v5371 = vld [vmem:[%s3993 + $0x4] sm:$0xf]
    %v5372 = vld [vmem:[%s3993 + $0x8] sm:$0x1]
    %v5373 = vld [vmem:[%s3993 + $0xc] sm:$0xe]
    %v5374 = vld [vmem:[%s3993 + $0x10] sm:$0xf]
    %v5375 = vld [vmem:[%s3993 + $0x14] sm:$0x1]
    %v5376 = vld [vmem:[%s3993 + $0x18] sm:$0xe]
    %v5377 = vld [vmem:[%s3993 + $0x1c] sm:$0xf]
    %v5378 = vld [vmem:[%s3993 + $0x20] sm:$0x1]
    %v5379 = vld [vmem:[%s3993 + $0x24] sm:$0xe]
    %v5380 = vld [vmem:[%s3993 + $0x28] sm:$0xf]
    %v5381 = vld [vmem:[%s3993 + $0x2c] sm:$0x1]
    %v5382 = vld [vmem:[%s3993 + $0x30] sm:$0xe]
    %v5383 = vld [vmem:[%s3993 + $0x34] sm:$0xf]
    %v5384 = vld [vmem:[%s3993 + $0x38] sm:$0x1]
    %v5385 = vld [vmem:[%s3993 + $0x3c] sm:$0xe]
    %v5386 = vld [vmem:[%s3993 + $0x40] sm:$0xf]
    %v5387 = vld [vmem:[%s3993 + $0x44] sm:$0x1]
    %v5388 = vld [vmem:[%s3993 + $0x48] sm:$0xe]
    %v5389 = vld [vmem:[%s3993 + $0x4c] sm:$0xf]
    %v5390 = vld [vmem:[%s3993 + $0x50] sm:$0x1]
    %v5391 = vld [vmem:[%s3993 + $0x54] sm:$0xe]
    %v5392 = vld [vmem:[%s3993 + $0x58] sm:$0xf]
    %v5393 = vld [vmem:[%s3993 + $0x5c] sm:$0x1]
    %v5394 = vld [vmem:[%s3993 + $0x60] sm:$0xe]
    %v5395 = vld [vmem:[%s3993 + $0x64] sm:$0xf]
    %v5396 = vld [vmem:[%s3993 + $0x68] sm:$0x1]
    %v5397 = vld [vmem:[%s3993 + $0x6c] sm:$0xe]
    %v5398 = vld [vmem:[%s3993 + $0x70] sm:$0xf]
    %v5399 = vld [vmem:[%s3993 + $0x74] sm:$0x1]
    %v5400 = vld [vmem:[%s3993 + $0x78] sm:$0xe]
    %v5401 = vld [vmem:[%s3993 + $0x7c] sm:$0xf]
    %v5402 = vld [vmem:[%s3993 + $0x80] sm:$0x1]
    %v5403 = vld [vmem:[%s3993 + $0x84] sm:$0xe]
    %v5404 = vld [vmem:[%s3993 + $0x88] sm:$0xf]
    %v5405 = vld [vmem:[%s3993 + $0x8c] sm:$0x1]
    %v5406 = vld [vmem:[%s3993 + $0x90] sm:$0xe]
    %v5407 = vld [vmem:[%s3993 + $0x94] sm:$0xf]
    %v5408 = vld [vmem:[%s3993 + $0x98] sm:$0x1]
    %v5409 = vld [vmem:[%s3993 + $0x9c] sm:$0xe]
    %v5410 = vld [vmem:[%s3993 + $0xa0] sm:$0xf]
    %v5411 = vld [vmem:[%s3993 + $0xa4] sm:$0x1]
    %v5412 = vld [vmem:[%s3993 + $0xa8] sm:$0xe]
    %v5413 = vld [vmem:[%s3993 + $0xac] sm:$0xf]
    %v5414 = vld [vmem:[%s3993 + $0xb0] sm:$0x1]
    %v5415 = vld [vmem:[%s3993 + $0xb4] sm:$0xe]
    %v5416 = vld [vmem:[%s3993 + $0xb8] sm:$0xf]
    %v5417 = vld [vmem:[%s3993 + $0xbc] sm:$0x1]
    %v5418 = vld [vmem:[%s3993 + $0xd8] sm:$0xe]
    %v5419 = vld [vmem:[%s3993 + $0xdc] sm:$0xf]
    %v5420 = vld [vmem:[%s3993 + $0xe0] sm:$0x1]
    %v5421 = vld [vmem:[%s3993 + $0xe4] sm:$0xe]
    %v5422 = vld [vmem:[%s3993 + $0xe8] sm:$0xf]
    %v5423 = vld [vmem:[%s3993 + $0xec] sm:$0x1]
    %v5424 = vld [vmem:[%s3993 + $0xf0] sm:$0xe]
    %v5425 = vld [vmem:[%s3993 + $0xf4] sm:$0xf]
    %v5426 = vld [vmem:[%s3993 + $0xf8] sm:$0x1]
    %v5427 = vld [vmem:[%s3993 + $0xfc] sm:$0xe]
    %v5428 = vld [vmem:[%s3993 + $0x100] sm:$0xf]
    %v5429 = vld [vmem:[%s3993 + $0x104] sm:$0x1]
    %v5430 = vld [vmem:[%s3993 + $0x108] sm:$0xe]
    %v5431 = vld [vmem:[%s3993 + $0x10c] sm:$0xf]
    %v5432 = vld [vmem:[%s3993 + $0x110] sm:$0x1]
    %v5433 = vld [vmem:[%s3993 + $0x114] sm:$0xe]
    %v5434 = vld [vmem:[%s3993 + $0x118] sm:$0xf]
    %v5435 = vld [vmem:[%s3993 + $0x11c] sm:$0x1]
    %v5436 = vld [vmem:[%s3993 + $0x120] sm:$0xe]
    %v5437 = vld [vmem:[%s3993 + $0x124] sm:$0xf]
    %v5438 = vld [vmem:[%s3993 + $0x128] sm:$0x1]
    %v5439 = vld [vmem:[%s3993 + $0x12c] sm:$0xe]
    %v5440 = vld [vmem:[%s3993 + $0x130] sm:$0xf]
    %v5441 = vld [vmem:[%s3993 + $0x134] sm:$0x1]
    %v5442 = vld [vmem:[%s3993 + $0x138] sm:$0xe]
    %v5443 = vld [vmem:[%s3993 + $0x13c] sm:$0xf]
    %v5444 = vld [vmem:[%s3993 + $0x140] sm:$0x1]
    %v5445 = vld [vmem:[%s3993 + $0x144] sm:$0xe]
    %v5446 = vld [vmem:[%s3993 + $0x148] sm:$0xf]
    %v5447 = vld [vmem:[%s3993 + $0x14c] sm:$0x1]
    %v5448 = vld [vmem:[%s3993 + $0x150] sm:$0xe]
    %v5449 = vld [vmem:[%s3993 + $0x154] sm:$0xf]
    %v5450 = vld [vmem:[%s3993 + $0x158] sm:$0x1]
    %v5451 = vld [vmem:[%s3993 + $0x15c] sm:$0xe]
    %v5452 = vld [vmem:[%s3993 + $0x160] sm:$0xf]
    %v5453 = vld [vmem:[%s3993 + $0x164] sm:$0x1]
    %v5454 = vld [vmem:[%s3993 + $0x168] sm:$0xe]
    %v5455 = vld [vmem:[%s3993 + $0x16c] sm:$0xf]
    %v5456 = vld [vmem:[%s3993 + $0x170] sm:$0x1]
    %v5457 = vld [vmem:[%s3993 + $0x174] sm:$0xe]
    %v5458 = vld [vmem:[%s3993 + $0x178] sm:$0xf]
    %v5459 = vld [vmem:[%s3993 + $0x17c] sm:$0x1]
    %v5460 = vld [vmem:[%s3993 + $0x180] sm:$0xe]
    %v5461 = vld [vmem:[%s3993 + $0x184] sm:$0xf]
    %v5462 = vld [vmem:[%s3993 + $0x188] sm:$0x1]
    %v5463 = vld [vmem:[%s3993 + $0x18c] sm:$0xe]
    %v5464 = vld [vmem:[%s3993 + $0x190] sm:$0xf]
    %v5465 = vld [vmem:[%s3993 + $0x194] sm:$0x1]
    %v5562 = vrot.slane %v5370, 5
    %v5563 = vrot.slane %v5562, 4
    %v5564 = vrot.slane %v5371, 5
    %v5565 = vsel %vm1591, %v5563, %v5564
    %v5566 = vrot.slane %v5564, 4
    %v5567 = vrot.slane %v5372, 5
    %v5568 = vsel %vm1591, %v5566, %v5567
    %v5569 = vrot.slane %v5373, 5
    %v5570 = vrot.slane %v5569, 4
    %v5571 = vrot.slane %v5374, 5
    %v5572 = vsel %vm1591, %v5570, %v5571
    %v5573 = vrot.slane %v5571, 4
    %v5574 = vrot.slane %v5375, 5
    %v5575 = vsel %vm1591, %v5573, %v5574
    %v5576 = vrot.slane %v5376, 5
    %v5577 = vrot.slane %v5576, 4
    %v5578 = vrot.slane %v5377, 5
    %v5579 = vsel %vm1591, %v5577, %v5578
    %v5580 = vrot.slane %v5578, 4
    %v5581 = vrot.slane %v5378, 5
    %v5582 = vsel %vm1591, %v5580, %v5581
    %v5583 = vrot.slane %v5379, 5
    %v5584 = vrot.slane %v5583, 4
    %v5585 = vrot.slane %v5380, 5
    %v5586 = vsel %vm1591, %v5584, %v5585
    %v5587 = vrot.slane %v5585, 4
    %v5588 = vrot.slane %v5381, 5
    %v5589 = vsel %vm1591, %v5587, %v5588
    %v5590 = vrot.slane %v5382, 5
    %v5591 = vrot.slane %v5590, 4
    %v5592 = vrot.slane %v5383, 5
    %v5593 = vsel %vm1591, %v5591, %v5592
    %v5594 = vrot.slane %v5592, 4
    %v5595 = vrot.slane %v5384, 5
    %v5596 = vsel %vm1591, %v5594, %v5595
    %v5597 = vrot.slane %v5385, 5
    %v5598 = vrot.slane %v5597, 4
    %v5599 = vrot.slane %v5386, 5
    %v5600 = vsel %vm1591, %v5598, %v5599
    %v5601 = vrot.slane %v5599, 4
    %v5602 = vrot.slane %v5387, 5
    %v5603 = vsel %vm1591, %v5601, %v5602
    %v5604 = vrot.slane %v5388, 5
    %v5605 = vrot.slane %v5604, 4
    %v5606 = vrot.slane %v5389, 5
    %v5607 = vsel %vm1591, %v5605, %v5606
    %v5608 = vrot.slane %v5606, 4
    %v5609 = vrot.slane %v5390, 5
    %v5610 = vsel %vm1591, %v5608, %v5609
    %v5611 = vrot.slane %v5391, 5
    %v5612 = vrot.slane %v5611, 4
    %v5613 = vrot.slane %v5392, 5
    %v5614 = vsel %vm1591, %v5612, %v5613
    %v5615 = vrot.slane %v5613, 4
    %v5616 = vrot.slane %v5393, 5
    %v5617 = vsel %vm1591, %v5615, %v5616
    %v5618 = vrot.slane %v5394, 5
    %v5619 = vrot.slane %v5618, 4
    %v5620 = vrot.slane %v5395, 5
    %v5621 = vsel %vm1591, %v5619, %v5620
    %v5622 = vrot.slane %v5620, 4
    %v5623 = vrot.slane %v5396, 5
    %v5624 = vsel %vm1591, %v5622, %v5623
    %v5625 = vrot.slane %v5397, 5
    %v5626 = vrot.slane %v5625, 4
    %v5627 = vrot.slane %v5398, 5
    %v5628 = vsel %vm1591, %v5626, %v5627
    %v5629 = vrot.slane %v5627, 4
    %v5630 = vrot.slane %v5399, 5
    %v5631 = vsel %vm1591, %v5629, %v5630
    %v5632 = vrot.slane %v5400, 5
    %v5633 = vrot.slane %v5632, 4
    %v5634 = vrot.slane %v5401, 5
    %v5635 = vsel %vm1591, %v5633, %v5634
    %v5636 = vrot.slane %v5634, 4
    %v5637 = vrot.slane %v5402, 5
    %v5638 = vsel %vm1591, %v5636, %v5637
    %v5639 = vrot.slane %v5403, 5
    %v5640 = vrot.slane %v5639, 4
    %v5641 = vrot.slane %v5404, 5
    %v5642 = vsel %vm1591, %v5640, %v5641
    %v5643 = vrot.slane %v5641, 4
    %v5644 = vrot.slane %v5405, 5
    %v5645 = vsel %vm1591, %v5643, %v5644
    %v5646 = vrot.slane %v5406, 5
    %v5647 = vrot.slane %v5646, 4
    %v5648 = vrot.slane %v5407, 5
    %v5649 = vsel %vm1591, %v5647, %v5648
    %v5650 = vrot.slane %v5648, 4
    %v5651 = vrot.slane %v5408, 5
    %v5652 = vsel %vm1591, %v5650, %v5651
    %v5653 = vrot.slane %v5409, 5
    %v5654 = vrot.slane %v5653, 4
    %v5655 = vrot.slane %v5410, 5
    %v5656 = vsel %vm1591, %v5654, %v5655
    %v5657 = vrot.slane %v5655, 4
    %v5658 = vrot.slane %v5411, 5
    %v5659 = vsel %vm1591, %v5657, %v5658
    %v5660 = vrot.slane %v5412, 5
    %v5661 = vrot.slane %v5660, 4
    %v5662 = vrot.slane %v5413, 5
    %v5663 = vsel %vm1591, %v5661, %v5662
    %v5664 = vrot.slane %v5662, 4
    %v5665 = vrot.slane %v5414, 5
    %v5666 = vsel %vm1591, %v5664, %v5665
    %v5667 = vrot.slane %v5415, 5
    %v5668 = vrot.slane %v5667, 4
    %v5669 = vrot.slane %v5416, 5
    %v5670 = vsel %vm1591, %v5668, %v5669
    %v5671 = vrot.slane %v5669, 4
    %v5672 = vrot.slane %v5417, 5
    %v5673 = vsel %vm1591, %v5671, %v5672
    %v5674 = vrot.slane %v5418, 5
    %v5675 = vrot.slane %v5674, 4
    %v5676 = vrot.slane %v5419, 5
    %v5677 = vsel %vm1591, %v5675, %v5676
    %v5678 = vrot.slane %v5676, 4
    %v5679 = vrot.slane %v5420, 5
    %v5680 = vsel %vm1591, %v5678, %v5679
    %v5681 = vrot.slane %v5421, 5
    %v5682 = vrot.slane %v5681, 4
    %v5683 = vrot.slane %v5422, 5
    %v5684 = vsel %vm1591, %v5682, %v5683
    %v5685 = vrot.slane %v5683, 4
    %v5686 = vrot.slane %v5423, 5
    %v5687 = vsel %vm1591, %v5685, %v5686
    %v5688 = vrot.slane %v5424, 5
    %v5689 = vrot.slane %v5688, 4
    %v5690 = vrot.slane %v5425, 5
    %v5691 = vsel %vm1591, %v5689, %v5690
    %v5692 = vrot.slane %v5690, 4
    %v5693 = vrot.slane %v5426, 5
    %v5694 = vsel %vm1591, %v5692, %v5693
    %v5695 = vrot.slane %v5427, 5
    %v5696 = vrot.slane %v5695, 4
    %v5697 = vrot.slane %v5428, 5
    %v5698 = vsel %vm1591, %v5696, %v5697
    %v5699 = vrot.slane %v5697, 4
    %v5700 = vrot.slane %v5429, 5
    %v5701 = vsel %vm1591, %v5699, %v5700
    %v5702 = vrot.slane %v5430, 5
    %v5703 = vrot.slane %v5702, 4
    %v5704 = vrot.slane %v5431, 5
    %v5705 = vsel %vm1591, %v5703, %v5704
    %v5706 = vrot.slane %v5704, 4
    %v5707 = vrot.slane %v5432, 5
    %v5708 = vsel %vm1591, %v5706, %v5707
    %v5709 = vrot.slane %v5433, 5
    %v5710 = vrot.slane %v5709, 4
    %v5711 = vrot.slane %v5434, 5
    %v5712 = vsel %vm1591, %v5710, %v5711
    %v5713 = vrot.slane %v5711, 4
    %v5714 = vrot.slane %v5435, 5
    %v5715 = vsel %vm1591, %v5713, %v5714
    %v5716 = vrot.slane %v5436, 5
    %v5717 = vrot.slane %v5716, 4
    %v5718 = vrot.slane %v5437, 5
    %v5719 = vsel %vm1591, %v5717, %v5718
    %v5720 = vrot.slane %v5718, 4
    %v5721 = vrot.slane %v5438, 5
    %v5722 = vsel %vm1591, %v5720, %v5721
    %v5723 = vrot.slane %v5439, 5
    %v5724 = vrot.slane %v5723, 4
    %v5725 = vrot.slane %v5440, 5
    %v5726 = vsel %vm1591, %v5724, %v5725
    %v5727 = vrot.slane %v5725, 4
    %v5728 = vrot.slane %v5441, 5
    %v5729 = vsel %vm1591, %v5727, %v5728
    %v5730 = vrot.slane %v5442, 5
    %v5731 = vrot.slane %v5730, 4
    %v5732 = vrot.slane %v5443, 5
    %v5733 = vsel %vm1591, %v5731, %v5732
    %v5734 = vrot.slane %v5732, 4
    %v5735 = vrot.slane %v5444, 5
    %v5736 = vsel %vm1591, %v5734, %v5735
    %v5737 = vrot.slane %v5445, 5
    %v5738 = vrot.slane %v5737, 4
    %v5739 = vrot.slane %v5446, 5
    %v5740 = vsel %vm1591, %v5738, %v5739
    %v5741 = vrot.slane %v5739, 4
    %v5742 = vrot.slane %v5447, 5
    %v5743 = vsel %vm1591, %v5741, %v5742
    %v5744 = vrot.slane %v5448, 5
    %v5745 = vrot.slane %v5744, 4
    %v5746 = vrot.slane %v5449, 5
    %v5747 = vsel %vm1591, %v5745, %v5746
    %v5748 = vrot.slane %v5746, 4
    %v5749 = vrot.slane %v5450, 5
    %v5750 = vsel %vm1591, %v5748, %v5749
    %v5751 = vrot.slane %v5451, 5
    %v5752 = vrot.slane %v5751, 4
    %v5753 = vrot.slane %v5452, 5
    %v5754 = vsel %vm1591, %v5752, %v5753
    %v5755 = vrot.slane %v5753, 4
    %v5756 = vrot.slane %v5453, 5
    %v5757 = vsel %vm1591, %v5755, %v5756
    %v5758 = vrot.slane %v5454, 5
    %v5759 = vrot.slane %v5758, 4
    %v5760 = vrot.slane %v5455, 5
    %v5761 = vsel %vm1591, %v5759, %v5760
    %v5762 = vrot.slane %v5760, 4
    %v5763 = vrot.slane %v5456, 5
    %v5764 = vsel %vm1591, %v5762, %v5763
    %v5765 = vrot.slane %v5457, 5
    %v5766 = vrot.slane %v5765, 4
    %v5767 = vrot.slane %v5458, 5
    %v5768 = vsel %vm1591, %v5766, %v5767
    %v5769 = vrot.slane %v5767, 4
    %v5770 = vrot.slane %v5459, 5
    %v5771 = vsel %vm1591, %v5769, %v5770
    %v5772 = vrot.slane %v5460, 5
    %v5773 = vrot.slane %v5772, 4
    %v5774 = vrot.slane %v5461, 5
    %v5775 = vsel %vm1591, %v5773, %v5774
    %v5776 = vrot.slane %v5774, 4
    %v5777 = vrot.slane %v5462, 5
    %v5778 = vsel %vm1591, %v5776, %v5777
    %v5779 = vrot.slane %v5463, 5
    %v5780 = vrot.slane %v5779, 4
    %v5781 = vrot.slane %v5464, 5
    %v5782 = vsel %vm1591, %v5780, %v5781
    %v5783 = vrot.slane %v5781, 4
    %v5784 = vrot.slane %v5465, 5
    %v5785 = vsel %vm1591, %v5783, %v5784
    %v5786 = vunpack.c.l.b16 %v5565
    %v5787 = vunpack.c.l.b16 %v5568
    %v5788 = vunpack.c.l.b16 %v5572
    %v5789 = vunpack.c.l.b16 %v5575
    %v5790 = vunpack.c.l.b16 %v5579
    %v5791 = vunpack.c.l.b16 %v5582
    %v5792 = vunpack.c.l.b16 %v5586
    %v5793 = vunpack.c.l.b16 %v5589
    %v5794 = vunpack.c.l.b16 %v5593
    %v5795 = vunpack.c.l.b16 %v5596
    %v5796 = vunpack.c.l.b16 %v5600
    %v5797 = vunpack.c.l.b16 %v5603
    %v5798 = vunpack.c.l.b16 %v5607
    %v5799 = vunpack.c.l.b16 %v5610
    %v5800 = vunpack.c.l.b16 %v5614
    %v5801 = vunpack.c.l.b16 %v5617
    %v5802 = vunpack.c.l.b16 %v5621
    %v5803 = vunpack.c.l.b16 %v5624
    %v5804 = vunpack.c.l.b16 %v5628
    %v5805 = vunpack.c.l.b16 %v5631
    %v5806 = vunpack.c.l.b16 %v5635
    %v5807 = vunpack.c.l.b16 %v5638
    %v5808 = vunpack.c.l.b16 %v5642
    %v5809 = vunpack.c.l.b16 %v5645
    %v5810 = vunpack.c.l.b16 %v5649
    %v5811 = vunpack.c.l.b16 %v5652
    %v5812 = vunpack.c.l.b16 %v5656
    %v5813 = vunpack.c.l.b16 %v5659
    %v5814 = vunpack.c.l.b16 %v5663
    %v5815 = vunpack.c.l.b16 %v5666
    %v5816 = vunpack.c.l.b16 %v5670
    %v5817 = vunpack.c.l.b16 %v5673
    %v5818 = vunpack.c.l.b16 %v5677
    %v5819 = vunpack.c.l.b16 %v5680
    %v5820 = vunpack.c.l.b16 %v5684
    %v5821 = vunpack.c.l.b16 %v5687
    %v5822 = vunpack.c.l.b16 %v5691
    %v5823 = vunpack.c.l.b16 %v5694
    %v5824 = vunpack.c.l.b16 %v5698
    %v5825 = vunpack.c.l.b16 %v5701
    %v5826 = vunpack.c.l.b16 %v5705
    %v5827 = vunpack.c.l.b16 %v5708
    %v5828 = vunpack.c.l.b16 %v5712
    %v5829 = vunpack.c.l.b16 %v5715
    %v5830 = vunpack.c.l.b16 %v5719
    %v5831 = vunpack.c.l.b16 %v5722
    %v5832 = vunpack.c.l.b16 %v5726
    %v5833 = vunpack.c.l.b16 %v5729
    %v5834 = vunpack.c.l.b16 %v5733
    %v5835 = vunpack.c.l.b16 %v5736
    %v5836 = vunpack.c.l.b16 %v5740
    %v5837 = vunpack.c.l.b16 %v5743
    %v5838 = vunpack.c.l.b16 %v5747
    %v5839 = vunpack.c.l.b16 %v5750
    %v5840 = vunpack.c.l.b16 %v5754
    %v5841 = vunpack.c.l.b16 %v5757
    %v5842 = vunpack.c.l.b16 %v5761
    %v5843 = vunpack.c.l.b16 %v5764
    %v5844 = vunpack.c.l.b16 %v5768
    %v5845 = vunpack.c.l.b16 %v5771
    %v5846 = vunpack.c.l.b16 %v5775
    %v5847 = vunpack.c.l.b16 %v5778
    %v5848 = vunpack.c.l.b16 %v5782
    %v5849 = vunpack.c.l.b16 %v5785
    %v5850 = vpack.c.b16 %v5787, %v5786
    %v5851 = vpack.c.b16 %v5789, %v5788
    %v5852 = vpack.c.b16 %v5791, %v5790
    %v5853 = vpack.c.b16 %v5793, %v5792
    %v5854 = vpack.c.b16 %v5795, %v5794
    %v5855 = vpack.c.b16 %v5797, %v5796
    %v5856 = vpack.c.b16 %v5799, %v5798
    %v5857 = vpack.c.b16 %v5801, %v5800
    %v5858 = vpack.c.b16 %v5803, %v5802
    %v5859 = vpack.c.b16 %v5805, %v5804
    %v5860 = vpack.c.b16 %v5807, %v5806
    %v5861 = vpack.c.b16 %v5809, %v5808
    %v5862 = vpack.c.b16 %v5811, %v5810
    %v5863 = vpack.c.b16 %v5813, %v5812
    %v5864 = vpack.c.b16 %v5815, %v5814
    %v5865 = vpack.c.b16 %v5817, %v5816
    %v5866 = vpack.c.b16 %v5819, %v5818
    %v5867 = vpack.c.b16 %v5821, %v5820
    %v5868 = vpack.c.b16 %v5823, %v5822
    %v5869 = vpack.c.b16 %v5825, %v5824
    %v5870 = vpack.c.b16 %v5827, %v5826
    %v5871 = vpack.c.b16 %v5829, %v5828
    %v5872 = vpack.c.b16 %v5831, %v5830
    %v5873 = vpack.c.b16 %v5833, %v5832
    %v5874 = vpack.c.b16 %v5835, %v5834
    %v5875 = vpack.c.b16 %v5837, %v5836
    %v5876 = vpack.c.b16 %v5839, %v5838
    %v5877 = vpack.c.b16 %v5841, %v5840
    %v5878 = vpack.c.b16 %v5843, %v5842
    %v5879 = vpack.c.b16 %v5845, %v5844
    %v5880 = vpack.c.b16 %v5847, %v5846
    %v5881 = vpack.c.b16 %v5849, %v5848
    %5914 = vst.msk [vmem:[#allocation2 + $0x20] sm:$0xff] %vm272, %v5850
    %5915 = vst.msk [vmem:[#allocation2 + $0x48] sm:$0xff] %vm272, %v5851
    %5916 = vst.msk [vmem:[#allocation2 + $0x70] sm:$0xff] %vm272, %v5852
    %5917 = vst.msk [vmem:[#allocation2 + $0x98] sm:$0xff] %vm272, %v5853
    %5918 = vst.msk [vmem:[#allocation2 + $0xc0] sm:$0xff] %vm272, %v5854
    %5919 = vst.msk [vmem:[#allocation2 + $0xe8] sm:$0xff] %vm272, %v5855
    %5920 = vst.msk [vmem:[#allocation2 + $0x110] sm:$0xff] %vm272, %v5856
    %5921 = vst.msk [vmem:[#allocation2 + $0x138] sm:$0xff] %vm272, %v5857
    %5922 = vst.msk [vmem:[#allocation2 + $0x160] sm:$0xff] %vm272, %v5858
    %5923 = vst.msk [vmem:[#allocation2 + $0x188] sm:$0xff] %vm272, %v5859
    %5924 = vst.msk [vmem:[#allocation2 + $0x1b0] sm:$0xff] %vm272, %v5860
    %5925 = vst.msk [vmem:[#allocation2 + $0x1d8] sm:$0xff] %vm272, %v5861
    %5926 = vst.msk [vmem:[#allocation2 + $0x200] sm:$0xff] %vm272, %v5862
    %5927 = vst.msk [vmem:[#allocation2 + $0x228] sm:$0xff] %vm272, %v5863
    %5928 = vst.msk [vmem:[#allocation2 + $0x250] sm:$0xff] %vm272, %v5864
    %5929 = vst.msk [vmem:[#allocation2 + $0x278] sm:$0xff] %vm272, %v5865
    %5930 = vst.msk [vmem:[#allocation2 + $0x2a0] sm:$0xff] %vm272, %v5866
    %5931 = vst.msk [vmem:[#allocation2 + $0x2c8] sm:$0xff] %vm272, %v5867
    %5932 = vst.msk [vmem:[#allocation2 + $0x2f0] sm:$0xff] %vm272, %v5868
    %5933 = vst.msk [vmem:[#allocation2 + $0x318] sm:$0xff] %vm272, %v5869
    %5934 = vst.msk [vmem:[#allocation2 + $0x340] sm:$0xff] %vm272, %v5870
    %5935 = vst.msk [vmem:[#allocation2 + $0x368] sm:$0xff] %vm272, %v5871
    %5936 = vst.msk [vmem:[#allocation2 + $0x390] sm:$0xff] %vm272, %v5872
    %5937 = vst.msk [vmem:[#allocation2 + $0x3b8] sm:$0xff] %vm272, %v5873
    %5938 = vst.msk [vmem:[#allocation2 + $0x3e0] sm:$0xff] %vm272, %v5874
    %5939 = vst.msk [vmem:[#allocation2 + $0x408] sm:$0xff] %vm272, %v5875
    %5940 = vst.msk [vmem:[#allocation2 + $0x430] sm:$0xff] %vm272, %v5876
    %5941 = vst.msk [vmem:[#allocation2 + $0x458] sm:$0xff] %vm272, %v5877
    %5942 = vst.msk [vmem:[#allocation2 + $0x480] sm:$0xff] %vm272, %v5878
    %5943 = vst.msk [vmem:[#allocation2 + $0x4a8] sm:$0xff] %vm272, %v5879
    %5944 = vst.msk [vmem:[#allocation2 + $0x4d0] sm:$0xff] %vm272, %v5880
    %5945 = vst.msk [vmem:[#allocation2 + $0x4f8] sm:$0xff] %vm272, %v5881
    %v5946 = vld [vmem:[#allocation2] sm:$0xff]
    %v5947 = vld [vmem:[#allocation2 + $0x8] sm:$0xff]
    %v5948 = vld [vmem:[#allocation2 + $0x10] sm:$0xff]
    %v5949 = vld [vmem:[#allocation2 + $0x18] sm:$0xff]
    %v5950 = vld [vmem:[#allocation2 + $0x20] sm:$0xff]
    %v5951 = vld [vmem:[#allocation2 + $0x28] sm:$0xff]
    %v5952 = vld [vmem:[#allocation2 + $0x30] sm:$0xff]
    %v5953 = vld [vmem:[#allocation2 + $0x38] sm:$0xff]
    %v5954 = vld [vmem:[#allocation2 + $0x40] sm:$0xff]
    %v5955 = vld [vmem:[#allocation2 + $0x48] sm:$0xff]
    %v5956 = vld [vmem:[#allocation2 + $0x50] sm:$0xff]
    %v5957 = vld [vmem:[#allocation2 + $0x58] sm:$0xff]
    %v5958 = vld [vmem:[#allocation2 + $0x60] sm:$0xff]
    %v5959 = vld [vmem:[#allocation2 + $0x68] sm:$0xff]
    %v5960 = vld [vmem:[#allocation2 + $0x70] sm:$0xff]
    %v5961 = vld [vmem:[#allocation2 + $0x78] sm:$0xff]
    %v5962 = vld [vmem:[#allocation2 + $0x80] sm:$0xff]
    %v5963 = vld [vmem:[#allocation2 + $0x88] sm:$0xff]
    %v5964 = vld [vmem:[#allocation2 + $0x90] sm:$0xff]
    %v5965 = vld [vmem:[#allocation2 + $0x98] sm:$0xff]
    %v5966 = vld [vmem:[#allocation2 + $0xa0] sm:$0xff]
    %v5967 = vld [vmem:[#allocation2 + $0xa8] sm:$0xff]
    %v5968 = vld [vmem:[#allocation2 + $0xb0] sm:$0xff]
    %v5969 = vld [vmem:[#allocation2 + $0xb8] sm:$0xff]
    %v5970 = vld [vmem:[#allocation2 + $0xc0] sm:$0xff]
    %v5971 = vld [vmem:[#allocation2 + $0xc8] sm:$0xff]
    %v5972 = vld [vmem:[#allocation2 + $0xd0] sm:$0xff]
    %v5973 = vld [vmem:[#allocation2 + $0xd8] sm:$0xff]
    %v5974 = vld [vmem:[#allocation2 + $0xe0] sm:$0xff]
    %v5975 = vld [vmem:[#allocation2 + $0xe8] sm:$0xff]
    %v5976 = vld [vmem:[#allocation2 + $0xf0] sm:$0xff]
    %v5977 = vld [vmem:[#allocation2 + $0xf8] sm:$0xff]
    %v5978 = vld [vmem:[#allocation2 + $0x100] sm:$0xff]
    %v5979 = vld [vmem:[#allocation2 + $0x108] sm:$0xff]
    %v5980 = vld [vmem:[#allocation2 + $0x110] sm:$0xff]
    %v5981 = vld [vmem:[#allocation2 + $0x118] sm:$0xff]
    %v5982 = vld [vmem:[#allocation2 + $0x120] sm:$0xff]
    %v5983 = vld [vmem:[#allocation2 + $0x128] sm:$0xff]
    %v5984 = vld [vmem:[#allocation2 + $0x130] sm:$0xff]
    %v5985 = vld [vmem:[#allocation2 + $0x138] sm:$0xff]
    %v5986 = vld [vmem:[#allocation2 + $0x140] sm:$0xff]
    %v5987 = vld [vmem:[#allocation2 + $0x148] sm:$0xff]
    %v5988 = vld [vmem:[#allocation2 + $0x150] sm:$0xff]
    %v5989 = vld [vmem:[#allocation2 + $0x158] sm:$0xff]
    %v5990 = vld [vmem:[#allocation2 + $0x160] sm:$0xff]
    %v5991 = vld [vmem:[#allocation2 + $0x168] sm:$0xff]
    %v5992 = vld [vmem:[#allocation2 + $0x170] sm:$0xff]
    %v5993 = vld [vmem:[#allocation2 + $0x178] sm:$0xff]
    %v5994 = vld [vmem:[#allocation2 + $0x180] sm:$0xff]
    %v5995 = vld [vmem:[#allocation2 + $0x188] sm:$0xff]
    %v5996 = vld [vmem:[#allocation2 + $0x190] sm:$0xff]
    %v5997 = vld [vmem:[#allocation2 + $0x198] sm:$0xff]
    %v5998 = vld [vmem:[#allocation2 + $0x1a0] sm:$0xff]
    %v5999 = vld [vmem:[#allocation2 + $0x1a8] sm:$0xff]
    %v6000 = vld [vmem:[#allocation2 + $0x1b0] sm:$0xff]
    %v6001 = vld [vmem:[#allocation2 + $0x1b8] sm:$0xff]
    %v6002 = vld [vmem:[#allocation2 + $0x1c0] sm:$0xff]
    %v6003 = vld [vmem:[#allocation2 + $0x1c8] sm:$0xff]
    %v6004 = vld [vmem:[#allocation2 + $0x1d0] sm:$0xff]
    %v6005 = vld [vmem:[#allocation2 + $0x1d8] sm:$0xff]
    %v6006 = vld [vmem:[#allocation2 + $0x1e0] sm:$0xff]
    %v6007 = vld [vmem:[#allocation2 + $0x1e8] sm:$0xff]
    %v6008 = vld [vmem:[#allocation2 + $0x1f0] sm:$0xff]
    %v6009 = vld [vmem:[#allocation2 + $0x1f8] sm:$0xff]
    %v6010 = vld [vmem:[#allocation2 + $0x200] sm:$0xff]
    %v6011 = vld [vmem:[#allocation2 + $0x208] sm:$0xff]
    %v6012 = vld [vmem:[#allocation2 + $0x210] sm:$0xff]
    %v6013 = vld [vmem:[#allocation2 + $0x218] sm:$0xff]
    %v6014 = vld [vmem:[#allocation2 + $0x220] sm:$0xff]
    %v6015 = vld [vmem:[#allocation2 + $0x228] sm:$0xff]
    %v6016 = vld [vmem:[#allocation2 + $0x230] sm:$0xff]
    %v6017 = vld [vmem:[#allocation2 + $0x238] sm:$0xff]
    %v6018 = vld [vmem:[#allocation2 + $0x240] sm:$0xff]
    %v6019 = vld [vmem:[#allocation2 + $0x248] sm:$0xff]
    %v6020 = vld [vmem:[#allocation2 + $0x250] sm:$0xff]
    %v6021 = vld [vmem:[#allocation2 + $0x258] sm:$0xff]
    %v6022 = vld [vmem:[#allocation2 + $0x260] sm:$0xff]
    %v6023 = vld [vmem:[#allocation2 + $0x268] sm:$0xff]
    %v6024 = vld [vmem:[#allocation2 + $0x270] sm:$0xff]
    %v6025 = vld [vmem:[#allocation2 + $0x278] sm:$0xff]
    %v6026 = vld [vmem:[#allocation2 + $0x280] sm:$0xff]
    %v6027 = vld [vmem:[#allocation2 + $0x288] sm:$0xff]
    %v6028 = vld [vmem:[#allocation2 + $0x290] sm:$0xff]
    %v6029 = vld [vmem:[#allocation2 + $0x298] sm:$0xff]
    %v6030 = vld [vmem:[#allocation2 + $0x2a0] sm:$0xff]
    %v6031 = vld [vmem:[#allocation2 + $0x2a8] sm:$0xff]
    %v6032 = vld [vmem:[#allocation2 + $0x2b0] sm:$0xff]
    %v6033 = vld [vmem:[#allocation2 + $0x2b8] sm:$0xff]
    %v6034 = vld [vmem:[#allocation2 + $0x2c0] sm:$0xff]
    %v6035 = vld [vmem:[#allocation2 + $0x2c8] sm:$0xff]
    %v6036 = vld [vmem:[#allocation2 + $0x2d0] sm:$0xff]
    %v6037 = vld [vmem:[#allocation2 + $0x2d8] sm:$0xff]
    %v6038 = vld [vmem:[#allocation2 + $0x2e0] sm:$0xff]
    %v6039 = vld [vmem:[#allocation2 + $0x2e8] sm:$0xff]
    %v6040 = vld [vmem:[#allocation2 + $0x2f0] sm:$0xff]
    %v6041 = vld [vmem:[#allocation2 + $0x2f8] sm:$0xff]
    %v6042 = vld [vmem:[#allocation2 + $0x300] sm:$0xff]
    %v6043 = vld [vmem:[#allocation2 + $0x308] sm:$0xff]
    %v6044 = vld [vmem:[#allocation2 + $0x310] sm:$0xff]
    %v6045 = vld [vmem:[#allocation2 + $0x318] sm:$0xff]
    %v6046 = vld [vmem:[#allocation2 + $0x320] sm:$0xff]
    %v6047 = vld [vmem:[#allocation2 + $0x328] sm:$0xff]
    %v6048 = vld [vmem:[#allocation2 + $0x330] sm:$0xff]
    %v6049 = vld [vmem:[#allocation2 + $0x338] sm:$0xff]
    %v6050 = vld [vmem:[#allocation2 + $0x340] sm:$0xff]
    %v6051 = vld [vmem:[#allocation2 + $0x348] sm:$0xff]
    %v6052 = vld [vmem:[#allocation2 + $0x350] sm:$0xff]
    %v6053 = vld [vmem:[#allocation2 + $0x358] sm:$0xff]
    %v6054 = vld [vmem:[#allocation2 + $0x360] sm:$0xff]
    %v6055 = vld [vmem:[#allocation2 + $0x368] sm:$0xff]
    %v6056 = vld [vmem:[#allocation2 + $0x370] sm:$0xff]
    %v6057 = vld [vmem:[#allocation2 + $0x378] sm:$0xff]
    %v6058 = vld [vmem:[#allocation2 + $0x380] sm:$0xff]
    %v6059 = vld [vmem:[#allocation2 + $0x388] sm:$0xff]
    %v6060 = vld [vmem:[#allocation2 + $0x390] sm:$0xff]
    %v6061 = vld [vmem:[#allocation2 + $0x398] sm:$0xff]
    %v6062 = vld [vmem:[#allocation2 + $0x3a0] sm:$0xff]
    %v6063 = vld [vmem:[#allocation2 + $0x3a8] sm:$0xff]
    %v6064 = vld [vmem:[#allocation2 + $0x3b0] sm:$0xff]
    %v6065 = vld [vmem:[#allocation2 + $0x3b8] sm:$0xff]
    %v6066 = vld [vmem:[#allocation2 + $0x3c0] sm:$0xff]
    %v6067 = vld [vmem:[#allocation2 + $0x3c8] sm:$0xff]
    %v6068 = vld [vmem:[#allocation2 + $0x3d0] sm:$0xff]
    %v6069 = vld [vmem:[#allocation2 + $0x3d8] sm:$0xff]
    %v6070 = vld [vmem:[#allocation2 + $0x3e0] sm:$0xff]
    %v6071 = vld [vmem:[#allocation2 + $0x3e8] sm:$0xff]
    %v6072 = vld [vmem:[#allocation2 + $0x3f0] sm:$0xff]
    %v6073 = vld [vmem:[#allocation2 + $0x3f8] sm:$0xff]
    %v6074 = vld [vmem:[#allocation2 + $0x400] sm:$0xff]
    %v6075 = vld [vmem:[#allocation2 + $0x408] sm:$0xff]
    %v6076 = vld [vmem:[#allocation2 + $0x410] sm:$0xff]
    %v6077 = vld [vmem:[#allocation2 + $0x418] sm:$0xff]
    %v6078 = vld [vmem:[#allocation2 + $0x420] sm:$0xff]
    %v6079 = vld [vmem:[#allocation2 + $0x428] sm:$0xff]
    %v6080 = vld [vmem:[#allocation2 + $0x430] sm:$0xff]
    %v6081 = vld [vmem:[#allocation2 + $0x438] sm:$0xff]
    %v6082 = vld [vmem:[#allocation2 + $0x440] sm:$0xff]
    %v6083 = vld [vmem:[#allocation2 + $0x448] sm:$0xff]
    %v6084 = vld [vmem:[#allocation2 + $0x450] sm:$0xff]
    %v6085 = vld [vmem:[#allocation2 + $0x458] sm:$0xff]
    %v6086 = vld [vmem:[#allocation2 + $0x460] sm:$0xff]
    %v6087 = vld [vmem:[#allocation2 + $0x468] sm:$0xff]
    %v6088 = vld [vmem:[#allocation2 + $0x470] sm:$0xff]
    %v6089 = vld [vmem:[#allocation2 + $0x478] sm:$0xff]
    %v6090 = vld [vmem:[#allocation2 + $0x480] sm:$0xff]
    %v6091 = vld [vmem:[#allocation2 + $0x488] sm:$0xff]
    %v6092 = vld [vmem:[#allocation2 + $0x490] sm:$0xff]
    %v6093 = vld [vmem:[#allocation2 + $0x498] sm:$0xff]
    %v6094 = vld [vmem:[#allocation2 + $0x4a0] sm:$0xff]
    %v6095 = vld [vmem:[#allocation2 + $0x4a8] sm:$0xff]
    %v6096 = vld [vmem:[#allocation2 + $0x4b0] sm:$0xff]
    %v6097 = vld [vmem:[#allocation2 + $0x4b8] sm:$0xff]
    %v6098 = vld [vmem:[#allocation2 + $0x4c0] sm:$0xff]
    %v6099 = vld [vmem:[#allocation2 + $0x4c8] sm:$0xff]
    %v6100 = vld [vmem:[#allocation2 + $0x4d0] sm:$0xff]
    %v6101 = vld [vmem:[#allocation2 + $0x4d8] sm:$0xff]
    %v6102 = vld [vmem:[#allocation2 + $0x4e0] sm:$0xff]
    %v6103 = vld [vmem:[#allocation2 + $0x4e8] sm:$0xff]
    %v6104 = vld [vmem:[#allocation2 + $0x4f0] sm:$0xff]
    %v6105 = vld [vmem:[#allocation2 + $0x4f8] sm:$0xff]
    %v6106 = vld [vmem:[%s1] sm:$0xf]
    %v6107 = vld [vmem:[%s1 + $0x4] sm:$0xf]
    %v6108 = vld [vmem:[%s1 + $0x8] sm:$0xf]
    %v6109 = vld [vmem:[%s1 + $0xc] sm:$0xf]
    %v6110 = vld [vmem:[%s1 + $0x10] sm:$0xf]
    %v6111 = vld [vmem:[%s1 + $0x14] sm:$0xf]
    %v6112 = vld [vmem:[%s1 + $0x18] sm:$0xf]
    %v6113 = vld [vmem:[%s1 + $0x1c] sm:$0xf]
    %v6114 = vld [vmem:[%s1 + $0x20] sm:$0xf]
    %v6115 = vld [vmem:[%s1 + $0x24] sm:$0xf]
    %v6116 = vld [vmem:[%s1 + $0x28] sm:$0xf]
    %v6117 = vld [vmem:[%s1 + $0x2c] sm:$0xf]
    %v6118 = vld [vmem:[%s1 + $0x30] sm:$0xf]
    %v6119 = vld [vmem:[%s1 + $0x34] sm:$0xf]
    %v6120 = vld [vmem:[%s1 + $0x38] sm:$0xf]
    %v6121 = vld [vmem:[%s1 + $0x3c] sm:$0xf]
    %v6122 = vld [vmem:[%s1 + $0x40] sm:$0xf]
    %v6123 = vld [vmem:[%s1 + $0x44] sm:$0xf]
    %v6124 = vld [vmem:[%s1 + $0x48] sm:$0xf]
    %v6125 = vld [vmem:[%s1 + $0x4c] sm:$0xf]
    %v6126 = vld [vmem:[%s1 + $0x50] sm:$0xf]
    %v6127 = vld [vmem:[%s1 + $0x54] sm:$0xf]
    %v6128 = vld [vmem:[%s1 + $0x58] sm:$0xf]
    %v6129 = vld [vmem:[%s1 + $0x5c] sm:$0xf]
    %v6130 = vld [vmem:[%s1 + $0x60] sm:$0xf]
    %v6131 = vld [vmem:[%s1 + $0x64] sm:$0xf]
    %v6132 = vld [vmem:[%s1 + $0x68] sm:$0xf]
    %v6133 = vld [vmem:[%s1 + $0x6c] sm:$0xf]
    %v6134 = vld [vmem:[%s1 + $0x70] sm:$0xf]
    %v6135 = vld [vmem:[%s1 + $0x74] sm:$0xf]
    %v6136 = vld [vmem:[%s1 + $0x78] sm:$0xf]
    %v6137 = vld [vmem:[%s1 + $0x7c] sm:$0xf]
    %v6138 = vld [vmem:[%s1 + $0x80] sm:$0xf]
    %v6139 = vld [vmem:[%s1 + $0x84] sm:$0xf]
    %v6140 = vld [vmem:[%s1 + $0x88] sm:$0xf]
    %v6141 = vld [vmem:[%s1 + $0x8c] sm:$0xf]
    %v6142 = vld [vmem:[%s1 + $0x90] sm:$0xf]
    %v6143 = vld [vmem:[%s1 + $0x94] sm:$0xf]
    %v6144 = vld [vmem:[%s1 + $0x98] sm:$0xf]
    %v6145 = vld [vmem:[%s1 + $0x9c] sm:$0xf]
    %v6146 = vld [vmem:[%s1 + $0xa0] sm:$0xf]
    %v6147 = vld [vmem:[%s1 + $0xa4] sm:$0xf]
    %v6148 = vld [vmem:[%s1 + $0xa8] sm:$0xf]
    %v6149 = vld [vmem:[%s1 + $0xac] sm:$0xf]
    %v6150 = vld [vmem:[%s1 + $0xb0] sm:$0xf]
    %v6151 = vld [vmem:[%s1 + $0xb4] sm:$0xf]
    %v6152 = vld [vmem:[%s1 + $0xb8] sm:$0xf]
    %v6153 = vld [vmem:[%s1 + $0xbc] sm:$0xf]
    %v6154 = vld [vmem:[%s1 + $0xc0] sm:$0xf]
    %v6155 = vld [vmem:[%s1 + $0xc4] sm:$0xf]
    %v6156 = vld [vmem:[%s1 + $0xc8] sm:$0xf]
    %v6157 = vld [vmem:[%s1 + $0xcc] sm:$0xf]
    %v6158 = vld [vmem:[%s1 + $0xd0] sm:$0xf]
    %v6159 = vld [vmem:[%s1 + $0xd4] sm:$0xf]
    %v6160 = vld [vmem:[%s1 + $0xd8] sm:$0xf]
    %v6161 = vld [vmem:[%s1 + $0xdc] sm:$0xf]
    %v6162 = vld [vmem:[%s1 + $0xe0] sm:$0xf]
    %v6163 = vld [vmem:[%s1 + $0xe4] sm:$0xf]
    %v6164 = vld [vmem:[%s1 + $0xe8] sm:$0xf]
    %v6165 = vld [vmem:[%s1 + $0xec] sm:$0xf]
    %v6166 = vld [vmem:[%s1 + $0xf0] sm:$0xf]
    %v6167 = vld [vmem:[%s1 + $0xf4] sm:$0xf]
    %v6168 = vld [vmem:[%s1 + $0xf8] sm:$0xf]
    %v6169 = vld [vmem:[%s1 + $0xfc] sm:$0xf]
    %v6170 = vld [vmem:[%s1 + $0x100] sm:$0xf]
    %v6171 = vld [vmem:[%s1 + $0x104] sm:$0xf]
    %v6172 = vld [vmem:[%s1 + $0x108] sm:$0xf]
    %v6173 = vld [vmem:[%s1 + $0x10c] sm:$0xf]
    %v6174 = vld [vmem:[%s1 + $0x110] sm:$0xf]
    %v6175 = vld [vmem:[%s1 + $0x114] sm:$0xf]
    %v6176 = vld [vmem:[%s1 + $0x118] sm:$0xf]
    %v6177 = vld [vmem:[%s1 + $0x11c] sm:$0xf]
    %v6178 = vld [vmem:[%s2] sm:$0x1]
    %v6180 = vlaneseq
    %v6181 = vshrl.u32 %v6180, 7
    %v6182 = vsub.s32 0, %v6181
    %v6183 = vrot.slane %v6178, %v6182
    %v6257 = vunpack.c.l.b16 %v6106
    %v6258 = vunpack.c.l.b16 %v6107
    %v6259 = vunpack.c.l.b16 %v6108
    %v6260 = vunpack.c.l.b16 %v6109
    %v6261 = vunpack.c.l.b16 %v6110
    %v6262 = vunpack.c.l.b16 %v6111
    %v6263 = vunpack.c.l.b16 %v6112
    %v6264 = vunpack.c.l.b16 %v6113
    %v6265 = vunpack.c.l.b16 %v6114
    %v6266 = vunpack.c.l.b16 %v6115
    %v6267 = vunpack.c.l.b16 %v6116
    %v6268 = vunpack.c.l.b16 %v6117
    %v6269 = vunpack.c.l.b16 %v6118
    %v6270 = vunpack.c.l.b16 %v6119
    %v6271 = vunpack.c.l.b16 %v6120
    %v6272 = vunpack.c.l.b16 %v6121
    %v6273 = vunpack.c.l.b16 %v6122
    %v6274 = vunpack.c.l.b16 %v6123
    %v6275 = vunpack.c.l.b16 %v6124
    %v6276 = vunpack.c.l.b16 %v6125
    %v6277 = vunpack.c.l.b16 %v6126
    %v6278 = vunpack.c.l.b16 %v6127
    %v6279 = vunpack.c.l.b16 %v6128
    %v6280 = vunpack.c.l.b16 %v6129
    %v6281 = vunpack.c.l.b16 %v6130
    %v6282 = vunpack.c.l.b16 %v6131
    %v6283 = vunpack.c.l.b16 %v6132
    %v6284 = vunpack.c.l.b16 %v6133
    %v6285 = vunpack.c.l.b16 %v6134
    %v6286 = vunpack.c.l.b16 %v6135
    %v6287 = vunpack.c.l.b16 %v6136
    %v6288 = vunpack.c.l.b16 %v6137
    %v6289 = vunpack.c.l.b16 %v6138
    %v6290 = vunpack.c.l.b16 %v6139
    %v6291 = vunpack.c.l.b16 %v6140
    %v6292 = vunpack.c.l.b16 %v6141
    %v6293 = vunpack.c.l.b16 %v6142
    %v6294 = vunpack.c.l.b16 %v6143
    %v6295 = vunpack.c.l.b16 %v6144
    %v6296 = vunpack.c.l.b16 %v6145
    %v6297 = vunpack.c.l.b16 %v6146
    %v6298 = vunpack.c.l.b16 %v6147
    %v6299 = vunpack.c.l.b16 %v6148
    %v6300 = vunpack.c.l.b16 %v6149
    %v6301 = vunpack.c.l.b16 %v6150
    %v6302 = vunpack.c.l.b16 %v6151
    %v6303 = vunpack.c.l.b16 %v6152
    %v6304 = vunpack.c.l.b16 %v6153
    %v6305 = vunpack.c.l.b16 %v6154
    %v6306 = vunpack.c.l.b16 %v6155
    %v6307 = vunpack.c.l.b16 %v6156
    %v6308 = vunpack.c.l.b16 %v6157
    %v6309 = vunpack.c.l.b16 %v6158
    %v6310 = vunpack.c.l.b16 %v6159
    %v6311 = vunpack.c.l.b16 %v6160
    %v6312 = vunpack.c.l.b16 %v6161
    %v6313 = vunpack.c.l.b16 %v6162
    %v6314 = vunpack.c.l.b16 %v6163
    %v6315 = vunpack.c.l.b16 %v6164
    %v6316 = vunpack.c.l.b16 %v6165
    %v6317 = vunpack.c.l.b16 %v6166
    %v6318 = vunpack.c.l.b16 %v6167
    %v6319 = vunpack.c.l.b16 %v6168
    %v6320 = vunpack.c.l.b16 %v6169
    %v6321 = vunpack.c.l.b16 %v6170
    %v6322 = vunpack.c.l.b16 %v6171
    %v6323 = vunpack.c.l.b16 %v6172
    %v6324 = vunpack.c.l.b16 %v6173
    %v6325 = vunpack.c.l.b16 %v6174
    %v6326 = vunpack.c.l.b16 %v6175
    %v6327 = vunpack.c.l.b16 %v6176
    %v6328 = vunpack.c.l.b16 %v6177
    %v6329 = vpack.c.b16 %v6258, %v6257
    %v6330 = vpack.c.b16 %v6260, %v6259
    %v6331 = vpack.c.b16 %v6262, %v6261
    %v6332 = vpack.c.b16 %v6264, %v6263
    %v6333 = vpack.c.b16 %v6266, %v6265
    %v6334 = vpack.c.b16 %v6268, %v6267
    %v6335 = vpack.c.b16 %v6270, %v6269
    %v6336 = vpack.c.b16 %v6272, %v6271
    %v6337 = vpack.c.b16 %v6274, %v6273
    %v6338 = vpack.c.b16 %v6276, %v6275
    %v6339 = vpack.c.b16 %v6278, %v6277
    %v6340 = vpack.c.b16 %v6280, %v6279
    %v6341 = vpack.c.b16 %v6282, %v6281
    %v6342 = vpack.c.b16 %v6284, %v6283
    %v6343 = vpack.c.b16 %v6286, %v6285
    %v6344 = vpack.c.b16 %v6288, %v6287
    %v6345 = vpack.c.b16 %v6290, %v6289
    %v6346 = vpack.c.b16 %v6292, %v6291
    %v6347 = vpack.c.b16 %v6294, %v6293
    %v6348 = vpack.c.b16 %v6296, %v6295
    %v6349 = vpack.c.b16 %v6298, %v6297
    %v6350 = vpack.c.b16 %v6300, %v6299
    %v6351 = vpack.c.b16 %v6302, %v6301
    %v6352 = vpack.c.b16 %v6304, %v6303
    %v6353 = vpack.c.b16 %v6306, %v6305
    %v6354 = vpack.c.b16 %v6308, %v6307
    %v6355 = vpack.c.b16 %v6310, %v6309
    %v6356 = vpack.c.b16 %v6312, %v6311
    %v6357 = vpack.c.b16 %v6314, %v6313
    %v6358 = vpack.c.b16 %v6316, %v6315
    %v6359 = vpack.c.b16 %v6318, %v6317
    %v6360 = vpack.c.b16 %v6320, %v6319
    %v6361 = vpack.c.b16 %v6322, %v6321
    %v6362 = vpack.c.b16 %v6324, %v6323
    %v6363 = vpack.c.b16 %v6326, %v6325
    %v6364 = vpack.c.b16 %v6328, %v6327
    %v6402 = vsel %vm272, %v5950, 0
    %v6405 = vsel %vm272, %v5955, 0
    %v6408 = vsel %vm272, %v5960, 0
    %v6411 = vsel %vm272, %v5965, 0
    %v6414 = vsel %vm272, %v5970, 0
    %v6417 = vsel %vm272, %v5975, 0
    %v6420 = vsel %vm272, %v5980, 0
    %v6423 = vsel %vm272, %v5985, 0
    %v6426 = vsel %vm272, %v5990, 0
    %v6429 = vsel %vm272, %v5995, 0
    %v6432 = vsel %vm272, %v6000, 0
    %v6435 = vsel %vm272, %v6005, 0
    %v6438 = vsel %vm272, %v6010, 0
    %v6441 = vsel %vm272, %v6015, 0
    %v6444 = vsel %vm272, %v6020, 0
    %v6447 = vsel %vm272, %v6025, 0
    %v6450 = vsel %vm272, %v6030, 0
    %v6453 = vsel %vm272, %v6035, 0
    %v6456 = vsel %vm272, %v6040, 0
    %v6459 = vsel %vm272, %v6045, 0
    %v6462 = vsel %vm272, %v6050, 0
    %v6465 = vsel %vm272, %v6055, 0
    %v6468 = vsel %vm272, %v6060, 0
    %v6471 = vsel %vm272, %v6065, 0
    %v6474 = vsel %vm272, %v6070, 0
    %v6477 = vsel %vm272, %v6075, 0
    %v6480 = vsel %vm272, %v6080, 0
    %v6483 = vsel %vm272, %v6085, 0
    %v6486 = vsel %vm272, %v6090, 0
    %v6489 = vsel %vm272, %v6095, 0
    %v6492 = vsel %vm272, %v6100, 0
    %v6495 = vsel %vm272, %v6105, 0
    %6497 = vmatprep.subr.bf16.mxu0 0
    %6498 = vmatpush1.bf16.msra.mxu0 %v6329
    %6499 = vmatprep.subr.bf16.mxu0 0
    %6500 = vmatpush1.bf16.msra.mxu0 %v6330
    %6501 = vmatprep.subr.bf16.mxu0 0
    %6502 = vmatpush1.bf16.msra.mxu0 %v6331
    %6503 = vmatprep.subr.bf16.mxu0 0
    %6504 = vmatpush1.bf16.msra.mxu0 %v6332
    %6505 = vmatprep.subr.bf16.mxu0 0
    %6506 = vmatpush1.bf16.msra.mxu0 %v6333
    %6507 = vmatprep.subr.bf16.mxu0 0
    %6508 = vmatpush1.bf16.msra.mxu0 %v6334
    %6509 = vmatprep.subr.bf16.mxu0 0
    %6510 = vmatpush1.bf16.msra.mxu0 %v6335
    %6511 = vmatprep.subr.bf16.mxu0 0
    %6512 = vmatpush1.bf16.msra.mxu0 %v6336
    %6513 = vmatprep.subr.bf16.mxu0 0
    %6514 = vmatpush1.bf16.msra.mxu0 %v6337
    %6515 = vmatprep.subr.bf16.mxu0 0
    %6516 = vmatpush1.bf16.msra.mxu0 %v6338
    %6517 = vmatprep.subr.bf16.mxu0 0
    %6518 = vmatpush1.bf16.msra.mxu0 %v6339
    %6519 = vmatprep.subr.bf16.mxu0 0
    %6520 = vmatpush1.bf16.msra.mxu0 %v6340
    %6521 = vmatprep.subr.bf16.mxu0 0
    %6522 = vmatpush1.bf16.msra.mxu0 %v6341
    %6523 = vmatprep.subr.bf16.mxu0 0
    %6524 = vmatpush1.bf16.msra.mxu0 %v6342
    %6525 = vmatprep.subr.bf16.mxu0 0
    %6526 = vmatpush1.bf16.msra.mxu0 %v6343
    %6527 = vmatprep.subr.bf16.mxu0 0
    %6528 = vmatpush1.bf16.msra.mxu0 %v6344
    %6529 = vmatprep.mubr.bf16.mxu0 %v5947
    %6530 = vmatmul.mubr.bf16.gmra.mrb[0].mxu0 %v5946
    %v6531 = vpop.f32.mrb[0].mxu0
    %v6532 = vadd.f32 %v6183, %v6531
    %v6533 = vpop.f32.mrb[0].mxu0
    %v6534 = vpop.f32.mrb[0].mxu0
    %v6535 = vadd.f32 %v6183, %v6534
    %v6536 = vpop.f32.mrb[0].mxu0
    %6537 = vmatprep.mubr.bf16.mxu0 %v5952
    %6538 = vmatmul.mubr.bf16.gmra.mrb[0].mxu0 %v5951
    %v6539 = vpop.f32.mrb[0].mxu0
    %v6540 = vadd.f32 %v6183, %v6539
    %v6541 = vpop.f32.mrb[0].mxu0
    %v6542 = vpop.f32.mrb[0].mxu0
    %v6543 = vadd.f32 %v6183, %v6542
    %v6544 = vpop.f32.mrb[0].mxu0
    %6545 = vmatprep.mubr.bf16.mxu0 %v5957
    %6546 = vmatmul.mubr.bf16.gmra.mrb[0].mxu0 %v5956
    %v6547 = vpop.f32.mrb[0].mxu0
    %v6548 = vadd.f32 %v6183, %v6547
    %v6549 = vpop.f32.mrb[0].mxu0
    %v6550 = vpop.f32.mrb[0].mxu0
    %v6551 = vadd.f32 %v6183, %v6550
    %v6552 = vpop.f32.mrb[0].mxu0
    %6553 = vmatprep.mubr.bf16.mxu0 %v5962
    %6554 = vmatmul.mubr.bf16.gmra.mrb[0].mxu0 %v5961
    %v6555 = vpop.f32.mrb[0].mxu0
    %v6556 = vadd.f32 %v6183, %v6555
    %v6557 = vpop.f32.mrb[0].mxu0
    %v6558 = vpop.f32.mrb[0].mxu0
    %v6559 = vadd.f32 %v6183, %v6558
    %v6560 = vpop.f32.mrb[0].mxu0
    %6561 = vmatprep.mubr.bf16.mxu0 %v5967
    %6562 = vmatmul.mubr.bf16.gmra.mrb[0].mxu0 %v5966
    %v6563 = vpop.f32.mrb[0].mxu0
    %v6564 = vadd.f32 %v6183, %v6563
    %v6565 = vpop.f32.mrb[0].mxu0
    %v6566 = vpop.f32.mrb[0].mxu0
    %v6567 = vadd.f32 %v6183, %v6566
    %v6568 = vpop.f32.mrb[0].mxu0
    %6569 = vmatprep.mubr.bf16.mxu0 %v5972
    %6570 = vmatmul.mubr.bf16.gmra.mrb[0].mxu0 %v5971
    %v6571 = vpop.f32.mrb[0].mxu0
    %v6572 = vadd.f32 %v6183, %v6571
    %v6573 = vpop.f32.mrb[0].mxu0
    %v6574 = vpop.f32.mrb[0].mxu0
    %v6575 = vadd.f32 %v6183, %v6574
    %v6576 = vpop.f32.mrb[0].mxu0
    %6577 = vmatprep.mubr.bf16.mxu0 %v5977
    %6578 = vmatmul.mubr.bf16.gmra.mrb[0].mxu0 %v5976
    %v6579 = vpop.f32.mrb[0].mxu0
    %v6580 = vadd.f32 %v6183, %v6579
    %v6581 = vpop.f32.mrb[0].mxu0
    %v6582 = vpop.f32.mrb[0].mxu0
    %v6583 = vadd.f32 %v6183, %v6582
    %v6584 = vpop.f32.mrb[0].mxu0
    %6585 = vmatprep.mubr.bf16.mxu0 %v5982
    %6586 = vmatmul.mubr.bf16.gmra.mrb[0].mxu0 %v5981
    %v6587 = vpop.f32.mrb[0].mxu0
    %v6588 = vadd.f32 %v6183, %v6587
    %v6589 = vpop.f32.mrb[0].mxu0
    %v6590 = vpop.f32.mrb[0].mxu0
    %v6591 = vadd.f32 %v6183, %v6590
    %v6592 = vpop.f32.mrb[0].mxu0
    %6593 = vmatprep.mubr.bf16.mxu0 %v5987
    %6594 = vmatmul.mubr.bf16.gmra.mrb[0].mxu0 %v5986
    %v6595 = vpop.f32.mrb[0].mxu0
    %v6596 = vadd.f32 %v6183, %v6595
    %v6597 = vpop.f32.mrb[0].mxu0
    %v6598 = vpop.f32.mrb[0].mxu0
    %v6599 = vadd.f32 %v6183, %v6598
    %v6600 = vpop.f32.mrb[0].mxu0
    %6601 = vmatprep.mubr.bf16.mxu0 %v5992
    %6602 = vmatmul.mubr.bf16.gmra.mrb[0].mxu0 %v5991
    %v6603 = vpop.f32.mrb[0].mxu0
    %v6604 = vadd.f32 %v6183, %v6603
    %v6605 = vpop.f32.mrb[0].mxu0
    %v6606 = vpop.f32.mrb[0].mxu0
    %v6607 = vadd.f32 %v6183, %v6606
    %v6608 = vpop.f32.mrb[0].mxu0
    %6609 = vmatprep.mubr.bf16.mxu0 %v5997
    %6610 = vmatmul.mubr.bf16.gmra.mrb[0].mxu0 %v5996
    %v6611 = vpop.f32.mrb[0].mxu0
    %v6612 = vadd.f32 %v6183, %v6611
    %v6613 = vpop.f32.mrb[0].mxu0
    %v6614 = vpop.f32.mrb[0].mxu0
    %v6615 = vadd.f32 %v6183, %v6614
    %v6616 = vpop.f32.mrb[0].mxu0
    %6617 = vmatprep.mubr.bf16.mxu0 %v6002
    %6618 = vmatmul.mubr.bf16.gmra.mrb[0].mxu0 %v6001
    %v6619 = vpop.f32.mrb[0].mxu0
    %v6620 = vadd.f32 %v6183, %v6619
    %v6621 = vpop.f32.mrb[0].mxu0
    %v6622 = vpop.f32.mrb[0].mxu0
    %v6623 = vadd.f32 %v6183, %v6622
    %v6624 = vpop.f32.mrb[0].mxu0
    %6625 = vmatprep.mubr.bf16.mxu0 %v6007
    %6626 = vmatmul.mubr.bf16.gmra.mrb[0].mxu0 %v6006
    %v6627 = vpop.f32.mrb[0].mxu0
    %v6628 = vadd.f32 %v6183, %v6627
    %v6629 = vpop.f32.mrb[0].mxu0
    %v6630 = vpop.f32.mrb[0].mxu0
    %v6631 = vadd.f32 %v6183, %v6630
    %v6632 = vpop.f32.mrb[0].mxu0
    %6633 = vmatprep.mubr.bf16.mxu0 %v6012
    %6634 = vmatmul.mubr.bf16.gmra.mrb[0].mxu0 %v6011
    %v6635 = vpop.f32.mrb[0].mxu0
    %v6636 = vadd.f32 %v6183, %v6635
    %v6637 = vpop.f32.mrb[0].mxu0
    %v6638 = vpop.f32.mrb[0].mxu0
    %v6639 = vadd.f32 %v6183, %v6638
    %v6640 = vpop.f32.mrb[0].mxu0
    %6641 = vmatprep.mubr.bf16.mxu0 %v6017
    %6642 = vmatmul.mubr.bf16.gmra.mrb[0].mxu0 %v6016
    %v6643 = vpop.f32.mrb[0].mxu0
    %v6644 = vadd.f32 %v6183, %v6643
    %v6645 = vpop.f32.mrb[0].mxu0
    %v6646 = vpop.f32.mrb[0].mxu0
    %v6647 = vadd.f32 %v6183, %v6646
    %v6648 = vpop.f32.mrb[0].mxu0
    %6649 = vmatprep.mubr.bf16.mxu0 %v6022
    %6650 = vmatmul.mubr.bf16.gmra.mrb[0].mxu0 %v6021
    %v6651 = vpop.f32.mrb[0].mxu0
    %v6652 = vadd.f32 %v6183, %v6651
    %v6653 = vpop.f32.mrb[0].mxu0
    %v6654 = vpop.f32.mrb[0].mxu0
    %v6655 = vadd.f32 %v6183, %v6654
    %v6656 = vpop.f32.mrb[0].mxu0
    %6657 = vmatprep.mubr.bf16.mxu0 %v6027
    %6658 = vmatmul.mubr.bf16.gmra.mrb[0].mxu0 %v6026
    %v6659 = vpop.f32.mrb[0].mxu0
    %v6660 = vadd.f32 %v6183, %v6659
    %v6661 = vpop.f32.mrb[0].mxu0
    %v6662 = vpop.f32.mrb[0].mxu0
    %v6663 = vadd.f32 %v6183, %v6662
    %v6664 = vpop.f32.mrb[0].mxu0
    %6665 = vmatprep.mubr.bf16.mxu0 %v6032
    %6666 = vmatmul.mubr.bf16.gmra.mrb[0].mxu0 %v6031
    %v6667 = vpop.f32.mrb[0].mxu0
    %v6668 = vadd.f32 %v6183, %v6667
    %v6669 = vpop.f32.mrb[0].mxu0
    %v6670 = vpop.f32.mrb[0].mxu0
    %v6671 = vadd.f32 %v6183, %v6670
    %v6672 = vpop.f32.mrb[0].mxu0
    %6673 = vmatprep.mubr.bf16.mxu0 %v6037
    %6674 = vmatmul.mubr.bf16.gmra.mrb[0].mxu0 %v6036
    %v6675 = vpop.f32.mrb[0].mxu0
    %v6676 = vadd.f32 %v6183, %v6675
    %v6677 = vpop.f32.mrb[0].mxu0
    %v6678 = vpop.f32.mrb[0].mxu0
    %v6679 = vadd.f32 %v6183, %v6678
    %v6680 = vpop.f32.mrb[0].mxu0
    %6681 = vmatprep.mubr.bf16.mxu0 %v6042
    %6682 = vmatmul.mubr.bf16.gmra.mrb[0].mxu0 %v6041
    %v6683 = vpop.f32.mrb[0].mxu0
    %v6684 = vadd.f32 %v6183, %v6683
    %v6685 = vpop.f32.mrb[0].mxu0
    %v6686 = vpop.f32.mrb[0].mxu0
    %v6687 = vadd.f32 %v6183, %v6686
    %v6688 = vpop.f32.mrb[0].mxu0
    %6689 = vmatprep.mubr.bf16.mxu0 %v6047
    %6690 = vmatmul.mubr.bf16.gmra.mrb[0].mxu0 %v6046
    %v6691 = vpop.f32.mrb[0].mxu0
    %v6692 = vadd.f32 %v6183, %v6691
    %v6693 = vpop.f32.mrb[0].mxu0
    %v6694 = vpop.f32.mrb[0].mxu0
    %v6695 = vadd.f32 %v6183, %v6694
    %v6696 = vpop.f32.mrb[0].mxu0
    %6697 = vmatprep.mubr.bf16.mxu0 %v6052
    %6698 = vmatmul.mubr.bf16.gmra.mrb[0].mxu0 %v6051
    %v6699 = vpop.f32.mrb[0].mxu0
    %v6700 = vadd.f32 %v6183, %v6699
    %v6701 = vpop.f32.mrb[0].mxu0
    %v6702 = vpop.f32.mrb[0].mxu0
    %v6703 = vadd.f32 %v6183, %v6702
    %v6704 = vpop.f32.mrb[0].mxu0
    %6705 = vmatprep.mubr.bf16.mxu0 %v6057
    %6706 = vmatmul.mubr.bf16.gmra.mrb[0].mxu0 %v6056
    %v6707 = vpop.f32.mrb[0].mxu0
    %v6708 = vadd.f32 %v6183, %v6707
    %v6709 = vpop.f32.mrb[0].mxu0
    %v6710 = vpop.f32.mrb[0].mxu0
    %v6711 = vadd.f32 %v6183, %v6710
    %v6712 = vpop.f32.mrb[0].mxu0
    %6713 = vmatprep.mubr.bf16.mxu0 %v6062
    %6714 = vmatmul.mubr.bf16.gmra.mrb[0].mxu0 %v6061
    %v6715 = vpop.f32.mrb[0].mxu0
    %v6716 = vadd.f32 %v6183, %v6715
    %v6717 = vpop.f32.mrb[0].mxu0
    %v6718 = vpop.f32.mrb[0].mxu0
    %v6719 = vadd.f32 %v6183, %v6718
    %v6720 = vpop.f32.mrb[0].mxu0
    %6721 = vmatprep.mubr.bf16.mxu0 %v6067
    %6722 = vmatmul.mubr.bf16.gmra.mrb[0].mxu0 %v6066
    %v6723 = vpop.f32.mrb[0].mxu0
    %v6724 = vadd.f32 %v6183, %v6723
    %v6725 = vpop.f32.mrb[0].mxu0
    %v6726 = vpop.f32.mrb[0].mxu0
    %v6727 = vadd.f32 %v6183, %v6726
    %v6728 = vpop.f32.mrb[0].mxu0
    %6729 = vmatprep.mubr.bf16.mxu0 %v6072
    %6730 = vmatmul.mubr.bf16.gmra.mrb[0].mxu0 %v6071
    %v6731 = vpop.f32.mrb[0].mxu0
    %v6732 = vadd.f32 %v6183, %v6731
    %v6733 = vpop.f32.mrb[0].mxu0
    %v6734 = vpop.f32.mrb[0].mxu0
    %v6735 = vadd.f32 %v6183, %v6734
    %v6736 = vpop.f32.mrb[0].mxu0
    %6737 = vmatprep.mubr.bf16.mxu0 %v6077
    %6738 = vmatmul.mubr.bf16.gmra.mrb[0].mxu0 %v6076
    %v6739 = vpop.f32.mrb[0].mxu0
    %v6740 = vadd.f32 %v6183, %v6739
    %v6741 = vpop.f32.mrb[0].mxu0
    %v6742 = vpop.f32.mrb[0].mxu0
    %v6743 = vadd.f32 %v6183, %v6742
    %v6744 = vpop.f32.mrb[0].mxu0
    %6745 = vmatprep.mubr.bf16.mxu0 %v6082
    %6746 = vmatmul.mubr.bf16.gmra.mrb[0].mxu0 %v6081
    %v6747 = vpop.f32.mrb[0].mxu0
    %v6748 = vadd.f32 %v6183, %v6747
    %v6749 = vpop.f32.mrb[0].mxu0
    %v6750 = vpop.f32.mrb[0].mxu0
    %v6751 = vadd.f32 %v6183, %v6750
    %v6752 = vpop.f32.mrb[0].mxu0
    %6753 = vmatprep.mubr.bf16.mxu0 %v6087
    %6754 = vmatmul.mubr.bf16.gmra.mrb[0].mxu0 %v6086
    %v6755 = vpop.f32.mrb[0].mxu0
    %v6756 = vadd.f32 %v6183, %v6755
    %v6757 = vpop.f32.mrb[0].mxu0
    %v6758 = vpop.f32.mrb[0].mxu0
    %v6759 = vadd.f32 %v6183, %v6758
    %v6760 = vpop.f32.mrb[0].mxu0
    %6761 = vmatprep.mubr.bf16.mxu0 %v6092
    %6762 = vmatmul.mubr.bf16.gmra.mrb[0].mxu0 %v6091
    %v6763 = vpop.f32.mrb[0].mxu0
    %v6764 = vadd.f32 %v6183, %v6763
    %v6765 = vpop.f32.mrb[0].mxu0
    %v6766 = vpop.f32.mrb[0].mxu0
    %v6767 = vadd.f32 %v6183, %v6766
    %v6768 = vpop.f32.mrb[0].mxu0
    %6769 = vmatprep.mubr.bf16.mxu0 %v6097
    %6770 = vmatmul.mubr.bf16.gmra.mrb[0].mxu0 %v6096
    %v6771 = vpop.f32.mrb[0].mxu0
    %v6772 = vadd.f32 %v6183, %v6771
    %v6773 = vpop.f32.mrb[0].mxu0
    %v6774 = vpop.f32.mrb[0].mxu0
    %v6775 = vadd.f32 %v6183, %v6774
    %v6776 = vpop.f32.mrb[0].mxu0
    %6777 = vmatprep.mubr.bf16.mxu0 %v6102
    %6778 = vmatmul.mubr.bf16.gmra.mrb[0].mxu0 %v6101
    %v6779 = vpop.f32.mrb[0].mxu0
    %v6780 = vadd.f32 %v6183, %v6779
    %v6781 = vpop.f32.mrb[0].mxu0
    %v6782 = vpop.f32.mrb[0].mxu0
    %v6783 = vadd.f32 %v6183, %v6782
    %v6784 = vpop.f32.mrb[0].mxu0
    %6785 = vdwg.mxu0
    %6786 = vmatprep.subr.bf16.mxu0 0
    %6787 = vmatpush1.bf16.msra.mxu0 %v6345
    %6788 = vmatprep.subr.bf16.mxu0 0
    %6789 = vmatpush1.bf16.msra.mxu0 %v6346
    %6790 = vmatprep.subr.bf16.mxu0 0
    %6791 = vmatpush1.bf16.msra.mxu0 %v6347
    %6792 = vmatprep.subr.bf16.mxu0 0
    %6793 = vmatpush1.bf16.msra.mxu0 %v6348
    %6794 = vmatprep.subr.bf16.mxu0 0
    %6795 = vmatpush1.bf16.msra.mxu0 %v6349
    %6796 = vmatprep.subr.bf16.mxu0 0
    %6797 = vmatpush1.bf16.msra.mxu0 %v6350
    %6798 = vmatprep.subr.bf16.mxu0 0
    %6799 = vmatpush1.bf16.msra.mxu0 %v6351
    %6800 = vmatprep.subr.bf16.mxu0 0
    %6801 = vmatpush1.bf16.msra.mxu0 %v6352
    %6802 = vmatprep.subr.bf16.mxu0 0
    %6803 = vmatpush1.bf16.msra.mxu0 %v6353
    %6804 = vmatprep.subr.bf16.mxu0 0
    %6805 = vmatpush1.bf16.msra.mxu0 %v6354
    %6806 = vmatprep.subr.bf16.mxu0 0
    %6807 = vmatpush1.bf16.msra.mxu0 %v6355
    %6808 = vmatprep.subr.bf16.mxu0 0
    %6809 = vmatpush1.bf16.msra.mxu0 %v6356
    %6810 = vmatprep.subr.bf16.mxu0 0
    %6811 = vmatpush1.bf16.msra.mxu0 %v6357
    %6812 = vmatprep.subr.bf16.mxu0 0
    %6813 = vmatpush1.bf16.msra.mxu0 %v6358
    %6814 = vmatprep.subr.bf16.mxu0 0
    %6815 = vmatpush1.bf16.msra.mxu0 %v6359
    %6816 = vmatprep.subr.bf16.mxu0 0
    %6817 = vmatpush1.bf16.msra.mxu0 %v6360
    %6818 = vmatprep.mubr.bf16.mxu0 %v5949
    %6819 = vmatmul.mubr.bf16.gmra.mrb[0].mxu0 %v5948
    %v6820 = vpop.f32.mrb[0].mxu0
    %v6821 = vadd.f32 %v6532, %v6820
    %v6822 = vpop.f32.mrb[0].mxu0
    %v6823 = vpop.f32.mrb[0].mxu0
    %v6824 = vadd.f32 %v6535, %v6823
    %v6825 = vpop.f32.mrb[0].mxu0
    %6826 = vmatprep.mubr.bf16.mxu0 %v5954
    %6827 = vmatmul.mubr.bf16.gmra.mrb[0].mxu0 %v5953
    %v6828 = vpop.f32.mrb[0].mxu0
    %v6829 = vadd.f32 %v6540, %v6828
    %v6830 = vpop.f32.mrb[0].mxu0
    %v6831 = vpop.f32.mrb[0].mxu0
    %v6832 = vadd.f32 %v6543, %v6831
    %v6833 = vpop.f32.mrb[0].mxu0
    %6834 = vmatprep.mubr.bf16.mxu0 %v5959
    %6835 = vmatmul.mubr.bf16.gmra.mrb[0].mxu0 %v5958
    %v6836 = vpop.f32.mrb[0].mxu0
    %v6837 = vadd.f32 %v6548, %v6836
    %v6838 = vpop.f32.mrb[0].mxu0
    %v6839 = vpop.f32.mrb[0].mxu0
    %v6840 = vadd.f32 %v6551, %v6839
    %v6841 = vpop.f32.mrb[0].mxu0
    %6842 = vmatprep.mubr.bf16.mxu0 %v5964
    %6843 = vmatmul.mubr.bf16.gmra.mrb[0].mxu0 %v5963
    %v6844 = vpop.f32.mrb[0].mxu0
    %v6845 = vadd.f32 %v6556, %v6844
    %v6846 = vpop.f32.mrb[0].mxu0
    %v6847 = vpop.f32.mrb[0].mxu0
    %v6848 = vadd.f32 %v6559, %v6847
    %v6849 = vpop.f32.mrb[0].mxu0
    %6850 = vmatprep.mubr.bf16.mxu0 %v5969
    %6851 = vmatmul.mubr.bf16.gmra.mrb[0].mxu0 %v5968
    %v6852 = vpop.f32.mrb[0].mxu0
    %v6853 = vadd.f32 %v6564, %v6852
    %v6854 = vpop.f32.mrb[0].mxu0
    %v6855 = vpop.f32.mrb[0].mxu0
    %v6856 = vadd.f32 %v6567, %v6855
    %v6857 = vpop.f32.mrb[0].mxu0
    %6858 = vmatprep.mubr.bf16.mxu0 %v5974
    %6859 = vmatmul.mubr.bf16.gmra.mrb[0].mxu0 %v5973
    %v6860 = vpop.f32.mrb[0].mxu0
    %v6861 = vadd.f32 %v6572, %v6860
    %v6862 = vpop.f32.mrb[0].mxu0
    %v6863 = vpop.f32.mrb[0].mxu0
    %v6864 = vadd.f32 %v6575, %v6863
    %v6865 = vpop.f32.mrb[0].mxu0
    %6866 = vmatprep.mubr.bf16.mxu0 %v5979
    %6867 = vmatmul.mubr.bf16.gmra.mrb[0].mxu0 %v5978
    %v6868 = vpop.f32.mrb[0].mxu0
    %v6869 = vadd.f32 %v6580, %v6868
    %v6870 = vpop.f32.mrb[0].mxu0
    %v6871 = vpop.f32.mrb[0].mxu0
    %v6872 = vadd.f32 %v6583, %v6871
    %v6873 = vpop.f32.mrb[0].mxu0
    %6874 = vmatprep.mubr.bf16.mxu0 %v5984
    %6875 = vmatmul.mubr.bf16.gmra.mrb[0].mxu0 %v5983
    %v6876 = vpop.f32.mrb[0].mxu0
    %v6877 = vadd.f32 %v6588, %v6876
    %v6878 = vpop.f32.mrb[0].mxu0
    %v6879 = vpop.f32.mrb[0].mxu0
    %v6880 = vadd.f32 %v6591, %v6879
    %v6881 = vpop.f32.mrb[0].mxu0
    %6882 = vmatprep.mubr.bf16.mxu0 %v5989
    %6883 = vmatmul.mubr.bf16.gmra.mrb[0].mxu0 %v5988
    %v6884 = vpop.f32.mrb[0].mxu0
    %v6885 = vadd.f32 %v6596, %v6884
    %v6886 = vpop.f32.mrb[0].mxu0
    %v6887 = vpop.f32.mrb[0].mxu0
    %v6888 = vadd.f32 %v6599, %v6887
    %v6889 = vpop.f32.mrb[0].mxu0
    %6890 = vmatprep.mubr.bf16.mxu0 %v5994
    %6891 = vmatmul.mubr.bf16.gmra.mrb[0].mxu0 %v5993
    %v6892 = vpop.f32.mrb[0].mxu0
    %v6893 = vadd.f32 %v6604, %v6892
    %v6894 = vpop.f32.mrb[0].mxu0
    %v6895 = vpop.f32.mrb[0].mxu0
    %v6896 = vadd.f32 %v6607, %v6895
    %v6897 = vpop.f32.mrb[0].mxu0
    %6898 = vmatprep.mubr.bf16.mxu0 %v5999
    %6899 = vmatmul.mubr.bf16.gmra.mrb[0].mxu0 %v5998
    %v6900 = vpop.f32.mrb[0].mxu0
    %v6901 = vadd.f32 %v6612, %v6900
    %v6902 = vpop.f32.mrb[0].mxu0
    %v6903 = vpop.f32.mrb[0].mxu0
    %v6904 = vadd.f32 %v6615, %v6903
    %v6905 = vpop.f32.mrb[0].mxu0
    %6906 = vmatprep.mubr.bf16.mxu0 %v6004
    %6907 = vmatmul.mubr.bf16.gmra.mrb[0].mxu0 %v6003
    %v6908 = vpop.f32.mrb[0].mxu0
    %v6909 = vadd.f32 %v6620, %v6908
    %v6910 = vpop.f32.mrb[0].mxu0
    %v6911 = vpop.f32.mrb[0].mxu0
    %v6912 = vadd.f32 %v6623, %v6911
    %v6913 = vpop.f32.mrb[0].mxu0
    %6914 = vmatprep.mubr.bf16.mxu0 %v6009
    %6915 = vmatmul.mubr.bf16.gmra.mrb[0].mxu0 %v6008
    %v6916 = vpop.f32.mrb[0].mxu0
    %v6917 = vadd.f32 %v6628, %v6916
    %v6918 = vpop.f32.mrb[0].mxu0
    %v6919 = vpop.f32.mrb[0].mxu0
    %v6920 = vadd.f32 %v6631, %v6919
    %v6921 = vpop.f32.mrb[0].mxu0
    %6922 = vmatprep.mubr.bf16.mxu0 %v6014
    %6923 = vmatmul.mubr.bf16.gmra.mrb[0].mxu0 %v6013
    %v6924 = vpop.f32.mrb[0].mxu0
    %v6925 = vadd.f32 %v6636, %v6924
    %v6926 = vpop.f32.mrb[0].mxu0
    %v6927 = vpop.f32.mrb[0].mxu0
    %v6928 = vadd.f32 %v6639, %v6927
    %v6929 = vpop.f32.mrb[0].mxu0
    %6930 = vmatprep.mubr.bf16.mxu0 %v6019
    %6931 = vmatmul.mubr.bf16.gmra.mrb[0].mxu0 %v6018
    %v6932 = vpop.f32.mrb[0].mxu0
    %v6933 = vadd.f32 %v6644, %v6932
    %v6934 = vpop.f32.mrb[0].mxu0
    %v6935 = vpop.f32.mrb[0].mxu0
    %v6936 = vadd.f32 %v6647, %v6935
    %v6937 = vpop.f32.mrb[0].mxu0
    %6938 = vmatprep.mubr.bf16.mxu0 %v6024
    %6939 = vmatmul.mubr.bf16.gmra.mrb[0].mxu0 %v6023
    %v6940 = vpop.f32.mrb[0].mxu0
    %v6941 = vadd.f32 %v6652, %v6940
    %v6942 = vpop.f32.mrb[0].mxu0
    %v6943 = vpop.f32.mrb[0].mxu0
    %v6944 = vadd.f32 %v6655, %v6943
    %v6945 = vpop.f32.mrb[0].mxu0
    %6946 = vmatprep.mubr.bf16.mxu0 %v6029
    %6947 = vmatmul.mubr.bf16.gmra.mrb[0].mxu0 %v6028
    %v6948 = vpop.f32.mrb[0].mxu0
    %v6949 = vadd.f32 %v6660, %v6948
    %v6950 = vpop.f32.mrb[0].mxu0
    %v6951 = vpop.f32.mrb[0].mxu0
    %v6952 = vadd.f32 %v6663, %v6951
    %v6953 = vpop.f32.mrb[0].mxu0
    %6954 = vmatprep.mubr.bf16.mxu0 %v6034
    %6955 = vmatmul.mubr.bf16.gmra.mrb[0].mxu0 %v6033
    %v6956 = vpop.f32.mrb[0].mxu0
    %v6957 = vadd.f32 %v6668, %v6956
    %v6958 = vpop.f32.mrb[0].mxu0
    %v6959 = vpop.f32.mrb[0].mxu0
    %v6960 = vadd.f32 %v6671, %v6959
    %v6961 = vpop.f32.mrb[0].mxu0
    %6962 = vmatprep.mubr.bf16.mxu0 %v6039
    %6963 = vmatmul.mubr.bf16.gmra.mrb[0].mxu0 %v6038
    %v6964 = vpop.f32.mrb[0].mxu0
    %v6965 = vadd.f32 %v6676, %v6964
    %v6966 = vpop.f32.mrb[0].mxu0
    %v6967 = vpop.f32.mrb[0].mxu0
    %v6968 = vadd.f32 %v6679, %v6967
    %v6969 = vpop.f32.mrb[0].mxu0
    %6970 = vmatprep.mubr.bf16.mxu0 %v6044
    %6971 = vmatmul.mubr.bf16.gmra.mrb[0].mxu0 %v6043
    %v6972 = vpop.f32.mrb[0].mxu0
    %v6973 = vadd.f32 %v6684, %v6972
    %v6974 = vpop.f32.mrb[0].mxu0
    %v6975 = vpop.f32.mrb[0].mxu0
    %v6976 = vadd.f32 %v6687, %v6975
    %v6977 = vpop.f32.mrb[0].mxu0
    %6978 = vmatprep.mubr.bf16.mxu0 %v6049
    %6979 = vmatmul.mubr.bf16.gmra.mrb[0].mxu0 %v6048
    %v6980 = vpop.f32.mrb[0].mxu0
    %v6981 = vadd.f32 %v6692, %v6980
    %v6982 = vpop.f32.mrb[0].mxu0
    %v6983 = vpop.f32.mrb[0].mxu0
    %v6984 = vadd.f32 %v6695, %v6983
    %v6985 = vpop.f32.mrb[0].mxu0
    %6986 = vmatprep.mubr.bf16.mxu0 %v6054
    %6987 = vmatmul.mubr.bf16.gmra.mrb[0].mxu0 %v6053
    %v6988 = vpop.f32.mrb[0].mxu0
    %v6989 = vadd.f32 %v6700, %v6988
    %v6990 = vpop.f32.mrb[0].mxu0
    %v6991 = vpop.f32.mrb[0].mxu0
    %v6992 = vadd.f32 %v6703, %v6991
    %v6993 = vpop.f32.mrb[0].mxu0
    %6994 = vmatprep.mubr.bf16.mxu0 %v6059
    %6995 = vmatmul.mubr.bf16.gmra.mrb[0].mxu0 %v6058
    %v6996 = vpop.f32.mrb[0].mxu0
    %v6997 = vadd.f32 %v6708, %v6996
    %v6998 = vpop.f32.mrb[0].mxu0
    %v6999 = vpop.f32.mrb[0].mxu0
    %v7000 = vadd.f32 %v6711, %v6999
    %v7001 = vpop.f32.mrb[0].mxu0
    %7002 = vmatprep.mubr.bf16.mxu0 %v6064
    %7003 = vmatmul.mubr.bf16.gmra.mrb[0].mxu0 %v6063
    %v7004 = vpop.f32.mrb[0].mxu0
    %v7005 = vadd.f32 %v6716, %v7004
    %v7006 = vpop.f32.mrb[0].mxu0
    %v7007 = vpop.f32.mrb[0].mxu0
    %v7008 = vadd.f32 %v6719, %v7007
    %v7009 = vpop.f32.mrb[0].mxu0
    %7010 = vmatprep.mubr.bf16.mxu0 %v6069
    %7011 = vmatmul.mubr.bf16.gmra.mrb[0].mxu0 %v6068
    %v7012 = vpop.f32.mrb[0].mxu0
    %v7013 = vadd.f32 %v6724, %v7012
    %v7014 = vpop.f32.mrb[0].mxu0
    %v7015 = vpop.f32.mrb[0].mxu0
    %v7016 = vadd.f32 %v6727, %v7015
    %v7017 = vpop.f32.mrb[0].mxu0
    %7018 = vmatprep.mubr.bf16.mxu0 %v6074
    %7019 = vmatmul.mubr.bf16.gmra.mrb[0].mxu0 %v6073
    %v7020 = vpop.f32.mrb[0].mxu0
    %v7021 = vadd.f32 %v6732, %v7020
    %v7022 = vpop.f32.mrb[0].mxu0
    %v7023 = vpop.f32.mrb[0].mxu0
    %v7024 = vadd.f32 %v6735, %v7023
    %v7025 = vpop.f32.mrb[0].mxu0
    %7026 = vmatprep.mubr.bf16.mxu0 %v6079
    %7027 = vmatmul.mubr.bf16.gmra.mrb[0].mxu0 %v6078
    %v7028 = vpop.f32.mrb[0].mxu0
    %v7029 = vadd.f32 %v6740, %v7028
    %v7030 = vpop.f32.mrb[0].mxu0
    %v7031 = vpop.f32.mrb[0].mxu0
    %v7032 = vadd.f32 %v6743, %v7031
    %v7033 = vpop.f32.mrb[0].mxu0
    %7034 = vmatprep.mubr.bf16.mxu0 %v6084
    %7035 = vmatmul.mubr.bf16.gmra.mrb[0].mxu0 %v6083
    %v7036 = vpop.f32.mrb[0].mxu0
    %v7037 = vadd.f32 %v6748, %v7036
    %v7038 = vpop.f32.mrb[0].mxu0
    %v7039 = vpop.f32.mrb[0].mxu0
    %v7040 = vadd.f32 %v6751, %v7039
    %v7041 = vpop.f32.mrb[0].mxu0
    %7042 = vmatprep.mubr.bf16.mxu0 %v6089
    %7043 = vmatmul.mubr.bf16.gmra.mrb[0].mxu0 %v6088
    %v7044 = vpop.f32.mrb[0].mxu0
    %v7045 = vadd.f32 %v6756, %v7044
    %v7046 = vpop.f32.mrb[0].mxu0
    %v7047 = vpop.f32.mrb[0].mxu0
    %v7048 = vadd.f32 %v6759, %v7047
    %v7049 = vpop.f32.mrb[0].mxu0
    %7050 = vmatprep.mubr.bf16.mxu0 %v6094
    %7051 = vmatmul.mubr.bf16.gmra.mrb[0].mxu0 %v6093
    %v7052 = vpop.f32.mrb[0].mxu0
    %v7053 = vadd.f32 %v6764, %v7052
    %v7054 = vpop.f32.mrb[0].mxu0
    %v7055 = vpop.f32.mrb[0].mxu0
    %v7056 = vadd.f32 %v6767, %v7055
    %v7057 = vpop.f32.mrb[0].mxu0
    %7058 = vmatprep.mubr.bf16.mxu0 %v6099
    %7059 = vmatmul.mubr.bf16.gmra.mrb[0].mxu0 %v6098
    %v7060 = vpop.f32.mrb[0].mxu0
    %v7061 = vadd.f32 %v6772, %v7060
    %v7062 = vpop.f32.mrb[0].mxu0
    %v7063 = vpop.f32.mrb[0].mxu0
    %v7064 = vadd.f32 %v6775, %v7063
    %v7065 = vpop.f32.mrb[0].mxu0
    %7066 = vmatprep.mubr.bf16.mxu0 %v6104
    %7067 = vmatmul.mubr.bf16.gmra.mrb[0].mxu0 %v6103
    %v7068 = vpop.f32.mrb[0].mxu0
    %v7069 = vadd.f32 %v6780, %v7068
    %v7070 = vpop.f32.mrb[0].mxu0
    %v7071 = vpop.f32.mrb[0].mxu0
    %v7072 = vadd.f32 %v6783, %v7071
    %v7073 = vpop.f32.mrb[0].mxu0
    %7074 = vdwg.mxu0
    %7075 = vmatprep.subr.bf16.mxu0 0
    %7076 = vmatpush1.bf16.msra.mxu0 %v6361
    %7077 = vmatprep.subr.bf16.mxu0 0
    %7078 = vmatpush1.bf16.msra.mxu0 %v6362
    %7079 = vmatprep.subr.bf16.mxu0 0
    %7080 = vmatpush1.bf16.msra.mxu0 %v6363
    %7081 = vmatprep.subr.bf16.mxu0 0
    %7082 = vmatpush1.bf16.msra.mxu0 %v6364
    %7083 = vmatprep.subr.bf16.mxu0 0
    %7084 = vmatpush1.bf16.msra.mxu0 0
    %7085 = vmatprep.subr.bf16.mxu0 0
    %7086 = vmatpush1.bf16.msra.mxu0 0
    %7087 = vmatprep.subr.bf16.mxu0 0
    %7088 = vmatpush1.bf16.msra.mxu0 0
    %7089 = vmatprep.subr.bf16.mxu0 0
    %7090 = vmatpush1.bf16.msra.mxu0 0
    %7091 = vmatprep.subr.bf16.mxu0 0
    %7092 = vmatpush1.bf16.msra.mxu0 0
    %7093 = vmatprep.subr.bf16.mxu0 0
    %7094 = vmatpush1.bf16.msra.mxu0 0
    %7095 = vmatprep.subr.bf16.mxu0 0
    %7096 = vmatpush1.bf16.msra.mxu0 0
    %7097 = vmatprep.subr.bf16.mxu0 0
    %7098 = vmatpush1.bf16.msra.mxu0 0
    %7099 = vmatprep.subr.bf16.mxu0 0
    %7100 = vmatpush1.bf16.msra.mxu0 0
    %7101 = vmatprep.subr.bf16.mxu0 0
    %7102 = vmatpush1.bf16.msra.mxu0 0
    %7103 = vmatprep.subr.bf16.mxu0 0
    %7104 = vmatpush1.bf16.msra.mxu0 0
    %7105 = vmatprep.subr.bf16.mxu0 0
    %7106 = vmatpush1.bf16.msra.mxu0 0
    %7107 = vmatprep.mubr.bf16.mxu0 0
    %7108 = vmatmul.mubr.bf16.gmra.mrb[0].mxu0 %v6402
    %v7109 = vpop.f32.mrb[0].mxu0
    %v7110 = vadd.f32 %v6821, %v7109
    %v7111 = vpop.f32.mrb[0].mxu0
    %v7112 = vpop.f32.mrb[0].mxu0
    %v7113 = vadd.f32 %v6824, %v7112
    %v7114 = vpop.f32.mrb[0].mxu0
    %7115 = vmatprep.mubr.bf16.mxu0 0
    %7116 = vmatmul.mubr.bf16.gmra.mrb[0].mxu0 %v6405
    %v7117 = vpop.f32.mrb[0].mxu0
    %v7118 = vadd.f32 %v6829, %v7117
    %v7119 = vpop.f32.mrb[0].mxu0
    %v7120 = vpop.f32.mrb[0].mxu0
    %v7121 = vadd.f32 %v6832, %v7120
    %v7122 = vpop.f32.mrb[0].mxu0
    %7123 = vmatprep.mubr.bf16.mxu0 0
    %7124 = vmatmul.mubr.bf16.gmra.mrb[0].mxu0 %v6408
    %v7125 = vpop.f32.mrb[0].mxu0
    %v7126 = vadd.f32 %v6837, %v7125
    %v7127 = vpop.f32.mrb[0].mxu0
    %v7128 = vpop.f32.mrb[0].mxu0
    %v7129 = vadd.f32 %v6840, %v7128
    %v7130 = vpop.f32.mrb[0].mxu0
    %7131 = vmatprep.mubr.bf16.mxu0 0
    %7132 = vmatmul.mubr.bf16.gmra.mrb[0].mxu0 %v6411
    %v7133 = vpop.f32.mrb[0].mxu0
    %v7134 = vadd.f32 %v6845, %v7133
    %v7135 = vpop.f32.mrb[0].mxu0
    %v7136 = vpop.f32.mrb[0].mxu0
    %v7137 = vadd.f32 %v6848, %v7136
    %v7138 = vpop.f32.mrb[0].mxu0
    %7139 = vmatprep.mubr.bf16.mxu0 0
    %7140 = vmatmul.mubr.bf16.gmra.mrb[0].mxu0 %v6414
    %v7141 = vpop.f32.mrb[0].mxu0
    %v7142 = vadd.f32 %v6853, %v7141
    %v7143 = vpop.f32.mrb[0].mxu0
    %v7144 = vpop.f32.mrb[0].mxu0
    %v7145 = vadd.f32 %v6856, %v7144
    %v7146 = vpop.f32.mrb[0].mxu0
    %7147 = vmatprep.mubr.bf16.mxu0 0
    %7148 = vmatmul.mubr.bf16.gmra.mrb[0].mxu0 %v6417
    %v7149 = vpop.f32.mrb[0].mxu0
    %v7150 = vadd.f32 %v6861, %v7149
    %v7151 = vpop.f32.mrb[0].mxu0
    %v7152 = vpop.f32.mrb[0].mxu0
    %v7153 = vadd.f32 %v6864, %v7152
    %v7154 = vpop.f32.mrb[0].mxu0
    %7155 = vmatprep.mubr.bf16.mxu0 0
    %7156 = vmatmul.mubr.bf16.gmra.mrb[0].mxu0 %v6420
    %v7157 = vpop.f32.mrb[0].mxu0
    %v7158 = vadd.f32 %v6869, %v7157
    %v7159 = vpop.f32.mrb[0].mxu0
    %v7160 = vpop.f32.mrb[0].mxu0
    %v7161 = vadd.f32 %v6872, %v7160
    %v7162 = vpop.f32.mrb[0].mxu0
    %7163 = vmatprep.mubr.bf16.mxu0 0
    %7164 = vmatmul.mubr.bf16.gmra.mrb[0].mxu0 %v6423
    %v7165 = vpop.f32.mrb[0].mxu0
    %v7166 = vadd.f32 %v6877, %v7165
    %v7167 = vpop.f32.mrb[0].mxu0
    %v7168 = vpop.f32.mrb[0].mxu0
    %v7169 = vadd.f32 %v6880, %v7168
    %v7170 = vpop.f32.mrb[0].mxu0
    %7171 = vmatprep.mubr.bf16.mxu0 0
    %7172 = vmatmul.mubr.bf16.gmra.mrb[0].mxu0 %v6426
    %v7173 = vpop.f32.mrb[0].mxu0
    %v7174 = vadd.f32 %v6885, %v7173
    %v7175 = vpop.f32.mrb[0].mxu0
    %v7176 = vpop.f32.mrb[0].mxu0
    %v7177 = vadd.f32 %v6888, %v7176
    %v7178 = vpop.f32.mrb[0].mxu0
    %7179 = vmatprep.mubr.bf16.mxu0 0
    %7180 = vmatmul.mubr.bf16.gmra.mrb[0].mxu0 %v6429
    %v7181 = vpop.f32.mrb[0].mxu0
    %v7182 = vadd.f32 %v6893, %v7181
    %v7183 = vpop.f32.mrb[0].mxu0
    %v7184 = vpop.f32.mrb[0].mxu0
    %v7185 = vadd.f32 %v6896, %v7184
    %v7186 = vpop.f32.mrb[0].mxu0
    %7187 = vmatprep.mubr.bf16.mxu0 0
    %7188 = vmatmul.mubr.bf16.gmra.mrb[0].mxu0 %v6432
    %v7189 = vpop.f32.mrb[0].mxu0
    %v7190 = vadd.f32 %v6901, %v7189
    %v7191 = vpop.f32.mrb[0].mxu0
    %v7192 = vpop.f32.mrb[0].mxu0
    %v7193 = vadd.f32 %v6904, %v7192
    %v7194 = vpop.f32.mrb[0].mxu0
    %7195 = vmatprep.mubr.bf16.mxu0 0
    %7196 = vmatmul.mubr.bf16.gmra.mrb[0].mxu0 %v6435
    %v7197 = vpop.f32.mrb[0].mxu0
    %v7198 = vadd.f32 %v6909, %v7197
    %v7199 = vpop.f32.mrb[0].mxu0
    %v7200 = vpop.f32.mrb[0].mxu0
    %v7201 = vadd.f32 %v6912, %v7200
    %v7202 = vpop.f32.mrb[0].mxu0
    %7203 = vmatprep.mubr.bf16.mxu0 0
    %7204 = vmatmul.mubr.bf16.gmra.mrb[0].mxu0 %v6438
    %v7205 = vpop.f32.mrb[0].mxu0
    %v7206 = vadd.f32 %v6917, %v7205
    %v7207 = vpop.f32.mrb[0].mxu0
    %v7208 = vpop.f32.mrb[0].mxu0
    %v7209 = vadd.f32 %v6920, %v7208
    %v7210 = vpop.f32.mrb[0].mxu0
    %7211 = vmatprep.mubr.bf16.mxu0 0
    %7212 = vmatmul.mubr.bf16.gmra.mrb[0].mxu0 %v6441
    %v7213 = vpop.f32.mrb[0].mxu0
    %v7214 = vadd.f32 %v6925, %v7213
    %v7215 = vpop.f32.mrb[0].mxu0
    %v7216 = vpop.f32.mrb[0].mxu0
    %v7217 = vadd.f32 %v6928, %v7216
    %v7218 = vpop.f32.mrb[0].mxu0
    %7219 = vmatprep.mubr.bf16.mxu0 0
    %7220 = vmatmul.mubr.bf16.gmra.mrb[0].mxu0 %v6444
    %v7221 = vpop.f32.mrb[0].mxu0
    %v7222 = vadd.f32 %v6933, %v7221
    %v7223 = vpop.f32.mrb[0].mxu0
    %v7224 = vpop.f32.mrb[0].mxu0
    %v7225 = vadd.f32 %v6936, %v7224
    %v7226 = vpop.f32.mrb[0].mxu0
    %7227 = vmatprep.mubr.bf16.mxu0 0
    %7228 = vmatmul.mubr.bf16.gmra.mrb[0].mxu0 %v6447
    %v7229 = vpop.f32.mrb[0].mxu0
    %v7230 = vadd.f32 %v6941, %v7229
    %v7231 = vpop.f32.mrb[0].mxu0
    %v7232 = vpop.f32.mrb[0].mxu0
    %v7233 = vadd.f32 %v6944, %v7232
    %v7234 = vpop.f32.mrb[0].mxu0
    %7235 = vmatprep.mubr.bf16.mxu0 0
    %7236 = vmatmul.mubr.bf16.gmra.mrb[0].mxu0 %v6450
    %v7237 = vpop.f32.mrb[0].mxu0
    %v7238 = vadd.f32 %v6949, %v7237
    %v7239 = vpop.f32.mrb[0].mxu0
    %v7240 = vpop.f32.mrb[0].mxu0
    %v7241 = vadd.f32 %v6952, %v7240
    %v7242 = vpop.f32.mrb[0].mxu0
    %7243 = vmatprep.mubr.bf16.mxu0 0
    %7244 = vmatmul.mubr.bf16.gmra.mrb[0].mxu0 %v6453
    %v7245 = vpop.f32.mrb[0].mxu0
    %v7246 = vadd.f32 %v6957, %v7245
    %v7247 = vpop.f32.mrb[0].mxu0
    %v7248 = vpop.f32.mrb[0].mxu0
    %v7249 = vadd.f32 %v6960, %v7248
    %v7250 = vpop.f32.mrb[0].mxu0
    %7251 = vmatprep.mubr.bf16.mxu0 0
    %7252 = vmatmul.mubr.bf16.gmra.mrb[0].mxu0 %v6456
    %v7253 = vpop.f32.mrb[0].mxu0
    %v7254 = vadd.f32 %v6965, %v7253
    %v7255 = vpop.f32.mrb[0].mxu0
    %v7256 = vpop.f32.mrb[0].mxu0
    %v7257 = vadd.f32 %v6968, %v7256
    %v7258 = vpop.f32.mrb[0].mxu0
    %7259 = vmatprep.mubr.bf16.mxu0 0
    %7260 = vmatmul.mubr.bf16.gmra.mrb[0].mxu0 %v6459
    %v7261 = vpop.f32.mrb[0].mxu0
    %v7262 = vadd.f32 %v6973, %v7261
    %v7263 = vpop.f32.mrb[0].mxu0
    %v7264 = vpop.f32.mrb[0].mxu0
    %v7265 = vadd.f32 %v6976, %v7264
    %v7266 = vpop.f32.mrb[0].mxu0
    %7267 = vmatprep.mubr.bf16.mxu0 0
    %7268 = vmatmul.mubr.bf16.gmra.mrb[0].mxu0 %v6462
    %v7269 = vpop.f32.mrb[0].mxu0
    %v7270 = vadd.f32 %v6981, %v7269
    %v7271 = vpop.f32.mrb[0].mxu0
    %v7272 = vpop.f32.mrb[0].mxu0
    %v7273 = vadd.f32 %v6984, %v7272
    %v7274 = vpop.f32.mrb[0].mxu0
    %7275 = vmatprep.mubr.bf16.mxu0 0
    %7276 = vmatmul.mubr.bf16.gmra.mrb[0].mxu0 %v6465
    %v7277 = vpop.f32.mrb[0].mxu0
    %v7278 = vadd.f32 %v6989, %v7277
    %v7279 = vpop.f32.mrb[0].mxu0
    %v7280 = vpop.f32.mrb[0].mxu0
    %v7281 = vadd.f32 %v6992, %v7280
    %v7282 = vpop.f32.mrb[0].mxu0
    %7283 = vmatprep.mubr.bf16.mxu0 0
    %7284 = vmatmul.mubr.bf16.gmra.mrb[0].mxu0 %v6468
    %v7285 = vpop.f32.mrb[0].mxu0
    %v7286 = vadd.f32 %v6997, %v7285
    %v7287 = vpop.f32.mrb[0].mxu0
    %v7288 = vpop.f32.mrb[0].mxu0
    %v7289 = vadd.f32 %v7000, %v7288
    %v7290 = vpop.f32.mrb[0].mxu0
    %7291 = vmatprep.mubr.bf16.mxu0 0
    %7292 = vmatmul.mubr.bf16.gmra.mrb[0].mxu0 %v6471
    %v7293 = vpop.f32.mrb[0].mxu0
    %v7294 = vadd.f32 %v7005, %v7293
    %v7295 = vpop.f32.mrb[0].mxu0
    %v7296 = vpop.f32.mrb[0].mxu0
    %v7297 = vadd.f32 %v7008, %v7296
    %v7298 = vpop.f32.mrb[0].mxu0
    %7299 = vmatprep.mubr.bf16.mxu0 0
    %7300 = vmatmul.mubr.bf16.gmra.mrb[0].mxu0 %v6474
    %v7301 = vpop.f32.mrb[0].mxu0
    %v7302 = vadd.f32 %v7013, %v7301
    %v7303 = vpop.f32.mrb[0].mxu0
    %v7304 = vpop.f32.mrb[0].mxu0
    %v7305 = vadd.f32 %v7016, %v7304
    %v7306 = vpop.f32.mrb[0].mxu0
    %7307 = vmatprep.mubr.bf16.mxu0 0
    %7308 = vmatmul.mubr.bf16.gmra.mrb[0].mxu0 %v6477
    %v7309 = vpop.f32.mrb[0].mxu0
    %v7310 = vadd.f32 %v7021, %v7309
    %v7311 = vpop.f32.mrb[0].mxu0
    %v7312 = vpop.f32.mrb[0].mxu0
    %v7313 = vadd.f32 %v7024, %v7312
    %v7314 = vpop.f32.mrb[0].mxu0
    %7315 = vmatprep.mubr.bf16.mxu0 0
    %7316 = vmatmul.mubr.bf16.gmra.mrb[0].mxu0 %v6480
    %v7317 = vpop.f32.mrb[0].mxu0
    %v7318 = vadd.f32 %v7029, %v7317
    %v7319 = vpop.f32.mrb[0].mxu0
    %v7320 = vpop.f32.mrb[0].mxu0
    %v7321 = vadd.f32 %v7032, %v7320
    %v7322 = vpop.f32.mrb[0].mxu0
    %7323 = vmatprep.mubr.bf16.mxu0 0
    %7324 = vmatmul.mubr.bf16.gmra.mrb[0].mxu0 %v6483
    %v7325 = vpop.f32.mrb[0].mxu0
    %v7326 = vadd.f32 %v7037, %v7325
    %v7327 = vpop.f32.mrb[0].mxu0
    %v7328 = vpop.f32.mrb[0].mxu0
    %v7329 = vadd.f32 %v7040, %v7328
    %v7330 = vpop.f32.mrb[0].mxu0
    %7331 = vmatprep.mubr.bf16.mxu0 0
    %7332 = vmatmul.mubr.bf16.gmra.mrb[0].mxu0 %v6486
    %v7333 = vpop.f32.mrb[0].mxu0
    %v7334 = vadd.f32 %v7045, %v7333
    %v7335 = vpop.f32.mrb[0].mxu0
    %v7336 = vpop.f32.mrb[0].mxu0
    %v7337 = vadd.f32 %v7048, %v7336
    %v7338 = vpop.f32.mrb[0].mxu0
    %7339 = vmatprep.mubr.bf16.mxu0 0
    %7340 = vmatmul.mubr.bf16.gmra.mrb[0].mxu0 %v6489
    %v7341 = vpop.f32.mrb[0].mxu0
    %v7342 = vadd.f32 %v7053, %v7341
    %v7343 = vpop.f32.mrb[0].mxu0
    %v7344 = vpop.f32.mrb[0].mxu0
    %v7345 = vadd.f32 %v7056, %v7344
    %v7346 = vpop.f32.mrb[0].mxu0
    %7347 = vmatprep.mubr.bf16.mxu0 0
    %7348 = vmatmul.mubr.bf16.gmra.mrb[0].mxu0 %v6492
    %v7349 = vpop.f32.mrb[0].mxu0
    %v7350 = vadd.f32 %v7061, %v7349
    %v7351 = vpop.f32.mrb[0].mxu0
    %v7352 = vpop.f32.mrb[0].mxu0
    %v7353 = vadd.f32 %v7064, %v7352
    %v7354 = vpop.f32.mrb[0].mxu0
    %7355 = vmatprep.mubr.bf16.mxu0 0
    %7356 = vmatmul.mubr.bf16.gmra.mrb[0].mxu0 %v6495
    %v7357 = vpop.f32.mrb[0].mxu0
    %v7358 = vadd.f32 %v7069, %v7357
    %v7359 = vpop.f32.mrb[0].mxu0
    %v7360 = vpop.f32.mrb[0].mxu0
    %v7361 = vadd.f32 %v7072, %v7360
    %v7362 = vpop.f32.mrb[0].mxu0
    %7363 = vdwg.mxu0
    %v7364 = vpack.c.bf16 %v7113, %v7110
    %v7365 = vpack.c.bf16 %v7121, %v7118
    %v7366 = vpack.c.bf16 %v7129, %v7126
    %v7367 = vpack.c.bf16 %v7137, %v7134
    %v7368 = vpack.c.bf16 %v7145, %v7142
    %v7369 = vpack.c.bf16 %v7153, %v7150
    %v7370 = vpack.c.bf16 %v7161, %v7158
    %v7371 = vpack.c.bf16 %v7169, %v7166
    %v7372 = vpack.c.bf16 %v7177, %v7174
    %v7373 = vpack.c.bf16 %v7185, %v7182
    %v7374 = vpack.c.bf16 %v7193, %v7190
    %v7375 = vpack.c.bf16 %v7201, %v7198
    %v7376 = vpack.c.bf16 %v7209, %v7206
    %v7377 = vpack.c.bf16 %v7217, %v7214
    %v7378 = vpack.c.bf16 %v7225, %v7222
    %v7379 = vpack.c.bf16 %v7233, %v7230
    %v7380 = vpack.c.bf16 %v7241, %v7238
    %v7381 = vpack.c.bf16 %v7249, %v7246
    %v7382 = vpack.c.bf16 %v7257, %v7254
    %v7383 = vpack.c.bf16 %v7265, %v7262
    %v7384 = vpack.c.bf16 %v7273, %v7270
    %v7385 = vpack.c.bf16 %v7281, %v7278
    %v7386 = vpack.c.bf16 %v7289, %v7286
    %v7387 = vpack.c.bf16 %v7297, %v7294
    %v7388 = vpack.c.bf16 %v7305, %v7302
    %v7389 = vpack.c.bf16 %v7313, %v7310
    %v7390 = vpack.c.bf16 %v7321, %v7318
    %v7391 = vpack.c.bf16 %v7329, %v7326
    %v7392 = vpack.c.bf16 %v7337, %v7334
    %v7393 = vpack.c.bf16 %v7345, %v7342
    %v7394 = vpack.c.bf16 %v7353, %v7350
    %v7395 = vpack.c.bf16 %v7361, %v7358
    %v7428 = vunpack.c.l.b16 %v7364
    %v7429 = vunpack.c.h.b16 %v7364
    %v7430 = vunpack.c.l.b16 %v7365
    %v7431 = vunpack.c.h.b16 %v7365
    %v7432 = vunpack.c.l.b16 %v7366
    %v7433 = vunpack.c.h.b16 %v7366
    %v7434 = vunpack.c.l.b16 %v7367
    %v7435 = vunpack.c.h.b16 %v7367
    %v7436 = vunpack.c.l.b16 %v7368
    %v7437 = vunpack.c.h.b16 %v7368
    %v7438 = vunpack.c.l.b16 %v7369
    %v7439 = vunpack.c.h.b16 %v7369
    %v7440 = vunpack.c.l.b16 %v7370
    %v7441 = vunpack.c.h.b16 %v7370
    %v7442 = vunpack.c.l.b16 %v7371
    %v7443 = vunpack.c.h.b16 %v7371
    %v7444 = vunpack.c.l.b16 %v7372
    %v7445 = vunpack.c.h.b16 %v7372
    %v7446 = vunpack.c.l.b16 %v7373
    %v7447 = vunpack.c.h.b16 %v7373
    %v7448 = vunpack.c.l.b16 %v7374
    %v7449 = vunpack.c.h.b16 %v7374
    %v7450 = vunpack.c.l.b16 %v7375
    %v7451 = vunpack.c.h.b16 %v7375
    %v7452 = vunpack.c.l.b16 %v7376
    %v7453 = vunpack.c.h.b16 %v7376
    %v7454 = vunpack.c.l.b16 %v7377
    %v7455 = vunpack.c.h.b16 %v7377
    %v7456 = vunpack.c.l.b16 %v7378
    %v7457 = vunpack.c.h.b16 %v7378
    %v7458 = vunpack.c.l.b16 %v7379
    %v7459 = vunpack.c.h.b16 %v7379
    %v7460 = vunpack.c.l.b16 %v7380
    %v7461 = vunpack.c.h.b16 %v7380
    %v7462 = vunpack.c.l.b16 %v7381
    %v7463 = vunpack.c.h.b16 %v7381
    %v7464 = vunpack.c.l.b16 %v7382
    %v7465 = vunpack.c.h.b16 %v7382
    %v7466 = vunpack.c.l.b16 %v7383
    %v7467 = vunpack.c.h.b16 %v7383
    %v7468 = vunpack.c.l.b16 %v7384
    %v7469 = vunpack.c.h.b16 %v7384
    %v7470 = vunpack.c.l.b16 %v7385
    %v7471 = vunpack.c.h.b16 %v7385
    %v7472 = vunpack.c.l.b16 %v7386
    %v7473 = vunpack.c.h.b16 %v7386
    %v7474 = vunpack.c.l.b16 %v7387
    %v7475 = vunpack.c.h.b16 %v7387
    %v7476 = vunpack.c.l.b16 %v7388
    %v7477 = vunpack.c.h.b16 %v7388
    %v7478 = vunpack.c.l.b16 %v7389
    %v7479 = vunpack.c.h.b16 %v7389
    %v7480 = vunpack.c.l.b16 %v7390
    %v7481 = vunpack.c.h.b16 %v7390
    %v7482 = vunpack.c.l.b16 %v7391
    %v7483 = vunpack.c.h.b16 %v7391
    %v7484 = vunpack.c.l.b16 %v7392
    %v7485 = vunpack.c.h.b16 %v7392
    %v7486 = vunpack.c.l.b16 %v7393
    %v7487 = vunpack.c.h.b16 %v7393
    %v7488 = vunpack.c.l.b16 %v7394
    %v7489 = vunpack.c.h.b16 %v7394
    %v7490 = vunpack.c.l.b16 %v7395
    %v7491 = vunpack.c.h.b16 %v7395
    %v7492 = vpack.c.b16 %v7428, %v7428
    %v7493 = vpack.c.b16 %v7429, %v7429
    %v7494 = vpack.c.b16 %v7430, %v7430
    %v7495 = vpack.c.b16 %v7431, %v7431
    %v7496 = vpack.c.b16 %v7432, %v7432
    %v7497 = vpack.c.b16 %v7433, %v7433
    %v7498 = vpack.c.b16 %v7434, %v7434
    %v7499 = vpack.c.b16 %v7435, %v7435
    %v7500 = vpack.c.b16 %v7436, %v7436
    %v7501 = vpack.c.b16 %v7437, %v7437
    %v7502 = vpack.c.b16 %v7438, %v7438
    %v7503 = vpack.c.b16 %v7439, %v7439
    %v7504 = vpack.c.b16 %v7440, %v7440
    %v7505 = vpack.c.b16 %v7441, %v7441
    %v7506 = vpack.c.b16 %v7442, %v7442
    %v7507 = vpack.c.b16 %v7443, %v7443
    %v7508 = vpack.c.b16 %v7444, %v7444
    %v7509 = vpack.c.b16 %v7445, %v7445
    %v7510 = vpack.c.b16 %v7446, %v7446
    %v7511 = vpack.c.b16 %v7447, %v7447
    %v7512 = vpack.c.b16 %v7448, %v7448
    %v7513 = vpack.c.b16 %v7449, %v7449
    %v7514 = vpack.c.b16 %v7450, %v7450
    %v7515 = vpack.c.b16 %v7451, %v7451
    %v7516 = vpack.c.b16 %v7452, %v7452
    %v7517 = vpack.c.b16 %v7453, %v7453
    %v7518 = vpack.c.b16 %v7454, %v7454
    %v7519 = vpack.c.b16 %v7455, %v7455
    %v7520 = vpack.c.b16 %v7456, %v7456
    %v7521 = vpack.c.b16 %v7457, %v7457
    %v7522 = vpack.c.b16 %v7458, %v7458
    %v7523 = vpack.c.b16 %v7459, %v7459
    %v7524 = vpack.c.b16 %v7460, %v7460
    %v7525 = vpack.c.b16 %v7461, %v7461
    %v7526 = vpack.c.b16 %v7462, %v7462
    %v7527 = vpack.c.b16 %v7463, %v7463
    %v7528 = vpack.c.b16 %v7464, %v7464
    %v7529 = vpack.c.b16 %v7465, %v7465
    %v7530 = vpack.c.b16 %v7466, %v7466
    %v7531 = vpack.c.b16 %v7467, %v7467
    %v7532 = vpack.c.b16 %v7468, %v7468
    %v7533 = vpack.c.b16 %v7469, %v7469
    %v7534 = vpack.c.b16 %v7470, %v7470
    %v7535 = vpack.c.b16 %v7471, %v7471
    %v7536 = vpack.c.b16 %v7472, %v7472
    %v7537 = vpack.c.b16 %v7473, %v7473
    %v7538 = vpack.c.b16 %v7474, %v7474
    %v7539 = vpack.c.b16 %v7475, %v7475
    %v7540 = vpack.c.b16 %v7476, %v7476
    %v7541 = vpack.c.b16 %v7477, %v7477
    %v7542 = vpack.c.b16 %v7478, %v7478
    %v7543 = vpack.c.b16 %v7479, %v7479
    %v7544 = vpack.c.b16 %v7480, %v7480
    %v7545 = vpack.c.b16 %v7481, %v7481
    %v7546 = vpack.c.b16 %v7482, %v7482
    %v7547 = vpack.c.b16 %v7483, %v7483
    %v7548 = vpack.c.b16 %v7484, %v7484
    %v7549 = vpack.c.b16 %v7485, %v7485
    %v7550 = vpack.c.b16 %v7486, %v7486
    %v7551 = vpack.c.b16 %v7487, %v7487
    %v7552 = vpack.c.b16 %v7488, %v7488
    %v7553 = vpack.c.b16 %v7489, %v7489
    %v7554 = vpack.c.b16 %v7490, %v7490
    %v7555 = vpack.c.b16 %v7491, %v7491
    %7620 = vst [vmem:[#allocation3] sm:$0xf] %v7492
    %7621 = vst [vmem:[#allocation3 + $0x4] sm:$0xf] %v7493
    %7622 = vst [vmem:[#allocation3 + $0x8] sm:$0xf] %v7494
    %7623 = vst [vmem:[#allocation3 + $0xc] sm:$0xf] %v7495
    %7624 = vst [vmem:[#allocation3 + $0x10] sm:$0xf] %v7496
    %7625 = vst [vmem:[#allocation3 + $0x14] sm:$0xf] %v7497
    %7626 = vst [vmem:[#allocation3 + $0x18] sm:$0xf] %v7498
    %7627 = vst [vmem:[#allocation3 + $0x1c] sm:$0xf] %v7499
    %7628 = vst [vmem:[#allocation3 + $0x20] sm:$0xf] %v7500
    %7629 = vst [vmem:[#allocation3 + $0x24] sm:$0xf] %v7501
    %7630 = vst [vmem:[#allocation3 + $0x28] sm:$0xf] %v7502
    %7631 = vst [vmem:[#allocation3 + $0x2c] sm:$0xf] %v7503
    %7632 = vst [vmem:[#allocation3 + $0x30] sm:$0xf] %v7504
    %7633 = vst [vmem:[#allocation3 + $0x34] sm:$0xf] %v7505
    %7634 = vst [vmem:[#allocation3 + $0x38] sm:$0xf] %v7506
    %7635 = vst [vmem:[#allocation3 + $0x3c] sm:$0xf] %v7507
    %7636 = vst [vmem:[#allocation3 + $0x40] sm:$0xf] %v7508
    %7637 = vst [vmem:[#allocation3 + $0x44] sm:$0xf] %v7509
    %7638 = vst [vmem:[#allocation3 + $0x48] sm:$0xf] %v7510
    %7639 = vst [vmem:[#allocation3 + $0x4c] sm:$0xf] %v7511
    %7640 = vst [vmem:[#allocation3 + $0x50] sm:$0xf] %v7512
    %7641 = vst [vmem:[#allocation3 + $0x54] sm:$0xf] %v7513
    %7642 = vst [vmem:[#allocation3 + $0x58] sm:$0xf] %v7514
    %7643 = vst [vmem:[#allocation3 + $0x5c] sm:$0xf] %v7515
    %7644 = vst [vmem:[#allocation3 + $0x60] sm:$0xf] %v7516
    %7645 = vst [vmem:[#allocation3 + $0x64] sm:$0xf] %v7517
    %7646 = vst [vmem:[#allocation3 + $0x68] sm:$0xf] %v7518
    %7647 = vst [vmem:[#allocation3 + $0x6c] sm:$0xf] %v7519
    %7648 = vst [vmem:[#allocation3 + $0x70] sm:$0xf] %v7520
    %7649 = vst [vmem:[#allocation3 + $0x74] sm:$0xf] %v7521
    %7650 = vst [vmem:[#allocation3 + $0x78] sm:$0xf] %v7522
    %7651 = vst [vmem:[#allocation3 + $0x7c] sm:$0xf] %v7523
    %7652 = vst [vmem:[#allocation3 + $0x80] sm:$0xf] %v7524
    %7653 = vst [vmem:[#allocation3 + $0x84] sm:$0xf] %v7525
    %7654 = vst [vmem:[#allocation3 + $0x88] sm:$0xf] %v7526
    %7655 = vst [vmem:[#allocation3 + $0x8c] sm:$0xf] %v7527
    %7656 = vst [vmem:[#allocation3 + $0x90] sm:$0xf] %v7528
    %7657 = vst [vmem:[#allocation3 + $0x94] sm:$0xf] %v7529
    %7658 = vst [vmem:[#allocation3 + $0x98] sm:$0xf] %v7530
    %7659 = vst [vmem:[#allocation3 + $0x9c] sm:$0xf] %v7531
    %7660 = vst [vmem:[#allocation3 + $0xa0] sm:$0xf] %v7532
    %7661 = vst [vmem:[#allocation3 + $0xa4] sm:$0xf] %v7533
    %7662 = vst [vmem:[#allocation3 + $0xa8] sm:$0xf] %v7534
    %7663 = vst [vmem:[#allocation3 + $0xac] sm:$0xf] %v7535
    %7664 = vst [vmem:[#allocation3 + $0xb0] sm:$0xf] %v7536
    %7665 = vst [vmem:[#allocation3 + $0xb4] sm:$0xf] %v7537
    %7666 = vst [vmem:[#allocation3 + $0xb8] sm:$0xf] %v7538
    %7667 = vst [vmem:[#allocation3 + $0xbc] sm:$0xf] %v7539
    %7668 = vst [vmem:[#allocation3 + $0xc0] sm:$0xf] %v7540
    %7669 = vst [vmem:[#allocation3 + $0xc4] sm:$0xf] %v7541
    %7670 = vst [vmem:[#allocation3 + $0xc8] sm:$0xf] %v7542
    %7671 = vst [vmem:[#allocation3 + $0xcc] sm:$0xf] %v7543
    %7672 = vst [vmem:[#allocation3 + $0xd0] sm:$0xf] %v7544
    %7673 = vst [vmem:[#allocation3 + $0xd4] sm:$0xf] %v7545
    %7674 = vst [vmem:[#allocation3 + $0xd8] sm:$0xf] %v7546
    %7675 = vst [vmem:[#allocation3 + $0xdc] sm:$0xf] %v7547
    %7676 = vst [vmem:[#allocation3 + $0xe0] sm:$0xf] %v7548
    %7677 = vst [vmem:[#allocation3 + $0xe4] sm:$0xf] %v7549
    %7678 = vst [vmem:[#allocation3 + $0xe8] sm:$0xf] %v7550
    %7679 = vst [vmem:[#allocation3 + $0xec] sm:$0xf] %v7551
    %7680 = vst [vmem:[#allocation3 + $0xf0] sm:$0xf] %v7552
    %7681 = vst [vmem:[#allocation3 + $0xf4] sm:$0xf] %v7553
    %7682 = vst [vmem:[#allocation3 + $0xf8] sm:$0xf] %v7554
    %7683 = vst [vmem:[#allocation3 + $0xfc] sm:$0xf] %v7555
    // Predicated region
    $region14: #{tpu_custom_call.1} parent=1 // pred_check
      _
    $region15: #{tpu_custom_call.1} parent=1 // pred_check_branch
      %7685 = sbr.rel (0) target = $region17
    $region16: #{tpu_custom_call.1} parent=1 // pred_region
      %s7687 = ssub.s32 4096, 4096
      %7688 = vsyncadd [#allocation4], %s7687
      %s7689 = sshll.u32 [#allocation3], 4
      %s7690 = int_to_ptr.vmem [resolvable:$true] %s7689
      %7695 = dma.vmem_to_hbm [thread:$0]  %s7690, 4096, %s3, [#allocation4], 64, 64, 4
    $region17: #{tpu_custom_call.1} parent=1 // pred_fallthru
      _
    // Predicated region
    $region18: #{tpu_custom_call.1} parent=1 // pred_check
      _
    $region19: #{tpu_custom_call.1} parent=1 // pred_check_branch
      %7697 = sbr.rel (0) target = $region21
    $region20: #{tpu_custom_call.1} parent=1 // pred_region
      %7698 = dma.done [#allocation4], 4096
    $region21: #{tpu_custom_call.1} parent=1 // pred_fallthru
      _
    %7699 = vsyncpa [#allocation4], 1

</llo_original>
